<compile_context>
chip_gen: v7x
topology: tpu7x:2x2x1
jax: 0.10.0
libtpu: 0.0.40
codegen_flags: <defaults>
</compile_context>

<pallas_src>
import functools

import jax
import jax.numpy as jnp
from jax import lax
from jax.experimental import pallas as pl
from jax.experimental.pallas import tpu as pltpu

EPS = 1e-6
_INV_SQRT2 = 0.7071067811865476
_SQRT_2_OVER_PI = 0.7978845608028654


def _gelu_exact(x):
    # PyTorch nn.GELU() default: exact erf-based GELU (erf -> VALU polynomial).
    return 0.5 * x * (1.0 + lax.erf(x * _INV_SQRT2))


def _gelu_tanh(x):
    # tanh approximation: tanh lowers to the EUP slot (nearly free in the bundle).
    return 0.5 * x * (1.0 + jnp.tanh(_SQRT_2_OVER_PI * (x + 0.044715 * (x * x * x))))


def convnext_block_kernel(xp_ref, dww_ref, dwb_ref, lnw_ref, lnb_ref,
                          w1_ref, b1_ref, w2_ref, b2_ref, gamma_ref, out_ref,
                          *, conv_dtype, tanh_gelu):
    # xp_ref   : (1, H+6, W+6, C) zero-padded NHWC image for batch b (VMEM resident)
    # dww_ref  : (7, 7, C)        depthwise conv weight
    # dwb/lnw/lnb : (1, C)        depthwise bias / LayerNorm affine
    # w1_ref   : (C, 4C) bf16     pwconv1 weight, pre-transposed for pixel-major matmul
    # b1_ref   : (1, 4C)
    # w2_ref   : (4C, C) bf16     pwconv2 weight, pre-transposed
    # b2_ref   : (1, C)
    # gamma_ref: (1, C)           layer scale
    # out_ref  : (1, C, M)        lane-dense NCHW-flattened output strip, M = TH * W
    _, Hp, Wp, C = xp_ref.shape
    W = Wp - 6
    M = out_ref.shape[2]
    TH = M // W                                    # rows per strip

    h0 = pl.multiple_of(pl.program_id(1) * TH, TH)  # strip start (padded coords)

    # Halo window for this strip (read once; also provides the residual).
    win = xp_ref[0, pl.ds(h0, TH + 6)]             # (TH+6, Wp, C) f32
    # Residual = interior of the window (exact f32 copy of x, no second HBM read).
    res = win[3:3 + TH, 3:3 + W, :].reshape(M, C)  # (M, C)

    # --- depthwise 7x7 conv ---------------------------------------------------
    # Row taps (i) are free leading-dim slices; column taps (j) are 7 shifted views.
    # Tap math in `conv_dtype` (bf16 on v6e/v7x halves VALU bundle count); per-column
    # partial sums are upcast to f32 before bias / LayerNorm.
    win_c = win.astype(conv_dtype)
    dww_c = dww_ref[...].astype(conv_dtype)        # (7, 7, C)
    acc = jnp.zeros((TH, W, C), dtype=jnp.float32)
    for j in range(7):
        xj = win_c[:, j:j + W, :]                  # (TH+6, W, C)
        col = xj[0:TH] * dww_c[0, j]
        for i in range(1, 7):
            col = col + xj[i:i + TH] * dww_c[i, j]
        acc = acc + col.astype(jnp.float32)
    acc = acc + dwb_ref[0]

    # --- LayerNorm over channels (channels_last, biased variance, f32) --------
    u = jnp.mean(acc, axis=-1, keepdims=True)
    d = acc - u
    s = jnp.mean(d * d, axis=-1, keepdims=True)
    h = d * lax.rsqrt(s + EPS)
    h = h * lnw_ref[0] + lnb_ref[0]                # (TH, W, C), f32

    # --- pointwise MLP on the MXU, pixel-major (standard contractions) --------
    h2 = h.reshape(M, C).astype(jnp.bfloat16)
    y = jnp.dot(h2, w1_ref[...], preferred_element_type=jnp.float32)   # (M, 4C)
    y = y + b1_ref[...]
    y = _gelu_tanh(y) if tanh_gelu else _gelu_exact(y)                 # f32
    y = jnp.dot(y.astype(jnp.bfloat16), w2_ref[...],
                preferred_element_type=jnp.float32)                     # (M, C)
    y = y + b2_ref[...]

    # --- layer scale + residual, then one transpose for the lane-dense store --
    out = res + gamma_ref[...] * y                 # (M, C) f32
    out_ref[0] = out.T.astype(out_ref.dtype)       # (C, M), unmasked vst when M%128==0


def _device_kind():
    try:
        return jax.devices()[0].device_kind.lower()
    except Exception:
        return ""


def _pick_block_h(H, W, C, budget_bytes=24 * 1024 * 1024):
    """Largest row-strip TH dividing H whose per-strip activations fit the budget and
    whose TH*W is a multiple of 256 (preferred) or 128 (lane-dense stores, MXU width).
    Falls back to the whole image (block dims == array dims, possibly masked stores)."""
    def strip_bytes(th):
        m = th * W
        return 4 * ((th + 6) * (W + 6) * C          # f32 halo window
                    + 3 * th * W * C                # conv acc / col / LN
                    + 2 * m * 4 * C                 # (M, 4C) intermediate
                    + 3 * m * C)                    # h2 / y2 / out (+transpose)
    cands = [th for th in (64, 32, 16, 8, 4, 2, 1)
             if H % th == 0 and strip_bytes(th) <= budget_bytes]
    for mult in (256, 128):
        for th in cands:
            if (th * W) % mult == 0:
                return th
    return H  # TODO(synk): non-128-multiple H*W stages (14x14 / 7x7) keep masked stores.


def _vmem_limit_bytes(Hp, Wp, C, TH, W, kind):
    """Scoped-VMEM limit from the actual per-step footprint (+2x margin, per-gen cap)."""
    M, C4 = TH * W, 4 * C
    img = Hp * Wp * C * 4                 # padded image block (double-buffered)
    out_blk = C * M * 4                   # output strip (double-buffered)
    wts = 2 * (C * C4 * 2)                # w1t + w2t, bf16, single-buffered
    vecs = 4 * (49 * C + 12 * C)          # dww + small per-channel vectors
    inter = 4 * (2 * (TH + 6) * Wp * C    # f32 window + compute-dtype copy (worst case)
                 + 3 * TH * W * C
                 + 2 * M * C4
                 + 3 * M * C)
    need = 2 * img + 2 * out_blk + wts + vecs + inter
    cap = (56 if "v7" in kind else 96) * 1024 * 1024
    return int(min(max(2 * need, 16 * 1024 * 1024), cap))


def convnext_block(x_nchw, params, *, tanh_gelu=True):
    """x_nchw: (B, C, H, W) float32; params in PyTorch layouts. Returns (B, C, H, W)."""
    dw_w, dw_b, ln_w, ln_b, w1, b1, w2, b2, gamma = params
    B, C, H, W = x_nchw.shape
    C4 = 4 * C
    kind = _device_kind()
    # bf16 VPU exists on v6e/v7x; keep f32 tap math on v5e / unknown chips.
    conv_dtype = jnp.bfloat16 if ("v6" in kind or "v7" in kind) else jnp.float32

    TH = _pick_block_h(H, W, C)
    n_h = H // TH
    M = TH * W
    Hp, Wp = H + 6, W + 6

    # Depthwise-conv input: NHWC, zero padded by 3 on each spatial side.  This is the
    # ONLY image-sized input; the residual is re-sliced from it inside the kernel.
    xp = jnp.pad(jnp.transpose(x_nchw, (0, 2, 3, 1)),
                 ((0, 0), (3, 3), (3, 3), (0, 0)))

    # Weight re-layouts (one-time, weight-sized -> negligible).
    dww = jnp.transpose(dw_w.reshape(C, 7, 7), (1, 2, 0))      # (7, 7, C)
    dwb = dw_b.reshape(1, C)
    lnw = ln_w.reshape(1, C)
    lnb = ln_b.reshape(1, C)
    w1t = jnp.transpose(w1).astype(jnp.bfloat16)               # (C, 4C)
    w2t = jnp.transpose(w2).astype(jnp.bfloat16)               # (4C, C)
    b1r = b1.reshape(1, C4)
    b2r = b2.reshape(1, C)
    gr = gamma.reshape(1, C)

    kernel = functools.partial(convnext_block_kernel,
                               conv_dtype=conv_dtype, tanh_gelu=tanh_gelu)

    flops = 2 * B * H * W * C * (49 + 8 * C)       # dwconv + two pointwise matmuls
    transcendentals = B * H * W * C4               # one tanh/erf per hidden element
    bytes_accessed = (4 * (xp.size + B * C * H * W)
                      + 2 * (w1.size + w2.size)
                      + 4 * (dww.size + dw_b.size + ln_w.size + ln_b.size
                             + b1.size + b2.size + gamma.size))

    const = lambda b, h: (0, 0)
    out = pl.pallas_call(
        kernel,
        out_shape=jax.ShapeDtypeStruct((B, C, H * W), x_nchw.dtype),
        grid=(B, n_h),
        in_specs=[
            # Whole padded image, resident across the (independent) row-strip axis.
            # TODO(synk): for very large images switch to per-strip halo DMA (pl.ANY +
            # make_async_copy) to cut VMEM residency on v7x.
            pl.BlockSpec((1, Hp, Wp, C), lambda b, h: (b, 0, 0, 0)),
            pl.BlockSpec((7, 7, C), lambda b, h: (0, 0, 0)),
            pl.BlockSpec((1, C), const),
            pl.BlockSpec((1, C), const),
            pl.BlockSpec((1, C), const),
            # Constant-index weights: fetched once, single-buffered.
            pl.BlockSpec((C, C4), const, pipeline_mode=pl.Buffered(1)),
            pl.BlockSpec((1, C4), const),
            pl.BlockSpec((C4, C), const, pipeline_mode=pl.Buffered(1)),
            pl.BlockSpec((1, C), const),
            pl.BlockSpec((1, C), const),
        ],
        out_specs=pl.BlockSpec((1, C, M), lambda b, h: (b, 0, h)),
        compiler_params=pltpu.CompilerParams(
            dimension_semantics=("parallel", "parallel"),
            vmem_limit_bytes=_vmem_limit_bytes(Hp, Wp, C, TH, W, kind)),
        cost_estimate=pl.CostEstimate(
            flops=flops, transcendentals=transcendentals,
            bytes_accessed=bytes_accessed),
    )(xp, dww, dwb, lnw, lnb, w1t, b1r, w2t, b2r, gr)

    return out.reshape(B, C, H, W)


def make_params(key, dim, layer_scale_init_value=1e-6):
    """Synthetic parameters in PyTorch layouts (matching ConvNeXtBlock.__init__)."""
    k = jax.random.split(key, 6)
    dw_w = jax.random.normal(k[0], (dim, 1, 7, 7), jnp.float32) * 0.02   # Conv2d groups=dim
    dw_b = jax.random.normal(k[1], (dim,), jnp.float32) * 0.02
    ln_w = jnp.ones((dim,), jnp.float32)
    ln_b = jnp.zeros((dim,), jnp.float32)
    w1 = jax.random.normal(k[2], (4 * dim, dim), jnp.float32) * 0.02     # Linear(dim, 4dim)
    b1 = jax.random.normal(k[3], (4 * dim,), jnp.float32) * 0.02
    w2 = jax.random.normal(k[4], (dim, 4 * dim), jnp.float32) * 0.02     # Linear(4dim, dim)
    b2 = jax.random.normal(k[5], (dim,), jnp.float32) * 0.02
    gamma = layer_scale_init_value * jnp.ones((dim,), jnp.float32)
    return (dw_w, dw_b, ln_w, ln_b, w1, b1, w2, b2, gamma)


def convnext_block_reference(x_nchw, params):
    """Pure-JAX f32 reference (independent path: lax.conv + exact-erf GELU)."""
    dw_w, dw_b, ln_w, ln_b, w1, b1, w2, b2, gamma = params
    B, C, H, W = x_nchw.shape
    x = jnp.transpose(x_nchw, (0, 2, 3, 1))                              # NHWC
    w_hwio = jnp.transpose(dw_w.reshape(C, 7, 7), (1, 2, 0)).reshape(7, 7, 1, C)
    h = lax.conv_general_dilated(
        x, w_hwio, window_strides=(1, 1), padding=((3, 3), (3, 3)),
        dimension_numbers=("NHWC", "HWIO", "NHWC"), feature_group_count=C)
    h = h + dw_b
    u = jnp.mean(h, axis=-1, keepdims=True)
    s = jnp.mean((h - u) ** 2, axis=-1, keepdims=True)
    h = (h - u) / jnp.sqrt(s + EPS) * ln_w + ln_b
    y = h @ w1.T + b1
    y = jax.nn.gelu(y, approximate=False)
    y = y @ w2.T + b2
    y = gamma * y
    return jnp.transpose(x + y, (0, 3, 1, 2))


if __name__ == "__main__":
    # TODO(synk): DropPath (drop_path=0.0) is an identity at inference; training-time
    # stochastic depth is not implemented in the kernel.
    B, C, H, W = 2, 32, 16, 16
    key = jax.random.PRNGKey(0)
    kx, kp = jax.random.split(key)
    x = jax.random.normal(kx, (B, C, H, W), jnp.float32)
    # Non-tiny layer scale so the MLP branch actually contributes to the check
    # (module default 1e-6 would vanish against the residual).
    params = make_params(kp, C, layer_scale_init_value=0.5)

    out = jax.block_until_ready(jax.jit(convnext_block)(x, params))
    ref = convnext_block_reference(x, params)

    assert out.shape == (B, C, H, W)
    max_err = float(jnp.max(jnp.abs(out - ref)))
    # bf16 MXU operands (+ bf16 conv taps on v6e/v7x, tanh GELU) -> loosened tolerance
    # vs the pure-f32 exact-erf reference.
    assert jnp.allclose(out, ref, rtol=2e-3, atol=2e-3), max_err

    print("KERNEL_OK")
</pallas_src>

<mosaic_0001>
module attributes {stable_mosaic.version = 11 : i64} {
  func.func @convnext_block_kernel(%arg0: i32, %arg1: i32, %arg2: memref<1x22x22x32xf32, #tpu.memory_space<vmem>>, %arg3: memref<7x7x32xf32, #tpu.memory_space<vmem>>, %arg4: memref<1x32xf32, #tpu.memory_space<vmem>>, %arg5: memref<1x32xf32, #tpu.memory_space<vmem>>, %arg6: memref<1x32xf32, #tpu.memory_space<vmem>>, %arg7: memref<32x128xbf16, #tpu.memory_space<vmem>>, %arg8: memref<1x128xf32, #tpu.memory_space<vmem>>, %arg9: memref<128x32xbf16, #tpu.memory_space<vmem>>, %arg10: memref<1x32xf32, #tpu.memory_space<vmem>>, %arg11: memref<1x32xf32, #tpu.memory_space<vmem>>, %arg12: memref<1x32x256xf32, #tpu.memory_space<vmem>>) attributes {dimension_semantics = [#tpu.dimension_semantics<parallel>, #tpu.dimension_semantics<parallel>], iteration_bounds = array<i64: 2, 1>, scalar_prefetch = 0 : i64, scratch_operands = 0 : i64, tpu.core_type = #tpu.core_type<tc>, window_params = [{transform_indices = @transform_0, window_bounds = array<i64: 1, 22, 22, 32>}, {pipeline_mode = #tpu.pipeline_mode<synchronous>, transform_indices = @transform_1, window_bounds = array<i64: 7, 7, 32>}, {pipeline_mode = #tpu.pipeline_mode<synchronous>, transform_indices = @transform_2, window_bounds = array<i64: 1, 32>}, {pipeline_mode = #tpu.pipeline_mode<synchronous>, transform_indices = @transform_3, window_bounds = array<i64: 1, 32>}, {pipeline_mode = #tpu.pipeline_mode<synchronous>, transform_indices = @transform_4, window_bounds = array<i64: 1, 32>}, {pipeline_mode = #tpu.pipeline_mode<synchronous>, transform_indices = @transform_5, window_bounds = array<i64: 32, 128>}, {pipeline_mode = #tpu.pipeline_mode<synchronous>, transform_indices = @transform_6, window_bounds = array<i64: 1, 128>}, {pipeline_mode = #tpu.pipeline_mode<synchronous>, transform_indices = @transform_7, window_bounds = array<i64: 128, 32>}, {pipeline_mode = #tpu.pipeline_mode<synchronous>, transform_indices = @transform_8, window_bounds = array<i64: 1, 32>}, {pipeline_mode = #tpu.pipeline_mode<synchronous>, transform_indices = @transform_9, window_bounds = array<i64: 1, 32>}, {transform_indices = @transform_10, window_bounds = array<i64: 1, 32, 256>}]} {
    %c16_i32 = arith.constant 16 : i32
    %0 = arith.muli %arg1, %c16_i32 : i32
    %1 = tpu.assume_multiple %0, 16 : i32
    %c0 = arith.constant 0 : index
    %2 = arith.index_cast %1 : i32 to index
    %c0_0 = arith.constant 0 : index
    %c0_1 = arith.constant 0 : index
    %3 = vector.load %arg2[%c0, %2, %c0_0, %c0_1] : memref<1x22x22x32xf32, #tpu.memory_space<vmem>>, vector<1x22x22x32xf32>
    %4 = vector.shape_cast %3 : vector<1x22x22x32xf32> to vector<22x22x32xf32>
    %5 = vector.extract_strided_slice %4 {offsets = [3, 3, 0], sizes = [16, 16, 32], strides = [1, 1, 1]} : vector<22x22x32xf32> to vector<16x16x32xf32>
    %6 = vector.shape_cast %5 : vector<16x16x32xf32> to vector<256x32xf32>
    %c0_2 = arith.constant 0 : index
    %c0_3 = arith.constant 0 : index
    %c0_4 = arith.constant 0 : index
    %7 = vector.load %arg3[%c0_2, %c0_3, %c0_4] : memref<7x7x32xf32, #tpu.memory_space<vmem>>, vector<7x7x32xf32>
    %cst = arith.constant 0.000000e+00 : f32
    %8 = vector.broadcast %cst : f32 to vector<16x16x32xf32>
    %9 = vector.extract_strided_slice %4 {offsets = [0, 0, 0], sizes = [22, 16, 32], strides = [1, 1, 1]} : vector<22x22x32xf32> to vector<22x16x32xf32>
    %10 = vector.extract_strided_slice %9 {offsets = [0, 0, 0], sizes = [16, 16, 32], strides = [1, 1, 1]} : vector<22x16x32xf32> to vector<16x16x32xf32>
    %11 = vector.extract_strided_slice %7 {offsets = [0, 0, 0], sizes = [1, 1, 32], strides = [1, 1, 1]} : vector<7x7x32xf32> to vector<1x1x32xf32>
    %12 = vector.shape_cast %11 : vector<1x1x32xf32> to vector<32xf32>
    %13 = vector.shape_cast %12 : vector<32xf32> to vector<1x1x32xf32>
    %14 = vector.broadcast %13 : vector<1x1x32xf32> to vector<16x16x32xf32>
    %15 = arith.mulf %10, %14 : vector<16x16x32xf32>
    %16 = vector.extract_strided_slice %9 {offsets = [1, 0, 0], sizes = [16, 16, 32], strides = [1, 1, 1]} : vector<22x16x32xf32> to vector<16x16x32xf32>
    %17 = vector.extract_strided_slice %7 {offsets = [1, 0, 0], sizes = [1, 1, 32], strides = [1, 1, 1]} : vector<7x7x32xf32> to vector<1x1x32xf32>
    %18 = vector.shape_cast %17 : vector<1x1x32xf32> to vector<32xf32>
    %19 = vector.shape_cast %18 : vector<32xf32> to vector<1x1x32xf32>
    %20 = vector.broadcast %19 : vector<1x1x32xf32> to vector<16x16x32xf32>
    %21 = arith.mulf %16, %20 : vector<16x16x32xf32>
    %22 = arith.addf %15, %21 : vector<16x16x32xf32>
    %23 = vector.extract_strided_slice %9 {offsets = [2, 0, 0], sizes = [16, 16, 32], strides = [1, 1, 1]} : vector<22x16x32xf32> to vector<16x16x32xf32>
    %24 = vector.extract_strided_slice %7 {offsets = [2, 0, 0], sizes = [1, 1, 32], strides = [1, 1, 1]} : vector<7x7x32xf32> to vector<1x1x32xf32>
    %25 = vector.shape_cast %24 : vector<1x1x32xf32> to vector<32xf32>
    %26 = vector.shape_cast %25 : vector<32xf32> to vector<1x1x32xf32>
    %27 = vector.broadcast %26 : vector<1x1x32xf32> to vector<16x16x32xf32>
    %28 = arith.mulf %23, %27 : vector<16x16x32xf32>
    %29 = arith.addf %22, %28 : vector<16x16x32xf32>
    %30 = vector.extract_strided_slice %9 {offsets = [3, 0, 0], sizes = [16, 16, 32], strides = [1, 1, 1]} : vector<22x16x32xf32> to vector<16x16x32xf32>
    %31 = vector.extract_strided_slice %7 {offsets = [3, 0, 0], sizes = [1, 1, 32], strides = [1, 1, 1]} : vector<7x7x32xf32> to vector<1x1x32xf32>
    %32 = vector.shape_cast %31 : vector<1x1x32xf32> to vector<32xf32>
    %33 = vector.shape_cast %32 : vector<32xf32> to vector<1x1x32xf32>
    %34 = vector.broadcast %33 : vector<1x1x32xf32> to vector<16x16x32xf32>
    %35 = arith.mulf %30, %34 : vector<16x16x32xf32>
    %36 = arith.addf %29, %35 : vector<16x16x32xf32>
    %37 = vector.extract_strided_slice %9 {offsets = [4, 0, 0], sizes = [16, 16, 32], strides = [1, 1, 1]} : vector<22x16x32xf32> to vector<16x16x32xf32>
    %38 = vector.extract_strided_slice %7 {offsets = [4, 0, 0], sizes = [1, 1, 32], strides = [1, 1, 1]} : vector<7x7x32xf32> to vector<1x1x32xf32>
    %39 = vector.shape_cast %38 : vector<1x1x32xf32> to vector<32xf32>
    %40 = vector.shape_cast %39 : vector<32xf32> to vector<1x1x32xf32>
    %41 = vector.broadcast %40 : vector<1x1x32xf32> to vector<16x16x32xf32>
    %42 = arith.mulf %37, %41 : vector<16x16x32xf32>
    %43 = arith.addf %36, %42 : vector<16x16x32xf32>
    %44 = vector.extract_strided_slice %9 {offsets = [5, 0, 0], sizes = [16, 16, 32], strides = [1, 1, 1]} : vector<22x16x32xf32> to vector<16x16x32xf32>
    %45 = vector.extract_strided_slice %7 {offsets = [5, 0, 0], sizes = [1, 1, 32], strides = [1, 1, 1]} : vector<7x7x32xf32> to vector<1x1x32xf32>
    %46 = vector.shape_cast %45 : vector<1x1x32xf32> to vector<32xf32>
    %47 = vector.shape_cast %46 : vector<32xf32> to vector<1x1x32xf32>
    %48 = vector.broadcast %47 : vector<1x1x32xf32> to vector<16x16x32xf32>
    %49 = arith.mulf %44, %48 : vector<16x16x32xf32>
    %50 = arith.addf %43, %49 : vector<16x16x32xf32>
    %51 = vector.extract_strided_slice %9 {offsets = [6, 0, 0], sizes = [16, 16, 32], strides = [1, 1, 1]} : vector<22x16x32xf32> to vector<16x16x32xf32>
    %52 = vector.extract_strided_slice %7 {offsets = [6, 0, 0], sizes = [1, 1, 32], strides = [1, 1, 1]} : vector<7x7x32xf32> to vector<1x1x32xf32>
    %53 = vector.shape_cast %52 : vector<1x1x32xf32> to vector<32xf32>
    %54 = vector.shape_cast %53 : vector<32xf32> to vector<1x1x32xf32>
    %55 = vector.broadcast %54 : vector<1x1x32xf32> to vector<16x16x32xf32>
    %56 = arith.mulf %51, %55 : vector<16x16x32xf32>
    %57 = arith.addf %50, %56 : vector<16x16x32xf32>
    %58 = arith.addf %8, %57 : vector<16x16x32xf32>
    %59 = vector.extract_strided_slice %4 {offsets = [0, 1, 0], sizes = [22, 16, 32], strides = [1, 1, 1]} : vector<22x22x32xf32> to vector<22x16x32xf32>
    %60 = vector.extract_strided_slice %59 {offsets = [0, 0, 0], sizes = [16, 16, 32], strides = [1, 1, 1]} : vector<22x16x32xf32> to vector<16x16x32xf32>
    %61 = vector.extract_strided_slice %7 {offsets = [0, 1, 0], sizes = [1, 1, 32], strides = [1, 1, 1]} : vector<7x7x32xf32> to vector<1x1x32xf32>
    %62 = vector.shape_cast %61 : vector<1x1x32xf32> to vector<32xf32>
    %63 = vector.shape_cast %62 : vector<32xf32> to vector<1x1x32xf32>
    %64 = vector.broadcast %63 : vector<1x1x32xf32> to vector<16x16x32xf32>
    %65 = arith.mulf %60, %64 : vector<16x16x32xf32>
    %66 = vector.extract_strided_slice %59 {offsets = [1, 0, 0], sizes = [16, 16, 32], strides = [1, 1, 1]} : vector<22x16x32xf32> to vector<16x16x32xf32>
    %67 = vector.extract_strided_slice %7 {offsets = [1, 1, 0], sizes = [1, 1, 32], strides = [1, 1, 1]} : vector<7x7x32xf32> to vector<1x1x32xf32>
    %68 = vector.shape_cast %67 : vector<1x1x32xf32> to vector<32xf32>
    %69 = vector.shape_cast %68 : vector<32xf32> to vector<1x1x32xf32>
    %70 = vector.broadcast %69 : vector<1x1x32xf32> to vector<16x16x32xf32>
    %71 = arith.mulf %66, %70 : vector<16x16x32xf32>
    %72 = arith.addf %65, %71 : vector<16x16x32xf32>
    %73 = vector.extract_strided_slice %59 {offsets = [2, 0, 0], sizes = [16, 16, 32], strides = [1, 1, 1]} : vector<22x16x32xf32> to vector<16x16x32xf32>
    %74 = vector.extract_strided_slice %7 {offsets = [2, 1, 0], sizes = [1, 1, 32], strides = [1, 1, 1]} : vector<7x7x32xf32> to vector<1x1x32xf32>
    %75 = vector.shape_cast %74 : vector<1x1x32xf32> to vector<32xf32>
    %76 = vector.shape_cast %75 : vector<32xf32> to vector<1x1x32xf32>
    %77 = vector.broadcast %76 : vector<1x1x32xf32> to vector<16x16x32xf32>
    %78 = arith.mulf %73, %77 : vector<16x16x32xf32>
    %79 = arith.addf %72, %78 : vector<16x16x32xf32>
    %80 = vector.extract_strided_slice %59 {offsets = [3, 0, 0], sizes = [16, 16, 32], strides = [1, 1, 1]} : vector<22x16x32xf32> to vector<16x16x32xf32>
    %81 = vector.extract_strided_slice %7 {offsets = [3, 1, 0], sizes = [1, 1, 32], strides = [1, 1, 1]} : vector<7x7x32xf32> to vector<1x1x32xf32>
    %82 = vector.shape_cast %81 : vector<1x1x32xf32> to vector<32xf32>
    %83 = vector.shape_cast %82 : vector<32xf32> to vector<1x1x32xf32>
    %84 = vector.broadcast %83 : vector<1x1x32xf32> to vector<16x16x32xf32>
    %85 = arith.mulf %80, %84 : vector<16x16x32xf32>
    %86 = arith.addf %79, %85 : vector<16x16x32xf32>
    %87 = vector.extract_strided_slice %59 {offsets = [4, 0, 0], sizes = [16, 16, 32], strides = [1, 1, 1]} : vector<22x16x32xf32> to vector<16x16x32xf32>
    %88 = vector.extract_strided_slice %7 {offsets = [4, 1, 0], sizes = [1, 1, 32], strides = [1, 1, 1]} : vector<7x7x32xf32> to vector<1x1x32xf32>
    %89 = vector.shape_cast %88 : vector<1x1x32xf32> to vector<32xf32>
    %90 = vector.shape_cast %89 : vector<32xf32> to vector<1x1x32xf32>
    %91 = vector.broadcast %90 : vector<1x1x32xf32> to vector<16x16x32xf32>
    %92 = arith.mulf %87, %91 : vector<16x16x32xf32>
    %93 = arith.addf %86, %92 : vector<16x16x32xf32>
    %94 = vector.extract_strided_slice %59 {offsets = [5, 0, 0], sizes = [16, 16, 32], strides = [1, 1, 1]} : vector<22x16x32xf32> to vector<16x16x32xf32>
    %95 = vector.extract_strided_slice %7 {offsets = [5, 1, 0], sizes = [1, 1, 32], strides = [1, 1, 1]} : vector<7x7x32xf32> to vector<1x1x32xf32>
    %96 = vector.shape_cast %95 : vector<1x1x32xf32> to vector<32xf32>
    %97 = vector.shape_cast %96 : vector<32xf32> to vector<1x1x32xf32>
    %98 = vector.broadcast %97 : vector<1x1x32xf32> to vector<16x16x32xf32>
    %99 = arith.mulf %94, %98 : vector<16x16x32xf32>
    %100 = arith.addf %93, %99 : vector<16x16x32xf32>
    %101 = vector.extract_strided_slice %59 {offsets = [6, 0, 0], sizes = [16, 16, 32], strides = [1, 1, 1]} : vector<22x16x32xf32> to vector<16x16x32xf32>
    %102 = vector.extract_strided_slice %7 {offsets = [6, 1, 0], sizes = [1, 1, 32], strides = [1, 1, 1]} : vector<7x7x32xf32> to vector<1x1x32xf32>
    %103 = vector.shape_cast %102 : vector<1x1x32xf32> to vector<32xf32>
    %104 = vector.shape_cast %103 : vector<32xf32> to vector<1x1x32xf32>
    %105 = vector.broadcast %104 : vector<1x1x32xf32> to vector<16x16x32xf32>
    %106 = arith.mulf %101, %105 : vector<16x16x32xf32>
    %107 = arith.addf %100, %106 : vector<16x16x32xf32>
    %108 = arith.addf %58, %107 : vector<16x16x32xf32>
    %109 = vector.extract_strided_slice %4 {offsets = [0, 2, 0], sizes = [22, 16, 32], strides = [1, 1, 1]} : vector<22x22x32xf32> to vector<22x16x32xf32>
    %110 = vector.extract_strided_slice %109 {offsets = [0, 0, 0], sizes = [16, 16, 32], strides = [1, 1, 1]} : vector<22x16x32xf32> to vector<16x16x32xf32>
    %111 = vector.extract_strided_slice %7 {offsets = [0, 2, 0], sizes = [1, 1, 32], strides = [1, 1, 1]} : vector<7x7x32xf32> to vector<1x1x32xf32>
    %112 = vector.shape_cast %111 : vector<1x1x32xf32> to vector<32xf32>
    %113 = vector.shape_cast %112 : vector<32xf32> to vector<1x1x32xf32>
    %114 = vector.broadcast %113 : vector<1x1x32xf32> to vector<16x16x32xf32>
    %115 = arith.mulf %110, %114 : vector<16x16x32xf32>
    %116 = vector.extract_strided_slice %109 {offsets = [1, 0, 0], sizes = [16, 16, 32], strides = [1, 1, 1]} : vector<22x16x32xf32> to vector<16x16x32xf32>
    %117 = vector.extract_strided_slice %7 {offsets = [1, 2, 0], sizes = [1, 1, 32], strides = [1, 1, 1]} : vector<7x7x32xf32> to vector<1x1x32xf32>
    %118 = vector.shape_cast %117 : vector<1x1x32xf32> to vector<32xf32>
    %119 = vector.shape_cast %118 : vector<32xf32> to vector<1x1x32xf32>
    %120 = vector.broadcast %119 : vector<1x1x32xf32> to vector<16x16x32xf32>
    %121 = arith.mulf %116, %120 : vector<16x16x32xf32>
    %122 = arith.addf %115, %121 : vector<16x16x32xf32>
    %123 = vector.extract_strided_slice %109 {offsets = [2, 0, 0], sizes = [16, 16, 32], strides = [1, 1, 1]} : vector<22x16x32xf32> to vector<16x16x32xf32>
    %124 = vector.extract_strided_slice %7 {offsets = [2, 2, 0], sizes = [1, 1, 32], strides = [1, 1, 1]} : vector<7x7x32xf32> to vector<1x1x32xf32>
    %125 = vector.shape_cast %124 : vector<1x1x32xf32> to vector<32xf32>
    %126 = vector.shape_cast %125 : vector<32xf32> to vector<1x1x32xf32>
    %127 = vector.broadcast %126 : vector<1x1x32xf32> to vector<16x16x32xf32>
    %128 = arith.mulf %123, %127 : vector<16x16x32xf32>
    %129 = arith.addf %122, %128 : vector<16x16x32xf32>
    %130 = vector.extract_strided_slice %109 {offsets = [3, 0, 0], sizes = [16, 16, 32], strides = [1, 1, 1]} : vector<22x16x32xf32> to vector<16x16x32xf32>
    %131 = vector.extract_strided_slice %7 {offsets = [3, 2, 0], sizes = [1, 1, 32], strides = [1, 1, 1]} : vector<7x7x32xf32> to vector<1x1x32xf32>
    %132 = vector.shape_cast %131 : vector<1x1x32xf32> to vector<32xf32>
    %133 = vector.shape_cast %132 : vector<32xf32> to vector<1x1x32xf32>
    %134 = vector.broadcast %133 : vector<1x1x32xf32> to vector<16x16x32xf32>
    %135 = arith.mulf %130, %134 : vector<16x16x32xf32>
    %136 = arith.addf %129, %135 : vector<16x16x32xf32>
    %137 = vector.extract_strided_slice %109 {offsets = [4, 0, 0], sizes = [16, 16, 32], strides = [1, 1, 1]} : vector<22x16x32xf32> to vector<16x16x32xf32>
    %138 = vector.extract_strided_slice %7 {offsets = [4, 2, 0], sizes = [1, 1, 32], strides = [1, 1, 1]} : vector<7x7x32xf32> to vector<1x1x32xf32>
    %139 = vector.shape_cast %138 : vector<1x1x32xf32> to vector<32xf32>
    %140 = vector.shape_cast %139 : vector<32xf32> to vector<1x1x32xf32>
    %141 = vector.broadcast %140 : vector<1x1x32xf32> to vector<16x16x32xf32>
    %142 = arith.mulf %137, %141 : vector<16x16x32xf32>
    %143 = arith.addf %136, %142 : vector<16x16x32xf32>
    %144 = vector.extract_strided_slice %109 {offsets = [5, 0, 0], sizes = [16, 16, 32], strides = [1, 1, 1]} : vector<22x16x32xf32> to vector<16x16x32xf32>
    %145 = vector.extract_strided_slice %7 {offsets = [5, 2, 0], sizes = [1, 1, 32], strides = [1, 1, 1]} : vector<7x7x32xf32> to vector<1x1x32xf32>
    %146 = vector.shape_cast %145 : vector<1x1x32xf32> to vector<32xf32>
    %147 = vector.shape_cast %146 : vector<32xf32> to vector<1x1x32xf32>
    %148 = vector.broadcast %147 : vector<1x1x32xf32> to vector<16x16x32xf32>
    %149 = arith.mulf %144, %148 : vector<16x16x32xf32>
    %150 = arith.addf %143, %149 : vector<16x16x32xf32>
    %151 = vector.extract_strided_slice %109 {offsets = [6, 0, 0], sizes = [16, 16, 32], strides = [1, 1, 1]} : vector<22x16x32xf32> to vector<16x16x32xf32>
    %152 = vector.extract_strided_slice %7 {offsets = [6, 2, 0], sizes = [1, 1, 32], strides = [1, 1, 1]} : vector<7x7x32xf32> to vector<1x1x32xf32>
    %153 = vector.shape_cast %152 : vector<1x1x32xf32> to vector<32xf32>
    %154 = vector.shape_cast %153 : vector<32xf32> to vector<1x1x32xf32>
    %155 = vector.broadcast %154 : vector<1x1x32xf32> to vector<16x16x32xf32>
    %156 = arith.mulf %151, %155 : vector<16x16x32xf32>
    %157 = arith.addf %150, %156 : vector<16x16x32xf32>
    %158 = arith.addf %108, %157 : vector<16x16x32xf32>
    %159 = vector.extract_strided_slice %4 {offsets = [0, 3, 0], sizes = [22, 16, 32], strides = [1, 1, 1]} : vector<22x22x32xf32> to vector<22x16x32xf32>
    %160 = vector.extract_strided_slice %159 {offsets = [0, 0, 0], sizes = [16, 16, 32], strides = [1, 1, 1]} : vector<22x16x32xf32> to vector<16x16x32xf32>
    %161 = vector.extract_strided_slice %7 {offsets = [0, 3, 0], sizes = [1, 1, 32], strides = [1, 1, 1]} : vector<7x7x32xf32> to vector<1x1x32xf32>
    %162 = vector.shape_cast %161 : vector<1x1x32xf32> to vector<32xf32>
    %163 = vector.shape_cast %162 : vector<32xf32> to vector<1x1x32xf32>
    %164 = vector.broadcast %163 : vector<1x1x32xf32> to vector<16x16x32xf32>
    %165 = arith.mulf %160, %164 : vector<16x16x32xf32>
    %166 = vector.extract_strided_slice %159 {offsets = [1, 0, 0], sizes = [16, 16, 32], strides = [1, 1, 1]} : vector<22x16x32xf32> to vector<16x16x32xf32>
    %167 = vector.extract_strided_slice %7 {offsets = [1, 3, 0], sizes = [1, 1, 32], strides = [1, 1, 1]} : vector<7x7x32xf32> to vector<1x1x32xf32>
    %168 = vector.shape_cast %167 : vector<1x1x32xf32> to vector<32xf32>
    %169 = vector.shape_cast %168 : vector<32xf32> to vector<1x1x32xf32>
    %170 = vector.broadcast %169 : vector<1x1x32xf32> to vector<16x16x32xf32>
    %171 = arith.mulf %166, %170 : vector<16x16x32xf32>
    %172 = arith.addf %165, %171 : vector<16x16x32xf32>
    %173 = vector.extract_strided_slice %159 {offsets = [2, 0, 0], sizes = [16, 16, 32], strides = [1, 1, 1]} : vector<22x16x32xf32> to vector<16x16x32xf32>
    %174 = vector.extract_strided_slice %7 {offsets = [2, 3, 0], sizes = [1, 1, 32], strides = [1, 1, 1]} : vector<7x7x32xf32> to vector<1x1x32xf32>
    %175 = vector.shape_cast %174 : vector<1x1x32xf32> to vector<32xf32>
    %176 = vector.shape_cast %175 : vector<32xf32> to vector<1x1x32xf32>
    %177 = vector.broadcast %176 : vector<1x1x32xf32> to vector<16x16x32xf32>
    %178 = arith.mulf %173, %177 : vector<16x16x32xf32>
    %179 = arith.addf %172, %178 : vector<16x16x32xf32>
    %180 = vector.extract_strided_slice %159 {offsets = [3, 0, 0], sizes = [16, 16, 32], strides = [1, 1, 1]} : vector<22x16x32xf32> to vector<16x16x32xf32>
    %181 = vector.extract_strided_slice %7 {offsets = [3, 3, 0], sizes = [1, 1, 32], strides = [1, 1, 1]} : vector<7x7x32xf32> to vector<1x1x32xf32>
    %182 = vector.shape_cast %181 : vector<1x1x32xf32> to vector<32xf32>
    %183 = vector.shape_cast %182 : vector<32xf32> to vector<1x1x32xf32>
    %184 = vector.broadcast %183 : vector<1x1x32xf32> to vector<16x16x32xf32>
    %185 = arith.mulf %180, %184 : vector<16x16x32xf32>
    %186 = arith.addf %179, %185 : vector<16x16x32xf32>
    %187 = vector.extract_strided_slice %159 {offsets = [4, 0, 0], sizes = [16, 16, 32], strides = [1, 1, 1]} : vector<22x16x32xf32> to vector<16x16x32xf32>
    %188 = vector.extract_strided_slice %7 {offsets = [4, 3, 0], sizes = [1, 1, 32], strides = [1, 1, 1]} : vector<7x7x32xf32> to vector<1x1x32xf32>
    %189 = vector.shape_cast %188 : vector<1x1x32xf32> to vector<32xf32>
    %190 = vector.shape_cast %189 : vector<32xf32> to vector<1x1x32xf32>
    %191 = vector.broadcast %190 : vector<1x1x32xf32> to vector<16x16x32xf32>
    %192 = arith.mulf %187, %191 : vector<16x16x32xf32>
    %193 = arith.addf %186, %192 : vector<16x16x32xf32>
    %194 = vector.extract_strided_slice %159 {offsets = [5, 0, 0], sizes = [16, 16, 32], strides = [1, 1, 1]} : vector<22x16x32xf32> to vector<16x16x32xf32>
    %195 = vector.extract_strided_slice %7 {offsets = [5, 3, 0], sizes = [1, 1, 32], strides = [1, 1, 1]} : vector<7x7x32xf32> to vector<1x1x32xf32>
    %196 = vector.shape_cast %195 : vector<1x1x32xf32> to vector<32xf32>
    %197 = vector.shape_cast %196 : vector<32xf32> to vector<1x1x32xf32>
    %198 = vector.broadcast %197 : vector<1x1x32xf32> to vector<16x16x32xf32>
    %199 = arith.mulf %194, %198 : vector<16x16x32xf32>
    %200 = arith.addf %193, %199 : vector<16x16x32xf32>
    %201 = vector.extract_strided_slice %159 {offsets = [6, 0, 0], sizes = [16, 16, 32], strides = [1, 1, 1]} : vector<22x16x32xf32> to vector<16x16x32xf32>
    %202 = vector.extract_strided_slice %7 {offsets = [6, 3, 0], sizes = [1, 1, 32], strides = [1, 1, 1]} : vector<7x7x32xf32> to vector<1x1x32xf32>
    %203 = vector.shape_cast %202 : vector<1x1x32xf32> to vector<32xf32>
    %204 = vector.shape_cast %203 : vector<32xf32> to vector<1x1x32xf32>
    %205 = vector.broadcast %204 : vector<1x1x32xf32> to vector<16x16x32xf32>
    %206 = arith.mulf %201, %205 : vector<16x16x32xf32>
    %207 = arith.addf %200, %206 : vector<16x16x32xf32>
    %208 = arith.addf %158, %207 : vector<16x16x32xf32>
    %209 = vector.extract_strided_slice %4 {offsets = [0, 4, 0], sizes = [22, 16, 32], strides = [1, 1, 1]} : vector<22x22x32xf32> to vector<22x16x32xf32>
    %210 = vector.extract_strided_slice %209 {offsets = [0, 0, 0], sizes = [16, 16, 32], strides = [1, 1, 1]} : vector<22x16x32xf32> to vector<16x16x32xf32>
    %211 = vector.extract_strided_slice %7 {offsets = [0, 4, 0], sizes = [1, 1, 32], strides = [1, 1, 1]} : vector<7x7x32xf32> to vector<1x1x32xf32>
    %212 = vector.shape_cast %211 : vector<1x1x32xf32> to vector<32xf32>
    %213 = vector.shape_cast %212 : vector<32xf32> to vector<1x1x32xf32>
    %214 = vector.broadcast %213 : vector<1x1x32xf32> to vector<16x16x32xf32>
    %215 = arith.mulf %210, %214 : vector<16x16x32xf32>
    %216 = vector.extract_strided_slice %209 {offsets = [1, 0, 0], sizes = [16, 16, 32], strides = [1, 1, 1]} : vector<22x16x32xf32> to vector<16x16x32xf32>
    %217 = vector.extract_strided_slice %7 {offsets = [1, 4, 0], sizes = [1, 1, 32], strides = [1, 1, 1]} : vector<7x7x32xf32> to vector<1x1x32xf32>
    %218 = vector.shape_cast %217 : vector<1x1x32xf32> to vector<32xf32>
    %219 = vector.shape_cast %218 : vector<32xf32> to vector<1x1x32xf32>
    %220 = vector.broadcast %219 : vector<1x1x32xf32> to vector<16x16x32xf32>
    %221 = arith.mulf %216, %220 : vector<16x16x32xf32>
    %222 = arith.addf %215, %221 : vector<16x16x32xf32>
    %223 = vector.extract_strided_slice %209 {offsets = [2, 0, 0], sizes = [16, 16, 32], strides = [1, 1, 1]} : vector<22x16x32xf32> to vector<16x16x32xf32>
    %224 = vector.extract_strided_slice %7 {offsets = [2, 4, 0], sizes = [1, 1, 32], strides = [1, 1, 1]} : vector<7x7x32xf32> to vector<1x1x32xf32>
    %225 = vector.shape_cast %224 : vector<1x1x32xf32> to vector<32xf32>
    %226 = vector.shape_cast %225 : vector<32xf32> to vector<1x1x32xf32>
    %227 = vector.broadcast %226 : vector<1x1x32xf32> to vector<16x16x32xf32>
    %228 = arith.mulf %223, %227 : vector<16x16x32xf32>
    %229 = arith.addf %222, %228 : vector<16x16x32xf32>
    %230 = vector.extract_strided_slice %209 {offsets = [3, 0, 0], sizes = [16, 16, 32], strides = [1, 1, 1]} : vector<22x16x32xf32> to vector<16x16x32xf32>
    %231 = vector.extract_strided_slice %7 {offsets = [3, 4, 0], sizes = [1, 1, 32], strides = [1, 1, 1]} : vector<7x7x32xf32> to vector<1x1x32xf32>
    %232 = vector.shape_cast %231 : vector<1x1x32xf32> to vector<32xf32>
    %233 = vector.shape_cast %232 : vector<32xf32> to vector<1x1x32xf32>
    %234 = vector.broadcast %233 : vector<1x1x32xf32> to vector<16x16x32xf32>
    %235 = arith.mulf %230, %234 : vector<16x16x32xf32>
    %236 = arith.addf %229, %235 : vector<16x16x32xf32>
    %237 = vector.extract_strided_slice %209 {offsets = [4, 0, 0], sizes = [16, 16, 32], strides = [1, 1, 1]} : vector<22x16x32xf32> to vector<16x16x32xf32>
    %238 = vector.extract_strided_slice %7 {offsets = [4, 4, 0], sizes = [1, 1, 32], strides = [1, 1, 1]} : vector<7x7x32xf32> to vector<1x1x32xf32>
    %239 = vector.shape_cast %238 : vector<1x1x32xf32> to vector<32xf32>
    %240 = vector.shape_cast %239 : vector<32xf32> to vector<1x1x32xf32>
    %241 = vector.broadcast %240 : vector<1x1x32xf32> to vector<16x16x32xf32>
    %242 = arith.mulf %237, %241 : vector<16x16x32xf32>
    %243 = arith.addf %236, %242 : vector<16x16x32xf32>
    %244 = vector.extract_strided_slice %209 {offsets = [5, 0, 0], sizes = [16, 16, 32], strides = [1, 1, 1]} : vector<22x16x32xf32> to vector<16x16x32xf32>
    %245 = vector.extract_strided_slice %7 {offsets = [5, 4, 0], sizes = [1, 1, 32], strides = [1, 1, 1]} : vector<7x7x32xf32> to vector<1x1x32xf32>
    %246 = vector.shape_cast %245 : vector<1x1x32xf32> to vector<32xf32>
    %247 = vector.shape_cast %246 : vector<32xf32> to vector<1x1x32xf32>
    %248 = vector.broadcast %247 : vector<1x1x32xf32> to vector<16x16x32xf32>
    %249 = arith.mulf %244, %248 : vector<16x16x32xf32>
    %250 = arith.addf %243, %249 : vector<16x16x32xf32>
    %251 = vector.extract_strided_slice %209 {offsets = [6, 0, 0], sizes = [16, 16, 32], strides = [1, 1, 1]} : vector<22x16x32xf32> to vector<16x16x32xf32>
    %252 = vector.extract_strided_slice %7 {offsets = [6, 4, 0], sizes = [1, 1, 32], strides = [1, 1, 1]} : vector<7x7x32xf32> to vector<1x1x32xf32>
    %253 = vector.shape_cast %252 : vector<1x1x32xf32> to vector<32xf32>
    %254 = vector.shape_cast %253 : vector<32xf32> to vector<1x1x32xf32>
    %255 = vector.broadcast %254 : vector<1x1x32xf32> to vector<16x16x32xf32>
    %256 = arith.mulf %251, %255 : vector<16x16x32xf32>
    %257 = arith.addf %250, %256 : vector<16x16x32xf32>
    %258 = arith.addf %208, %257 : vector<16x16x32xf32>
    %259 = vector.extract_strided_slice %4 {offsets = [0, 5, 0], sizes = [22, 16, 32], strides = [1, 1, 1]} : vector<22x22x32xf32> to vector<22x16x32xf32>
    %260 = vector.extract_strided_slice %259 {offsets = [0, 0, 0], sizes = [16, 16, 32], strides = [1, 1, 1]} : vector<22x16x32xf32> to vector<16x16x32xf32>
    %261 = vector.extract_strided_slice %7 {offsets = [0, 5, 0], sizes = [1, 1, 32], strides = [1, 1, 1]} : vector<7x7x32xf32> to vector<1x1x32xf32>
    %262 = vector.shape_cast %261 : vector<1x1x32xf32> to vector<32xf32>
    %263 = vector.shape_cast %262 : vector<32xf32> to vector<1x1x32xf32>
    %264 = vector.broadcast %263 : vector<1x1x32xf32> to vector<16x16x32xf32>
    %265 = arith.mulf %260, %264 : vector<16x16x32xf32>
    %266 = vector.extract_strided_slice %259 {offsets = [1, 0, 0], sizes = [16, 16, 32], strides = [1, 1, 1]} : vector<22x16x32xf32> to vector<16x16x32xf32>
    %267 = vector.extract_strided_slice %7 {offsets = [1, 5, 0], sizes = [1, 1, 32], strides = [1, 1, 1]} : vector<7x7x32xf32> to vector<1x1x32xf32>
    %268 = vector.shape_cast %267 : vector<1x1x32xf32> to vector<32xf32>
    %269 = vector.shape_cast %268 : vector<32xf32> to vector<1x1x32xf32>
    %270 = vector.broadcast %269 : vector<1x1x32xf32> to vector<16x16x32xf32>
    %271 = arith.mulf %266, %270 : vector<16x16x32xf32>
    %272 = arith.addf %265, %271 : vector<16x16x32xf32>
    %273 = vector.extract_strided_slice %259 {offsets = [2, 0, 0], sizes = [16, 16, 32], strides = [1, 1, 1]} : vector<22x16x32xf32> to vector<16x16x32xf32>
    %274 = vector.extract_strided_slice %7 {offsets = [2, 5, 0], sizes = [1, 1, 32], strides = [1, 1, 1]} : vector<7x7x32xf32> to vector<1x1x32xf32>
    %275 = vector.shape_cast %274 : vector<1x1x32xf32> to vector<32xf32>
    %276 = vector.shape_cast %275 : vector<32xf32> to vector<1x1x32xf32>
    %277 = vector.broadcast %276 : vector<1x1x32xf32> to vector<16x16x32xf32>
    %278 = arith.mulf %273, %277 : vector<16x16x32xf32>
    %279 = arith.addf %272, %278 : vector<16x16x32xf32>
    %280 = vector.extract_strided_slice %259 {offsets = [3, 0, 0], sizes = [16, 16, 32], strides = [1, 1, 1]} : vector<22x16x32xf32> to vector<16x16x32xf32>
    %281 = vector.extract_strided_slice %7 {offsets = [3, 5, 0], sizes = [1, 1, 32], strides = [1, 1, 1]} : vector<7x7x32xf32> to vector<1x1x32xf32>
    %282 = vector.shape_cast %281 : vector<1x1x32xf32> to vector<32xf32>
    %283 = vector.shape_cast %282 : vector<32xf32> to vector<1x1x32xf32>
    %284 = vector.broadcast %283 : vector<1x1x32xf32> to vector<16x16x32xf32>
    %285 = arith.mulf %280, %284 : vector<16x16x32xf32>
    %286 = arith.addf %279, %285 : vector<16x16x32xf32>
    %287 = vector.extract_strided_slice %259 {offsets = [4, 0, 0], sizes = [16, 16, 32], strides = [1, 1, 1]} : vector<22x16x32xf32> to vector<16x16x32xf32>
    %288 = vector.extract_strided_slice %7 {offsets = [4, 5, 0], sizes = [1, 1, 32], strides = [1, 1, 1]} : vector<7x7x32xf32> to vector<1x1x32xf32>
    %289 = vector.shape_cast %288 : vector<1x1x32xf32> to vector<32xf32>
    %290 = vector.shape_cast %289 : vector<32xf32> to vector<1x1x32xf32>
    %291 = vector.broadcast %290 : vector<1x1x32xf32> to vector<16x16x32xf32>
    %292 = arith.mulf %287, %291 : vector<16x16x32xf32>
    %293 = arith.addf %286, %292 : vector<16x16x32xf32>
    %294 = vector.extract_strided_slice %259 {offsets = [5, 0, 0], sizes = [16, 16, 32], strides = [1, 1, 1]} : vector<22x16x32xf32> to vector<16x16x32xf32>
    %295 = vector.extract_strided_slice %7 {offsets = [5, 5, 0], sizes = [1, 1, 32], strides = [1, 1, 1]} : vector<7x7x32xf32> to vector<1x1x32xf32>
    %296 = vector.shape_cast %295 : vector<1x1x32xf32> to vector<32xf32>
    %297 = vector.shape_cast %296 : vector<32xf32> to vector<1x1x32xf32>
    %298 = vector.broadcast %297 : vector<1x1x32xf32> to vector<16x16x32xf32>
    %299 = arith.mulf %294, %298 : vector<16x16x32xf32>
    %300 = arith.addf %293, %299 : vector<16x16x32xf32>
    %301 = vector.extract_strided_slice %259 {offsets = [6, 0, 0], sizes = [16, 16, 32], strides = [1, 1, 1]} : vector<22x16x32xf32> to vector<16x16x32xf32>
    %302 = vector.extract_strided_slice %7 {offsets = [6, 5, 0], sizes = [1, 1, 32], strides = [1, 1, 1]} : vector<7x7x32xf32> to vector<1x1x32xf32>
    %303 = vector.shape_cast %302 : vector<1x1x32xf32> to vector<32xf32>
    %304 = vector.shape_cast %303 : vector<32xf32> to vector<1x1x32xf32>
    %305 = vector.broadcast %304 : vector<1x1x32xf32> to vector<16x16x32xf32>
    %306 = arith.mulf %301, %305 : vector<16x16x32xf32>
    %307 = arith.addf %300, %306 : vector<16x16x32xf32>
    %308 = arith.addf %258, %307 : vector<16x16x32xf32>
    %309 = vector.extract_strided_slice %4 {offsets = [0, 6, 0], sizes = [22, 16, 32], strides = [1, 1, 1]} : vector<22x22x32xf32> to vector<22x16x32xf32>
    %310 = vector.extract_strided_slice %309 {offsets = [0, 0, 0], sizes = [16, 16, 32], strides = [1, 1, 1]} : vector<22x16x32xf32> to vector<16x16x32xf32>
    %311 = vector.extract_strided_slice %7 {offsets = [0, 6, 0], sizes = [1, 1, 32], strides = [1, 1, 1]} : vector<7x7x32xf32> to vector<1x1x32xf32>
    %312 = vector.shape_cast %311 : vector<1x1x32xf32> to vector<32xf32>
    %313 = vector.shape_cast %312 : vector<32xf32> to vector<1x1x32xf32>
    %314 = vector.broadcast %313 : vector<1x1x32xf32> to vector<16x16x32xf32>
    %315 = arith.mulf %310, %314 : vector<16x16x32xf32>
    %316 = vector.extract_strided_slice %309 {offsets = [1, 0, 0], sizes = [16, 16, 32], strides = [1, 1, 1]} : vector<22x16x32xf32> to vector<16x16x32xf32>
    %317 = vector.extract_strided_slice %7 {offsets = [1, 6, 0], sizes = [1, 1, 32], strides = [1, 1, 1]} : vector<7x7x32xf32> to vector<1x1x32xf32>
    %318 = vector.shape_cast %317 : vector<1x1x32xf32> to vector<32xf32>
    %319 = vector.shape_cast %318 : vector<32xf32> to vector<1x1x32xf32>
    %320 = vector.broadcast %319 : vector<1x1x32xf32> to vector<16x16x32xf32>
    %321 = arith.mulf %316, %320 : vector<16x16x32xf32>
    %322 = arith.addf %315, %321 : vector<16x16x32xf32>
    %323 = vector.extract_strided_slice %309 {offsets = [2, 0, 0], sizes = [16, 16, 32], strides = [1, 1, 1]} : vector<22x16x32xf32> to vector<16x16x32xf32>
    %324 = vector.extract_strided_slice %7 {offsets = [2, 6, 0], sizes = [1, 1, 32], strides = [1, 1, 1]} : vector<7x7x32xf32> to vector<1x1x32xf32>
    %325 = vector.shape_cast %324 : vector<1x1x32xf32> to vector<32xf32>
    %326 = vector.shape_cast %325 : vector<32xf32> to vector<1x1x32xf32>
    %327 = vector.broadcast %326 : vector<1x1x32xf32> to vector<16x16x32xf32>
    %328 = arith.mulf %323, %327 : vector<16x16x32xf32>
    %329 = arith.addf %322, %328 : vector<16x16x32xf32>
    %330 = vector.extract_strided_slice %309 {offsets = [3, 0, 0], sizes = [16, 16, 32], strides = [1, 1, 1]} : vector<22x16x32xf32> to vector<16x16x32xf32>
    %331 = vector.extract_strided_slice %7 {offsets = [3, 6, 0], sizes = [1, 1, 32], strides = [1, 1, 1]} : vector<7x7x32xf32> to vector<1x1x32xf32>
    %332 = vector.shape_cast %331 : vector<1x1x32xf32> to vector<32xf32>
    %333 = vector.shape_cast %332 : vector<32xf32> to vector<1x1x32xf32>
    %334 = vector.broadcast %333 : vector<1x1x32xf32> to vector<16x16x32xf32>
    %335 = arith.mulf %330, %334 : vector<16x16x32xf32>
    %336 = arith.addf %329, %335 : vector<16x16x32xf32>
    %337 = vector.extract_strided_slice %309 {offsets = [4, 0, 0], sizes = [16, 16, 32], strides = [1, 1, 1]} : vector<22x16x32xf32> to vector<16x16x32xf32>
    %338 = vector.extract_strided_slice %7 {offsets = [4, 6, 0], sizes = [1, 1, 32], strides = [1, 1, 1]} : vector<7x7x32xf32> to vector<1x1x32xf32>
    %339 = vector.shape_cast %338 : vector<1x1x32xf32> to vector<32xf32>
    %340 = vector.shape_cast %339 : vector<32xf32> to vector<1x1x32xf32>
    %341 = vector.broadcast %340 : vector<1x1x32xf32> to vector<16x16x32xf32>
    %342 = arith.mulf %337, %341 : vector<16x16x32xf32>
    %343 = arith.addf %336, %342 : vector<16x16x32xf32>
    %344 = vector.extract_strided_slice %309 {offsets = [5, 0, 0], sizes = [16, 16, 32], strides = [1, 1, 1]} : vector<22x16x32xf32> to vector<16x16x32xf32>
    %345 = vector.extract_strided_slice %7 {offsets = [5, 6, 0], sizes = [1, 1, 32], strides = [1, 1, 1]} : vector<7x7x32xf32> to vector<1x1x32xf32>
    %346 = vector.shape_cast %345 : vector<1x1x32xf32> to vector<32xf32>
    %347 = vector.shape_cast %346 : vector<32xf32> to vector<1x1x32xf32>
    %348 = vector.broadcast %347 : vector<1x1x32xf32> to vector<16x16x32xf32>
    %349 = arith.mulf %344, %348 : vector<16x16x32xf32>
    %350 = arith.addf %343, %349 : vector<16x16x32xf32>
    %351 = vector.extract_strided_slice %309 {offsets = [6, 0, 0], sizes = [16, 16, 32], strides = [1, 1, 1]} : vector<22x16x32xf32> to vector<16x16x32xf32>
    %352 = vector.extract_strided_slice %7 {offsets = [6, 6, 0], sizes = [1, 1, 32], strides = [1, 1, 1]} : vector<7x7x32xf32> to vector<1x1x32xf32>
    %353 = vector.shape_cast %352 : vector<1x1x32xf32> to vector<32xf32>
    %354 = vector.shape_cast %353 : vector<32xf32> to vector<1x1x32xf32>
    %355 = vector.broadcast %354 : vector<1x1x32xf32> to vector<16x16x32xf32>
    %356 = arith.mulf %351, %355 : vector<16x16x32xf32>
    %357 = arith.addf %350, %356 : vector<16x16x32xf32>
    %358 = arith.addf %308, %357 : vector<16x16x32xf32>
    %c0_5 = arith.constant 0 : index
    %c0_6 = arith.constant 0 : index
    %359 = vector.load %arg4[%c0_5, %c0_6] : memref<1x32xf32, #tpu.memory_space<vmem>>, vector<1x32xf32>
    %360 = vector.shape_cast %359 : vector<1x32xf32> to vector<32xf32>
    %361 = vector.shape_cast %360 : vector<32xf32> to vector<1x1x32xf32>
    %362 = vector.broadcast %361 : vector<1x1x32xf32> to vector<16x16x32xf32>
    %363 = arith.addf %358, %362 : vector<16x16x32xf32>
    %cst_7 = arith.constant dense<0.000000e+00> : vector<16x16xf32>
    %364 = vector.multi_reduction <add>, %363, %cst_7 [2] : vector<16x16x32xf32> to vector<16x16xf32>
    %365 = vector.shape_cast %364 : vector<16x16xf32> to vector<16x16x1xf32>
    %cst_8 = arith.constant 3.200000e+01 : f32
    %366 = vector.broadcast %cst_8 : f32 to vector<16x16x1xf32>
    %367 = arith.divf %365, %366 : vector<16x16x1xf32>
    %368 = vector.broadcast %367 : vector<16x16x1xf32> to vector<16x16x32xf32>
    %369 = arith.subf %363, %368 : vector<16x16x32xf32>
    %370 = arith.mulf %369, %369 : vector<16x16x32xf32>
    %cst_9 = arith.constant dense<0.000000e+00> : vector<16x16xf32>
    %371 = vector.multi_reduction <add>, %370, %cst_9 [2] : vector<16x16x32xf32> to vector<16x16xf32>
    %372 = vector.shape_cast %371 : vector<16x16xf32> to vector<16x16x1xf32>
    %cst_10 = arith.constant 3.200000e+01 : f32
    %373 = vector.broadcast %cst_10 : f32 to vector<16x16x1xf32>
    %374 = arith.divf %372, %373 : vector<16x16x1xf32>
    %cst_11 = arith.constant 9.99999997E-7 : f32
    %375 = vector.broadcast %cst_11 : f32 to vector<16x16x1xf32>
    %376 = arith.addf %374, %375 : vector<16x16x1xf32>
    %377 = math.rsqrt %376 : vector<16x16x1xf32>
    %378 = vector.broadcast %377 : vector<16x16x1xf32> to vector<16x16x32xf32>
    %379 = arith.mulf %369, %378 : vector<16x16x32xf32>
    %c0_12 = arith.constant 0 : index
    %c0_13 = arith.constant 0 : index
    %380 = vector.load %arg5[%c0_12, %c0_13] : memref<1x32xf32, #tpu.memory_space<vmem>>, vector<1x32xf32>
    %381 = vector.shape_cast %380 : vector<1x32xf32> to vector<32xf32>
    %382 = vector.shape_cast %381 : vector<32xf32> to vector<1x1x32xf32>
    %383 = vector.broadcast %382 : vector<1x1x32xf32> to vector<16x16x32xf32>
    %384 = arith.mulf %379, %383 : vector<16x16x32xf32>
    %c0_14 = arith.constant 0 : index
    %c0_15 = arith.constant 0 : index
    %385 = vector.load %arg6[%c0_14, %c0_15] : memref<1x32xf32, #tpu.memory_space<vmem>>, vector<1x32xf32>
    %386 = vector.shape_cast %385 : vector<1x32xf32> to vector<32xf32>
    %387 = vector.shape_cast %386 : vector<32xf32> to vector<1x1x32xf32>
    %388 = vector.broadcast %387 : vector<1x1x32xf32> to vector<16x16x32xf32>
    %389 = arith.addf %384, %388 : vector<16x16x32xf32>
    %390 = vector.shape_cast %389 : vector<16x16x32xf32> to vector<256x32xf32>
    %391 = arith.truncf %390 : vector<256x32xf32> to vector<256x32xbf16>
    %c0_16 = arith.constant 0 : index
    %c0_17 = arith.constant 0 : index
    %392 = vector.load %arg7[%c0_16, %c0_17] : memref<32x128xbf16, #tpu.memory_space<vmem>>, vector<32x128xbf16>
    %cst_18 = arith.constant dense<0.000000e+00> : vector<256x128xf32>
    %393 = tpu.matmul %391, %392, %cst_18 {dimension_numbers = #tpu.dot_dimension_numbers<[1], [0], [0], [1], [0, 0, 1, 1], [], []>} : vector<256x32xbf16>, vector<32x128xbf16>, vector<256x128xf32> -> vector<256x128xf32>
    %c0_19 = arith.constant 0 : index
    %c0_20 = arith.constant 0 : index
    %394 = vector.load %arg8[%c0_19, %c0_20] : memref<1x128xf32, #tpu.memory_space<vmem>>, vector<1x128xf32>
    %395 = vector.broadcast %394 : vector<1x128xf32> to vector<256x128xf32>
    %396 = arith.addf %393, %395 : vector<256x128xf32>
    %cst_21 = arith.constant 5.000000e-01 : f32
    %397 = vector.broadcast %cst_21 : f32 to vector<256x128xf32>
    %398 = arith.mulf %397, %396 : vector<256x128xf32>
    %399 = arith.mulf %396, %396 : vector<256x128xf32>
    %400 = arith.mulf %399, %396 : vector<256x128xf32>
    %cst_22 = arith.constant 4.471500e-02 : f32
    %401 = vector.broadcast %cst_22 : f32 to vector<256x128xf32>
    %402 = arith.mulf %401, %400 : vector<256x128xf32>
    %403 = arith.addf %396, %402 : vector<256x128xf32>
    %cst_23 = arith.constant 0.797884583 : f32
    %404 = vector.broadcast %cst_23 : f32 to vector<256x128xf32>
    %405 = arith.mulf %404, %403 : vector<256x128xf32>
    %406 = math.tanh %405 : vector<256x128xf32>
    %cst_24 = arith.constant 1.000000e+00 : f32
    %407 = vector.broadcast %cst_24 : f32 to vector<256x128xf32>
    %408 = arith.addf %407, %406 : vector<256x128xf32>
    %409 = arith.mulf %398, %408 : vector<256x128xf32>
    %410 = arith.truncf %409 : vector<256x128xf32> to vector<256x128xbf16>
    %c0_25 = arith.constant 0 : index
    %c0_26 = arith.constant 0 : index
    %411 = vector.load %arg9[%c0_25, %c0_26] : memref<128x32xbf16, #tpu.memory_space<vmem>>, vector<128x32xbf16>
    %cst_27 = arith.constant dense<0.000000e+00> : vector<256x32xf32>
    %412 = tpu.matmul %410, %411, %cst_27 {dimension_numbers = #tpu.dot_dimension_numbers<[1], [0], [0], [1], [0, 0, 1, 1], [], []>} : vector<256x128xbf16>, vector<128x32xbf16>, vector<256x32xf32> -> vector<256x32xf32>
    %c0_28 = arith.constant 0 : index
    %c0_29 = arith.constant 0 : index
    %413 = vector.load %arg10[%c0_28, %c0_29] : memref<1x32xf32, #tpu.memory_space<vmem>>, vector<1x32xf32>
    %414 = vector.broadcast %413 : vector<1x32xf32> to vector<256x32xf32>
    %415 = arith.addf %412, %414 : vector<256x32xf32>
    %c0_30 = arith.constant 0 : index
    %c0_31 = arith.constant 0 : index
    %416 = vector.load %arg11[%c0_30, %c0_31] : memref<1x32xf32, #tpu.memory_space<vmem>>, vector<1x32xf32>
    %417 = vector.broadcast %416 : vector<1x32xf32> to vector<256x32xf32>
    %418 = arith.mulf %417, %415 : vector<256x32xf32>
    %419 = arith.addf %6, %418 : vector<256x32xf32>
    %420 = tpu.transpose %419, [1, 0] : vector<256x32xf32> -> vector<32x256xf32>
    %c0_32 = arith.constant 0 : index
    %c0_33 = arith.constant 0 : index
    %c0_34 = arith.constant 0 : index
    %421 = vector.load %arg12[%c0_32, %c0_33, %c0_34] : memref<1x32x256xf32, #tpu.memory_space<vmem>>, vector<1x32x256xf32>
    %422 = vector.shape_cast %421 : vector<1x32x256xf32> to vector<32x256xf32>
    %423 = vector.shape_cast %420 : vector<32x256xf32> to vector<1x32x256xf32>
    tpu.vector_store %arg12[%c0_32, %c0_33, %c0_34], %423 {strides = array<i32>} : memref<1x32x256xf32, #tpu.memory_space<vmem>>, vector<1x32x256xf32>,
    return
  }
  func.func @transform_0(%arg0: i32, %arg1: i32) -> (i32, i32, i32, i32) {
    %c0_i32 = arith.constant 0 : i32
    %c0_i32_0 = arith.constant 0 : i32
    %c0_i32_1 = arith.constant 0 : i32
    %c0_i32_2 = arith.constant 0 : i32
    return %arg0, %c0_i32, %c0_i32_0, %c0_i32_1 : i32, i32, i32, i32
  }
  func.func @transform_1(%arg0: i32, %arg1: i32) -> (i32, i32, i32) {
    %c0_i32 = arith.constant 0 : i32
    %c0_i32_0 = arith.constant 0 : i32
    %c0_i32_1 = arith.constant 0 : i32
    %c0_i32_2 = arith.constant 0 : i32
    return %c0_i32, %c0_i32_0, %c0_i32_1 : i32, i32, i32
  }
  func.func @transform_2(%arg0: i32, %arg1: i32) -> (i32, i32) {
    %c0_i32 = arith.constant 0 : i32
    %c0_i32_0 = arith.constant 0 : i32
    %c0_i32_1 = arith.constant 0 : i32
    return %c0_i32, %c0_i32_0 : i32, i32
  }
  func.func @transform_3(%arg0: i32, %arg1: i32) -> (i32, i32) {
    %c0_i32 = arith.constant 0 : i32
    %c0_i32_0 = arith.constant 0 : i32
    %c0_i32_1 = arith.constant 0 : i32
    return %c0_i32, %c0_i32_0 : i32, i32
  }
  func.func @transform_4(%arg0: i32, %arg1: i32) -> (i32, i32) {
    %c0_i32 = arith.constant 0 : i32
    %c0_i32_0 = arith.constant 0 : i32
    %c0_i32_1 = arith.constant 0 : i32
    return %c0_i32, %c0_i32_0 : i32, i32
  }
  func.func @transform_5(%arg0: i32, %arg1: i32) -> (i32, i32) {
    %c0_i32 = arith.constant 0 : i32
    %c0_i32_0 = arith.constant 0 : i32
    %c0_i32_1 = arith.constant 0 : i32
    return %c0_i32, %c0_i32_0 : i32, i32
  }
  func.func @transform_6(%arg0: i32, %arg1: i32) -> (i32, i32) {
    %c0_i32 = arith.constant 0 : i32
    %c0_i32_0 = arith.constant 0 : i32
    %c0_i32_1 = arith.constant 0 : i32
    return %c0_i32, %c0_i32_0 : i32, i32
  }
  func.func @transform_7(%arg0: i32, %arg1: i32) -> (i32, i32) {
    %c0_i32 = arith.constant 0 : i32
    %c0_i32_0 = arith.constant 0 : i32
    %c0_i32_1 = arith.constant 0 : i32
    return %c0_i32, %c0_i32_0 : i32, i32
  }
  func.func @transform_8(%arg0: i32, %arg1: i32) -> (i32, i32) {
    %c0_i32 = arith.constant 0 : i32
    %c0_i32_0 = arith.constant 0 : i32
    %c0_i32_1 = arith.constant 0 : i32
    return %c0_i32, %c0_i32_0 : i32, i32
  }
  func.func @transform_9(%arg0: i32, %arg1: i32) -> (i32, i32) {
    %c0_i32 = arith.constant 0 : i32
    %c0_i32_0 = arith.constant 0 : i32
    %c0_i32_1 = arith.constant 0 : i32
    return %c0_i32, %c0_i32_0 : i32, i32
  }
  func.func @transform_10(%arg0: i32, %arg1: i32) -> (i32, i32, i32) {
    %c0_i32 = arith.constant 0 : i32
    %c0_i32_0 = arith.constant 0 : i32
    return %arg0, %c0_i32, %arg1 : i32, i32, i32
  }
}

</mosaic_0001>

<llo_original>
// kernel: convnext_block.1
$region0: #{convnext_block.1}
  #allocation0 [shape = 'u32[]', space=smem, size = 0x4, offset = 0x4, fixed_abs, tag = 'smem constant byte address 0x4 - core index']
  #allocation1 [shape = 'u32[144,128]{1,0:T(1,128)}', space=vmem, size = 0x12000, scoped, tag = 'internal scratch']
  %s0 = inlined_call_operand.vmem [shape: f32[2,22,22,32], index: 0, kind: input, shape index: {}]
  %s1 = inlined_call_operand.vmem [shape: f32[7,7,32], index: 1, kind: input, shape index: {}]
  %s2 = inlined_call_operand.vmem [shape: f32[1,32], index: 2, kind: input, shape index: {}]
  %s3 = inlined_call_operand.vmem [shape: f32[1,32], index: 3, kind: input, shape index: {}]
  %s4 = inlined_call_operand.vmem [shape: f32[1,32], index: 4, kind: input, shape index: {}]
  %s5 = inlined_call_operand.vmem [shape: bf16[32,128], index: 5, kind: input, shape index: {}]
  %s6 = inlined_call_operand.vmem [shape: f32[1,128], index: 6, kind: input, shape index: {}]
  %s7 = inlined_call_operand.vmem [shape: bf16[128,32], index: 7, kind: input, shape index: {}]
  %s8 = inlined_call_operand.vmem [shape: f32[1,32], index: 8, kind: input, shape index: {}]
  %s9 = inlined_call_operand.vmem [shape: f32[1,32], index: 9, kind: input, shape index: {}]
  %s10 = inlined_call_operand.vmem [shape: f32[2,32,256], index: 10, kind: output, shape index: {}]
  %s11 = sld [smem:[#allocation0]]
  $region73: #{convnext_block.1} parent=0
    _
  %s13 = ssub.s32 1, %s11
  %s14 = scalar_select 0, %s13, %s11
  loop: start=0, step=1, limit=4
  $region2: #{convnext_block.1} parent=0 // loop_pre_header
    _
  $region3: #{convnext_block.1} parent=0 // loop_header
    %s16 = sphi 0, %s20
    %p17 = scmp.ge.s32.totalorder %s16, 4
    %s23 = sphi 0, %s35
    %s24 = sphi 0, %s31
    %s25 = sphi 0, %s23
    %s26 = sphi 0, %s24
    %s27 = sphi 0, %s25
    %s28 = sphi 0, %s26
    %s38 = sphi 0, %s40
    %s41 = sphi 0, %s38
    %s42 = sphi 0, %s41
    %s58 = sphi 0, %s42
    %s62 = sphi 0, %s62
    %s64 = sphi 0, %s62
    %s65 = sphi 0, %s64
    %s79 = sphi 0, %s65
    %s83 = sphi 0, %s83
    %s85 = sphi 0, %s83
    %s86 = sphi 0, %s85
    %s100 = sphi 0, %s86
    %s104 = sphi 0, %s104
    %s106 = sphi 0, %s104
    %s107 = sphi 0, %s106
    %s121 = sphi 0, %s107
    %s125 = sphi 0, %s125
    %s127 = sphi 0, %s125
    %s128 = sphi 0, %s127
    %s142 = sphi 0, %s128
    %s146 = sphi 0, %s146
    %s148 = sphi 0, %s146
    %s149 = sphi 0, %s148
    %s163 = sphi 0, %s149
    %s167 = sphi 0, %s167
    %s169 = sphi 0, %s167
    %s170 = sphi 0, %s169
    %s184 = sphi 0, %s170
    %s188 = sphi 0, %s188
    %s190 = sphi 0, %s188
    %s191 = sphi 0, %s190
    %s205 = sphi 0, %s191
    %s209 = sphi 0, %s209
    %s211 = sphi 0, %s209
    %s212 = sphi 0, %s211
    %s226 = sphi 0, %s212
    %s230 = sphi 0, %s230
    %s232 = sphi 0, %s230
    %s233 = sphi 0, %s232
    %s247 = sphi 0, %s233
    %s255 = sphi 0, %s257
    %s258 = sphi 0, %s255
    %s259 = sphi 0, %s258
    %s275 = sphi 0, %s259
  $region4: #{convnext_block.1} parent=0 // loop_header_branch
    %19 = sbr.rel (%p17) target = $region8
  $region5: #{convnext_block.1} parent=0 // loop_body
    %s21 = ssub.s32 %s16, 1
    %s22 = ssub.s32 %s16, 2
    %s29 = sadd.s32 1, %s24
    %p30 = scmp.ge.s32.totalorder %s29, 1
    %s31 = scalar_select %p30, 0, %s29
    %s32 = sadd.s32 1, %s23
    %s33 = scalar_select %p30, %s32, %s23
    %p34 = scmp.ge.s32.totalorder %s33, 2
    %s35 = scalar_select %p34, 0, %s33
    %s36 = ssub.s32 %s23, %s35
    %p37 = scmp.eq.s32.totalorder %s36, 0
    %s39 = sadd.s32 %s38, 1
    %s40 = scalar_select %p37, %s38, %s39
    %p43 = pneg %p37
    %p44 = scmp.eq.s32.totalorder %s16, 1
    %p45 = por %p43, %p44
    %p46 = scmp.ne.s32.totalorder %s38, %s41
    %p47 = scmp.eq.s32.totalorder %s16, 0
    %p48 = por %p46, %p47
    %p49 = scmp.ne.s32.totalorder %s38, %s41
    %p50 = scmp.eq.s32.totalorder %s21, 1
    %p51 = por %p49, %p50
    %p52 = scmp.ne.s32.totalorder %s41, %s42
    %p53 = scmp.eq.s32.totalorder %s21, 0
    %p54 = por %p52, %p53
    %p55 = scmp.ne.s32.totalorder %s41, %s42
    %p56 = scmp.eq.s32.totalorder %s22, 1
    %p57 = por %p55, %p56
    %p59 = scmp.ne.s32.totalorder %s42, %s58
    %p60 = scmp.eq.s32.totalorder %s22, 0
    %p61 = por %p59, %p60
    %s63 = sadd.s32 %s62, 1
    %p66 = scmp.eq.s32.totalorder %s16, 1
    %p67 = scmp.ne.s32.totalorder %s62, %s64
    %p68 = scmp.eq.s32.totalorder %s16, 0
    %p69 = por %p67, %p68
    %p70 = scmp.ne.s32.totalorder %s62, %s64
    %p71 = scmp.eq.s32.totalorder %s21, 1
    %p72 = por %p70, %p71
    %p73 = scmp.ne.s32.totalorder %s64, %s65
    %p74 = scmp.eq.s32.totalorder %s21, 0
    %p75 = por %p73, %p74
    %p76 = scmp.ne.s32.totalorder %s64, %s65
    %p77 = scmp.eq.s32.totalorder %s22, 1
    %p78 = por %p76, %p77
    %p80 = scmp.ne.s32.totalorder %s65, %s79
    %p81 = scmp.eq.s32.totalorder %s22, 0
    %p82 = por %p80, %p81
    %s84 = sadd.s32 %s83, 1
    %p87 = scmp.eq.s32.totalorder %s16, 1
    %p88 = scmp.ne.s32.totalorder %s83, %s85
    %p89 = scmp.eq.s32.totalorder %s16, 0
    %p90 = por %p88, %p89
    %p91 = scmp.ne.s32.totalorder %s83, %s85
    %p92 = scmp.eq.s32.totalorder %s21, 1
    %p93 = por %p91, %p92
    %p94 = scmp.ne.s32.totalorder %s85, %s86
    %p95 = scmp.eq.s32.totalorder %s21, 0
    %p96 = por %p94, %p95
    %p97 = scmp.ne.s32.totalorder %s85, %s86
    %p98 = scmp.eq.s32.totalorder %s22, 1
    %p99 = por %p97, %p98
    %p101 = scmp.ne.s32.totalorder %s86, %s100
    %p102 = scmp.eq.s32.totalorder %s22, 0
    %p103 = por %p101, %p102
    %s105 = sadd.s32 %s104, 1
    %p108 = scmp.eq.s32.totalorder %s16, 1
    %p109 = scmp.ne.s32.totalorder %s104, %s106
    %p110 = scmp.eq.s32.totalorder %s16, 0
    %p111 = por %p109, %p110
    %p112 = scmp.ne.s32.totalorder %s104, %s106
    %p113 = scmp.eq.s32.totalorder %s21, 1
    %p114 = por %p112, %p113
    %p115 = scmp.ne.s32.totalorder %s106, %s107
    %p116 = scmp.eq.s32.totalorder %s21, 0
    %p117 = por %p115, %p116
    %p118 = scmp.ne.s32.totalorder %s106, %s107
    %p119 = scmp.eq.s32.totalorder %s22, 1
    %p120 = por %p118, %p119
    %p122 = scmp.ne.s32.totalorder %s107, %s121
    %p123 = scmp.eq.s32.totalorder %s22, 0
    %p124 = por %p122, %p123
    %s126 = sadd.s32 %s125, 1
    %p129 = scmp.eq.s32.totalorder %s16, 1
    %p130 = scmp.ne.s32.totalorder %s125, %s127
    %p131 = scmp.eq.s32.totalorder %s16, 0
    %p132 = por %p130, %p131
    %p133 = scmp.ne.s32.totalorder %s125, %s127
    %p134 = scmp.eq.s32.totalorder %s21, 1
    %p135 = por %p133, %p134
    %p136 = scmp.ne.s32.totalorder %s127, %s128
    %p137 = scmp.eq.s32.totalorder %s21, 0
    %p138 = por %p136, %p137
    %p139 = scmp.ne.s32.totalorder %s127, %s128
    %p140 = scmp.eq.s32.totalorder %s22, 1
    %p141 = por %p139, %p140
    %p143 = scmp.ne.s32.totalorder %s128, %s142
    %p144 = scmp.eq.s32.totalorder %s22, 0
    %p145 = por %p143, %p144
    %s147 = sadd.s32 %s146, 1
    %p150 = scmp.eq.s32.totalorder %s16, 1
    %p151 = scmp.ne.s32.totalorder %s146, %s148
    %p152 = scmp.eq.s32.totalorder %s16, 0
    %p153 = por %p151, %p152
    %p154 = scmp.ne.s32.totalorder %s146, %s148
    %p155 = scmp.eq.s32.totalorder %s21, 1
    %p156 = por %p154, %p155
    %p157 = scmp.ne.s32.totalorder %s148, %s149
    %p158 = scmp.eq.s32.totalorder %s21, 0
    %p159 = por %p157, %p158
    %p160 = scmp.ne.s32.totalorder %s148, %s149
    %p161 = scmp.eq.s32.totalorder %s22, 1
    %p162 = por %p160, %p161
    %p164 = scmp.ne.s32.totalorder %s149, %s163
    %p165 = scmp.eq.s32.totalorder %s22, 0
    %p166 = por %p164, %p165
    %s168 = sadd.s32 %s167, 1
    %p171 = scmp.eq.s32.totalorder %s16, 1
    %p172 = scmp.ne.s32.totalorder %s167, %s169
    %p173 = scmp.eq.s32.totalorder %s16, 0
    %p174 = por %p172, %p173
    %p175 = scmp.ne.s32.totalorder %s167, %s169
    %p176 = scmp.eq.s32.totalorder %s21, 1
    %p177 = por %p175, %p176
    %p178 = scmp.ne.s32.totalorder %s169, %s170
    %p179 = scmp.eq.s32.totalorder %s21, 0
    %p180 = por %p178, %p179
    %p181 = scmp.ne.s32.totalorder %s169, %s170
    %p182 = scmp.eq.s32.totalorder %s22, 1
    %p183 = por %p181, %p182
    %p185 = scmp.ne.s32.totalorder %s170, %s184
    %p186 = scmp.eq.s32.totalorder %s22, 0
    %p187 = por %p185, %p186
    %s189 = sadd.s32 %s188, 1
    %p192 = scmp.eq.s32.totalorder %s16, 1
    %p193 = scmp.ne.s32.totalorder %s188, %s190
    %p194 = scmp.eq.s32.totalorder %s16, 0
    %p195 = por %p193, %p194
    %p196 = scmp.ne.s32.totalorder %s188, %s190
    %p197 = scmp.eq.s32.totalorder %s21, 1
    %p198 = por %p196, %p197
    %p199 = scmp.ne.s32.totalorder %s190, %s191
    %p200 = scmp.eq.s32.totalorder %s21, 0
    %p201 = por %p199, %p200
    %p202 = scmp.ne.s32.totalorder %s190, %s191
    %p203 = scmp.eq.s32.totalorder %s22, 1
    %p204 = por %p202, %p203
    %p206 = scmp.ne.s32.totalorder %s191, %s205
    %p207 = scmp.eq.s32.totalorder %s22, 0
    %p208 = por %p206, %p207
    %s210 = sadd.s32 %s209, 1
    %p213 = scmp.eq.s32.totalorder %s16, 1
    %p214 = scmp.ne.s32.totalorder %s209, %s211
    %p215 = scmp.eq.s32.totalorder %s16, 0
    %p216 = por %p214, %p215
    %p217 = scmp.ne.s32.totalorder %s209, %s211
    %p218 = scmp.eq.s32.totalorder %s21, 1
    %p219 = por %p217, %p218
    %p220 = scmp.ne.s32.totalorder %s211, %s212
    %p221 = scmp.eq.s32.totalorder %s21, 0
    %p222 = por %p220, %p221
    %p223 = scmp.ne.s32.totalorder %s211, %s212
    %p224 = scmp.eq.s32.totalorder %s22, 1
    %p225 = por %p223, %p224
    %p227 = scmp.ne.s32.totalorder %s212, %s226
    %p228 = scmp.eq.s32.totalorder %s22, 0
    %p229 = por %p227, %p228
    %s231 = sadd.s32 %s230, 1
    %p234 = scmp.eq.s32.totalorder %s16, 1
    %p235 = scmp.ne.s32.totalorder %s230, %s232
    %p236 = scmp.eq.s32.totalorder %s16, 0
    %p237 = por %p235, %p236
    %p238 = scmp.ne.s32.totalorder %s230, %s232
    %p239 = scmp.eq.s32.totalorder %s21, 1
    %p240 = por %p238, %p239
    %p241 = scmp.ne.s32.totalorder %s232, %s233
    %p242 = scmp.eq.s32.totalorder %s21, 0
    %p243 = por %p241, %p242
    %p244 = scmp.ne.s32.totalorder %s232, %s233
    %p245 = scmp.eq.s32.totalorder %s22, 1
    %p246 = por %p244, %p245
    %p248 = scmp.ne.s32.totalorder %s233, %s247
    %p249 = scmp.eq.s32.totalorder %s22, 0
    %p250 = por %p248, %p249
    %s251 = ssub.s32 %s23, %s35
    %s252 = ssub.s32 %s24, %s31
    %s253 = sor.u32 %s251, %s252
    %p254 = scmp.eq.s32.totalorder %s253, 0
    %s256 = sadd.s32 %s255, 1
    %s257 = scalar_select %p254, %s255, %s256
    %p260 = pneg %p254
    %p261 = scmp.eq.s32.totalorder %s16, 1
    %p262 = por %p260, %p261
    %p263 = scmp.ne.s32.totalorder %s255, %s258
    %p264 = scmp.eq.s32.totalorder %s16, 0
    %p265 = por %p263, %p264
    %p266 = scmp.ne.s32.totalorder %s255, %s258
    %p267 = scmp.eq.s32.totalorder %s21, 1
    %p268 = por %p266, %p267
    %p269 = scmp.ne.s32.totalorder %s258, %s259
    %p270 = scmp.eq.s32.totalorder %s21, 0
    %p271 = por %p269, %p270
    %p272 = scmp.ne.s32.totalorder %s258, %s259
    %p273 = scmp.eq.s32.totalorder %s22, 1
    %p274 = por %p272, %p273
    %p276 = scmp.ne.s32.totalorder %s259, %s275
    %p277 = scmp.eq.s32.totalorder %s22, 0
    %p278 = por %p276, %p277
    %p279 = scmp.le.s32.totalorder 1, %s16
    %p280 = scmp.lt.s32.totalorder %s16, 3
    %p281 = pnand %p279, %p280
    %p282 = pneg %p281
    // Predicated region
    $region9: #{convnext_block.1} parent=5 // pred_check
      _
    $region10: #{convnext_block.1} parent=5 // pred_check_branch
      %284 = sbr.rel (%p281) target = $region12
    $region11: #{convnext_block.1} parent=5 // pred_region
      %s285 = ssub.s32 %s16, 1
      // Predicated region
      $region13: #{convnext_block.1} parent=11 // pred_check
        %p286 = pneg %p75
      $region14: #{convnext_block.1} parent=11 // pred_check_branch
        %288 = sbr.rel (%p286) target = $region16
      $region15: #{convnext_block.1} parent=11 // pred_region
        _
      $region16: #{convnext_block.1} parent=11 // pred_fallthru
        _
      // Predicated region
      $region17: #{convnext_block.1} parent=11 // pred_check
        %p289 = pneg %p96
      $region18: #{convnext_block.1} parent=11 // pred_check_branch
        %291 = sbr.rel (%p289) target = $region20
      $region19: #{convnext_block.1} parent=11 // pred_region
        _
      $region20: #{convnext_block.1} parent=11 // pred_fallthru
        _
      // Predicated region
      $region21: #{convnext_block.1} parent=11 // pred_check
        %p292 = pneg %p117
      $region22: #{convnext_block.1} parent=11 // pred_check_branch
        %294 = sbr.rel (%p292) target = $region24
      $region23: #{convnext_block.1} parent=11 // pred_region
        _
      $region24: #{convnext_block.1} parent=11 // pred_fallthru
        _
      // Predicated region
      $region25: #{convnext_block.1} parent=11 // pred_check
        %p295 = pneg %p138
      $region26: #{convnext_block.1} parent=11 // pred_check_branch
        %297 = sbr.rel (%p295) target = $region28
      $region27: #{convnext_block.1} parent=11 // pred_region
        _
      $region28: #{convnext_block.1} parent=11 // pred_fallthru
        _
      // Predicated region
      $region29: #{convnext_block.1} parent=11 // pred_check
        %p298 = pneg %p159
      $region30: #{convnext_block.1} parent=11 // pred_check_branch
        %300 = sbr.rel (%p298) target = $region32
      $region31: #{convnext_block.1} parent=11 // pred_region
        _
      $region32: #{convnext_block.1} parent=11 // pred_fallthru
        _
      // Predicated region
      $region33: #{convnext_block.1} parent=11 // pred_check
        %p301 = pneg %p180
      $region34: #{convnext_block.1} parent=11 // pred_check_branch
        %303 = sbr.rel (%p301) target = $region36
      $region35: #{convnext_block.1} parent=11 // pred_region
        _
      $region36: #{convnext_block.1} parent=11 // pred_fallthru
        _
      // Predicated region
      $region37: #{convnext_block.1} parent=11 // pred_check
        %p304 = pneg %p201
      $region38: #{convnext_block.1} parent=11 // pred_check_branch
        %306 = sbr.rel (%p304) target = $region40
      $region39: #{convnext_block.1} parent=11 // pred_region
        _
      $region40: #{convnext_block.1} parent=11 // pred_fallthru
        _
      // Predicated region
      $region41: #{convnext_block.1} parent=11 // pred_check
        %p307 = pneg %p222
      $region42: #{convnext_block.1} parent=11 // pred_check_branch
        %309 = sbr.rel (%p307) target = $region44
      $region43: #{convnext_block.1} parent=11 // pred_region
        _
      $region44: #{convnext_block.1} parent=11 // pred_fallthru
        _
      // Predicated region
      $region45: #{convnext_block.1} parent=11 // pred_check
        %p310 = pneg %p243
      $region46: #{convnext_block.1} parent=11 // pred_check_branch
        %312 = sbr.rel (%p310) target = $region48
      $region47: #{convnext_block.1} parent=11 // pred_region
        _
      $region48: #{convnext_block.1} parent=11 // pred_fallthru
        _
    $region12: #{convnext_block.1} parent=5 // pred_fallthru
      _
    %p313 = scmp.lt.s32.totalorder %s16, 2
    // Predicated region
    $region49: #{convnext_block.1} parent=5 // pred_check
      %p314 = pneg %p313
    $region50: #{convnext_block.1} parent=5 // pred_check_branch
      %316 = sbr.rel (%p314) target = $region52
    $region51: #{convnext_block.1} parent=5 // pred_region
      // Predicated region
      $region53: #{convnext_block.1} parent=51 // pred_check
        %p317 = pneg %p48
      $region54: #{convnext_block.1} parent=51 // pred_check_branch
        %319 = sbr.rel (%p317) target = $region56
      $region55: #{convnext_block.1} parent=51 // pred_region
        %p320 = scmp.lt.s32.totalorder %s23, 1
        %s321 = scalar_select %p320, %s23, 1
        %s322 = smul.addr %s321, 66
        %s323 = smul.addr %s322, 8
        %s324 = scalar_lea.vmem %s0, %s323
      $region56: #{convnext_block.1} parent=51 // pred_fallthru
        _
    $region52: #{convnext_block.1} parent=5 // pred_fallthru
      _
    %p325 = scmp.le.s32.totalorder 1, %s16
    %p326 = scmp.lt.s32.totalorder %s16, 3
    %p327 = pnand %p325, %p326
    %p328 = pneg %p327
    // Predicated region
    $region57: #{convnext_block.1} parent=5 // pred_check
      _
    $region58: #{convnext_block.1} parent=5 // pred_check_branch
      %330 = sbr.rel (%p327) target = $region60
    $region59: #{convnext_block.1} parent=5 // pred_region
      %s331 = ssub.s32 %s16, 1
      %p332 = scmp.lt.s32.totalorder %s25, 1
      %s333 = scalar_select %p332, %s25, 1
      %s334 = smul.addr %s333, 66
      %s335 = smul.addr %s334, 8
      %s336 = scalar_lea.vmem %s0, %s335
      %p337 = pneg %p54
      %p338 = pneg %p51
      %p339 = pneg %p75
      %p340 = pneg %p72
      %p341 = pneg %p96
      %p342 = pneg %p93
      %p343 = pneg %p117
      %p344 = pneg %p114
      %p345 = pneg %p138
      %p346 = pneg %p135
      %p347 = pneg %p159
      %p348 = pneg %p156
      %p349 = pneg %p180
      %p350 = pneg %p177
      %p351 = pneg %p201
      %p352 = pneg %p198
      %p353 = pneg %p222
      %p354 = pneg %p219
      %p355 = pneg %p243
      %p356 = pneg %p240
      %p357 = pneg %p271
      %p358 = pneg %p268
      %s359 = smul.u32 2, %s26
      %p360 = scmp.lt.s32.totalorder %s25, 1
      %s361 = scalar_select %p360, %s25, 1
      %p362 = scmp.lt.s32.totalorder %s359, 1
      %s363 = scalar_select %p362, %s359, 1
      %s364 = smul.addr %s361, 8
      %s365 = sadd.s32 %s363, %s364
      %s366 = smul.addr %s365, 8
      %s367 = scalar_lea.vmem %s10, %s366
      %p368 = scmp.lt.s32.totalorder %s25, 1
      %s369 = scalar_select %p368, %s25, 1
      %s370 = smul.addr %s369, 66
      %s371 = smul.addr %s370, 8
      %s372 = scalar_lea.vmem %s0, %s371
      %s373 = smul.u32 2, %s26
      %p374 = scmp.lt.s32.totalorder %s25, 1
      %s375 = scalar_select %p374, %s25, 1
      %p376 = scmp.lt.s32.totalorder %s373, 1
      %s377 = scalar_select %p376, %s373, 1
      %s378 = smul.addr %s375, 8
      %s379 = sadd.s32 %s377, %s378
      %s380 = smul.addr %s379, 8
      %s381 = scalar_lea.vmem %s10, %s380
      %s382 = smul.u32 2, %s26
      %s384 = smul.u32 %s26, 16
      %s385 = smul.u32 %s384, 24
      %s386 = scalar_lea.vmem %s372, %s385
      %v387 = vld [vmem:[%s386] sm:$0xff]
      %v388 = vld [vmem:[%s386 + $0x8] sm:$0xff]
      %v389 = vld [vmem:[%s386 + $0x10] sm:$0x3f]
      %v390 = vld [vmem:[%s386 + $0x18] sm:$0xff]
      %v391 = vld [vmem:[%s386 + $0x20] sm:$0xff]
      %v392 = vld [vmem:[%s386 + $0x28] sm:$0x3f]
      %v393 = vld [vmem:[%s386 + $0x30] sm:$0xff]
      %v394 = vld [vmem:[%s386 + $0x38] sm:$0xff]
      %v395 = vld [vmem:[%s386 + $0x40] sm:$0x3f]
      %v396 = vld [vmem:[%s386 + $0x48] sm:$0xff]
      %v397 = vld [vmem:[%s386 + $0x50] sm:$0xff]
      %v398 = vld [vmem:[%s386 + $0x58] sm:$0x3f]
      %v399 = vld [vmem:[%s386 + $0x60] sm:$0xff]
      %v400 = vld [vmem:[%s386 + $0x68] sm:$0xff]
      %v401 = vld [vmem:[%s386 + $0x70] sm:$0x3f]
      %v402 = vld [vmem:[%s386 + $0x78] sm:$0xff]
      %v403 = vld [vmem:[%s386 + $0x80] sm:$0xff]
      %v404 = vld [vmem:[%s386 + $0x88] sm:$0x3f]
      %v405 = vld [vmem:[%s386 + $0x90] sm:$0xff]
      %v406 = vld [vmem:[%s386 + $0x98] sm:$0xff]
      %v407 = vld [vmem:[%s386 + $0xa0] sm:$0x3f]
      %v408 = vld [vmem:[%s386 + $0xa8] sm:$0xff]
      %v409 = vld [vmem:[%s386 + $0xb0] sm:$0xff]
      %v410 = vld [vmem:[%s386 + $0xb8] sm:$0x3f]
      %v411 = vld [vmem:[%s386 + $0xc0] sm:$0xff]
      %v412 = vld [vmem:[%s386 + $0xc8] sm:$0xff]
      %v413 = vld [vmem:[%s386 + $0xd0] sm:$0x3f]
      %v414 = vld [vmem:[%s386 + $0xd8] sm:$0xff]
      %v415 = vld [vmem:[%s386 + $0xe0] sm:$0xff]
      %v416 = vld [vmem:[%s386 + $0xe8] sm:$0x3f]
      %v417 = vld [vmem:[%s386 + $0xf0] sm:$0xff]
      %v418 = vld [vmem:[%s386 + $0xf8] sm:$0xff]
      %v419 = vld [vmem:[%s386 + $0x100] sm:$0x3f]
      %v420 = vld [vmem:[%s386 + $0x108] sm:$0xff]
      %v421 = vld [vmem:[%s386 + $0x110] sm:$0xff]
      %v422 = vld [vmem:[%s386 + $0x118] sm:$0x3f]
      %v423 = vld [vmem:[%s386 + $0x120] sm:$0xff]
      %v424 = vld [vmem:[%s386 + $0x128] sm:$0xff]
      %v425 = vld [vmem:[%s386 + $0x130] sm:$0x3f]
      %v426 = vld [vmem:[%s386 + $0x138] sm:$0xff]
      %v427 = vld [vmem:[%s386 + $0x140] sm:$0xff]
      %v428 = vld [vmem:[%s386 + $0x148] sm:$0x3f]
      %v429 = vld [vmem:[%s386 + $0x150] sm:$0xff]
      %v430 = vld [vmem:[%s386 + $0x158] sm:$0xff]
      %v431 = vld [vmem:[%s386 + $0x160] sm:$0x3f]
      %v432 = vld [vmem:[%s386 + $0x168] sm:$0xff]
      %v433 = vld [vmem:[%s386 + $0x170] sm:$0xff]
      %v434 = vld [vmem:[%s386 + $0x178] sm:$0x3f]
      %v435 = vld [vmem:[%s386 + $0x180] sm:$0xff]
      %v436 = vld [vmem:[%s386 + $0x188] sm:$0xff]
      %v437 = vld [vmem:[%s386 + $0x190] sm:$0x3f]
      %v438 = vld [vmem:[%s386 + $0x198] sm:$0xff]
      %v439 = vld [vmem:[%s386 + $0x1a0] sm:$0xff]
      %v440 = vld [vmem:[%s386 + $0x1a8] sm:$0x3f]
      %v441 = vld [vmem:[%s386 + $0x1b0] sm:$0xff]
      %v442 = vld [vmem:[%s386 + $0x1b8] sm:$0xff]
      %v443 = vld [vmem:[%s386 + $0x1c0] sm:$0x3f]
      %v444 = vld [vmem:[%s386 + $0x1c8] sm:$0xff]
      %v445 = vld [vmem:[%s386 + $0x1d0] sm:$0xff]
      %v446 = vld [vmem:[%s386 + $0x1d8] sm:$0x3f]
      %v447 = vld [vmem:[%s386 + $0x1e0] sm:$0xff]
      %v448 = vld [vmem:[%s386 + $0x1e8] sm:$0xff]
      %v449 = vld [vmem:[%s386 + $0x1f0] sm:$0x3f]
      %v450 = vld [vmem:[%s386 + $0x1f8] sm:$0xff]
      %v451 = vld [vmem:[%s386 + $0x200] sm:$0xff]
      %v452 = vld [vmem:[%s386 + $0x208] sm:$0x3f]
      %vm501 = vcmask 1044480
      %v502 = vrot.slane %v396, 3
      %v503 = vrot.slane %v397, 3
      %v504 = vsel %vm501, %v502, %v503
      %v505 = vrot.slane %v398, 3
      %v506 = vsel %vm501, %v503, %v505
      %v507 = vrot.slane %v399, 3
      %v508 = vrot.slane %v400, 3
      %v509 = vsel %vm501, %v507, %v508
      %v510 = vrot.slane %v401, 3
      %v511 = vsel %vm501, %v508, %v510
      %v512 = vrot.slane %v402, 3
      %v513 = vrot.slane %v403, 3
      %v514 = vsel %vm501, %v512, %v513
      %v515 = vrot.slane %v404, 3
      %v516 = vsel %vm501, %v513, %v515
      %v517 = vrot.slane %v405, 3
      %v518 = vrot.slane %v406, 3
      %v519 = vsel %vm501, %v517, %v518
      %v520 = vrot.slane %v407, 3
      %v521 = vsel %vm501, %v518, %v520
      %v522 = vrot.slane %v408, 3
      %v523 = vrot.slane %v409, 3
      %v524 = vsel %vm501, %v522, %v523
      %v525 = vrot.slane %v410, 3
      %v526 = vsel %vm501, %v523, %v525
      %v527 = vrot.slane %v411, 3
      %v528 = vrot.slane %v412, 3
      %v529 = vsel %vm501, %v527, %v528
      %v530 = vrot.slane %v413, 3
      %v531 = vsel %vm501, %v528, %v530
      %v532 = vrot.slane %v414, 3
      %v533 = vrot.slane %v415, 3
      %v534 = vsel %vm501, %v532, %v533
      %v535 = vrot.slane %v416, 3
      %v536 = vsel %vm501, %v533, %v535
      %v537 = vrot.slane %v417, 3
      %v538 = vrot.slane %v418, 3
      %v539 = vsel %vm501, %v537, %v538
      %v540 = vrot.slane %v419, 3
      %v541 = vsel %vm501, %v538, %v540
      %v542 = vrot.slane %v420, 3
      %v543 = vrot.slane %v421, 3
      %v544 = vsel %vm501, %v542, %v543
      %v545 = vrot.slane %v422, 3
      %v546 = vsel %vm501, %v543, %v545
      %v547 = vrot.slane %v423, 3
      %v548 = vrot.slane %v424, 3
      %v549 = vsel %vm501, %v547, %v548
      %v550 = vrot.slane %v425, 3
      %v551 = vsel %vm501, %v548, %v550
      %v552 = vrot.slane %v426, 3
      %v553 = vrot.slane %v427, 3
      %v554 = vsel %vm501, %v552, %v553
      %v555 = vrot.slane %v428, 3
      %v556 = vsel %vm501, %v553, %v555
      %v557 = vrot.slane %v429, 3
      %v558 = vrot.slane %v430, 3
      %v559 = vsel %vm501, %v557, %v558
      %v560 = vrot.slane %v431, 3
      %v561 = vsel %vm501, %v558, %v560
      %v562 = vrot.slane %v432, 3
      %v563 = vrot.slane %v433, 3
      %v564 = vsel %vm501, %v562, %v563
      %v565 = vrot.slane %v434, 3
      %v566 = vsel %vm501, %v563, %v565
      %v567 = vrot.slane %v435, 3
      %v568 = vrot.slane %v436, 3
      %v569 = vsel %vm501, %v567, %v568
      %v570 = vrot.slane %v437, 3
      %v571 = vsel %vm501, %v568, %v570
      %v572 = vrot.slane %v438, 3
      %v573 = vrot.slane %v439, 3
      %v574 = vsel %vm501, %v572, %v573
      %v575 = vrot.slane %v440, 3
      %v576 = vsel %vm501, %v573, %v575
      %v577 = vrot.slane %v441, 3
      %v578 = vrot.slane %v442, 3
      %v579 = vsel %vm501, %v577, %v578
      %v580 = vrot.slane %v443, 3
      %v581 = vsel %vm501, %v578, %v580
      %v614 = vld [vmem:[%s1] sm:$0x7f]
      %v615 = vld [vmem:[%s1 + $0x8] sm:$0x7f]
      %v616 = vld [vmem:[%s1 + $0x10] sm:$0x7f]
      %v617 = vld [vmem:[%s1 + $0x18] sm:$0x7f]
      %v618 = vld [vmem:[%s1 + $0x20] sm:$0x7f]
      %v619 = vld [vmem:[%s1 + $0x28] sm:$0x7f]
      %v620 = vld [vmem:[%s1 + $0x30] sm:$0x7f]
      %v621 = vlaneseq
      %v622 = vshrl.u32 %v621, 7
      %v623 = vsub.s32 0, %v622
      %v624 = vrot.slane %v614, %v623
      %v625 = vmul.f32 %v387, %v624
      %v626 = vmul.f32 %v388, %v624
      %v627 = vmul.f32 %v390, %v624
      %v628 = vmul.f32 %v391, %v624
      %v629 = vmul.f32 %v393, %v624
      %v630 = vmul.f32 %v394, %v624
      %v631 = vmul.f32 %v396, %v624
      %v632 = vmul.f32 %v397, %v624
      %v633 = vmul.f32 %v399, %v624
      %v634 = vmul.f32 %v400, %v624
      %v635 = vmul.f32 %v402, %v624
      %v636 = vmul.f32 %v403, %v624
      %v637 = vmul.f32 %v405, %v624
      %v638 = vmul.f32 %v406, %v624
      %v639 = vmul.f32 %v408, %v624
      %v640 = vmul.f32 %v409, %v624
      %v641 = vmul.f32 %v411, %v624
      %v642 = vmul.f32 %v412, %v624
      %v643 = vmul.f32 %v414, %v624
      %v644 = vmul.f32 %v415, %v624
      %v645 = vmul.f32 %v417, %v624
      %v646 = vmul.f32 %v418, %v624
      %v647 = vmul.f32 %v420, %v624
      %v648 = vmul.f32 %v421, %v624
      %v649 = vmul.f32 %v423, %v624
      %v650 = vmul.f32 %v424, %v624
      %v651 = vmul.f32 %v426, %v624
      %v652 = vmul.f32 %v427, %v624
      %v653 = vmul.f32 %v429, %v624
      %v654 = vmul.f32 %v430, %v624
      %v655 = vmul.f32 %v432, %v624
      %v656 = vmul.f32 %v433, %v624
      %v657 = vlaneseq
      %v658 = vshrl.u32 %v657, 7
      %v659 = vsub.s32 0, %v658
      %v660 = vrot.slane %v615, %v659
      %v661 = vmul.f32 %v390, %v660
      %v662 = vmul.f32 %v391, %v660
      %v663 = vmul.f32 %v393, %v660
      %v664 = vmul.f32 %v394, %v660
      %v665 = vmul.f32 %v396, %v660
      %v666 = vmul.f32 %v397, %v660
      %v667 = vmul.f32 %v399, %v660
      %v668 = vmul.f32 %v400, %v660
      %v669 = vmul.f32 %v402, %v660
      %v670 = vmul.f32 %v403, %v660
      %v671 = vmul.f32 %v405, %v660
      %v672 = vmul.f32 %v406, %v660
      %v673 = vmul.f32 %v408, %v660
      %v674 = vmul.f32 %v409, %v660
      %v675 = vmul.f32 %v411, %v660
      %v676 = vmul.f32 %v412, %v660
      %v677 = vmul.f32 %v414, %v660
      %v678 = vmul.f32 %v415, %v660
      %v679 = vmul.f32 %v417, %v660
      %v680 = vmul.f32 %v418, %v660
      %v681 = vmul.f32 %v420, %v660
      %v682 = vmul.f32 %v421, %v660
      %v683 = vmul.f32 %v423, %v660
      %v684 = vmul.f32 %v424, %v660
      %v685 = vmul.f32 %v426, %v660
      %v686 = vmul.f32 %v427, %v660
      %v687 = vmul.f32 %v429, %v660
      %v688 = vmul.f32 %v430, %v660
      %v689 = vmul.f32 %v432, %v660
      %v690 = vmul.f32 %v433, %v660
      %v691 = vmul.f32 %v435, %v660
      %v692 = vmul.f32 %v436, %v660
      %v693 = vadd.f32 %v625, %v661
      %v694 = vadd.f32 %v626, %v662
      %v695 = vadd.f32 %v627, %v663
      %v696 = vadd.f32 %v628, %v664
      %v697 = vadd.f32 %v629, %v665
      %v698 = vadd.f32 %v630, %v666
      %v699 = vadd.f32 %v631, %v667
      %v700 = vadd.f32 %v632, %v668
      %v701 = vadd.f32 %v633, %v669
      %v702 = vadd.f32 %v634, %v670
      %v703 = vadd.f32 %v635, %v671
      %v704 = vadd.f32 %v636, %v672
      %v705 = vadd.f32 %v637, %v673
      %v706 = vadd.f32 %v638, %v674
      %v707 = vadd.f32 %v639, %v675
      %v708 = vadd.f32 %v640, %v676
      %v709 = vadd.f32 %v641, %v677
      %v710 = vadd.f32 %v642, %v678
      %v711 = vadd.f32 %v643, %v679
      %v712 = vadd.f32 %v644, %v680
      %v713 = vadd.f32 %v645, %v681
      %v714 = vadd.f32 %v646, %v682
      %v715 = vadd.f32 %v647, %v683
      %v716 = vadd.f32 %v648, %v684
      %v717 = vadd.f32 %v649, %v685
      %v718 = vadd.f32 %v650, %v686
      %v719 = vadd.f32 %v651, %v687
      %v720 = vadd.f32 %v652, %v688
      %v721 = vadd.f32 %v653, %v689
      %v722 = vadd.f32 %v654, %v690
      %v723 = vadd.f32 %v655, %v691
      %v724 = vadd.f32 %v656, %v692
      %v725 = vlaneseq
      %v726 = vshrl.u32 %v725, 7
      %v727 = vsub.s32 0, %v726
      %v728 = vrot.slane %v616, %v727
      %v729 = vmul.f32 %v393, %v728
      %v730 = vmul.f32 %v394, %v728
      %v731 = vmul.f32 %v396, %v728
      %v732 = vmul.f32 %v397, %v728
      %v733 = vmul.f32 %v399, %v728
      %v734 = vmul.f32 %v400, %v728
      %v735 = vmul.f32 %v402, %v728
      %v736 = vmul.f32 %v403, %v728
      %v737 = vmul.f32 %v405, %v728
      %v738 = vmul.f32 %v406, %v728
      %v739 = vmul.f32 %v408, %v728
      %v740 = vmul.f32 %v409, %v728
      %v741 = vmul.f32 %v411, %v728
      %v742 = vmul.f32 %v412, %v728
      %v743 = vmul.f32 %v414, %v728
      %v744 = vmul.f32 %v415, %v728
      %v745 = vmul.f32 %v417, %v728
      %v746 = vmul.f32 %v418, %v728
      %v747 = vmul.f32 %v420, %v728
      %v748 = vmul.f32 %v421, %v728
      %v749 = vmul.f32 %v423, %v728
      %v750 = vmul.f32 %v424, %v728
      %v751 = vmul.f32 %v426, %v728
      %v752 = vmul.f32 %v427, %v728
      %v753 = vmul.f32 %v429, %v728
      %v754 = vmul.f32 %v430, %v728
      %v755 = vmul.f32 %v432, %v728
      %v756 = vmul.f32 %v433, %v728
      %v757 = vmul.f32 %v435, %v728
      %v758 = vmul.f32 %v436, %v728
      %v759 = vmul.f32 %v438, %v728
      %v760 = vmul.f32 %v439, %v728
      %v761 = vadd.f32 %v693, %v729
      %v762 = vadd.f32 %v694, %v730
      %v763 = vadd.f32 %v695, %v731
      %v764 = vadd.f32 %v696, %v732
      %v765 = vadd.f32 %v697, %v733
      %v766 = vadd.f32 %v698, %v734
      %v767 = vadd.f32 %v699, %v735
      %v768 = vadd.f32 %v700, %v736
      %v769 = vadd.f32 %v701, %v737
      %v770 = vadd.f32 %v702, %v738
      %v771 = vadd.f32 %v703, %v739
      %v772 = vadd.f32 %v704, %v740
      %v773 = vadd.f32 %v705, %v741
      %v774 = vadd.f32 %v706, %v742
      %v775 = vadd.f32 %v707, %v743
      %v776 = vadd.f32 %v708, %v744
      %v777 = vadd.f32 %v709, %v745
      %v778 = vadd.f32 %v710, %v746
      %v779 = vadd.f32 %v711, %v747
      %v780 = vadd.f32 %v712, %v748
      %v781 = vadd.f32 %v713, %v749
      %v782 = vadd.f32 %v714, %v750
      %v783 = vadd.f32 %v715, %v751
      %v784 = vadd.f32 %v716, %v752
      %v785 = vadd.f32 %v717, %v753
      %v786 = vadd.f32 %v718, %v754
      %v787 = vadd.f32 %v719, %v755
      %v788 = vadd.f32 %v720, %v756
      %v789 = vadd.f32 %v721, %v757
      %v790 = vadd.f32 %v722, %v758
      %v791 = vadd.f32 %v723, %v759
      %v792 = vadd.f32 %v724, %v760
      %v793 = vlaneseq
      %v794 = vshrl.u32 %v793, 7
      %v795 = vsub.s32 0, %v794
      %v796 = vrot.slane %v617, %v795
      %v797 = vmul.f32 %v396, %v796
      %v798 = vmul.f32 %v397, %v796
      %v799 = vmul.f32 %v399, %v796
      %v800 = vmul.f32 %v400, %v796
      %v801 = vmul.f32 %v402, %v796
      %v802 = vmul.f32 %v403, %v796
      %v803 = vmul.f32 %v405, %v796
      %v804 = vmul.f32 %v406, %v796
      %v805 = vmul.f32 %v408, %v796
      %v806 = vmul.f32 %v409, %v796
      %v807 = vmul.f32 %v411, %v796
      %v808 = vmul.f32 %v412, %v796
      %v809 = vmul.f32 %v414, %v796
      %v810 = vmul.f32 %v415, %v796
      %v811 = vmul.f32 %v417, %v796
      %v812 = vmul.f32 %v418, %v796
      %v813 = vmul.f32 %v420, %v796
      %v814 = vmul.f32 %v421, %v796
      %v815 = vmul.f32 %v423, %v796
      %v816 = vmul.f32 %v424, %v796
      %v817 = vmul.f32 %v426, %v796
      %v818 = vmul.f32 %v427, %v796
      %v819 = vmul.f32 %v429, %v796
      %v820 = vmul.f32 %v430, %v796
      %v821 = vmul.f32 %v432, %v796
      %v822 = vmul.f32 %v433, %v796
      %v823 = vmul.f32 %v435, %v796
      %v824 = vmul.f32 %v436, %v796
      %v825 = vmul.f32 %v438, %v796
      %v826 = vmul.f32 %v439, %v796
      %v827 = vmul.f32 %v441, %v796
      %v828 = vmul.f32 %v442, %v796
      %v829 = vadd.f32 %v761, %v797
      %v830 = vadd.f32 %v762, %v798
      %v831 = vadd.f32 %v763, %v799
      %v832 = vadd.f32 %v764, %v800
      %v833 = vadd.f32 %v765, %v801
      %v834 = vadd.f32 %v766, %v802
      %v835 = vadd.f32 %v767, %v803
      %v836 = vadd.f32 %v768, %v804
      %v837 = vadd.f32 %v769, %v805
      %v838 = vadd.f32 %v770, %v806
      %v839 = vadd.f32 %v771, %v807
      %v840 = vadd.f32 %v772, %v808
      %v841 = vadd.f32 %v773, %v809
      %v842 = vadd.f32 %v774, %v810
      %v843 = vadd.f32 %v775, %v811
      %v844 = vadd.f32 %v776, %v812
      %v845 = vadd.f32 %v777, %v813
      %v846 = vadd.f32 %v778, %v814
      %v847 = vadd.f32 %v779, %v815
      %v848 = vadd.f32 %v780, %v816
      %v849 = vadd.f32 %v781, %v817
      %v850 = vadd.f32 %v782, %v818
      %v851 = vadd.f32 %v783, %v819
      %v852 = vadd.f32 %v784, %v820
      %v853 = vadd.f32 %v785, %v821
      %v854 = vadd.f32 %v786, %v822
      %v855 = vadd.f32 %v787, %v823
      %v856 = vadd.f32 %v788, %v824
      %v857 = vadd.f32 %v789, %v825
      %v858 = vadd.f32 %v790, %v826
      %v859 = vadd.f32 %v791, %v827
      %v860 = vadd.f32 %v792, %v828
      %v861 = vlaneseq
      %v862 = vshrl.u32 %v861, 7
      %v863 = vsub.s32 0, %v862
      %v864 = vrot.slane %v618, %v863
      %v865 = vmul.f32 %v399, %v864
      %v866 = vmul.f32 %v400, %v864
      %v867 = vmul.f32 %v402, %v864
      %v868 = vmul.f32 %v403, %v864
      %v869 = vmul.f32 %v405, %v864
      %v870 = vmul.f32 %v406, %v864
      %v871 = vmul.f32 %v408, %v864
      %v872 = vmul.f32 %v409, %v864
      %v873 = vmul.f32 %v411, %v864
      %v874 = vmul.f32 %v412, %v864
      %v875 = vmul.f32 %v414, %v864
      %v876 = vmul.f32 %v415, %v864
      %v877 = vmul.f32 %v417, %v864
      %v878 = vmul.f32 %v418, %v864
      %v879 = vmul.f32 %v420, %v864
      %v880 = vmul.f32 %v421, %v864
      %v881 = vmul.f32 %v423, %v864
      %v882 = vmul.f32 %v424, %v864
      %v883 = vmul.f32 %v426, %v864
      %v884 = vmul.f32 %v427, %v864
      %v885 = vmul.f32 %v429, %v864
      %v886 = vmul.f32 %v430, %v864
      %v887 = vmul.f32 %v432, %v864
      %v888 = vmul.f32 %v433, %v864
      %v889 = vmul.f32 %v435, %v864
      %v890 = vmul.f32 %v436, %v864
      %v891 = vmul.f32 %v438, %v864
      %v892 = vmul.f32 %v439, %v864
      %v893 = vmul.f32 %v441, %v864
      %v894 = vmul.f32 %v442, %v864
      %v895 = vmul.f32 %v444, %v864
      %v896 = vmul.f32 %v445, %v864
      %v897 = vadd.f32 %v829, %v865
      %v898 = vadd.f32 %v830, %v866
      %v899 = vadd.f32 %v831, %v867
      %v900 = vadd.f32 %v832, %v868
      %v901 = vadd.f32 %v833, %v869
      %v902 = vadd.f32 %v834, %v870
      %v903 = vadd.f32 %v835, %v871
      %v904 = vadd.f32 %v836, %v872
      %v905 = vadd.f32 %v837, %v873
      %v906 = vadd.f32 %v838, %v874
      %v907 = vadd.f32 %v839, %v875
      %v908 = vadd.f32 %v840, %v876
      %v909 = vadd.f32 %v841, %v877
      %v910 = vadd.f32 %v842, %v878
      %v911 = vadd.f32 %v843, %v879
      %v912 = vadd.f32 %v844, %v880
      %v913 = vadd.f32 %v845, %v881
      %v914 = vadd.f32 %v846, %v882
      %v915 = vadd.f32 %v847, %v883
      %v916 = vadd.f32 %v848, %v884
      %v917 = vadd.f32 %v849, %v885
      %v918 = vadd.f32 %v850, %v886
      %v919 = vadd.f32 %v851, %v887
      %v920 = vadd.f32 %v852, %v888
      %v921 = vadd.f32 %v853, %v889
      %v922 = vadd.f32 %v854, %v890
      %v923 = vadd.f32 %v855, %v891
      %v924 = vadd.f32 %v856, %v892
      %v925 = vadd.f32 %v857, %v893
      %v926 = vadd.f32 %v858, %v894
      %v927 = vadd.f32 %v859, %v895
      %v928 = vadd.f32 %v860, %v896
      %v929 = vlaneseq
      %v930 = vshrl.u32 %v929, 7
      %v931 = vsub.s32 0, %v930
      %v932 = vrot.slane %v619, %v931
      %v933 = vmul.f32 %v402, %v932
      %v934 = vmul.f32 %v403, %v932
      %v935 = vmul.f32 %v405, %v932
      %v936 = vmul.f32 %v406, %v932
      %v937 = vmul.f32 %v408, %v932
      %v938 = vmul.f32 %v409, %v932
      %v939 = vmul.f32 %v411, %v932
      %v940 = vmul.f32 %v412, %v932
      %v941 = vmul.f32 %v414, %v932
      %v942 = vmul.f32 %v415, %v932
      %v943 = vmul.f32 %v417, %v932
      %v944 = vmul.f32 %v418, %v932
      %v945 = vmul.f32 %v420, %v932
      %v946 = vmul.f32 %v421, %v932
      %v947 = vmul.f32 %v423, %v932
      %v948 = vmul.f32 %v424, %v932
      %v949 = vmul.f32 %v426, %v932
      %v950 = vmul.f32 %v427, %v932
      %v951 = vmul.f32 %v429, %v932
      %v952 = vmul.f32 %v430, %v932
      %v953 = vmul.f32 %v432, %v932
      %v954 = vmul.f32 %v433, %v932
      %v955 = vmul.f32 %v435, %v932
      %v956 = vmul.f32 %v436, %v932
      %v957 = vmul.f32 %v438, %v932
      %v958 = vmul.f32 %v439, %v932
      %v959 = vmul.f32 %v441, %v932
      %v960 = vmul.f32 %v442, %v932
      %v961 = vmul.f32 %v444, %v932
      %v962 = vmul.f32 %v445, %v932
      %v963 = vmul.f32 %v447, %v932
      %v964 = vmul.f32 %v448, %v932
      %v965 = vadd.f32 %v897, %v933
      %v966 = vadd.f32 %v898, %v934
      %v967 = vadd.f32 %v899, %v935
      %v968 = vadd.f32 %v900, %v936
      %v969 = vadd.f32 %v901, %v937
      %v970 = vadd.f32 %v902, %v938
      %v971 = vadd.f32 %v903, %v939
      %v972 = vadd.f32 %v904, %v940
      %v973 = vadd.f32 %v905, %v941
      %v974 = vadd.f32 %v906, %v942
      %v975 = vadd.f32 %v907, %v943
      %v976 = vadd.f32 %v908, %v944
      %v977 = vadd.f32 %v909, %v945
      %v978 = vadd.f32 %v910, %v946
      %v979 = vadd.f32 %v911, %v947
      %v980 = vadd.f32 %v912, %v948
      %v981 = vadd.f32 %v913, %v949
      %v982 = vadd.f32 %v914, %v950
      %v983 = vadd.f32 %v915, %v951
      %v984 = vadd.f32 %v916, %v952
      %v985 = vadd.f32 %v917, %v953
      %v986 = vadd.f32 %v918, %v954
      %v987 = vadd.f32 %v919, %v955
      %v988 = vadd.f32 %v920, %v956
      %v989 = vadd.f32 %v921, %v957
      %v990 = vadd.f32 %v922, %v958
      %v991 = vadd.f32 %v923, %v959
      %v992 = vadd.f32 %v924, %v960
      %v993 = vadd.f32 %v925, %v961
      %v994 = vadd.f32 %v926, %v962
      %v995 = vadd.f32 %v927, %v963
      %v996 = vadd.f32 %v928, %v964
      %v997 = vlaneseq
      %v998 = vshrl.u32 %v997, 7
      %v999 = vsub.s32 0, %v998
      %v1000 = vrot.slane %v620, %v999
      %v1001 = vmul.f32 %v405, %v1000
      %v1002 = vmul.f32 %v406, %v1000
      %v1003 = vmul.f32 %v408, %v1000
      %v1004 = vmul.f32 %v409, %v1000
      %v1005 = vmul.f32 %v411, %v1000
      %v1006 = vmul.f32 %v412, %v1000
      %v1007 = vmul.f32 %v414, %v1000
      %v1008 = vmul.f32 %v415, %v1000
      %v1009 = vmul.f32 %v417, %v1000
      %v1010 = vmul.f32 %v418, %v1000
      %v1011 = vmul.f32 %v420, %v1000
      %v1012 = vmul.f32 %v421, %v1000
      %v1013 = vmul.f32 %v423, %v1000
      %v1014 = vmul.f32 %v424, %v1000
      %v1015 = vmul.f32 %v426, %v1000
      %v1016 = vmul.f32 %v427, %v1000
      %v1017 = vmul.f32 %v429, %v1000
      %v1018 = vmul.f32 %v430, %v1000
      %v1019 = vmul.f32 %v432, %v1000
      %v1020 = vmul.f32 %v433, %v1000
      %v1021 = vmul.f32 %v435, %v1000
      %v1022 = vmul.f32 %v436, %v1000
      %v1023 = vmul.f32 %v438, %v1000
      %v1024 = vmul.f32 %v439, %v1000
      %v1025 = vmul.f32 %v441, %v1000
      %v1026 = vmul.f32 %v442, %v1000
      %v1027 = vmul.f32 %v444, %v1000
      %v1028 = vmul.f32 %v445, %v1000
      %v1029 = vmul.f32 %v447, %v1000
      %v1030 = vmul.f32 %v448, %v1000
      %v1031 = vmul.f32 %v450, %v1000
      %v1032 = vmul.f32 %v451, %v1000
      %v1033 = vadd.f32 %v965, %v1001
      %v1034 = vadd.f32 %v966, %v1002
      %v1035 = vadd.f32 %v967, %v1003
      %v1036 = vadd.f32 %v968, %v1004
      %v1037 = vadd.f32 %v969, %v1005
      %v1038 = vadd.f32 %v970, %v1006
      %v1039 = vadd.f32 %v971, %v1007
      %v1040 = vadd.f32 %v972, %v1008
      %v1041 = vadd.f32 %v973, %v1009
      %v1042 = vadd.f32 %v974, %v1010
      %v1043 = vadd.f32 %v975, %v1011
      %v1044 = vadd.f32 %v976, %v1012
      %v1045 = vadd.f32 %v977, %v1013
      %v1046 = vadd.f32 %v978, %v1014
      %v1047 = vadd.f32 %v979, %v1015
      %v1048 = vadd.f32 %v980, %v1016
      %v1049 = vadd.f32 %v981, %v1017
      %v1050 = vadd.f32 %v982, %v1018
      %v1051 = vadd.f32 %v983, %v1019
      %v1052 = vadd.f32 %v984, %v1020
      %v1053 = vadd.f32 %v985, %v1021
      %v1054 = vadd.f32 %v986, %v1022
      %v1055 = vadd.f32 %v987, %v1023
      %v1056 = vadd.f32 %v988, %v1024
      %v1057 = vadd.f32 %v989, %v1025
      %v1058 = vadd.f32 %v990, %v1026
      %v1059 = vadd.f32 %v991, %v1027
      %v1060 = vadd.f32 %v992, %v1028
      %v1061 = vadd.f32 %v993, %v1029
      %v1062 = vadd.f32 %v994, %v1030
      %v1063 = vadd.f32 %v995, %v1031
      %v1064 = vadd.f32 %v996, %v1032
      %v1065 = vadd.f32 %v1033, 0.0
      %v1066 = vadd.f32 %v1034, 0.0
      %v1067 = vadd.f32 %v1035, 0.0
      %v1068 = vadd.f32 %v1036, 0.0
      %v1069 = vadd.f32 %v1037, 0.0
      %v1070 = vadd.f32 %v1038, 0.0
      %v1071 = vadd.f32 %v1039, 0.0
      %v1072 = vadd.f32 %v1040, 0.0
      %v1073 = vadd.f32 %v1041, 0.0
      %v1074 = vadd.f32 %v1042, 0.0
      %v1075 = vadd.f32 %v1043, 0.0
      %v1076 = vadd.f32 %v1044, 0.0
      %v1077 = vadd.f32 %v1045, 0.0
      %v1078 = vadd.f32 %v1046, 0.0
      %v1079 = vadd.f32 %v1047, 0.0
      %v1080 = vadd.f32 %v1048, 0.0
      %v1081 = vadd.f32 %v1049, 0.0
      %v1082 = vadd.f32 %v1050, 0.0
      %v1083 = vadd.f32 %v1051, 0.0
      %v1084 = vadd.f32 %v1052, 0.0
      %v1085 = vadd.f32 %v1053, 0.0
      %v1086 = vadd.f32 %v1054, 0.0
      %v1087 = vadd.f32 %v1055, 0.0
      %v1088 = vadd.f32 %v1056, 0.0
      %v1089 = vadd.f32 %v1057, 0.0
      %v1090 = vadd.f32 %v1058, 0.0
      %v1091 = vadd.f32 %v1059, 0.0
      %v1092 = vadd.f32 %v1060, 0.0
      %v1093 = vadd.f32 %v1061, 0.0
      %v1094 = vadd.f32 %v1062, 0.0
      %v1095 = vadd.f32 %v1063, 0.0
      %v1096 = vadd.f32 %v1064, 0.0
      %v1097 = vlaneseq
      %v1098 = vshrl.u32 %v1097, 7
      %v1099 = vsub.s32 1, %v1098
      %v1100 = vrot.slane %v614, %v1099
      %v1101 = vmul.f32 %v387, %v1100
      %v1102 = vmul.f32 %v388, %v1100
      %v1103 = vmul.f32 %v389, %v1100
      %v1104 = vmul.f32 %v390, %v1100
      %v1105 = vmul.f32 %v391, %v1100
      %v1106 = vmul.f32 %v392, %v1100
      %v1107 = vmul.f32 %v393, %v1100
      %v1108 = vmul.f32 %v394, %v1100
      %v1109 = vmul.f32 %v395, %v1100
      %v1110 = vmul.f32 %v396, %v1100
      %v1111 = vmul.f32 %v397, %v1100
      %v1112 = vmul.f32 %v398, %v1100
      %v1113 = vmul.f32 %v399, %v1100
      %v1114 = vmul.f32 %v400, %v1100
      %v1115 = vmul.f32 %v401, %v1100
      %v1116 = vmul.f32 %v402, %v1100
      %v1117 = vmul.f32 %v403, %v1100
      %v1118 = vmul.f32 %v404, %v1100
      %v1119 = vmul.f32 %v405, %v1100
      %v1120 = vmul.f32 %v406, %v1100
      %v1121 = vmul.f32 %v407, %v1100
      %v1122 = vmul.f32 %v408, %v1100
      %v1123 = vmul.f32 %v409, %v1100
      %v1124 = vmul.f32 %v410, %v1100
      %v1125 = vmul.f32 %v411, %v1100
      %v1126 = vmul.f32 %v412, %v1100
      %v1127 = vmul.f32 %v413, %v1100
      %v1128 = vmul.f32 %v414, %v1100
      %v1129 = vmul.f32 %v415, %v1100
      %v1130 = vmul.f32 %v416, %v1100
      %v1131 = vmul.f32 %v417, %v1100
      %v1132 = vmul.f32 %v418, %v1100
      %v1133 = vmul.f32 %v419, %v1100
      %v1134 = vmul.f32 %v420, %v1100
      %v1135 = vmul.f32 %v421, %v1100
      %v1136 = vmul.f32 %v422, %v1100
      %v1137 = vmul.f32 %v423, %v1100
      %v1138 = vmul.f32 %v424, %v1100
      %v1139 = vmul.f32 %v425, %v1100
      %v1140 = vmul.f32 %v426, %v1100
      %v1141 = vmul.f32 %v427, %v1100
      %v1142 = vmul.f32 %v428, %v1100
      %v1143 = vmul.f32 %v429, %v1100
      %v1144 = vmul.f32 %v430, %v1100
      %v1145 = vmul.f32 %v431, %v1100
      %v1146 = vmul.f32 %v432, %v1100
      %v1147 = vmul.f32 %v433, %v1100
      %v1148 = vmul.f32 %v434, %v1100
      %v1149 = vlaneseq
      %v1150 = vshrl.u32 %v1149, 7
      %v1151 = vsub.s32 1, %v1150
      %v1152 = vrot.slane %v615, %v1151
      %v1153 = vmul.f32 %v390, %v1152
      %v1154 = vmul.f32 %v391, %v1152
      %v1155 = vmul.f32 %v392, %v1152
      %v1156 = vmul.f32 %v393, %v1152
      %v1157 = vmul.f32 %v394, %v1152
      %v1158 = vmul.f32 %v395, %v1152
      %v1159 = vmul.f32 %v396, %v1152
      %v1160 = vmul.f32 %v397, %v1152
      %v1161 = vmul.f32 %v398, %v1152
      %v1162 = vmul.f32 %v399, %v1152
      %v1163 = vmul.f32 %v400, %v1152
      %v1164 = vmul.f32 %v401, %v1152
      %v1165 = vmul.f32 %v402, %v1152
      %v1166 = vmul.f32 %v403, %v1152
      %v1167 = vmul.f32 %v404, %v1152
      %v1168 = vmul.f32 %v405, %v1152
      %v1169 = vmul.f32 %v406, %v1152
      %v1170 = vmul.f32 %v407, %v1152
      %v1171 = vmul.f32 %v408, %v1152
      %v1172 = vmul.f32 %v409, %v1152
      %v1173 = vmul.f32 %v410, %v1152
      %v1174 = vmul.f32 %v411, %v1152
      %v1175 = vmul.f32 %v412, %v1152
      %v1176 = vmul.f32 %v413, %v1152
      %v1177 = vmul.f32 %v414, %v1152
      %v1178 = vmul.f32 %v415, %v1152
      %v1179 = vmul.f32 %v416, %v1152
      %v1180 = vmul.f32 %v417, %v1152
      %v1181 = vmul.f32 %v418, %v1152
      %v1182 = vmul.f32 %v419, %v1152
      %v1183 = vmul.f32 %v420, %v1152
      %v1184 = vmul.f32 %v421, %v1152
      %v1185 = vmul.f32 %v422, %v1152
      %v1186 = vmul.f32 %v423, %v1152
      %v1187 = vmul.f32 %v424, %v1152
      %v1188 = vmul.f32 %v425, %v1152
      %v1189 = vmul.f32 %v426, %v1152
      %v1190 = vmul.f32 %v427, %v1152
      %v1191 = vmul.f32 %v428, %v1152
      %v1192 = vmul.f32 %v429, %v1152
      %v1193 = vmul.f32 %v430, %v1152
      %v1194 = vmul.f32 %v431, %v1152
      %v1195 = vmul.f32 %v432, %v1152
      %v1196 = vmul.f32 %v433, %v1152
      %v1197 = vmul.f32 %v434, %v1152
      %v1198 = vmul.f32 %v435, %v1152
      %v1199 = vmul.f32 %v436, %v1152
      %v1200 = vmul.f32 %v437, %v1152
      %v1201 = vadd.f32 %v1101, %v1153
      %v1202 = vadd.f32 %v1102, %v1154
      %v1203 = vadd.f32 %v1103, %v1155
      %v1204 = vadd.f32 %v1104, %v1156
      %v1205 = vadd.f32 %v1105, %v1157
      %v1206 = vadd.f32 %v1106, %v1158
      %v1207 = vadd.f32 %v1107, %v1159
      %v1208 = vadd.f32 %v1108, %v1160
      %v1209 = vadd.f32 %v1109, %v1161
      %v1210 = vadd.f32 %v1110, %v1162
      %v1211 = vadd.f32 %v1111, %v1163
      %v1212 = vadd.f32 %v1112, %v1164
      %v1213 = vadd.f32 %v1113, %v1165
      %v1214 = vadd.f32 %v1114, %v1166
      %v1215 = vadd.f32 %v1115, %v1167
      %v1216 = vadd.f32 %v1116, %v1168
      %v1217 = vadd.f32 %v1117, %v1169
      %v1218 = vadd.f32 %v1118, %v1170
      %v1219 = vadd.f32 %v1119, %v1171
      %v1220 = vadd.f32 %v1120, %v1172
      %v1221 = vadd.f32 %v1121, %v1173
      %v1222 = vadd.f32 %v1122, %v1174
      %v1223 = vadd.f32 %v1123, %v1175
      %v1224 = vadd.f32 %v1124, %v1176
      %v1225 = vadd.f32 %v1125, %v1177
      %v1226 = vadd.f32 %v1126, %v1178
      %v1227 = vadd.f32 %v1127, %v1179
      %v1228 = vadd.f32 %v1128, %v1180
      %v1229 = vadd.f32 %v1129, %v1181
      %v1230 = vadd.f32 %v1130, %v1182
      %v1231 = vadd.f32 %v1131, %v1183
      %v1232 = vadd.f32 %v1132, %v1184
      %v1233 = vadd.f32 %v1133, %v1185
      %v1234 = vadd.f32 %v1134, %v1186
      %v1235 = vadd.f32 %v1135, %v1187
      %v1236 = vadd.f32 %v1136, %v1188
      %v1237 = vadd.f32 %v1137, %v1189
      %v1238 = vadd.f32 %v1138, %v1190
      %v1239 = vadd.f32 %v1139, %v1191
      %v1240 = vadd.f32 %v1140, %v1192
      %v1241 = vadd.f32 %v1141, %v1193
      %v1242 = vadd.f32 %v1142, %v1194
      %v1243 = vadd.f32 %v1143, %v1195
      %v1244 = vadd.f32 %v1144, %v1196
      %v1245 = vadd.f32 %v1145, %v1197
      %v1246 = vadd.f32 %v1146, %v1198
      %v1247 = vadd.f32 %v1147, %v1199
      %v1248 = vadd.f32 %v1148, %v1200
      %v1249 = vlaneseq
      %v1250 = vshrl.u32 %v1249, 7
      %v1251 = vsub.s32 1, %v1250
      %v1252 = vrot.slane %v616, %v1251
      %v1253 = vmul.f32 %v393, %v1252
      %v1254 = vmul.f32 %v394, %v1252
      %v1255 = vmul.f32 %v395, %v1252
      %v1256 = vmul.f32 %v396, %v1252
      %v1257 = vmul.f32 %v397, %v1252
      %v1258 = vmul.f32 %v398, %v1252
      %v1259 = vmul.f32 %v399, %v1252
      %v1260 = vmul.f32 %v400, %v1252
      %v1261 = vmul.f32 %v401, %v1252
      %v1262 = vmul.f32 %v402, %v1252
      %v1263 = vmul.f32 %v403, %v1252
      %v1264 = vmul.f32 %v404, %v1252
      %v1265 = vmul.f32 %v405, %v1252
      %v1266 = vmul.f32 %v406, %v1252
      %v1267 = vmul.f32 %v407, %v1252
      %v1268 = vmul.f32 %v408, %v1252
      %v1269 = vmul.f32 %v409, %v1252
      %v1270 = vmul.f32 %v410, %v1252
      %v1271 = vmul.f32 %v411, %v1252
      %v1272 = vmul.f32 %v412, %v1252
      %v1273 = vmul.f32 %v413, %v1252
      %v1274 = vmul.f32 %v414, %v1252
      %v1275 = vmul.f32 %v415, %v1252
      %v1276 = vmul.f32 %v416, %v1252
      %v1277 = vmul.f32 %v417, %v1252
      %v1278 = vmul.f32 %v418, %v1252
      %v1279 = vmul.f32 %v419, %v1252
      %v1280 = vmul.f32 %v420, %v1252
      %v1281 = vmul.f32 %v421, %v1252
      %v1282 = vmul.f32 %v422, %v1252
      %v1283 = vmul.f32 %v423, %v1252
      %v1284 = vmul.f32 %v424, %v1252
      %v1285 = vmul.f32 %v425, %v1252
      %v1286 = vmul.f32 %v426, %v1252
      %v1287 = vmul.f32 %v427, %v1252
      %v1288 = vmul.f32 %v428, %v1252
      %v1289 = vmul.f32 %v429, %v1252
      %v1290 = vmul.f32 %v430, %v1252
      %v1291 = vmul.f32 %v431, %v1252
      %v1292 = vmul.f32 %v432, %v1252
      %v1293 = vmul.f32 %v433, %v1252
      %v1294 = vmul.f32 %v434, %v1252
      %v1295 = vmul.f32 %v435, %v1252
      %v1296 = vmul.f32 %v436, %v1252
      %v1297 = vmul.f32 %v437, %v1252
      %v1298 = vmul.f32 %v438, %v1252
      %v1299 = vmul.f32 %v439, %v1252
      %v1300 = vmul.f32 %v440, %v1252
      %v1301 = vadd.f32 %v1201, %v1253
      %v1302 = vadd.f32 %v1202, %v1254
      %v1303 = vadd.f32 %v1203, %v1255
      %v1304 = vadd.f32 %v1204, %v1256
      %v1305 = vadd.f32 %v1205, %v1257
      %v1306 = vadd.f32 %v1206, %v1258
      %v1307 = vadd.f32 %v1207, %v1259
      %v1308 = vadd.f32 %v1208, %v1260
      %v1309 = vadd.f32 %v1209, %v1261
      %v1310 = vadd.f32 %v1210, %v1262
      %v1311 = vadd.f32 %v1211, %v1263
      %v1312 = vadd.f32 %v1212, %v1264
      %v1313 = vadd.f32 %v1213, %v1265
      %v1314 = vadd.f32 %v1214, %v1266
      %v1315 = vadd.f32 %v1215, %v1267
      %v1316 = vadd.f32 %v1216, %v1268
      %v1317 = vadd.f32 %v1217, %v1269
      %v1318 = vadd.f32 %v1218, %v1270
      %v1319 = vadd.f32 %v1219, %v1271
      %v1320 = vadd.f32 %v1220, %v1272
      %v1321 = vadd.f32 %v1221, %v1273
      %v1322 = vadd.f32 %v1222, %v1274
      %v1323 = vadd.f32 %v1223, %v1275
      %v1324 = vadd.f32 %v1224, %v1276
      %v1325 = vadd.f32 %v1225, %v1277
      %v1326 = vadd.f32 %v1226, %v1278
      %v1327 = vadd.f32 %v1227, %v1279
      %v1328 = vadd.f32 %v1228, %v1280
      %v1329 = vadd.f32 %v1229, %v1281
      %v1330 = vadd.f32 %v1230, %v1282
      %v1331 = vadd.f32 %v1231, %v1283
      %v1332 = vadd.f32 %v1232, %v1284
      %v1333 = vadd.f32 %v1233, %v1285
      %v1334 = vadd.f32 %v1234, %v1286
      %v1335 = vadd.f32 %v1235, %v1287
      %v1336 = vadd.f32 %v1236, %v1288
      %v1337 = vadd.f32 %v1237, %v1289
      %v1338 = vadd.f32 %v1238, %v1290
      %v1339 = vadd.f32 %v1239, %v1291
      %v1340 = vadd.f32 %v1240, %v1292
      %v1341 = vadd.f32 %v1241, %v1293
      %v1342 = vadd.f32 %v1242, %v1294
      %v1343 = vadd.f32 %v1243, %v1295
      %v1344 = vadd.f32 %v1244, %v1296
      %v1345 = vadd.f32 %v1245, %v1297
      %v1346 = vadd.f32 %v1246, %v1298
      %v1347 = vadd.f32 %v1247, %v1299
      %v1348 = vadd.f32 %v1248, %v1300
      %v1349 = vlaneseq
      %v1350 = vshrl.u32 %v1349, 7
      %v1351 = vsub.s32 1, %v1350
      %v1352 = vrot.slane %v617, %v1351
      %v1353 = vmul.f32 %v396, %v1352
      %v1354 = vmul.f32 %v397, %v1352
      %v1355 = vmul.f32 %v398, %v1352
      %v1356 = vmul.f32 %v399, %v1352
      %v1357 = vmul.f32 %v400, %v1352
      %v1358 = vmul.f32 %v401, %v1352
      %v1359 = vmul.f32 %v402, %v1352
      %v1360 = vmul.f32 %v403, %v1352
      %v1361 = vmul.f32 %v404, %v1352
      %v1362 = vmul.f32 %v405, %v1352
      %v1363 = vmul.f32 %v406, %v1352
      %v1364 = vmul.f32 %v407, %v1352
      %v1365 = vmul.f32 %v408, %v1352
      %v1366 = vmul.f32 %v409, %v1352
      %v1367 = vmul.f32 %v410, %v1352
      %v1368 = vmul.f32 %v411, %v1352
      %v1369 = vmul.f32 %v412, %v1352
      %v1370 = vmul.f32 %v413, %v1352
      %v1371 = vmul.f32 %v414, %v1352
      %v1372 = vmul.f32 %v415, %v1352
      %v1373 = vmul.f32 %v416, %v1352
      %v1374 = vmul.f32 %v417, %v1352
      %v1375 = vmul.f32 %v418, %v1352
      %v1376 = vmul.f32 %v419, %v1352
      %v1377 = vmul.f32 %v420, %v1352
      %v1378 = vmul.f32 %v421, %v1352
      %v1379 = vmul.f32 %v422, %v1352
      %v1380 = vmul.f32 %v423, %v1352
      %v1381 = vmul.f32 %v424, %v1352
      %v1382 = vmul.f32 %v425, %v1352
      %v1383 = vmul.f32 %v426, %v1352
      %v1384 = vmul.f32 %v427, %v1352
      %v1385 = vmul.f32 %v428, %v1352
      %v1386 = vmul.f32 %v429, %v1352
      %v1387 = vmul.f32 %v430, %v1352
      %v1388 = vmul.f32 %v431, %v1352
      %v1389 = vmul.f32 %v432, %v1352
      %v1390 = vmul.f32 %v433, %v1352
      %v1391 = vmul.f32 %v434, %v1352
      %v1392 = vmul.f32 %v435, %v1352
      %v1393 = vmul.f32 %v436, %v1352
      %v1394 = vmul.f32 %v437, %v1352
      %v1395 = vmul.f32 %v438, %v1352
      %v1396 = vmul.f32 %v439, %v1352
      %v1397 = vmul.f32 %v440, %v1352
      %v1398 = vmul.f32 %v441, %v1352
      %v1399 = vmul.f32 %v442, %v1352
      %v1400 = vmul.f32 %v443, %v1352
      %v1401 = vadd.f32 %v1301, %v1353
      %v1402 = vadd.f32 %v1302, %v1354
      %v1403 = vadd.f32 %v1303, %v1355
      %v1404 = vadd.f32 %v1304, %v1356
      %v1405 = vadd.f32 %v1305, %v1357
      %v1406 = vadd.f32 %v1306, %v1358
      %v1407 = vadd.f32 %v1307, %v1359
      %v1408 = vadd.f32 %v1308, %v1360
      %v1409 = vadd.f32 %v1309, %v1361
      %v1410 = vadd.f32 %v1310, %v1362
      %v1411 = vadd.f32 %v1311, %v1363
      %v1412 = vadd.f32 %v1312, %v1364
      %v1413 = vadd.f32 %v1313, %v1365
      %v1414 = vadd.f32 %v1314, %v1366
      %v1415 = vadd.f32 %v1315, %v1367
      %v1416 = vadd.f32 %v1316, %v1368
      %v1417 = vadd.f32 %v1317, %v1369
      %v1418 = vadd.f32 %v1318, %v1370
      %v1419 = vadd.f32 %v1319, %v1371
      %v1420 = vadd.f32 %v1320, %v1372
      %v1421 = vadd.f32 %v1321, %v1373
      %v1422 = vadd.f32 %v1322, %v1374
      %v1423 = vadd.f32 %v1323, %v1375
      %v1424 = vadd.f32 %v1324, %v1376
      %v1425 = vadd.f32 %v1325, %v1377
      %v1426 = vadd.f32 %v1326, %v1378
      %v1427 = vadd.f32 %v1327, %v1379
      %v1428 = vadd.f32 %v1328, %v1380
      %v1429 = vadd.f32 %v1329, %v1381
      %v1430 = vadd.f32 %v1330, %v1382
      %v1431 = vadd.f32 %v1331, %v1383
      %v1432 = vadd.f32 %v1332, %v1384
      %v1433 = vadd.f32 %v1333, %v1385
      %v1434 = vadd.f32 %v1334, %v1386
      %v1435 = vadd.f32 %v1335, %v1387
      %v1436 = vadd.f32 %v1336, %v1388
      %v1437 = vadd.f32 %v1337, %v1389
      %v1438 = vadd.f32 %v1338, %v1390
      %v1439 = vadd.f32 %v1339, %v1391
      %v1440 = vadd.f32 %v1340, %v1392
      %v1441 = vadd.f32 %v1341, %v1393
      %v1442 = vadd.f32 %v1342, %v1394
      %v1443 = vadd.f32 %v1343, %v1395
      %v1444 = vadd.f32 %v1344, %v1396
      %v1445 = vadd.f32 %v1345, %v1397
      %v1446 = vadd.f32 %v1346, %v1398
      %v1447 = vadd.f32 %v1347, %v1399
      %v1448 = vadd.f32 %v1348, %v1400
      %v1449 = vlaneseq
      %v1450 = vshrl.u32 %v1449, 7
      %v1451 = vsub.s32 1, %v1450
      %v1452 = vrot.slane %v618, %v1451
      %v1453 = vmul.f32 %v399, %v1452
      %v1454 = vmul.f32 %v400, %v1452
      %v1455 = vmul.f32 %v401, %v1452
      %v1456 = vmul.f32 %v402, %v1452
      %v1457 = vmul.f32 %v403, %v1452
      %v1458 = vmul.f32 %v404, %v1452
      %v1459 = vmul.f32 %v405, %v1452
      %v1460 = vmul.f32 %v406, %v1452
      %v1461 = vmul.f32 %v407, %v1452
      %v1462 = vmul.f32 %v408, %v1452
      %v1463 = vmul.f32 %v409, %v1452
      %v1464 = vmul.f32 %v410, %v1452
      %v1465 = vmul.f32 %v411, %v1452
      %v1466 = vmul.f32 %v412, %v1452
      %v1467 = vmul.f32 %v413, %v1452
      %v1468 = vmul.f32 %v414, %v1452
      %v1469 = vmul.f32 %v415, %v1452
      %v1470 = vmul.f32 %v416, %v1452
      %v1471 = vmul.f32 %v417, %v1452
      %v1472 = vmul.f32 %v418, %v1452
      %v1473 = vmul.f32 %v419, %v1452
      %v1474 = vmul.f32 %v420, %v1452
      %v1475 = vmul.f32 %v421, %v1452
      %v1476 = vmul.f32 %v422, %v1452
      %v1477 = vmul.f32 %v423, %v1452
      %v1478 = vmul.f32 %v424, %v1452
      %v1479 = vmul.f32 %v425, %v1452
      %v1480 = vmul.f32 %v426, %v1452
      %v1481 = vmul.f32 %v427, %v1452
      %v1482 = vmul.f32 %v428, %v1452
      %v1483 = vmul.f32 %v429, %v1452
      %v1484 = vmul.f32 %v430, %v1452
      %v1485 = vmul.f32 %v431, %v1452
      %v1486 = vmul.f32 %v432, %v1452
      %v1487 = vmul.f32 %v433, %v1452
      %v1488 = vmul.f32 %v434, %v1452
      %v1489 = vmul.f32 %v435, %v1452
      %v1490 = vmul.f32 %v436, %v1452
      %v1491 = vmul.f32 %v437, %v1452
      %v1492 = vmul.f32 %v438, %v1452
      %v1493 = vmul.f32 %v439, %v1452
      %v1494 = vmul.f32 %v440, %v1452
      %v1495 = vmul.f32 %v441, %v1452
      %v1496 = vmul.f32 %v442, %v1452
      %v1497 = vmul.f32 %v443, %v1452
      %v1498 = vmul.f32 %v444, %v1452
      %v1499 = vmul.f32 %v445, %v1452
      %v1500 = vmul.f32 %v446, %v1452
      %v1501 = vadd.f32 %v1401, %v1453
      %v1502 = vadd.f32 %v1402, %v1454
      %v1503 = vadd.f32 %v1403, %v1455
      %v1504 = vadd.f32 %v1404, %v1456
      %v1505 = vadd.f32 %v1405, %v1457
      %v1506 = vadd.f32 %v1406, %v1458
      %v1507 = vadd.f32 %v1407, %v1459
      %v1508 = vadd.f32 %v1408, %v1460
      %v1509 = vadd.f32 %v1409, %v1461
      %v1510 = vadd.f32 %v1410, %v1462
      %v1511 = vadd.f32 %v1411, %v1463
      %v1512 = vadd.f32 %v1412, %v1464
      %v1513 = vadd.f32 %v1413, %v1465
      %v1514 = vadd.f32 %v1414, %v1466
      %v1515 = vadd.f32 %v1415, %v1467
      %v1516 = vadd.f32 %v1416, %v1468
      %v1517 = vadd.f32 %v1417, %v1469
      %v1518 = vadd.f32 %v1418, %v1470
      %v1519 = vadd.f32 %v1419, %v1471
      %v1520 = vadd.f32 %v1420, %v1472
      %v1521 = vadd.f32 %v1421, %v1473
      %v1522 = vadd.f32 %v1422, %v1474
      %v1523 = vadd.f32 %v1423, %v1475
      %v1524 = vadd.f32 %v1424, %v1476
      %v1525 = vadd.f32 %v1425, %v1477
      %v1526 = vadd.f32 %v1426, %v1478
      %v1527 = vadd.f32 %v1427, %v1479
      %v1528 = vadd.f32 %v1428, %v1480
      %v1529 = vadd.f32 %v1429, %v1481
      %v1530 = vadd.f32 %v1430, %v1482
      %v1531 = vadd.f32 %v1431, %v1483
      %v1532 = vadd.f32 %v1432, %v1484
      %v1533 = vadd.f32 %v1433, %v1485
      %v1534 = vadd.f32 %v1434, %v1486
      %v1535 = vadd.f32 %v1435, %v1487
      %v1536 = vadd.f32 %v1436, %v1488
      %v1537 = vadd.f32 %v1437, %v1489
      %v1538 = vadd.f32 %v1438, %v1490
      %v1539 = vadd.f32 %v1439, %v1491
      %v1540 = vadd.f32 %v1440, %v1492
      %v1541 = vadd.f32 %v1441, %v1493
      %v1542 = vadd.f32 %v1442, %v1494
      %v1543 = vadd.f32 %v1443, %v1495
      %v1544 = vadd.f32 %v1444, %v1496
      %v1545 = vadd.f32 %v1445, %v1497
      %v1546 = vadd.f32 %v1446, %v1498
      %v1547 = vadd.f32 %v1447, %v1499
      %v1548 = vadd.f32 %v1448, %v1500
      %v1549 = vlaneseq
      %v1550 = vshrl.u32 %v1549, 7
      %v1551 = vsub.s32 1, %v1550
      %v1552 = vrot.slane %v619, %v1551
      %v1553 = vmul.f32 %v402, %v1552
      %v1554 = vmul.f32 %v403, %v1552
      %v1555 = vmul.f32 %v404, %v1552
      %v1556 = vmul.f32 %v405, %v1552
      %v1557 = vmul.f32 %v406, %v1552
      %v1558 = vmul.f32 %v407, %v1552
      %v1559 = vmul.f32 %v408, %v1552
      %v1560 = vmul.f32 %v409, %v1552
      %v1561 = vmul.f32 %v410, %v1552
      %v1562 = vmul.f32 %v411, %v1552
      %v1563 = vmul.f32 %v412, %v1552
      %v1564 = vmul.f32 %v413, %v1552
      %v1565 = vmul.f32 %v414, %v1552
      %v1566 = vmul.f32 %v415, %v1552
      %v1567 = vmul.f32 %v416, %v1552
      %v1568 = vmul.f32 %v417, %v1552
      %v1569 = vmul.f32 %v418, %v1552
      %v1570 = vmul.f32 %v419, %v1552
      %v1571 = vmul.f32 %v420, %v1552
      %v1572 = vmul.f32 %v421, %v1552
      %v1573 = vmul.f32 %v422, %v1552
      %v1574 = vmul.f32 %v423, %v1552
      %v1575 = vmul.f32 %v424, %v1552
      %v1576 = vmul.f32 %v425, %v1552
      %v1577 = vmul.f32 %v426, %v1552
      %v1578 = vmul.f32 %v427, %v1552
      %v1579 = vmul.f32 %v428, %v1552
      %v1580 = vmul.f32 %v429, %v1552
      %v1581 = vmul.f32 %v430, %v1552
      %v1582 = vmul.f32 %v431, %v1552
      %v1583 = vmul.f32 %v432, %v1552
      %v1584 = vmul.f32 %v433, %v1552
      %v1585 = vmul.f32 %v434, %v1552
      %v1586 = vmul.f32 %v435, %v1552
      %v1587 = vmul.f32 %v436, %v1552
      %v1588 = vmul.f32 %v437, %v1552
      %v1589 = vmul.f32 %v438, %v1552
      %v1590 = vmul.f32 %v439, %v1552
      %v1591 = vmul.f32 %v440, %v1552
      %v1592 = vmul.f32 %v441, %v1552
      %v1593 = vmul.f32 %v442, %v1552
      %v1594 = vmul.f32 %v443, %v1552
      %v1595 = vmul.f32 %v444, %v1552
      %v1596 = vmul.f32 %v445, %v1552
      %v1597 = vmul.f32 %v446, %v1552
      %v1598 = vmul.f32 %v447, %v1552
      %v1599 = vmul.f32 %v448, %v1552
      %v1600 = vmul.f32 %v449, %v1552
      %v1601 = vadd.f32 %v1501, %v1553
      %v1602 = vadd.f32 %v1502, %v1554
      %v1603 = vadd.f32 %v1503, %v1555
      %v1604 = vadd.f32 %v1504, %v1556
      %v1605 = vadd.f32 %v1505, %v1557
      %v1606 = vadd.f32 %v1506, %v1558
      %v1607 = vadd.f32 %v1507, %v1559
      %v1608 = vadd.f32 %v1508, %v1560
      %v1609 = vadd.f32 %v1509, %v1561
      %v1610 = vadd.f32 %v1510, %v1562
      %v1611 = vadd.f32 %v1511, %v1563
      %v1612 = vadd.f32 %v1512, %v1564
      %v1613 = vadd.f32 %v1513, %v1565
      %v1614 = vadd.f32 %v1514, %v1566
      %v1615 = vadd.f32 %v1515, %v1567
      %v1616 = vadd.f32 %v1516, %v1568
      %v1617 = vadd.f32 %v1517, %v1569
      %v1618 = vadd.f32 %v1518, %v1570
      %v1619 = vadd.f32 %v1519, %v1571
      %v1620 = vadd.f32 %v1520, %v1572
      %v1621 = vadd.f32 %v1521, %v1573
      %v1622 = vadd.f32 %v1522, %v1574
      %v1623 = vadd.f32 %v1523, %v1575
      %v1624 = vadd.f32 %v1524, %v1576
      %v1625 = vadd.f32 %v1525, %v1577
      %v1626 = vadd.f32 %v1526, %v1578
      %v1627 = vadd.f32 %v1527, %v1579
      %v1628 = vadd.f32 %v1528, %v1580
      %v1629 = vadd.f32 %v1529, %v1581
      %v1630 = vadd.f32 %v1530, %v1582
      %v1631 = vadd.f32 %v1531, %v1583
      %v1632 = vadd.f32 %v1532, %v1584
      %v1633 = vadd.f32 %v1533, %v1585
      %v1634 = vadd.f32 %v1534, %v1586
      %v1635 = vadd.f32 %v1535, %v1587
      %v1636 = vadd.f32 %v1536, %v1588
      %v1637 = vadd.f32 %v1537, %v1589
      %v1638 = vadd.f32 %v1538, %v1590
      %v1639 = vadd.f32 %v1539, %v1591
      %v1640 = vadd.f32 %v1540, %v1592
      %v1641 = vadd.f32 %v1541, %v1593
      %v1642 = vadd.f32 %v1542, %v1594
      %v1643 = vadd.f32 %v1543, %v1595
      %v1644 = vadd.f32 %v1544, %v1596
      %v1645 = vadd.f32 %v1545, %v1597
      %v1646 = vadd.f32 %v1546, %v1598
      %v1647 = vadd.f32 %v1547, %v1599
      %v1648 = vadd.f32 %v1548, %v1600
      %v1649 = vlaneseq
      %v1650 = vshrl.u32 %v1649, 7
      %v1651 = vsub.s32 1, %v1650
      %v1652 = vrot.slane %v620, %v1651
      %v1653 = vmul.f32 %v405, %v1652
      %v1654 = vmul.f32 %v406, %v1652
      %v1655 = vmul.f32 %v407, %v1652
      %v1656 = vmul.f32 %v408, %v1652
      %v1657 = vmul.f32 %v409, %v1652
      %v1658 = vmul.f32 %v410, %v1652
      %v1659 = vmul.f32 %v411, %v1652
      %v1660 = vmul.f32 %v412, %v1652
      %v1661 = vmul.f32 %v413, %v1652
      %v1662 = vmul.f32 %v414, %v1652
      %v1663 = vmul.f32 %v415, %v1652
      %v1664 = vmul.f32 %v416, %v1652
      %v1665 = vmul.f32 %v417, %v1652
      %v1666 = vmul.f32 %v418, %v1652
      %v1667 = vmul.f32 %v419, %v1652
      %v1668 = vmul.f32 %v420, %v1652
      %v1669 = vmul.f32 %v421, %v1652
      %v1670 = vmul.f32 %v422, %v1652
      %v1671 = vmul.f32 %v423, %v1652
      %v1672 = vmul.f32 %v424, %v1652
      %v1673 = vmul.f32 %v425, %v1652
      %v1674 = vmul.f32 %v426, %v1652
      %v1675 = vmul.f32 %v427, %v1652
      %v1676 = vmul.f32 %v428, %v1652
      %v1677 = vmul.f32 %v429, %v1652
      %v1678 = vmul.f32 %v430, %v1652
      %v1679 = vmul.f32 %v431, %v1652
      %v1680 = vmul.f32 %v432, %v1652
      %v1681 = vmul.f32 %v433, %v1652
      %v1682 = vmul.f32 %v434, %v1652
      %v1683 = vmul.f32 %v435, %v1652
      %v1684 = vmul.f32 %v436, %v1652
      %v1685 = vmul.f32 %v437, %v1652
      %v1686 = vmul.f32 %v438, %v1652
      %v1687 = vmul.f32 %v439, %v1652
      %v1688 = vmul.f32 %v440, %v1652
      %v1689 = vmul.f32 %v441, %v1652
      %v1690 = vmul.f32 %v442, %v1652
      %v1691 = vmul.f32 %v443, %v1652
      %v1692 = vmul.f32 %v444, %v1652
      %v1693 = vmul.f32 %v445, %v1652
      %v1694 = vmul.f32 %v446, %v1652
      %v1695 = vmul.f32 %v447, %v1652
      %v1696 = vmul.f32 %v448, %v1652
      %v1697 = vmul.f32 %v449, %v1652
      %v1698 = vmul.f32 %v450, %v1652
      %v1699 = vmul.f32 %v451, %v1652
      %v1700 = vmul.f32 %v452, %v1652
      %v1701 = vadd.f32 %v1601, %v1653
      %v1702 = vadd.f32 %v1602, %v1654
      %v1703 = vadd.f32 %v1603, %v1655
      %v1704 = vadd.f32 %v1604, %v1656
      %v1705 = vadd.f32 %v1605, %v1657
      %v1706 = vadd.f32 %v1606, %v1658
      %v1707 = vadd.f32 %v1607, %v1659
      %v1708 = vadd.f32 %v1608, %v1660
      %v1709 = vadd.f32 %v1609, %v1661
      %v1710 = vadd.f32 %v1610, %v1662
      %v1711 = vadd.f32 %v1611, %v1663
      %v1712 = vadd.f32 %v1612, %v1664
      %v1713 = vadd.f32 %v1613, %v1665
      %v1714 = vadd.f32 %v1614, %v1666
      %v1715 = vadd.f32 %v1615, %v1667
      %v1716 = vadd.f32 %v1616, %v1668
      %v1717 = vadd.f32 %v1617, %v1669
      %v1718 = vadd.f32 %v1618, %v1670
      %v1719 = vadd.f32 %v1619, %v1671
      %v1720 = vadd.f32 %v1620, %v1672
      %v1721 = vadd.f32 %v1621, %v1673
      %v1722 = vadd.f32 %v1622, %v1674
      %v1723 = vadd.f32 %v1623, %v1675
      %v1724 = vadd.f32 %v1624, %v1676
      %v1725 = vadd.f32 %v1625, %v1677
      %v1726 = vadd.f32 %v1626, %v1678
      %v1727 = vadd.f32 %v1627, %v1679
      %v1728 = vadd.f32 %v1628, %v1680
      %v1729 = vadd.f32 %v1629, %v1681
      %v1730 = vadd.f32 %v1630, %v1682
      %v1731 = vadd.f32 %v1631, %v1683
      %v1732 = vadd.f32 %v1632, %v1684
      %v1733 = vadd.f32 %v1633, %v1685
      %v1734 = vadd.f32 %v1634, %v1686
      %v1735 = vadd.f32 %v1635, %v1687
      %v1736 = vadd.f32 %v1636, %v1688
      %v1737 = vadd.f32 %v1637, %v1689
      %v1738 = vadd.f32 %v1638, %v1690
      %v1739 = vadd.f32 %v1639, %v1691
      %v1740 = vadd.f32 %v1640, %v1692
      %v1741 = vadd.f32 %v1641, %v1693
      %v1742 = vadd.f32 %v1642, %v1694
      %v1743 = vadd.f32 %v1643, %v1695
      %v1744 = vadd.f32 %v1644, %v1696
      %v1745 = vadd.f32 %v1645, %v1697
      %v1746 = vadd.f32 %v1646, %v1698
      %v1747 = vadd.f32 %v1647, %v1699
      %v1748 = vadd.f32 %v1648, %v1700
      %vm1797 = vcmask 1046528
      %v1798 = vrot.slane %v1701, 1
      %v1799 = vrot.slane %v1702, 1
      %v1800 = vsel %vm1797, %v1798, %v1799
      %v1801 = vrot.slane %v1703, 1
      %v1802 = vsel %vm1797, %v1799, %v1801
      %v1803 = vrot.slane %v1704, 1
      %v1804 = vrot.slane %v1705, 1
      %v1805 = vsel %vm1797, %v1803, %v1804
      %v1806 = vrot.slane %v1706, 1
      %v1807 = vsel %vm1797, %v1804, %v1806
      %v1808 = vrot.slane %v1707, 1
      %v1809 = vrot.slane %v1708, 1
      %v1810 = vsel %vm1797, %v1808, %v1809
      %v1811 = vrot.slane %v1709, 1
      %v1812 = vsel %vm1797, %v1809, %v1811
      %v1813 = vrot.slane %v1710, 1
      %v1814 = vrot.slane %v1711, 1
      %v1815 = vsel %vm1797, %v1813, %v1814
      %v1816 = vrot.slane %v1712, 1
      %v1817 = vsel %vm1797, %v1814, %v1816
      %v1818 = vrot.slane %v1713, 1
      %v1819 = vrot.slane %v1714, 1
      %v1820 = vsel %vm1797, %v1818, %v1819
      %v1821 = vrot.slane %v1715, 1
      %v1822 = vsel %vm1797, %v1819, %v1821
      %v1823 = vrot.slane %v1716, 1
      %v1824 = vrot.slane %v1717, 1
      %v1825 = vsel %vm1797, %v1823, %v1824
      %v1826 = vrot.slane %v1718, 1
      %v1827 = vsel %vm1797, %v1824, %v1826
      %v1828 = vrot.slane %v1719, 1
      %v1829 = vrot.slane %v1720, 1
      %v1830 = vsel %vm1797, %v1828, %v1829
      %v1831 = vrot.slane %v1721, 1
      %v1832 = vsel %vm1797, %v1829, %v1831
      %v1833 = vrot.slane %v1722, 1
      %v1834 = vrot.slane %v1723, 1
      %v1835 = vsel %vm1797, %v1833, %v1834
      %v1836 = vrot.slane %v1724, 1
      %v1837 = vsel %vm1797, %v1834, %v1836
      %v1838 = vrot.slane %v1725, 1
      %v1839 = vrot.slane %v1726, 1
      %v1840 = vsel %vm1797, %v1838, %v1839
      %v1841 = vrot.slane %v1727, 1
      %v1842 = vsel %vm1797, %v1839, %v1841
      %v1843 = vrot.slane %v1728, 1
      %v1844 = vrot.slane %v1729, 1
      %v1845 = vsel %vm1797, %v1843, %v1844
      %v1846 = vrot.slane %v1730, 1
      %v1847 = vsel %vm1797, %v1844, %v1846
      %v1848 = vrot.slane %v1731, 1
      %v1849 = vrot.slane %v1732, 1
      %v1850 = vsel %vm1797, %v1848, %v1849
      %v1851 = vrot.slane %v1733, 1
      %v1852 = vsel %vm1797, %v1849, %v1851
      %v1853 = vrot.slane %v1734, 1
      %v1854 = vrot.slane %v1735, 1
      %v1855 = vsel %vm1797, %v1853, %v1854
      %v1856 = vrot.slane %v1736, 1
      %v1857 = vsel %vm1797, %v1854, %v1856
      %v1858 = vrot.slane %v1737, 1
      %v1859 = vrot.slane %v1738, 1
      %v1860 = vsel %vm1797, %v1858, %v1859
      %v1861 = vrot.slane %v1739, 1
      %v1862 = vsel %vm1797, %v1859, %v1861
      %v1863 = vrot.slane %v1740, 1
      %v1864 = vrot.slane %v1741, 1
      %v1865 = vsel %vm1797, %v1863, %v1864
      %v1866 = vrot.slane %v1742, 1
      %v1867 = vsel %vm1797, %v1864, %v1866
      %v1868 = vrot.slane %v1743, 1
      %v1869 = vrot.slane %v1744, 1
      %v1870 = vsel %vm1797, %v1868, %v1869
      %v1871 = vrot.slane %v1745, 1
      %v1872 = vsel %vm1797, %v1869, %v1871
      %v1873 = vrot.slane %v1746, 1
      %v1874 = vrot.slane %v1747, 1
      %v1875 = vsel %vm1797, %v1873, %v1874
      %v1876 = vrot.slane %v1748, 1
      %v1877 = vsel %vm1797, %v1874, %v1876
      %v1910 = vadd.f32 %v1065, %v1800
      %v1911 = vadd.f32 %v1066, %v1802
      %v1912 = vadd.f32 %v1067, %v1805
      %v1913 = vadd.f32 %v1068, %v1807
      %v1914 = vadd.f32 %v1069, %v1810
      %v1915 = vadd.f32 %v1070, %v1812
      %v1916 = vadd.f32 %v1071, %v1815
      %v1917 = vadd.f32 %v1072, %v1817
      %v1918 = vadd.f32 %v1073, %v1820
      %v1919 = vadd.f32 %v1074, %v1822
      %v1920 = vadd.f32 %v1075, %v1825
      %v1921 = vadd.f32 %v1076, %v1827
      %v1922 = vadd.f32 %v1077, %v1830
      %v1923 = vadd.f32 %v1078, %v1832
      %v1924 = vadd.f32 %v1079, %v1835
      %v1925 = vadd.f32 %v1080, %v1837
      %v1926 = vadd.f32 %v1081, %v1840
      %v1927 = vadd.f32 %v1082, %v1842
      %v1928 = vadd.f32 %v1083, %v1845
      %v1929 = vadd.f32 %v1084, %v1847
      %v1930 = vadd.f32 %v1085, %v1850
      %v1931 = vadd.f32 %v1086, %v1852
      %v1932 = vadd.f32 %v1087, %v1855
      %v1933 = vadd.f32 %v1088, %v1857
      %v1934 = vadd.f32 %v1089, %v1860
      %v1935 = vadd.f32 %v1090, %v1862
      %v1936 = vadd.f32 %v1091, %v1865
      %v1937 = vadd.f32 %v1092, %v1867
      %v1938 = vadd.f32 %v1093, %v1870
      %v1939 = vadd.f32 %v1094, %v1872
      %v1940 = vadd.f32 %v1095, %v1875
      %v1941 = vadd.f32 %v1096, %v1877
      %v1942 = vlaneseq
      %v1943 = vshrl.u32 %v1942, 7
      %v1944 = vsub.s32 2, %v1943
      %v1945 = vrot.slane %v614, %v1944
      %v1946 = vmul.f32 %v387, %v1945
      %v1947 = vmul.f32 %v388, %v1945
      %v1948 = vmul.f32 %v389, %v1945
      %v1949 = vmul.f32 %v390, %v1945
      %v1950 = vmul.f32 %v391, %v1945
      %v1951 = vmul.f32 %v392, %v1945
      %v1952 = vmul.f32 %v393, %v1945
      %v1953 = vmul.f32 %v394, %v1945
      %v1954 = vmul.f32 %v395, %v1945
      %v1955 = vmul.f32 %v396, %v1945
      %v1956 = vmul.f32 %v397, %v1945
      %v1957 = vmul.f32 %v398, %v1945
      %v1958 = vmul.f32 %v399, %v1945
      %v1959 = vmul.f32 %v400, %v1945
      %v1960 = vmul.f32 %v401, %v1945
      %v1961 = vmul.f32 %v402, %v1945
      %v1962 = vmul.f32 %v403, %v1945
      %v1963 = vmul.f32 %v404, %v1945
      %v1964 = vmul.f32 %v405, %v1945
      %v1965 = vmul.f32 %v406, %v1945
      %v1966 = vmul.f32 %v407, %v1945
      %v1967 = vmul.f32 %v408, %v1945
      %v1968 = vmul.f32 %v409, %v1945
      %v1969 = vmul.f32 %v410, %v1945
      %v1970 = vmul.f32 %v411, %v1945
      %v1971 = vmul.f32 %v412, %v1945
      %v1972 = vmul.f32 %v413, %v1945
      %v1973 = vmul.f32 %v414, %v1945
      %v1974 = vmul.f32 %v415, %v1945
      %v1975 = vmul.f32 %v416, %v1945
      %v1976 = vmul.f32 %v417, %v1945
      %v1977 = vmul.f32 %v418, %v1945
      %v1978 = vmul.f32 %v419, %v1945
      %v1979 = vmul.f32 %v420, %v1945
      %v1980 = vmul.f32 %v421, %v1945
      %v1981 = vmul.f32 %v422, %v1945
      %v1982 = vmul.f32 %v423, %v1945
      %v1983 = vmul.f32 %v424, %v1945
      %v1984 = vmul.f32 %v425, %v1945
      %v1985 = vmul.f32 %v426, %v1945
      %v1986 = vmul.f32 %v427, %v1945
      %v1987 = vmul.f32 %v428, %v1945
      %v1988 = vmul.f32 %v429, %v1945
      %v1989 = vmul.f32 %v430, %v1945
      %v1990 = vmul.f32 %v431, %v1945
      %v1991 = vmul.f32 %v432, %v1945
      %v1992 = vmul.f32 %v433, %v1945
      %v1993 = vmul.f32 %v434, %v1945
      %v1994 = vlaneseq
      %v1995 = vshrl.u32 %v1994, 7
      %v1996 = vsub.s32 2, %v1995
      %v1997 = vrot.slane %v615, %v1996
      %v1998 = vmul.f32 %v390, %v1997
      %v1999 = vmul.f32 %v391, %v1997
      %v2000 = vmul.f32 %v392, %v1997
      %v2001 = vmul.f32 %v393, %v1997
      %v2002 = vmul.f32 %v394, %v1997
      %v2003 = vmul.f32 %v395, %v1997
      %v2004 = vmul.f32 %v396, %v1997
      %v2005 = vmul.f32 %v397, %v1997
      %v2006 = vmul.f32 %v398, %v1997
      %v2007 = vmul.f32 %v399, %v1997
      %v2008 = vmul.f32 %v400, %v1997
      %v2009 = vmul.f32 %v401, %v1997
      %v2010 = vmul.f32 %v402, %v1997
      %v2011 = vmul.f32 %v403, %v1997
      %v2012 = vmul.f32 %v404, %v1997
      %v2013 = vmul.f32 %v405, %v1997
      %v2014 = vmul.f32 %v406, %v1997
      %v2015 = vmul.f32 %v407, %v1997
      %v2016 = vmul.f32 %v408, %v1997
      %v2017 = vmul.f32 %v409, %v1997
      %v2018 = vmul.f32 %v410, %v1997
      %v2019 = vmul.f32 %v411, %v1997
      %v2020 = vmul.f32 %v412, %v1997
      %v2021 = vmul.f32 %v413, %v1997
      %v2022 = vmul.f32 %v414, %v1997
      %v2023 = vmul.f32 %v415, %v1997
      %v2024 = vmul.f32 %v416, %v1997
      %v2025 = vmul.f32 %v417, %v1997
      %v2026 = vmul.f32 %v418, %v1997
      %v2027 = vmul.f32 %v419, %v1997
      %v2028 = vmul.f32 %v420, %v1997
      %v2029 = vmul.f32 %v421, %v1997
      %v2030 = vmul.f32 %v422, %v1997
      %v2031 = vmul.f32 %v423, %v1997
      %v2032 = vmul.f32 %v424, %v1997
      %v2033 = vmul.f32 %v425, %v1997
      %v2034 = vmul.f32 %v426, %v1997
      %v2035 = vmul.f32 %v427, %v1997
      %v2036 = vmul.f32 %v428, %v1997
      %v2037 = vmul.f32 %v429, %v1997
      %v2038 = vmul.f32 %v430, %v1997
      %v2039 = vmul.f32 %v431, %v1997
      %v2040 = vmul.f32 %v432, %v1997
      %v2041 = vmul.f32 %v433, %v1997
      %v2042 = vmul.f32 %v434, %v1997
      %v2043 = vmul.f32 %v435, %v1997
      %v2044 = vmul.f32 %v436, %v1997
      %v2045 = vmul.f32 %v437, %v1997
      %v2046 = vadd.f32 %v1946, %v1998
      %v2047 = vadd.f32 %v1947, %v1999
      %v2048 = vadd.f32 %v1948, %v2000
      %v2049 = vadd.f32 %v1949, %v2001
      %v2050 = vadd.f32 %v1950, %v2002
      %v2051 = vadd.f32 %v1951, %v2003
      %v2052 = vadd.f32 %v1952, %v2004
      %v2053 = vadd.f32 %v1953, %v2005
      %v2054 = vadd.f32 %v1954, %v2006
      %v2055 = vadd.f32 %v1955, %v2007
      %v2056 = vadd.f32 %v1956, %v2008
      %v2057 = vadd.f32 %v1957, %v2009
      %v2058 = vadd.f32 %v1958, %v2010
      %v2059 = vadd.f32 %v1959, %v2011
      %v2060 = vadd.f32 %v1960, %v2012
      %v2061 = vadd.f32 %v1961, %v2013
      %v2062 = vadd.f32 %v1962, %v2014
      %v2063 = vadd.f32 %v1963, %v2015
      %v2064 = vadd.f32 %v1964, %v2016
      %v2065 = vadd.f32 %v1965, %v2017
      %v2066 = vadd.f32 %v1966, %v2018
      %v2067 = vadd.f32 %v1967, %v2019
      %v2068 = vadd.f32 %v1968, %v2020
      %v2069 = vadd.f32 %v1969, %v2021
      %v2070 = vadd.f32 %v1970, %v2022
      %v2071 = vadd.f32 %v1971, %v2023
      %v2072 = vadd.f32 %v1972, %v2024
      %v2073 = vadd.f32 %v1973, %v2025
      %v2074 = vadd.f32 %v1974, %v2026
      %v2075 = vadd.f32 %v1975, %v2027
      %v2076 = vadd.f32 %v1976, %v2028
      %v2077 = vadd.f32 %v1977, %v2029
      %v2078 = vadd.f32 %v1978, %v2030
      %v2079 = vadd.f32 %v1979, %v2031
      %v2080 = vadd.f32 %v1980, %v2032
      %v2081 = vadd.f32 %v1981, %v2033
      %v2082 = vadd.f32 %v1982, %v2034
      %v2083 = vadd.f32 %v1983, %v2035
      %v2084 = vadd.f32 %v1984, %v2036
      %v2085 = vadd.f32 %v1985, %v2037
      %v2086 = vadd.f32 %v1986, %v2038
      %v2087 = vadd.f32 %v1987, %v2039
      %v2088 = vadd.f32 %v1988, %v2040
      %v2089 = vadd.f32 %v1989, %v2041
      %v2090 = vadd.f32 %v1990, %v2042
      %v2091 = vadd.f32 %v1991, %v2043
      %v2092 = vadd.f32 %v1992, %v2044
      %v2093 = vadd.f32 %v1993, %v2045
      %v2094 = vlaneseq
      %v2095 = vshrl.u32 %v2094, 7
      %v2096 = vsub.s32 2, %v2095
      %v2097 = vrot.slane %v616, %v2096
      %v2098 = vmul.f32 %v393, %v2097
      %v2099 = vmul.f32 %v394, %v2097
      %v2100 = vmul.f32 %v395, %v2097
      %v2101 = vmul.f32 %v396, %v2097
      %v2102 = vmul.f32 %v397, %v2097
      %v2103 = vmul.f32 %v398, %v2097
      %v2104 = vmul.f32 %v399, %v2097
      %v2105 = vmul.f32 %v400, %v2097
      %v2106 = vmul.f32 %v401, %v2097
      %v2107 = vmul.f32 %v402, %v2097
      %v2108 = vmul.f32 %v403, %v2097
      %v2109 = vmul.f32 %v404, %v2097
      %v2110 = vmul.f32 %v405, %v2097
      %v2111 = vmul.f32 %v406, %v2097
      %v2112 = vmul.f32 %v407, %v2097
      %v2113 = vmul.f32 %v408, %v2097
      %v2114 = vmul.f32 %v409, %v2097
      %v2115 = vmul.f32 %v410, %v2097
      %v2116 = vmul.f32 %v411, %v2097
      %v2117 = vmul.f32 %v412, %v2097
      %v2118 = vmul.f32 %v413, %v2097
      %v2119 = vmul.f32 %v414, %v2097
      %v2120 = vmul.f32 %v415, %v2097
      %v2121 = vmul.f32 %v416, %v2097
      %v2122 = vmul.f32 %v417, %v2097
      %v2123 = vmul.f32 %v418, %v2097
      %v2124 = vmul.f32 %v419, %v2097
      %v2125 = vmul.f32 %v420, %v2097
      %v2126 = vmul.f32 %v421, %v2097
      %v2127 = vmul.f32 %v422, %v2097
      %v2128 = vmul.f32 %v423, %v2097
      %v2129 = vmul.f32 %v424, %v2097
      %v2130 = vmul.f32 %v425, %v2097
      %v2131 = vmul.f32 %v426, %v2097
      %v2132 = vmul.f32 %v427, %v2097
      %v2133 = vmul.f32 %v428, %v2097
      %v2134 = vmul.f32 %v429, %v2097
      %v2135 = vmul.f32 %v430, %v2097
      %v2136 = vmul.f32 %v431, %v2097
      %v2137 = vmul.f32 %v432, %v2097
      %v2138 = vmul.f32 %v433, %v2097
      %v2139 = vmul.f32 %v434, %v2097
      %v2140 = vmul.f32 %v435, %v2097
      %v2141 = vmul.f32 %v436, %v2097
      %v2142 = vmul.f32 %v437, %v2097
      %v2143 = vmul.f32 %v438, %v2097
      %v2144 = vmul.f32 %v439, %v2097
      %v2145 = vmul.f32 %v440, %v2097
      %v2146 = vadd.f32 %v2046, %v2098
      %v2147 = vadd.f32 %v2047, %v2099
      %v2148 = vadd.f32 %v2048, %v2100
      %v2149 = vadd.f32 %v2049, %v2101
      %v2150 = vadd.f32 %v2050, %v2102
      %v2151 = vadd.f32 %v2051, %v2103
      %v2152 = vadd.f32 %v2052, %v2104
      %v2153 = vadd.f32 %v2053, %v2105
      %v2154 = vadd.f32 %v2054, %v2106
      %v2155 = vadd.f32 %v2055, %v2107
      %v2156 = vadd.f32 %v2056, %v2108
      %v2157 = vadd.f32 %v2057, %v2109
      %v2158 = vadd.f32 %v2058, %v2110
      %v2159 = vadd.f32 %v2059, %v2111
      %v2160 = vadd.f32 %v2060, %v2112
      %v2161 = vadd.f32 %v2061, %v2113
      %v2162 = vadd.f32 %v2062, %v2114
      %v2163 = vadd.f32 %v2063, %v2115
      %v2164 = vadd.f32 %v2064, %v2116
      %v2165 = vadd.f32 %v2065, %v2117
      %v2166 = vadd.f32 %v2066, %v2118
      %v2167 = vadd.f32 %v2067, %v2119
      %v2168 = vadd.f32 %v2068, %v2120
      %v2169 = vadd.f32 %v2069, %v2121
      %v2170 = vadd.f32 %v2070, %v2122
      %v2171 = vadd.f32 %v2071, %v2123
      %v2172 = vadd.f32 %v2072, %v2124
      %v2173 = vadd.f32 %v2073, %v2125
      %v2174 = vadd.f32 %v2074, %v2126
      %v2175 = vadd.f32 %v2075, %v2127
      %v2176 = vadd.f32 %v2076, %v2128
      %v2177 = vadd.f32 %v2077, %v2129
      %v2178 = vadd.f32 %v2078, %v2130
      %v2179 = vadd.f32 %v2079, %v2131
      %v2180 = vadd.f32 %v2080, %v2132
      %v2181 = vadd.f32 %v2081, %v2133
      %v2182 = vadd.f32 %v2082, %v2134
      %v2183 = vadd.f32 %v2083, %v2135
      %v2184 = vadd.f32 %v2084, %v2136
      %v2185 = vadd.f32 %v2085, %v2137
      %v2186 = vadd.f32 %v2086, %v2138
      %v2187 = vadd.f32 %v2087, %v2139
      %v2188 = vadd.f32 %v2088, %v2140
      %v2189 = vadd.f32 %v2089, %v2141
      %v2190 = vadd.f32 %v2090, %v2142
      %v2191 = vadd.f32 %v2091, %v2143
      %v2192 = vadd.f32 %v2092, %v2144
      %v2193 = vadd.f32 %v2093, %v2145
      %v2194 = vlaneseq
      %v2195 = vshrl.u32 %v2194, 7
      %v2196 = vsub.s32 2, %v2195
      %v2197 = vrot.slane %v617, %v2196
      %v2198 = vmul.f32 %v396, %v2197
      %v2199 = vmul.f32 %v397, %v2197
      %v2200 = vmul.f32 %v398, %v2197
      %v2201 = vmul.f32 %v399, %v2197
      %v2202 = vmul.f32 %v400, %v2197
      %v2203 = vmul.f32 %v401, %v2197
      %v2204 = vmul.f32 %v402, %v2197
      %v2205 = vmul.f32 %v403, %v2197
      %v2206 = vmul.f32 %v404, %v2197
      %v2207 = vmul.f32 %v405, %v2197
      %v2208 = vmul.f32 %v406, %v2197
      %v2209 = vmul.f32 %v407, %v2197
      %v2210 = vmul.f32 %v408, %v2197
      %v2211 = vmul.f32 %v409, %v2197
      %v2212 = vmul.f32 %v410, %v2197
      %v2213 = vmul.f32 %v411, %v2197
      %v2214 = vmul.f32 %v412, %v2197
      %v2215 = vmul.f32 %v413, %v2197
      %v2216 = vmul.f32 %v414, %v2197
      %v2217 = vmul.f32 %v415, %v2197
      %v2218 = vmul.f32 %v416, %v2197
      %v2219 = vmul.f32 %v417, %v2197
      %v2220 = vmul.f32 %v418, %v2197
      %v2221 = vmul.f32 %v419, %v2197
      %v2222 = vmul.f32 %v420, %v2197
      %v2223 = vmul.f32 %v421, %v2197
      %v2224 = vmul.f32 %v422, %v2197
      %v2225 = vmul.f32 %v423, %v2197
      %v2226 = vmul.f32 %v424, %v2197
      %v2227 = vmul.f32 %v425, %v2197
      %v2228 = vmul.f32 %v426, %v2197
      %v2229 = vmul.f32 %v427, %v2197
      %v2230 = vmul.f32 %v428, %v2197
      %v2231 = vmul.f32 %v429, %v2197
      %v2232 = vmul.f32 %v430, %v2197
      %v2233 = vmul.f32 %v431, %v2197
      %v2234 = vmul.f32 %v432, %v2197
      %v2235 = vmul.f32 %v433, %v2197
      %v2236 = vmul.f32 %v434, %v2197
      %v2237 = vmul.f32 %v435, %v2197
      %v2238 = vmul.f32 %v436, %v2197
      %v2239 = vmul.f32 %v437, %v2197
      %v2240 = vmul.f32 %v438, %v2197
      %v2241 = vmul.f32 %v439, %v2197
      %v2242 = vmul.f32 %v440, %v2197
      %v2243 = vmul.f32 %v441, %v2197
      %v2244 = vmul.f32 %v442, %v2197
      %v2245 = vmul.f32 %v443, %v2197
      %v2246 = vadd.f32 %v2146, %v2198
      %v2247 = vadd.f32 %v2147, %v2199
      %v2248 = vadd.f32 %v2148, %v2200
      %v2249 = vadd.f32 %v2149, %v2201
      %v2250 = vadd.f32 %v2150, %v2202
      %v2251 = vadd.f32 %v2151, %v2203
      %v2252 = vadd.f32 %v2152, %v2204
      %v2253 = vadd.f32 %v2153, %v2205
      %v2254 = vadd.f32 %v2154, %v2206
      %v2255 = vadd.f32 %v2155, %v2207
      %v2256 = vadd.f32 %v2156, %v2208
      %v2257 = vadd.f32 %v2157, %v2209
      %v2258 = vadd.f32 %v2158, %v2210
      %v2259 = vadd.f32 %v2159, %v2211
      %v2260 = vadd.f32 %v2160, %v2212
      %v2261 = vadd.f32 %v2161, %v2213
      %v2262 = vadd.f32 %v2162, %v2214
      %v2263 = vadd.f32 %v2163, %v2215
      %v2264 = vadd.f32 %v2164, %v2216
      %v2265 = vadd.f32 %v2165, %v2217
      %v2266 = vadd.f32 %v2166, %v2218
      %v2267 = vadd.f32 %v2167, %v2219
      %v2268 = vadd.f32 %v2168, %v2220
      %v2269 = vadd.f32 %v2169, %v2221
      %v2270 = vadd.f32 %v2170, %v2222
      %v2271 = vadd.f32 %v2171, %v2223
      %v2272 = vadd.f32 %v2172, %v2224
      %v2273 = vadd.f32 %v2173, %v2225
      %v2274 = vadd.f32 %v2174, %v2226
      %v2275 = vadd.f32 %v2175, %v2227
      %v2276 = vadd.f32 %v2176, %v2228
      %v2277 = vadd.f32 %v2177, %v2229
      %v2278 = vadd.f32 %v2178, %v2230
      %v2279 = vadd.f32 %v2179, %v2231
      %v2280 = vadd.f32 %v2180, %v2232
      %v2281 = vadd.f32 %v2181, %v2233
      %v2282 = vadd.f32 %v2182, %v2234
      %v2283 = vadd.f32 %v2183, %v2235
      %v2284 = vadd.f32 %v2184, %v2236
      %v2285 = vadd.f32 %v2185, %v2237
      %v2286 = vadd.f32 %v2186, %v2238
      %v2287 = vadd.f32 %v2187, %v2239
      %v2288 = vadd.f32 %v2188, %v2240
      %v2289 = vadd.f32 %v2189, %v2241
      %v2290 = vadd.f32 %v2190, %v2242
      %v2291 = vadd.f32 %v2191, %v2243
      %v2292 = vadd.f32 %v2192, %v2244
      %v2293 = vadd.f32 %v2193, %v2245
      %v2294 = vlaneseq
      %v2295 = vshrl.u32 %v2294, 7
      %v2296 = vsub.s32 2, %v2295
      %v2297 = vrot.slane %v618, %v2296
      %v2298 = vmul.f32 %v399, %v2297
      %v2299 = vmul.f32 %v400, %v2297
      %v2300 = vmul.f32 %v401, %v2297
      %v2301 = vmul.f32 %v402, %v2297
      %v2302 = vmul.f32 %v403, %v2297
      %v2303 = vmul.f32 %v404, %v2297
      %v2304 = vmul.f32 %v405, %v2297
      %v2305 = vmul.f32 %v406, %v2297
      %v2306 = vmul.f32 %v407, %v2297
      %v2307 = vmul.f32 %v408, %v2297
      %v2308 = vmul.f32 %v409, %v2297
      %v2309 = vmul.f32 %v410, %v2297
      %v2310 = vmul.f32 %v411, %v2297
      %v2311 = vmul.f32 %v412, %v2297
      %v2312 = vmul.f32 %v413, %v2297
      %v2313 = vmul.f32 %v414, %v2297
      %v2314 = vmul.f32 %v415, %v2297
      %v2315 = vmul.f32 %v416, %v2297
      %v2316 = vmul.f32 %v417, %v2297
      %v2317 = vmul.f32 %v418, %v2297
      %v2318 = vmul.f32 %v419, %v2297
      %v2319 = vmul.f32 %v420, %v2297
      %v2320 = vmul.f32 %v421, %v2297
      %v2321 = vmul.f32 %v422, %v2297
      %v2322 = vmul.f32 %v423, %v2297
      %v2323 = vmul.f32 %v424, %v2297
      %v2324 = vmul.f32 %v425, %v2297
      %v2325 = vmul.f32 %v426, %v2297
      %v2326 = vmul.f32 %v427, %v2297
      %v2327 = vmul.f32 %v428, %v2297
      %v2328 = vmul.f32 %v429, %v2297
      %v2329 = vmul.f32 %v430, %v2297
      %v2330 = vmul.f32 %v431, %v2297
      %v2331 = vmul.f32 %v432, %v2297
      %v2332 = vmul.f32 %v433, %v2297
      %v2333 = vmul.f32 %v434, %v2297
      %v2334 = vmul.f32 %v435, %v2297
      %v2335 = vmul.f32 %v436, %v2297
      %v2336 = vmul.f32 %v437, %v2297
      %v2337 = vmul.f32 %v438, %v2297
      %v2338 = vmul.f32 %v439, %v2297
      %v2339 = vmul.f32 %v440, %v2297
      %v2340 = vmul.f32 %v441, %v2297
      %v2341 = vmul.f32 %v442, %v2297
      %v2342 = vmul.f32 %v443, %v2297
      %v2343 = vmul.f32 %v444, %v2297
      %v2344 = vmul.f32 %v445, %v2297
      %v2345 = vmul.f32 %v446, %v2297
      %v2346 = vadd.f32 %v2246, %v2298
      %v2347 = vadd.f32 %v2247, %v2299
      %v2348 = vadd.f32 %v2248, %v2300
      %v2349 = vadd.f32 %v2249, %v2301
      %v2350 = vadd.f32 %v2250, %v2302
      %v2351 = vadd.f32 %v2251, %v2303
      %v2352 = vadd.f32 %v2252, %v2304
      %v2353 = vadd.f32 %v2253, %v2305
      %v2354 = vadd.f32 %v2254, %v2306
      %v2355 = vadd.f32 %v2255, %v2307
      %v2356 = vadd.f32 %v2256, %v2308
      %v2357 = vadd.f32 %v2257, %v2309
      %v2358 = vadd.f32 %v2258, %v2310
      %v2359 = vadd.f32 %v2259, %v2311
      %v2360 = vadd.f32 %v2260, %v2312
      %v2361 = vadd.f32 %v2261, %v2313
      %v2362 = vadd.f32 %v2262, %v2314
      %v2363 = vadd.f32 %v2263, %v2315
      %v2364 = vadd.f32 %v2264, %v2316
      %v2365 = vadd.f32 %v2265, %v2317
      %v2366 = vadd.f32 %v2266, %v2318
      %v2367 = vadd.f32 %v2267, %v2319
      %v2368 = vadd.f32 %v2268, %v2320
      %v2369 = vadd.f32 %v2269, %v2321
      %v2370 = vadd.f32 %v2270, %v2322
      %v2371 = vadd.f32 %v2271, %v2323
      %v2372 = vadd.f32 %v2272, %v2324
      %v2373 = vadd.f32 %v2273, %v2325
      %v2374 = vadd.f32 %v2274, %v2326
      %v2375 = vadd.f32 %v2275, %v2327
      %v2376 = vadd.f32 %v2276, %v2328
      %v2377 = vadd.f32 %v2277, %v2329
      %v2378 = vadd.f32 %v2278, %v2330
      %v2379 = vadd.f32 %v2279, %v2331
      %v2380 = vadd.f32 %v2280, %v2332
      %v2381 = vadd.f32 %v2281, %v2333
      %v2382 = vadd.f32 %v2282, %v2334
      %v2383 = vadd.f32 %v2283, %v2335
      %v2384 = vadd.f32 %v2284, %v2336
      %v2385 = vadd.f32 %v2285, %v2337
      %v2386 = vadd.f32 %v2286, %v2338
      %v2387 = vadd.f32 %v2287, %v2339
      %v2388 = vadd.f32 %v2288, %v2340
      %v2389 = vadd.f32 %v2289, %v2341
      %v2390 = vadd.f32 %v2290, %v2342
      %v2391 = vadd.f32 %v2291, %v2343
      %v2392 = vadd.f32 %v2292, %v2344
      %v2393 = vadd.f32 %v2293, %v2345
      %v2394 = vlaneseq
      %v2395 = vshrl.u32 %v2394, 7
      %v2396 = vsub.s32 2, %v2395
      %v2397 = vrot.slane %v619, %v2396
      %v2398 = vmul.f32 %v402, %v2397
      %v2399 = vmul.f32 %v403, %v2397
      %v2400 = vmul.f32 %v404, %v2397
      %v2401 = vmul.f32 %v405, %v2397
      %v2402 = vmul.f32 %v406, %v2397
      %v2403 = vmul.f32 %v407, %v2397
      %v2404 = vmul.f32 %v408, %v2397
      %v2405 = vmul.f32 %v409, %v2397
      %v2406 = vmul.f32 %v410, %v2397
      %v2407 = vmul.f32 %v411, %v2397
      %v2408 = vmul.f32 %v412, %v2397
      %v2409 = vmul.f32 %v413, %v2397
      %v2410 = vmul.f32 %v414, %v2397
      %v2411 = vmul.f32 %v415, %v2397
      %v2412 = vmul.f32 %v416, %v2397
      %v2413 = vmul.f32 %v417, %v2397
      %v2414 = vmul.f32 %v418, %v2397
      %v2415 = vmul.f32 %v419, %v2397
      %v2416 = vmul.f32 %v420, %v2397
      %v2417 = vmul.f32 %v421, %v2397
      %v2418 = vmul.f32 %v422, %v2397
      %v2419 = vmul.f32 %v423, %v2397
      %v2420 = vmul.f32 %v424, %v2397
      %v2421 = vmul.f32 %v425, %v2397
      %v2422 = vmul.f32 %v426, %v2397
      %v2423 = vmul.f32 %v427, %v2397
      %v2424 = vmul.f32 %v428, %v2397
      %v2425 = vmul.f32 %v429, %v2397
      %v2426 = vmul.f32 %v430, %v2397
      %v2427 = vmul.f32 %v431, %v2397
      %v2428 = vmul.f32 %v432, %v2397
      %v2429 = vmul.f32 %v433, %v2397
      %v2430 = vmul.f32 %v434, %v2397
      %v2431 = vmul.f32 %v435, %v2397
      %v2432 = vmul.f32 %v436, %v2397
      %v2433 = vmul.f32 %v437, %v2397
      %v2434 = vmul.f32 %v438, %v2397
      %v2435 = vmul.f32 %v439, %v2397
      %v2436 = vmul.f32 %v440, %v2397
      %v2437 = vmul.f32 %v441, %v2397
      %v2438 = vmul.f32 %v442, %v2397
      %v2439 = vmul.f32 %v443, %v2397
      %v2440 = vmul.f32 %v444, %v2397
      %v2441 = vmul.f32 %v445, %v2397
      %v2442 = vmul.f32 %v446, %v2397
      %v2443 = vmul.f32 %v447, %v2397
      %v2444 = vmul.f32 %v448, %v2397
      %v2445 = vmul.f32 %v449, %v2397
      %v2446 = vadd.f32 %v2346, %v2398
      %v2447 = vadd.f32 %v2347, %v2399
      %v2448 = vadd.f32 %v2348, %v2400
      %v2449 = vadd.f32 %v2349, %v2401
      %v2450 = vadd.f32 %v2350, %v2402
      %v2451 = vadd.f32 %v2351, %v2403
      %v2452 = vadd.f32 %v2352, %v2404
      %v2453 = vadd.f32 %v2353, %v2405
      %v2454 = vadd.f32 %v2354, %v2406
      %v2455 = vadd.f32 %v2355, %v2407
      %v2456 = vadd.f32 %v2356, %v2408
      %v2457 = vadd.f32 %v2357, %v2409
      %v2458 = vadd.f32 %v2358, %v2410
      %v2459 = vadd.f32 %v2359, %v2411
      %v2460 = vadd.f32 %v2360, %v2412
      %v2461 = vadd.f32 %v2361, %v2413
      %v2462 = vadd.f32 %v2362, %v2414
      %v2463 = vadd.f32 %v2363, %v2415
      %v2464 = vadd.f32 %v2364, %v2416
      %v2465 = vadd.f32 %v2365, %v2417
      %v2466 = vadd.f32 %v2366, %v2418
      %v2467 = vadd.f32 %v2367, %v2419
      %v2468 = vadd.f32 %v2368, %v2420
      %v2469 = vadd.f32 %v2369, %v2421
      %v2470 = vadd.f32 %v2370, %v2422
      %v2471 = vadd.f32 %v2371, %v2423
      %v2472 = vadd.f32 %v2372, %v2424
      %v2473 = vadd.f32 %v2373, %v2425
      %v2474 = vadd.f32 %v2374, %v2426
      %v2475 = vadd.f32 %v2375, %v2427
      %v2476 = vadd.f32 %v2376, %v2428
      %v2477 = vadd.f32 %v2377, %v2429
      %v2478 = vadd.f32 %v2378, %v2430
      %v2479 = vadd.f32 %v2379, %v2431
      %v2480 = vadd.f32 %v2380, %v2432
      %v2481 = vadd.f32 %v2381, %v2433
      %v2482 = vadd.f32 %v2382, %v2434
      %v2483 = vadd.f32 %v2383, %v2435
      %v2484 = vadd.f32 %v2384, %v2436
      %v2485 = vadd.f32 %v2385, %v2437
      %v2486 = vadd.f32 %v2386, %v2438
      %v2487 = vadd.f32 %v2387, %v2439
      %v2488 = vadd.f32 %v2388, %v2440
      %v2489 = vadd.f32 %v2389, %v2441
      %v2490 = vadd.f32 %v2390, %v2442
      %v2491 = vadd.f32 %v2391, %v2443
      %v2492 = vadd.f32 %v2392, %v2444
      %v2493 = vadd.f32 %v2393, %v2445
      %v2494 = vlaneseq
      %v2495 = vshrl.u32 %v2494, 7
      %v2496 = vsub.s32 2, %v2495
      %v2497 = vrot.slane %v620, %v2496
      %v2498 = vmul.f32 %v405, %v2497
      %v2499 = vmul.f32 %v406, %v2497
      %v2500 = vmul.f32 %v407, %v2497
      %v2501 = vmul.f32 %v408, %v2497
      %v2502 = vmul.f32 %v409, %v2497
      %v2503 = vmul.f32 %v410, %v2497
      %v2504 = vmul.f32 %v411, %v2497
      %v2505 = vmul.f32 %v412, %v2497
      %v2506 = vmul.f32 %v413, %v2497
      %v2507 = vmul.f32 %v414, %v2497
      %v2508 = vmul.f32 %v415, %v2497
      %v2509 = vmul.f32 %v416, %v2497
      %v2510 = vmul.f32 %v417, %v2497
      %v2511 = vmul.f32 %v418, %v2497
      %v2512 = vmul.f32 %v419, %v2497
      %v2513 = vmul.f32 %v420, %v2497
      %v2514 = vmul.f32 %v421, %v2497
      %v2515 = vmul.f32 %v422, %v2497
      %v2516 = vmul.f32 %v423, %v2497
      %v2517 = vmul.f32 %v424, %v2497
      %v2518 = vmul.f32 %v425, %v2497
      %v2519 = vmul.f32 %v426, %v2497
      %v2520 = vmul.f32 %v427, %v2497
      %v2521 = vmul.f32 %v428, %v2497
      %v2522 = vmul.f32 %v429, %v2497
      %v2523 = vmul.f32 %v430, %v2497
      %v2524 = vmul.f32 %v431, %v2497
      %v2525 = vmul.f32 %v432, %v2497
      %v2526 = vmul.f32 %v433, %v2497
      %v2527 = vmul.f32 %v434, %v2497
      %v2528 = vmul.f32 %v435, %v2497
      %v2529 = vmul.f32 %v436, %v2497
      %v2530 = vmul.f32 %v437, %v2497
      %v2531 = vmul.f32 %v438, %v2497
      %v2532 = vmul.f32 %v439, %v2497
      %v2533 = vmul.f32 %v440, %v2497
      %v2534 = vmul.f32 %v441, %v2497
      %v2535 = vmul.f32 %v442, %v2497
      %v2536 = vmul.f32 %v443, %v2497
      %v2537 = vmul.f32 %v444, %v2497
      %v2538 = vmul.f32 %v445, %v2497
      %v2539 = vmul.f32 %v446, %v2497
      %v2540 = vmul.f32 %v447, %v2497
      %v2541 = vmul.f32 %v448, %v2497
      %v2542 = vmul.f32 %v449, %v2497
      %v2543 = vmul.f32 %v450, %v2497
      %v2544 = vmul.f32 %v451, %v2497
      %v2545 = vmul.f32 %v452, %v2497
      %v2546 = vadd.f32 %v2446, %v2498
      %v2547 = vadd.f32 %v2447, %v2499
      %v2548 = vadd.f32 %v2448, %v2500
      %v2549 = vadd.f32 %v2449, %v2501
      %v2550 = vadd.f32 %v2450, %v2502
      %v2551 = vadd.f32 %v2451, %v2503
      %v2552 = vadd.f32 %v2452, %v2504
      %v2553 = vadd.f32 %v2453, %v2505
      %v2554 = vadd.f32 %v2454, %v2506
      %v2555 = vadd.f32 %v2455, %v2507
      %v2556 = vadd.f32 %v2456, %v2508
      %v2557 = vadd.f32 %v2457, %v2509
      %v2558 = vadd.f32 %v2458, %v2510
      %v2559 = vadd.f32 %v2459, %v2511
      %v2560 = vadd.f32 %v2460, %v2512
      %v2561 = vadd.f32 %v2461, %v2513
      %v2562 = vadd.f32 %v2462, %v2514
      %v2563 = vadd.f32 %v2463, %v2515
      %v2564 = vadd.f32 %v2464, %v2516
      %v2565 = vadd.f32 %v2465, %v2517
      %v2566 = vadd.f32 %v2466, %v2518
      %v2567 = vadd.f32 %v2467, %v2519
      %v2568 = vadd.f32 %v2468, %v2520
      %v2569 = vadd.f32 %v2469, %v2521
      %v2570 = vadd.f32 %v2470, %v2522
      %v2571 = vadd.f32 %v2471, %v2523
      %v2572 = vadd.f32 %v2472, %v2524
      %v2573 = vadd.f32 %v2473, %v2525
      %v2574 = vadd.f32 %v2474, %v2526
      %v2575 = vadd.f32 %v2475, %v2527
      %v2576 = vadd.f32 %v2476, %v2528
      %v2577 = vadd.f32 %v2477, %v2529
      %v2578 = vadd.f32 %v2478, %v2530
      %v2579 = vadd.f32 %v2479, %v2531
      %v2580 = vadd.f32 %v2480, %v2532
      %v2581 = vadd.f32 %v2481, %v2533
      %v2582 = vadd.f32 %v2482, %v2534
      %v2583 = vadd.f32 %v2483, %v2535
      %v2584 = vadd.f32 %v2484, %v2536
      %v2585 = vadd.f32 %v2485, %v2537
      %v2586 = vadd.f32 %v2486, %v2538
      %v2587 = vadd.f32 %v2487, %v2539
      %v2588 = vadd.f32 %v2488, %v2540
      %v2589 = vadd.f32 %v2489, %v2541
      %v2590 = vadd.f32 %v2490, %v2542
      %v2591 = vadd.f32 %v2491, %v2543
      %v2592 = vadd.f32 %v2492, %v2544
      %v2593 = vadd.f32 %v2493, %v2545
      %vm2642 = vcmask 1045504
      %v2643 = vrot.slane %v2546, 2
      %v2644 = vrot.slane %v2547, 2
      %v2645 = vsel %vm2642, %v2643, %v2644
      %v2646 = vrot.slane %v2548, 2
      %v2647 = vsel %vm2642, %v2644, %v2646
      %v2648 = vrot.slane %v2549, 2
      %v2649 = vrot.slane %v2550, 2
      %v2650 = vsel %vm2642, %v2648, %v2649
      %v2651 = vrot.slane %v2551, 2
      %v2652 = vsel %vm2642, %v2649, %v2651
      %v2653 = vrot.slane %v2552, 2
      %v2654 = vrot.slane %v2553, 2
      %v2655 = vsel %vm2642, %v2653, %v2654
      %v2656 = vrot.slane %v2554, 2
      %v2657 = vsel %vm2642, %v2654, %v2656
      %v2658 = vrot.slane %v2555, 2
      %v2659 = vrot.slane %v2556, 2
      %v2660 = vsel %vm2642, %v2658, %v2659
      %v2661 = vrot.slane %v2557, 2
      %v2662 = vsel %vm2642, %v2659, %v2661
      %v2663 = vrot.slane %v2558, 2
      %v2664 = vrot.slane %v2559, 2
      %v2665 = vsel %vm2642, %v2663, %v2664
      %v2666 = vrot.slane %v2560, 2
      %v2667 = vsel %vm2642, %v2664, %v2666
      %v2668 = vrot.slane %v2561, 2
      %v2669 = vrot.slane %v2562, 2
      %v2670 = vsel %vm2642, %v2668, %v2669
      %v2671 = vrot.slane %v2563, 2
      %v2672 = vsel %vm2642, %v2669, %v2671
      %v2673 = vrot.slane %v2564, 2
      %v2674 = vrot.slane %v2565, 2
      %v2675 = vsel %vm2642, %v2673, %v2674
      %v2676 = vrot.slane %v2566, 2
      %v2677 = vsel %vm2642, %v2674, %v2676
      %v2678 = vrot.slane %v2567, 2
      %v2679 = vrot.slane %v2568, 2
      %v2680 = vsel %vm2642, %v2678, %v2679
      %v2681 = vrot.slane %v2569, 2
      %v2682 = vsel %vm2642, %v2679, %v2681
      %v2683 = vrot.slane %v2570, 2
      %v2684 = vrot.slane %v2571, 2
      %v2685 = vsel %vm2642, %v2683, %v2684
      %v2686 = vrot.slane %v2572, 2
      %v2687 = vsel %vm2642, %v2684, %v2686
      %v2688 = vrot.slane %v2573, 2
      %v2689 = vrot.slane %v2574, 2
      %v2690 = vsel %vm2642, %v2688, %v2689
      %v2691 = vrot.slane %v2575, 2
      %v2692 = vsel %vm2642, %v2689, %v2691
      %v2693 = vrot.slane %v2576, 2
      %v2694 = vrot.slane %v2577, 2
      %v2695 = vsel %vm2642, %v2693, %v2694
      %v2696 = vrot.slane %v2578, 2
      %v2697 = vsel %vm2642, %v2694, %v2696
      %v2698 = vrot.slane %v2579, 2
      %v2699 = vrot.slane %v2580, 2
      %v2700 = vsel %vm2642, %v2698, %v2699
      %v2701 = vrot.slane %v2581, 2
      %v2702 = vsel %vm2642, %v2699, %v2701
      %v2703 = vrot.slane %v2582, 2
      %v2704 = vrot.slane %v2583, 2
      %v2705 = vsel %vm2642, %v2703, %v2704
      %v2706 = vrot.slane %v2584, 2
      %v2707 = vsel %vm2642, %v2704, %v2706
      %v2708 = vrot.slane %v2585, 2
      %v2709 = vrot.slane %v2586, 2
      %v2710 = vsel %vm2642, %v2708, %v2709
      %v2711 = vrot.slane %v2587, 2
      %v2712 = vsel %vm2642, %v2709, %v2711
      %v2713 = vrot.slane %v2588, 2
      %v2714 = vrot.slane %v2589, 2
      %v2715 = vsel %vm2642, %v2713, %v2714
      %v2716 = vrot.slane %v2590, 2
      %v2717 = vsel %vm2642, %v2714, %v2716
      %v2718 = vrot.slane %v2591, 2
      %v2719 = vrot.slane %v2592, 2
      %v2720 = vsel %vm2642, %v2718, %v2719
      %v2721 = vrot.slane %v2593, 2
      %v2722 = vsel %vm2642, %v2719, %v2721
      %v2755 = vadd.f32 %v1910, %v2645
      %v2756 = vadd.f32 %v1911, %v2647
      %v2757 = vadd.f32 %v1912, %v2650
      %v2758 = vadd.f32 %v1913, %v2652
      %v2759 = vadd.f32 %v1914, %v2655
      %v2760 = vadd.f32 %v1915, %v2657
      %v2761 = vadd.f32 %v1916, %v2660
      %v2762 = vadd.f32 %v1917, %v2662
      %v2763 = vadd.f32 %v1918, %v2665
      %v2764 = vadd.f32 %v1919, %v2667
      %v2765 = vadd.f32 %v1920, %v2670
      %v2766 = vadd.f32 %v1921, %v2672
      %v2767 = vadd.f32 %v1922, %v2675
      %v2768 = vadd.f32 %v1923, %v2677
      %v2769 = vadd.f32 %v1924, %v2680
      %v2770 = vadd.f32 %v1925, %v2682
      %v2771 = vadd.f32 %v1926, %v2685
      %v2772 = vadd.f32 %v1927, %v2687
      %v2773 = vadd.f32 %v1928, %v2690
      %v2774 = vadd.f32 %v1929, %v2692
      %v2775 = vadd.f32 %v1930, %v2695
      %v2776 = vadd.f32 %v1931, %v2697
      %v2777 = vadd.f32 %v1932, %v2700
      %v2778 = vadd.f32 %v1933, %v2702
      %v2779 = vadd.f32 %v1934, %v2705
      %v2780 = vadd.f32 %v1935, %v2707
      %v2781 = vadd.f32 %v1936, %v2710
      %v2782 = vadd.f32 %v1937, %v2712
      %v2783 = vadd.f32 %v1938, %v2715
      %v2784 = vadd.f32 %v1939, %v2717
      %v2785 = vadd.f32 %v1940, %v2720
      %v2786 = vadd.f32 %v1941, %v2722
      %v2787 = vlaneseq
      %v2788 = vshrl.u32 %v2787, 7
      %v2789 = vsub.s32 3, %v2788
      %v2790 = vrot.slane %v614, %v2789
      %v2791 = vmul.f32 %v387, %v2790
      %v2792 = vmul.f32 %v388, %v2790
      %v2793 = vmul.f32 %v389, %v2790
      %v2794 = vmul.f32 %v390, %v2790
      %v2795 = vmul.f32 %v391, %v2790
      %v2796 = vmul.f32 %v392, %v2790
      %v2797 = vmul.f32 %v393, %v2790
      %v2798 = vmul.f32 %v394, %v2790
      %v2799 = vmul.f32 %v395, %v2790
      %v2800 = vmul.f32 %v396, %v2790
      %v2801 = vmul.f32 %v397, %v2790
      %v2802 = vmul.f32 %v398, %v2790
      %v2803 = vmul.f32 %v399, %v2790
      %v2804 = vmul.f32 %v400, %v2790
      %v2805 = vmul.f32 %v401, %v2790
      %v2806 = vmul.f32 %v402, %v2790
      %v2807 = vmul.f32 %v403, %v2790
      %v2808 = vmul.f32 %v404, %v2790
      %v2809 = vmul.f32 %v405, %v2790
      %v2810 = vmul.f32 %v406, %v2790
      %v2811 = vmul.f32 %v407, %v2790
      %v2812 = vmul.f32 %v408, %v2790
      %v2813 = vmul.f32 %v409, %v2790
      %v2814 = vmul.f32 %v410, %v2790
      %v2815 = vmul.f32 %v411, %v2790
      %v2816 = vmul.f32 %v412, %v2790
      %v2817 = vmul.f32 %v413, %v2790
      %v2818 = vmul.f32 %v414, %v2790
      %v2819 = vmul.f32 %v415, %v2790
      %v2820 = vmul.f32 %v416, %v2790
      %v2821 = vmul.f32 %v417, %v2790
      %v2822 = vmul.f32 %v418, %v2790
      %v2823 = vmul.f32 %v419, %v2790
      %v2824 = vmul.f32 %v420, %v2790
      %v2825 = vmul.f32 %v421, %v2790
      %v2826 = vmul.f32 %v422, %v2790
      %v2827 = vmul.f32 %v423, %v2790
      %v2828 = vmul.f32 %v424, %v2790
      %v2829 = vmul.f32 %v425, %v2790
      %v2830 = vmul.f32 %v426, %v2790
      %v2831 = vmul.f32 %v427, %v2790
      %v2832 = vmul.f32 %v428, %v2790
      %v2833 = vmul.f32 %v429, %v2790
      %v2834 = vmul.f32 %v430, %v2790
      %v2835 = vmul.f32 %v431, %v2790
      %v2836 = vmul.f32 %v432, %v2790
      %v2837 = vmul.f32 %v433, %v2790
      %v2838 = vmul.f32 %v434, %v2790
      %v2839 = vlaneseq
      %v2840 = vshrl.u32 %v2839, 7
      %v2841 = vsub.s32 3, %v2840
      %v2842 = vrot.slane %v615, %v2841
      %v2843 = vmul.f32 %v390, %v2842
      %v2844 = vmul.f32 %v391, %v2842
      %v2845 = vmul.f32 %v392, %v2842
      %v2846 = vmul.f32 %v393, %v2842
      %v2847 = vmul.f32 %v394, %v2842
      %v2848 = vmul.f32 %v395, %v2842
      %v2849 = vmul.f32 %v396, %v2842
      %v2850 = vmul.f32 %v397, %v2842
      %v2851 = vmul.f32 %v398, %v2842
      %v2852 = vmul.f32 %v399, %v2842
      %v2853 = vmul.f32 %v400, %v2842
      %v2854 = vmul.f32 %v401, %v2842
      %v2855 = vmul.f32 %v402, %v2842
      %v2856 = vmul.f32 %v403, %v2842
      %v2857 = vmul.f32 %v404, %v2842
      %v2858 = vmul.f32 %v405, %v2842
      %v2859 = vmul.f32 %v406, %v2842
      %v2860 = vmul.f32 %v407, %v2842
      %v2861 = vmul.f32 %v408, %v2842
      %v2862 = vmul.f32 %v409, %v2842
      %v2863 = vmul.f32 %v410, %v2842
      %v2864 = vmul.f32 %v411, %v2842
      %v2865 = vmul.f32 %v412, %v2842
      %v2866 = vmul.f32 %v413, %v2842
      %v2867 = vmul.f32 %v414, %v2842
      %v2868 = vmul.f32 %v415, %v2842
      %v2869 = vmul.f32 %v416, %v2842
      %v2870 = vmul.f32 %v417, %v2842
      %v2871 = vmul.f32 %v418, %v2842
      %v2872 = vmul.f32 %v419, %v2842
      %v2873 = vmul.f32 %v420, %v2842
      %v2874 = vmul.f32 %v421, %v2842
      %v2875 = vmul.f32 %v422, %v2842
      %v2876 = vmul.f32 %v423, %v2842
      %v2877 = vmul.f32 %v424, %v2842
      %v2878 = vmul.f32 %v425, %v2842
      %v2879 = vmul.f32 %v426, %v2842
      %v2880 = vmul.f32 %v427, %v2842
      %v2881 = vmul.f32 %v428, %v2842
      %v2882 = vmul.f32 %v429, %v2842
      %v2883 = vmul.f32 %v430, %v2842
      %v2884 = vmul.f32 %v431, %v2842
      %v2885 = vmul.f32 %v432, %v2842
      %v2886 = vmul.f32 %v433, %v2842
      %v2887 = vmul.f32 %v434, %v2842
      %v2888 = vmul.f32 %v435, %v2842
      %v2889 = vmul.f32 %v436, %v2842
      %v2890 = vmul.f32 %v437, %v2842
      %v2891 = vadd.f32 %v2791, %v2843
      %v2892 = vadd.f32 %v2792, %v2844
      %v2893 = vadd.f32 %v2793, %v2845
      %v2894 = vadd.f32 %v2794, %v2846
      %v2895 = vadd.f32 %v2795, %v2847
      %v2896 = vadd.f32 %v2796, %v2848
      %v2897 = vadd.f32 %v2797, %v2849
      %v2898 = vadd.f32 %v2798, %v2850
      %v2899 = vadd.f32 %v2799, %v2851
      %v2900 = vadd.f32 %v2800, %v2852
      %v2901 = vadd.f32 %v2801, %v2853
      %v2902 = vadd.f32 %v2802, %v2854
      %v2903 = vadd.f32 %v2803, %v2855
      %v2904 = vadd.f32 %v2804, %v2856
      %v2905 = vadd.f32 %v2805, %v2857
      %v2906 = vadd.f32 %v2806, %v2858
      %v2907 = vadd.f32 %v2807, %v2859
      %v2908 = vadd.f32 %v2808, %v2860
      %v2909 = vadd.f32 %v2809, %v2861
      %v2910 = vadd.f32 %v2810, %v2862
      %v2911 = vadd.f32 %v2811, %v2863
      %v2912 = vadd.f32 %v2812, %v2864
      %v2913 = vadd.f32 %v2813, %v2865
      %v2914 = vadd.f32 %v2814, %v2866
      %v2915 = vadd.f32 %v2815, %v2867
      %v2916 = vadd.f32 %v2816, %v2868
      %v2917 = vadd.f32 %v2817, %v2869
      %v2918 = vadd.f32 %v2818, %v2870
      %v2919 = vadd.f32 %v2819, %v2871
      %v2920 = vadd.f32 %v2820, %v2872
      %v2921 = vadd.f32 %v2821, %v2873
      %v2922 = vadd.f32 %v2822, %v2874
      %v2923 = vadd.f32 %v2823, %v2875
      %v2924 = vadd.f32 %v2824, %v2876
      %v2925 = vadd.f32 %v2825, %v2877
      %v2926 = vadd.f32 %v2826, %v2878
      %v2927 = vadd.f32 %v2827, %v2879
      %v2928 = vadd.f32 %v2828, %v2880
      %v2929 = vadd.f32 %v2829, %v2881
      %v2930 = vadd.f32 %v2830, %v2882
      %v2931 = vadd.f32 %v2831, %v2883
      %v2932 = vadd.f32 %v2832, %v2884
      %v2933 = vadd.f32 %v2833, %v2885
      %v2934 = vadd.f32 %v2834, %v2886
      %v2935 = vadd.f32 %v2835, %v2887
      %v2936 = vadd.f32 %v2836, %v2888
      %v2937 = vadd.f32 %v2837, %v2889
      %v2938 = vadd.f32 %v2838, %v2890
      %v2939 = vlaneseq
      %v2940 = vshrl.u32 %v2939, 7
      %v2941 = vsub.s32 3, %v2940
      %v2942 = vrot.slane %v616, %v2941
      %v2943 = vmul.f32 %v393, %v2942
      %v2944 = vmul.f32 %v394, %v2942
      %v2945 = vmul.f32 %v395, %v2942
      %v2946 = vmul.f32 %v396, %v2942
      %v2947 = vmul.f32 %v397, %v2942
      %v2948 = vmul.f32 %v398, %v2942
      %v2949 = vmul.f32 %v399, %v2942
      %v2950 = vmul.f32 %v400, %v2942
      %v2951 = vmul.f32 %v401, %v2942
      %v2952 = vmul.f32 %v402, %v2942
      %v2953 = vmul.f32 %v403, %v2942
      %v2954 = vmul.f32 %v404, %v2942
      %v2955 = vmul.f32 %v405, %v2942
      %v2956 = vmul.f32 %v406, %v2942
      %v2957 = vmul.f32 %v407, %v2942
      %v2958 = vmul.f32 %v408, %v2942
      %v2959 = vmul.f32 %v409, %v2942
      %v2960 = vmul.f32 %v410, %v2942
      %v2961 = vmul.f32 %v411, %v2942
      %v2962 = vmul.f32 %v412, %v2942
      %v2963 = vmul.f32 %v413, %v2942
      %v2964 = vmul.f32 %v414, %v2942
      %v2965 = vmul.f32 %v415, %v2942
      %v2966 = vmul.f32 %v416, %v2942
      %v2967 = vmul.f32 %v417, %v2942
      %v2968 = vmul.f32 %v418, %v2942
      %v2969 = vmul.f32 %v419, %v2942
      %v2970 = vmul.f32 %v420, %v2942
      %v2971 = vmul.f32 %v421, %v2942
      %v2972 = vmul.f32 %v422, %v2942
      %v2973 = vmul.f32 %v423, %v2942
      %v2974 = vmul.f32 %v424, %v2942
      %v2975 = vmul.f32 %v425, %v2942
      %v2976 = vmul.f32 %v426, %v2942
      %v2977 = vmul.f32 %v427, %v2942
      %v2978 = vmul.f32 %v428, %v2942
      %v2979 = vmul.f32 %v429, %v2942
      %v2980 = vmul.f32 %v430, %v2942
      %v2981 = vmul.f32 %v431, %v2942
      %v2982 = vmul.f32 %v432, %v2942
      %v2983 = vmul.f32 %v433, %v2942
      %v2984 = vmul.f32 %v434, %v2942
      %v2985 = vmul.f32 %v435, %v2942
      %v2986 = vmul.f32 %v436, %v2942
      %v2987 = vmul.f32 %v437, %v2942
      %v2988 = vmul.f32 %v438, %v2942
      %v2989 = vmul.f32 %v439, %v2942
      %v2990 = vmul.f32 %v440, %v2942
      %v2991 = vadd.f32 %v2891, %v2943
      %v2992 = vadd.f32 %v2892, %v2944
      %v2993 = vadd.f32 %v2893, %v2945
      %v2994 = vadd.f32 %v2894, %v2946
      %v2995 = vadd.f32 %v2895, %v2947
      %v2996 = vadd.f32 %v2896, %v2948
      %v2997 = vadd.f32 %v2897, %v2949
      %v2998 = vadd.f32 %v2898, %v2950
      %v2999 = vadd.f32 %v2899, %v2951
      %v3000 = vadd.f32 %v2900, %v2952
      %v3001 = vadd.f32 %v2901, %v2953
      %v3002 = vadd.f32 %v2902, %v2954
      %v3003 = vadd.f32 %v2903, %v2955
      %v3004 = vadd.f32 %v2904, %v2956
      %v3005 = vadd.f32 %v2905, %v2957
      %v3006 = vadd.f32 %v2906, %v2958
      %v3007 = vadd.f32 %v2907, %v2959
      %v3008 = vadd.f32 %v2908, %v2960
      %v3009 = vadd.f32 %v2909, %v2961
      %v3010 = vadd.f32 %v2910, %v2962
      %v3011 = vadd.f32 %v2911, %v2963
      %v3012 = vadd.f32 %v2912, %v2964
      %v3013 = vadd.f32 %v2913, %v2965
      %v3014 = vadd.f32 %v2914, %v2966
      %v3015 = vadd.f32 %v2915, %v2967
      %v3016 = vadd.f32 %v2916, %v2968
      %v3017 = vadd.f32 %v2917, %v2969
      %v3018 = vadd.f32 %v2918, %v2970
      %v3019 = vadd.f32 %v2919, %v2971
      %v3020 = vadd.f32 %v2920, %v2972
      %v3021 = vadd.f32 %v2921, %v2973
      %v3022 = vadd.f32 %v2922, %v2974
      %v3023 = vadd.f32 %v2923, %v2975
      %v3024 = vadd.f32 %v2924, %v2976
      %v3025 = vadd.f32 %v2925, %v2977
      %v3026 = vadd.f32 %v2926, %v2978
      %v3027 = vadd.f32 %v2927, %v2979
      %v3028 = vadd.f32 %v2928, %v2980
      %v3029 = vadd.f32 %v2929, %v2981
      %v3030 = vadd.f32 %v2930, %v2982
      %v3031 = vadd.f32 %v2931, %v2983
      %v3032 = vadd.f32 %v2932, %v2984
      %v3033 = vadd.f32 %v2933, %v2985
      %v3034 = vadd.f32 %v2934, %v2986
      %v3035 = vadd.f32 %v2935, %v2987
      %v3036 = vadd.f32 %v2936, %v2988
      %v3037 = vadd.f32 %v2937, %v2989
      %v3038 = vadd.f32 %v2938, %v2990
      %v3039 = vlaneseq
      %v3040 = vshrl.u32 %v3039, 7
      %v3041 = vsub.s32 3, %v3040
      %v3042 = vrot.slane %v617, %v3041
      %v3043 = vmul.f32 %v396, %v3042
      %v3044 = vmul.f32 %v397, %v3042
      %v3045 = vmul.f32 %v398, %v3042
      %v3046 = vmul.f32 %v399, %v3042
      %v3047 = vmul.f32 %v400, %v3042
      %v3048 = vmul.f32 %v401, %v3042
      %v3049 = vmul.f32 %v402, %v3042
      %v3050 = vmul.f32 %v403, %v3042
      %v3051 = vmul.f32 %v404, %v3042
      %v3052 = vmul.f32 %v405, %v3042
      %v3053 = vmul.f32 %v406, %v3042
      %v3054 = vmul.f32 %v407, %v3042
      %v3055 = vmul.f32 %v408, %v3042
      %v3056 = vmul.f32 %v409, %v3042
      %v3057 = vmul.f32 %v410, %v3042
      %v3058 = vmul.f32 %v411, %v3042
      %v3059 = vmul.f32 %v412, %v3042
      %v3060 = vmul.f32 %v413, %v3042
      %v3061 = vmul.f32 %v414, %v3042
      %v3062 = vmul.f32 %v415, %v3042
      %v3063 = vmul.f32 %v416, %v3042
      %v3064 = vmul.f32 %v417, %v3042
      %v3065 = vmul.f32 %v418, %v3042
      %v3066 = vmul.f32 %v419, %v3042
      %v3067 = vmul.f32 %v420, %v3042
      %v3068 = vmul.f32 %v421, %v3042
      %v3069 = vmul.f32 %v422, %v3042
      %v3070 = vmul.f32 %v423, %v3042
      %v3071 = vmul.f32 %v424, %v3042
      %v3072 = vmul.f32 %v425, %v3042
      %v3073 = vmul.f32 %v426, %v3042
      %v3074 = vmul.f32 %v427, %v3042
      %v3075 = vmul.f32 %v428, %v3042
      %v3076 = vmul.f32 %v429, %v3042
      %v3077 = vmul.f32 %v430, %v3042
      %v3078 = vmul.f32 %v431, %v3042
      %v3079 = vmul.f32 %v432, %v3042
      %v3080 = vmul.f32 %v433, %v3042
      %v3081 = vmul.f32 %v434, %v3042
      %v3082 = vmul.f32 %v435, %v3042
      %v3083 = vmul.f32 %v436, %v3042
      %v3084 = vmul.f32 %v437, %v3042
      %v3085 = vmul.f32 %v438, %v3042
      %v3086 = vmul.f32 %v439, %v3042
      %v3087 = vmul.f32 %v440, %v3042
      %v3088 = vmul.f32 %v441, %v3042
      %v3089 = vmul.f32 %v442, %v3042
      %v3090 = vmul.f32 %v443, %v3042
      %v3091 = vadd.f32 %v2991, %v3043
      %v3092 = vadd.f32 %v2992, %v3044
      %v3093 = vadd.f32 %v2993, %v3045
      %v3094 = vadd.f32 %v2994, %v3046
      %v3095 = vadd.f32 %v2995, %v3047
      %v3096 = vadd.f32 %v2996, %v3048
      %v3097 = vadd.f32 %v2997, %v3049
      %v3098 = vadd.f32 %v2998, %v3050
      %v3099 = vadd.f32 %v2999, %v3051
      %v3100 = vadd.f32 %v3000, %v3052
      %v3101 = vadd.f32 %v3001, %v3053
      %v3102 = vadd.f32 %v3002, %v3054
      %v3103 = vadd.f32 %v3003, %v3055
      %v3104 = vadd.f32 %v3004, %v3056
      %v3105 = vadd.f32 %v3005, %v3057
      %v3106 = vadd.f32 %v3006, %v3058
      %v3107 = vadd.f32 %v3007, %v3059
      %v3108 = vadd.f32 %v3008, %v3060
      %v3109 = vadd.f32 %v3009, %v3061
      %v3110 = vadd.f32 %v3010, %v3062
      %v3111 = vadd.f32 %v3011, %v3063
      %v3112 = vadd.f32 %v3012, %v3064
      %v3113 = vadd.f32 %v3013, %v3065
      %v3114 = vadd.f32 %v3014, %v3066
      %v3115 = vadd.f32 %v3015, %v3067
      %v3116 = vadd.f32 %v3016, %v3068
      %v3117 = vadd.f32 %v3017, %v3069
      %v3118 = vadd.f32 %v3018, %v3070
      %v3119 = vadd.f32 %v3019, %v3071
      %v3120 = vadd.f32 %v3020, %v3072
      %v3121 = vadd.f32 %v3021, %v3073
      %v3122 = vadd.f32 %v3022, %v3074
      %v3123 = vadd.f32 %v3023, %v3075
      %v3124 = vadd.f32 %v3024, %v3076
      %v3125 = vadd.f32 %v3025, %v3077
      %v3126 = vadd.f32 %v3026, %v3078
      %v3127 = vadd.f32 %v3027, %v3079
      %v3128 = vadd.f32 %v3028, %v3080
      %v3129 = vadd.f32 %v3029, %v3081
      %v3130 = vadd.f32 %v3030, %v3082
      %v3131 = vadd.f32 %v3031, %v3083
      %v3132 = vadd.f32 %v3032, %v3084
      %v3133 = vadd.f32 %v3033, %v3085
      %v3134 = vadd.f32 %v3034, %v3086
      %v3135 = vadd.f32 %v3035, %v3087
      %v3136 = vadd.f32 %v3036, %v3088
      %v3137 = vadd.f32 %v3037, %v3089
      %v3138 = vadd.f32 %v3038, %v3090
      %v3139 = vlaneseq
      %v3140 = vshrl.u32 %v3139, 7
      %v3141 = vsub.s32 3, %v3140
      %v3142 = vrot.slane %v618, %v3141
      %v3143 = vmul.f32 %v399, %v3142
      %v3144 = vmul.f32 %v400, %v3142
      %v3145 = vmul.f32 %v401, %v3142
      %v3146 = vmul.f32 %v402, %v3142
      %v3147 = vmul.f32 %v403, %v3142
      %v3148 = vmul.f32 %v404, %v3142
      %v3149 = vmul.f32 %v405, %v3142
      %v3150 = vmul.f32 %v406, %v3142
      %v3151 = vmul.f32 %v407, %v3142
      %v3152 = vmul.f32 %v408, %v3142
      %v3153 = vmul.f32 %v409, %v3142
      %v3154 = vmul.f32 %v410, %v3142
      %v3155 = vmul.f32 %v411, %v3142
      %v3156 = vmul.f32 %v412, %v3142
      %v3157 = vmul.f32 %v413, %v3142
      %v3158 = vmul.f32 %v414, %v3142
      %v3159 = vmul.f32 %v415, %v3142
      %v3160 = vmul.f32 %v416, %v3142
      %v3161 = vmul.f32 %v417, %v3142
      %v3162 = vmul.f32 %v418, %v3142
      %v3163 = vmul.f32 %v419, %v3142
      %v3164 = vmul.f32 %v420, %v3142
      %v3165 = vmul.f32 %v421, %v3142
      %v3166 = vmul.f32 %v422, %v3142
      %v3167 = vmul.f32 %v423, %v3142
      %v3168 = vmul.f32 %v424, %v3142
      %v3169 = vmul.f32 %v425, %v3142
      %v3170 = vmul.f32 %v426, %v3142
      %v3171 = vmul.f32 %v427, %v3142
      %v3172 = vmul.f32 %v428, %v3142
      %v3173 = vmul.f32 %v429, %v3142
      %v3174 = vmul.f32 %v430, %v3142
      %v3175 = vmul.f32 %v431, %v3142
      %v3176 = vmul.f32 %v432, %v3142
      %v3177 = vmul.f32 %v433, %v3142
      %v3178 = vmul.f32 %v434, %v3142
      %v3179 = vmul.f32 %v435, %v3142
      %v3180 = vmul.f32 %v436, %v3142
      %v3181 = vmul.f32 %v437, %v3142
      %v3182 = vmul.f32 %v438, %v3142
      %v3183 = vmul.f32 %v439, %v3142
      %v3184 = vmul.f32 %v440, %v3142
      %v3185 = vmul.f32 %v441, %v3142
      %v3186 = vmul.f32 %v442, %v3142
      %v3187 = vmul.f32 %v443, %v3142
      %v3188 = vmul.f32 %v444, %v3142
      %v3189 = vmul.f32 %v445, %v3142
      %v3190 = vmul.f32 %v446, %v3142
      %v3191 = vadd.f32 %v3091, %v3143
      %v3192 = vadd.f32 %v3092, %v3144
      %v3193 = vadd.f32 %v3093, %v3145
      %v3194 = vadd.f32 %v3094, %v3146
      %v3195 = vadd.f32 %v3095, %v3147
      %v3196 = vadd.f32 %v3096, %v3148
      %v3197 = vadd.f32 %v3097, %v3149
      %v3198 = vadd.f32 %v3098, %v3150
      %v3199 = vadd.f32 %v3099, %v3151
      %v3200 = vadd.f32 %v3100, %v3152
      %v3201 = vadd.f32 %v3101, %v3153
      %v3202 = vadd.f32 %v3102, %v3154
      %v3203 = vadd.f32 %v3103, %v3155
      %v3204 = vadd.f32 %v3104, %v3156
      %v3205 = vadd.f32 %v3105, %v3157
      %v3206 = vadd.f32 %v3106, %v3158
      %v3207 = vadd.f32 %v3107, %v3159
      %v3208 = vadd.f32 %v3108, %v3160
      %v3209 = vadd.f32 %v3109, %v3161
      %v3210 = vadd.f32 %v3110, %v3162
      %v3211 = vadd.f32 %v3111, %v3163
      %v3212 = vadd.f32 %v3112, %v3164
      %v3213 = vadd.f32 %v3113, %v3165
      %v3214 = vadd.f32 %v3114, %v3166
      %v3215 = vadd.f32 %v3115, %v3167
      %v3216 = vadd.f32 %v3116, %v3168
      %v3217 = vadd.f32 %v3117, %v3169
      %v3218 = vadd.f32 %v3118, %v3170
      %v3219 = vadd.f32 %v3119, %v3171
      %v3220 = vadd.f32 %v3120, %v3172
      %v3221 = vadd.f32 %v3121, %v3173
      %v3222 = vadd.f32 %v3122, %v3174
      %v3223 = vadd.f32 %v3123, %v3175
      %v3224 = vadd.f32 %v3124, %v3176
      %v3225 = vadd.f32 %v3125, %v3177
      %v3226 = vadd.f32 %v3126, %v3178
      %v3227 = vadd.f32 %v3127, %v3179
      %v3228 = vadd.f32 %v3128, %v3180
      %v3229 = vadd.f32 %v3129, %v3181
      %v3230 = vadd.f32 %v3130, %v3182
      %v3231 = vadd.f32 %v3131, %v3183
      %v3232 = vadd.f32 %v3132, %v3184
      %v3233 = vadd.f32 %v3133, %v3185
      %v3234 = vadd.f32 %v3134, %v3186
      %v3235 = vadd.f32 %v3135, %v3187
      %v3236 = vadd.f32 %v3136, %v3188
      %v3237 = vadd.f32 %v3137, %v3189
      %v3238 = vadd.f32 %v3138, %v3190
      %v3239 = vlaneseq
      %v3240 = vshrl.u32 %v3239, 7
      %v3241 = vsub.s32 3, %v3240
      %v3242 = vrot.slane %v619, %v3241
      %v3243 = vmul.f32 %v402, %v3242
      %v3244 = vmul.f32 %v403, %v3242
      %v3245 = vmul.f32 %v404, %v3242
      %v3246 = vmul.f32 %v405, %v3242
      %v3247 = vmul.f32 %v406, %v3242
      %v3248 = vmul.f32 %v407, %v3242
      %v3249 = vmul.f32 %v408, %v3242
      %v3250 = vmul.f32 %v409, %v3242
      %v3251 = vmul.f32 %v410, %v3242
      %v3252 = vmul.f32 %v411, %v3242
      %v3253 = vmul.f32 %v412, %v3242
      %v3254 = vmul.f32 %v413, %v3242
      %v3255 = vmul.f32 %v414, %v3242
      %v3256 = vmul.f32 %v415, %v3242
      %v3257 = vmul.f32 %v416, %v3242
      %v3258 = vmul.f32 %v417, %v3242
      %v3259 = vmul.f32 %v418, %v3242
      %v3260 = vmul.f32 %v419, %v3242
      %v3261 = vmul.f32 %v420, %v3242
      %v3262 = vmul.f32 %v421, %v3242
      %v3263 = vmul.f32 %v422, %v3242
      %v3264 = vmul.f32 %v423, %v3242
      %v3265 = vmul.f32 %v424, %v3242
      %v3266 = vmul.f32 %v425, %v3242
      %v3267 = vmul.f32 %v426, %v3242
      %v3268 = vmul.f32 %v427, %v3242
      %v3269 = vmul.f32 %v428, %v3242
      %v3270 = vmul.f32 %v429, %v3242
      %v3271 = vmul.f32 %v430, %v3242
      %v3272 = vmul.f32 %v431, %v3242
      %v3273 = vmul.f32 %v432, %v3242
      %v3274 = vmul.f32 %v433, %v3242
      %v3275 = vmul.f32 %v434, %v3242
      %v3276 = vmul.f32 %v435, %v3242
      %v3277 = vmul.f32 %v436, %v3242
      %v3278 = vmul.f32 %v437, %v3242
      %v3279 = vmul.f32 %v438, %v3242
      %v3280 = vmul.f32 %v439, %v3242
      %v3281 = vmul.f32 %v440, %v3242
      %v3282 = vmul.f32 %v441, %v3242
      %v3283 = vmul.f32 %v442, %v3242
      %v3284 = vmul.f32 %v443, %v3242
      %v3285 = vmul.f32 %v444, %v3242
      %v3286 = vmul.f32 %v445, %v3242
      %v3287 = vmul.f32 %v446, %v3242
      %v3288 = vmul.f32 %v447, %v3242
      %v3289 = vmul.f32 %v448, %v3242
      %v3290 = vmul.f32 %v449, %v3242
      %v3291 = vadd.f32 %v3191, %v3243
      %v3292 = vadd.f32 %v3192, %v3244
      %v3293 = vadd.f32 %v3193, %v3245
      %v3294 = vadd.f32 %v3194, %v3246
      %v3295 = vadd.f32 %v3195, %v3247
      %v3296 = vadd.f32 %v3196, %v3248
      %v3297 = vadd.f32 %v3197, %v3249
      %v3298 = vadd.f32 %v3198, %v3250
      %v3299 = vadd.f32 %v3199, %v3251
      %v3300 = vadd.f32 %v3200, %v3252
      %v3301 = vadd.f32 %v3201, %v3253
      %v3302 = vadd.f32 %v3202, %v3254
      %v3303 = vadd.f32 %v3203, %v3255
      %v3304 = vadd.f32 %v3204, %v3256
      %v3305 = vadd.f32 %v3205, %v3257
      %v3306 = vadd.f32 %v3206, %v3258
      %v3307 = vadd.f32 %v3207, %v3259
      %v3308 = vadd.f32 %v3208, %v3260
      %v3309 = vadd.f32 %v3209, %v3261
      %v3310 = vadd.f32 %v3210, %v3262
      %v3311 = vadd.f32 %v3211, %v3263
      %v3312 = vadd.f32 %v3212, %v3264
      %v3313 = vadd.f32 %v3213, %v3265
      %v3314 = vadd.f32 %v3214, %v3266
      %v3315 = vadd.f32 %v3215, %v3267
      %v3316 = vadd.f32 %v3216, %v3268
      %v3317 = vadd.f32 %v3217, %v3269
      %v3318 = vadd.f32 %v3218, %v3270
      %v3319 = vadd.f32 %v3219, %v3271
      %v3320 = vadd.f32 %v3220, %v3272
      %v3321 = vadd.f32 %v3221, %v3273
      %v3322 = vadd.f32 %v3222, %v3274
      %v3323 = vadd.f32 %v3223, %v3275
      %v3324 = vadd.f32 %v3224, %v3276
      %v3325 = vadd.f32 %v3225, %v3277
      %v3326 = vadd.f32 %v3226, %v3278
      %v3327 = vadd.f32 %v3227, %v3279
      %v3328 = vadd.f32 %v3228, %v3280
      %v3329 = vadd.f32 %v3229, %v3281
      %v3330 = vadd.f32 %v3230, %v3282
      %v3331 = vadd.f32 %v3231, %v3283
      %v3332 = vadd.f32 %v3232, %v3284
      %v3333 = vadd.f32 %v3233, %v3285
      %v3334 = vadd.f32 %v3234, %v3286
      %v3335 = vadd.f32 %v3235, %v3287
      %v3336 = vadd.f32 %v3236, %v3288
      %v3337 = vadd.f32 %v3237, %v3289
      %v3338 = vadd.f32 %v3238, %v3290
      %v3339 = vlaneseq
      %v3340 = vshrl.u32 %v3339, 7
      %v3341 = vsub.s32 3, %v3340
      %v3342 = vrot.slane %v620, %v3341
      %v3343 = vmul.f32 %v405, %v3342
      %v3344 = vmul.f32 %v406, %v3342
      %v3345 = vmul.f32 %v407, %v3342
      %v3346 = vmul.f32 %v408, %v3342
      %v3347 = vmul.f32 %v409, %v3342
      %v3348 = vmul.f32 %v410, %v3342
      %v3349 = vmul.f32 %v411, %v3342
      %v3350 = vmul.f32 %v412, %v3342
      %v3351 = vmul.f32 %v413, %v3342
      %v3352 = vmul.f32 %v414, %v3342
      %v3353 = vmul.f32 %v415, %v3342
      %v3354 = vmul.f32 %v416, %v3342
      %v3355 = vmul.f32 %v417, %v3342
      %v3356 = vmul.f32 %v418, %v3342
      %v3357 = vmul.f32 %v419, %v3342
      %v3358 = vmul.f32 %v420, %v3342
      %v3359 = vmul.f32 %v421, %v3342
      %v3360 = vmul.f32 %v422, %v3342
      %v3361 = vmul.f32 %v423, %v3342
      %v3362 = vmul.f32 %v424, %v3342
      %v3363 = vmul.f32 %v425, %v3342
      %v3364 = vmul.f32 %v426, %v3342
      %v3365 = vmul.f32 %v427, %v3342
      %v3366 = vmul.f32 %v428, %v3342
      %v3367 = vmul.f32 %v429, %v3342
      %v3368 = vmul.f32 %v430, %v3342
      %v3369 = vmul.f32 %v431, %v3342
      %v3370 = vmul.f32 %v432, %v3342
      %v3371 = vmul.f32 %v433, %v3342
      %v3372 = vmul.f32 %v434, %v3342
      %v3373 = vmul.f32 %v435, %v3342
      %v3374 = vmul.f32 %v436, %v3342
      %v3375 = vmul.f32 %v437, %v3342
      %v3376 = vmul.f32 %v438, %v3342
      %v3377 = vmul.f32 %v439, %v3342
      %v3378 = vmul.f32 %v440, %v3342
      %v3379 = vmul.f32 %v441, %v3342
      %v3380 = vmul.f32 %v442, %v3342
      %v3381 = vmul.f32 %v443, %v3342
      %v3382 = vmul.f32 %v444, %v3342
      %v3383 = vmul.f32 %v445, %v3342
      %v3384 = vmul.f32 %v446, %v3342
      %v3385 = vmul.f32 %v447, %v3342
      %v3386 = vmul.f32 %v448, %v3342
      %v3387 = vmul.f32 %v449, %v3342
      %v3388 = vmul.f32 %v450, %v3342
      %v3389 = vmul.f32 %v451, %v3342
      %v3390 = vmul.f32 %v452, %v3342
      %v3391 = vadd.f32 %v3291, %v3343
      %v3392 = vadd.f32 %v3292, %v3344
      %v3393 = vadd.f32 %v3293, %v3345
      %v3394 = vadd.f32 %v3294, %v3346
      %v3395 = vadd.f32 %v3295, %v3347
      %v3396 = vadd.f32 %v3296, %v3348
      %v3397 = vadd.f32 %v3297, %v3349
      %v3398 = vadd.f32 %v3298, %v3350
      %v3399 = vadd.f32 %v3299, %v3351
      %v3400 = vadd.f32 %v3300, %v3352
      %v3401 = vadd.f32 %v3301, %v3353
      %v3402 = vadd.f32 %v3302, %v3354
      %v3403 = vadd.f32 %v3303, %v3355
      %v3404 = vadd.f32 %v3304, %v3356
      %v3405 = vadd.f32 %v3305, %v3357
      %v3406 = vadd.f32 %v3306, %v3358
      %v3407 = vadd.f32 %v3307, %v3359
      %v3408 = vadd.f32 %v3308, %v3360
      %v3409 = vadd.f32 %v3309, %v3361
      %v3410 = vadd.f32 %v3310, %v3362
      %v3411 = vadd.f32 %v3311, %v3363
      %v3412 = vadd.f32 %v3312, %v3364
      %v3413 = vadd.f32 %v3313, %v3365
      %v3414 = vadd.f32 %v3314, %v3366
      %v3415 = vadd.f32 %v3315, %v3367
      %v3416 = vadd.f32 %v3316, %v3368
      %v3417 = vadd.f32 %v3317, %v3369
      %v3418 = vadd.f32 %v3318, %v3370
      %v3419 = vadd.f32 %v3319, %v3371
      %v3420 = vadd.f32 %v3320, %v3372
      %v3421 = vadd.f32 %v3321, %v3373
      %v3422 = vadd.f32 %v3322, %v3374
      %v3423 = vadd.f32 %v3323, %v3375
      %v3424 = vadd.f32 %v3324, %v3376
      %v3425 = vadd.f32 %v3325, %v3377
      %v3426 = vadd.f32 %v3326, %v3378
      %v3427 = vadd.f32 %v3327, %v3379
      %v3428 = vadd.f32 %v3328, %v3380
      %v3429 = vadd.f32 %v3329, %v3381
      %v3430 = vadd.f32 %v3330, %v3382
      %v3431 = vadd.f32 %v3331, %v3383
      %v3432 = vadd.f32 %v3332, %v3384
      %v3433 = vadd.f32 %v3333, %v3385
      %v3434 = vadd.f32 %v3334, %v3386
      %v3435 = vadd.f32 %v3335, %v3387
      %v3436 = vadd.f32 %v3336, %v3388
      %v3437 = vadd.f32 %v3337, %v3389
      %v3438 = vadd.f32 %v3338, %v3390
      %v3487 = vrot.slane %v3391, 3
      %v3488 = vrot.slane %v3392, 3
      %v3489 = vsel %vm501, %v3487, %v3488
      %v3490 = vrot.slane %v3393, 3
      %v3491 = vsel %vm501, %v3488, %v3490
      %v3492 = vrot.slane %v3394, 3
      %v3493 = vrot.slane %v3395, 3
      %v3494 = vsel %vm501, %v3492, %v3493
      %v3495 = vrot.slane %v3396, 3
      %v3496 = vsel %vm501, %v3493, %v3495
      %v3497 = vrot.slane %v3397, 3
      %v3498 = vrot.slane %v3398, 3
      %v3499 = vsel %vm501, %v3497, %v3498
      %v3500 = vrot.slane %v3399, 3
      %v3501 = vsel %vm501, %v3498, %v3500
      %v3502 = vrot.slane %v3400, 3
      %v3503 = vrot.slane %v3401, 3
      %v3504 = vsel %vm501, %v3502, %v3503
      %v3505 = vrot.slane %v3402, 3
      %v3506 = vsel %vm501, %v3503, %v3505
      %v3507 = vrot.slane %v3403, 3
      %v3508 = vrot.slane %v3404, 3
      %v3509 = vsel %vm501, %v3507, %v3508
      %v3510 = vrot.slane %v3405, 3
      %v3511 = vsel %vm501, %v3508, %v3510
      %v3512 = vrot.slane %v3406, 3
      %v3513 = vrot.slane %v3407, 3
      %v3514 = vsel %vm501, %v3512, %v3513
      %v3515 = vrot.slane %v3408, 3
      %v3516 = vsel %vm501, %v3513, %v3515
      %v3517 = vrot.slane %v3409, 3
      %v3518 = vrot.slane %v3410, 3
      %v3519 = vsel %vm501, %v3517, %v3518
      %v3520 = vrot.slane %v3411, 3
      %v3521 = vsel %vm501, %v3518, %v3520
      %v3522 = vrot.slane %v3412, 3
      %v3523 = vrot.slane %v3413, 3
      %v3524 = vsel %vm501, %v3522, %v3523
      %v3525 = vrot.slane %v3414, 3
      %v3526 = vsel %vm501, %v3523, %v3525
      %v3527 = vrot.slane %v3415, 3
      %v3528 = vrot.slane %v3416, 3
      %v3529 = vsel %vm501, %v3527, %v3528
      %v3530 = vrot.slane %v3417, 3
      %v3531 = vsel %vm501, %v3528, %v3530
      %v3532 = vrot.slane %v3418, 3
      %v3533 = vrot.slane %v3419, 3
      %v3534 = vsel %vm501, %v3532, %v3533
      %v3535 = vrot.slane %v3420, 3
      %v3536 = vsel %vm501, %v3533, %v3535
      %v3537 = vrot.slane %v3421, 3
      %v3538 = vrot.slane %v3422, 3
      %v3539 = vsel %vm501, %v3537, %v3538
      %v3540 = vrot.slane %v3423, 3
      %v3541 = vsel %vm501, %v3538, %v3540
      %v3542 = vrot.slane %v3424, 3
      %v3543 = vrot.slane %v3425, 3
      %v3544 = vsel %vm501, %v3542, %v3543
      %v3545 = vrot.slane %v3426, 3
      %v3546 = vsel %vm501, %v3543, %v3545
      %v3547 = vrot.slane %v3427, 3
      %v3548 = vrot.slane %v3428, 3
      %v3549 = vsel %vm501, %v3547, %v3548
      %v3550 = vrot.slane %v3429, 3
      %v3551 = vsel %vm501, %v3548, %v3550
      %v3552 = vrot.slane %v3430, 3
      %v3553 = vrot.slane %v3431, 3
      %v3554 = vsel %vm501, %v3552, %v3553
      %v3555 = vrot.slane %v3432, 3
      %v3556 = vsel %vm501, %v3553, %v3555
      %v3557 = vrot.slane %v3433, 3
      %v3558 = vrot.slane %v3434, 3
      %v3559 = vsel %vm501, %v3557, %v3558
      %v3560 = vrot.slane %v3435, 3
      %v3561 = vsel %vm501, %v3558, %v3560
      %v3562 = vrot.slane %v3436, 3
      %v3563 = vrot.slane %v3437, 3
      %v3564 = vsel %vm501, %v3562, %v3563
      %v3565 = vrot.slane %v3438, 3
      %v3566 = vsel %vm501, %v3563, %v3565
      %v3599 = vadd.f32 %v2755, %v3489
      %v3600 = vadd.f32 %v2756, %v3491
      %v3601 = vadd.f32 %v2757, %v3494
      %v3602 = vadd.f32 %v2758, %v3496
      %v3603 = vadd.f32 %v2759, %v3499
      %v3604 = vadd.f32 %v2760, %v3501
      %v3605 = vadd.f32 %v2761, %v3504
      %v3606 = vadd.f32 %v2762, %v3506
      %v3607 = vadd.f32 %v2763, %v3509
      %v3608 = vadd.f32 %v2764, %v3511
      %v3609 = vadd.f32 %v2765, %v3514
      %v3610 = vadd.f32 %v2766, %v3516
      %v3611 = vadd.f32 %v2767, %v3519
      %v3612 = vadd.f32 %v2768, %v3521
      %v3613 = vadd.f32 %v2769, %v3524
      %v3614 = vadd.f32 %v2770, %v3526
      %v3615 = vadd.f32 %v2771, %v3529
      %v3616 = vadd.f32 %v2772, %v3531
      %v3617 = vadd.f32 %v2773, %v3534
      %v3618 = vadd.f32 %v2774, %v3536
      %v3619 = vadd.f32 %v2775, %v3539
      %v3620 = vadd.f32 %v2776, %v3541
      %v3621 = vadd.f32 %v2777, %v3544
      %v3622 = vadd.f32 %v2778, %v3546
      %v3623 = vadd.f32 %v2779, %v3549
      %v3624 = vadd.f32 %v2780, %v3551
      %v3625 = vadd.f32 %v2781, %v3554
      %v3626 = vadd.f32 %v2782, %v3556
      %v3627 = vadd.f32 %v2783, %v3559
      %v3628 = vadd.f32 %v2784, %v3561
      %v3629 = vadd.f32 %v2785, %v3564
      %v3630 = vadd.f32 %v2786, %v3566
      %v3631 = vlaneseq
      %v3632 = vshrl.u32 %v3631, 7
      %v3633 = vsub.s32 4, %v3632
      %v3634 = vrot.slane %v614, %v3633
      %v3635 = vmul.f32 %v387, %v3634
      %v3636 = vmul.f32 %v388, %v3634
      %v3637 = vmul.f32 %v389, %v3634
      %v3638 = vmul.f32 %v390, %v3634
      %v3639 = vmul.f32 %v391, %v3634
      %v3640 = vmul.f32 %v392, %v3634
      %v3641 = vmul.f32 %v393, %v3634
      %v3642 = vmul.f32 %v394, %v3634
      %v3643 = vmul.f32 %v395, %v3634
      %v3644 = vmul.f32 %v396, %v3634
      %v3645 = vmul.f32 %v397, %v3634
      %v3646 = vmul.f32 %v398, %v3634
      %v3647 = vmul.f32 %v399, %v3634
      %v3648 = vmul.f32 %v400, %v3634
      %v3649 = vmul.f32 %v401, %v3634
      %v3650 = vmul.f32 %v402, %v3634
      %v3651 = vmul.f32 %v403, %v3634
      %v3652 = vmul.f32 %v404, %v3634
      %v3653 = vmul.f32 %v405, %v3634
      %v3654 = vmul.f32 %v406, %v3634
      %v3655 = vmul.f32 %v407, %v3634
      %v3656 = vmul.f32 %v408, %v3634
      %v3657 = vmul.f32 %v409, %v3634
      %v3658 = vmul.f32 %v410, %v3634
      %v3659 = vmul.f32 %v411, %v3634
      %v3660 = vmul.f32 %v412, %v3634
      %v3661 = vmul.f32 %v413, %v3634
      %v3662 = vmul.f32 %v414, %v3634
      %v3663 = vmul.f32 %v415, %v3634
      %v3664 = vmul.f32 %v416, %v3634
      %v3665 = vmul.f32 %v417, %v3634
      %v3666 = vmul.f32 %v418, %v3634
      %v3667 = vmul.f32 %v419, %v3634
      %v3668 = vmul.f32 %v420, %v3634
      %v3669 = vmul.f32 %v421, %v3634
      %v3670 = vmul.f32 %v422, %v3634
      %v3671 = vmul.f32 %v423, %v3634
      %v3672 = vmul.f32 %v424, %v3634
      %v3673 = vmul.f32 %v425, %v3634
      %v3674 = vmul.f32 %v426, %v3634
      %v3675 = vmul.f32 %v427, %v3634
      %v3676 = vmul.f32 %v428, %v3634
      %v3677 = vmul.f32 %v429, %v3634
      %v3678 = vmul.f32 %v430, %v3634
      %v3679 = vmul.f32 %v431, %v3634
      %v3680 = vmul.f32 %v432, %v3634
      %v3681 = vmul.f32 %v433, %v3634
      %v3682 = vmul.f32 %v434, %v3634
      %v3683 = vlaneseq
      %v3684 = vshrl.u32 %v3683, 7
      %v3685 = vsub.s32 4, %v3684
      %v3686 = vrot.slane %v615, %v3685
      %v3687 = vmul.f32 %v390, %v3686
      %v3688 = vmul.f32 %v391, %v3686
      %v3689 = vmul.f32 %v392, %v3686
      %v3690 = vmul.f32 %v393, %v3686
      %v3691 = vmul.f32 %v394, %v3686
      %v3692 = vmul.f32 %v395, %v3686
      %v3693 = vmul.f32 %v396, %v3686
      %v3694 = vmul.f32 %v397, %v3686
      %v3695 = vmul.f32 %v398, %v3686
      %v3696 = vmul.f32 %v399, %v3686
      %v3697 = vmul.f32 %v400, %v3686
      %v3698 = vmul.f32 %v401, %v3686
      %v3699 = vmul.f32 %v402, %v3686
      %v3700 = vmul.f32 %v403, %v3686
      %v3701 = vmul.f32 %v404, %v3686
      %v3702 = vmul.f32 %v405, %v3686
      %v3703 = vmul.f32 %v406, %v3686
      %v3704 = vmul.f32 %v407, %v3686
      %v3705 = vmul.f32 %v408, %v3686
      %v3706 = vmul.f32 %v409, %v3686
      %v3707 = vmul.f32 %v410, %v3686
      %v3708 = vmul.f32 %v411, %v3686
      %v3709 = vmul.f32 %v412, %v3686
      %v3710 = vmul.f32 %v413, %v3686
      %v3711 = vmul.f32 %v414, %v3686
      %v3712 = vmul.f32 %v415, %v3686
      %v3713 = vmul.f32 %v416, %v3686
      %v3714 = vmul.f32 %v417, %v3686
      %v3715 = vmul.f32 %v418, %v3686
      %v3716 = vmul.f32 %v419, %v3686
      %v3717 = vmul.f32 %v420, %v3686
      %v3718 = vmul.f32 %v421, %v3686
      %v3719 = vmul.f32 %v422, %v3686
      %v3720 = vmul.f32 %v423, %v3686
      %v3721 = vmul.f32 %v424, %v3686
      %v3722 = vmul.f32 %v425, %v3686
      %v3723 = vmul.f32 %v426, %v3686
      %v3724 = vmul.f32 %v427, %v3686
      %v3725 = vmul.f32 %v428, %v3686
      %v3726 = vmul.f32 %v429, %v3686
      %v3727 = vmul.f32 %v430, %v3686
      %v3728 = vmul.f32 %v431, %v3686
      %v3729 = vmul.f32 %v432, %v3686
      %v3730 = vmul.f32 %v433, %v3686
      %v3731 = vmul.f32 %v434, %v3686
      %v3732 = vmul.f32 %v435, %v3686
      %v3733 = vmul.f32 %v436, %v3686
      %v3734 = vmul.f32 %v437, %v3686
      %v3735 = vadd.f32 %v3635, %v3687
      %v3736 = vadd.f32 %v3636, %v3688
      %v3737 = vadd.f32 %v3637, %v3689
      %v3738 = vadd.f32 %v3638, %v3690
      %v3739 = vadd.f32 %v3639, %v3691
      %v3740 = vadd.f32 %v3640, %v3692
      %v3741 = vadd.f32 %v3641, %v3693
      %v3742 = vadd.f32 %v3642, %v3694
      %v3743 = vadd.f32 %v3643, %v3695
      %v3744 = vadd.f32 %v3644, %v3696
      %v3745 = vadd.f32 %v3645, %v3697
      %v3746 = vadd.f32 %v3646, %v3698
      %v3747 = vadd.f32 %v3647, %v3699
      %v3748 = vadd.f32 %v3648, %v3700
      %v3749 = vadd.f32 %v3649, %v3701
      %v3750 = vadd.f32 %v3650, %v3702
      %v3751 = vadd.f32 %v3651, %v3703
      %v3752 = vadd.f32 %v3652, %v3704
      %v3753 = vadd.f32 %v3653, %v3705
      %v3754 = vadd.f32 %v3654, %v3706
      %v3755 = vadd.f32 %v3655, %v3707
      %v3756 = vadd.f32 %v3656, %v3708
      %v3757 = vadd.f32 %v3657, %v3709
      %v3758 = vadd.f32 %v3658, %v3710
      %v3759 = vadd.f32 %v3659, %v3711
      %v3760 = vadd.f32 %v3660, %v3712
      %v3761 = vadd.f32 %v3661, %v3713
      %v3762 = vadd.f32 %v3662, %v3714
      %v3763 = vadd.f32 %v3663, %v3715
      %v3764 = vadd.f32 %v3664, %v3716
      %v3765 = vadd.f32 %v3665, %v3717
      %v3766 = vadd.f32 %v3666, %v3718
      %v3767 = vadd.f32 %v3667, %v3719
      %v3768 = vadd.f32 %v3668, %v3720
      %v3769 = vadd.f32 %v3669, %v3721
      %v3770 = vadd.f32 %v3670, %v3722
      %v3771 = vadd.f32 %v3671, %v3723
      %v3772 = vadd.f32 %v3672, %v3724
      %v3773 = vadd.f32 %v3673, %v3725
      %v3774 = vadd.f32 %v3674, %v3726
      %v3775 = vadd.f32 %v3675, %v3727
      %v3776 = vadd.f32 %v3676, %v3728
      %v3777 = vadd.f32 %v3677, %v3729
      %v3778 = vadd.f32 %v3678, %v3730
      %v3779 = vadd.f32 %v3679, %v3731
      %v3780 = vadd.f32 %v3680, %v3732
      %v3781 = vadd.f32 %v3681, %v3733
      %v3782 = vadd.f32 %v3682, %v3734
      %v3783 = vlaneseq
      %v3784 = vshrl.u32 %v3783, 7
      %v3785 = vsub.s32 4, %v3784
      %v3786 = vrot.slane %v616, %v3785
      %v3787 = vmul.f32 %v393, %v3786
      %v3788 = vmul.f32 %v394, %v3786
      %v3789 = vmul.f32 %v395, %v3786
      %v3790 = vmul.f32 %v396, %v3786
      %v3791 = vmul.f32 %v397, %v3786
      %v3792 = vmul.f32 %v398, %v3786
      %v3793 = vmul.f32 %v399, %v3786
      %v3794 = vmul.f32 %v400, %v3786
      %v3795 = vmul.f32 %v401, %v3786
      %v3796 = vmul.f32 %v402, %v3786
      %v3797 = vmul.f32 %v403, %v3786
      %v3798 = vmul.f32 %v404, %v3786
      %v3799 = vmul.f32 %v405, %v3786
      %v3800 = vmul.f32 %v406, %v3786
      %v3801 = vmul.f32 %v407, %v3786
      %v3802 = vmul.f32 %v408, %v3786
      %v3803 = vmul.f32 %v409, %v3786
      %v3804 = vmul.f32 %v410, %v3786
      %v3805 = vmul.f32 %v411, %v3786
      %v3806 = vmul.f32 %v412, %v3786
      %v3807 = vmul.f32 %v413, %v3786
      %v3808 = vmul.f32 %v414, %v3786
      %v3809 = vmul.f32 %v415, %v3786
      %v3810 = vmul.f32 %v416, %v3786
      %v3811 = vmul.f32 %v417, %v3786
      %v3812 = vmul.f32 %v418, %v3786
      %v3813 = vmul.f32 %v419, %v3786
      %v3814 = vmul.f32 %v420, %v3786
      %v3815 = vmul.f32 %v421, %v3786
      %v3816 = vmul.f32 %v422, %v3786
      %v3817 = vmul.f32 %v423, %v3786
      %v3818 = vmul.f32 %v424, %v3786
      %v3819 = vmul.f32 %v425, %v3786
      %v3820 = vmul.f32 %v426, %v3786
      %v3821 = vmul.f32 %v427, %v3786
      %v3822 = vmul.f32 %v428, %v3786
      %v3823 = vmul.f32 %v429, %v3786
      %v3824 = vmul.f32 %v430, %v3786
      %v3825 = vmul.f32 %v431, %v3786
      %v3826 = vmul.f32 %v432, %v3786
      %v3827 = vmul.f32 %v433, %v3786
      %v3828 = vmul.f32 %v434, %v3786
      %v3829 = vmul.f32 %v435, %v3786
      %v3830 = vmul.f32 %v436, %v3786
      %v3831 = vmul.f32 %v437, %v3786
      %v3832 = vmul.f32 %v438, %v3786
      %v3833 = vmul.f32 %v439, %v3786
      %v3834 = vmul.f32 %v440, %v3786
      %v3835 = vadd.f32 %v3735, %v3787
      %v3836 = vadd.f32 %v3736, %v3788
      %v3837 = vadd.f32 %v3737, %v3789
      %v3838 = vadd.f32 %v3738, %v3790
      %v3839 = vadd.f32 %v3739, %v3791
      %v3840 = vadd.f32 %v3740, %v3792
      %v3841 = vadd.f32 %v3741, %v3793
      %v3842 = vadd.f32 %v3742, %v3794
      %v3843 = vadd.f32 %v3743, %v3795
      %v3844 = vadd.f32 %v3744, %v3796
      %v3845 = vadd.f32 %v3745, %v3797
      %v3846 = vadd.f32 %v3746, %v3798
      %v3847 = vadd.f32 %v3747, %v3799
      %v3848 = vadd.f32 %v3748, %v3800
      %v3849 = vadd.f32 %v3749, %v3801
      %v3850 = vadd.f32 %v3750, %v3802
      %v3851 = vadd.f32 %v3751, %v3803
      %v3852 = vadd.f32 %v3752, %v3804
      %v3853 = vadd.f32 %v3753, %v3805
      %v3854 = vadd.f32 %v3754, %v3806
      %v3855 = vadd.f32 %v3755, %v3807
      %v3856 = vadd.f32 %v3756, %v3808
      %v3857 = vadd.f32 %v3757, %v3809
      %v3858 = vadd.f32 %v3758, %v3810
      %v3859 = vadd.f32 %v3759, %v3811
      %v3860 = vadd.f32 %v3760, %v3812
      %v3861 = vadd.f32 %v3761, %v3813
      %v3862 = vadd.f32 %v3762, %v3814
      %v3863 = vadd.f32 %v3763, %v3815
      %v3864 = vadd.f32 %v3764, %v3816
      %v3865 = vadd.f32 %v3765, %v3817
      %v3866 = vadd.f32 %v3766, %v3818
      %v3867 = vadd.f32 %v3767, %v3819
      %v3868 = vadd.f32 %v3768, %v3820
      %v3869 = vadd.f32 %v3769, %v3821
      %v3870 = vadd.f32 %v3770, %v3822
      %v3871 = vadd.f32 %v3771, %v3823
      %v3872 = vadd.f32 %v3772, %v3824
      %v3873 = vadd.f32 %v3773, %v3825
      %v3874 = vadd.f32 %v3774, %v3826
      %v3875 = vadd.f32 %v3775, %v3827
      %v3876 = vadd.f32 %v3776, %v3828
      %v3877 = vadd.f32 %v3777, %v3829
      %v3878 = vadd.f32 %v3778, %v3830
      %v3879 = vadd.f32 %v3779, %v3831
      %v3880 = vadd.f32 %v3780, %v3832
      %v3881 = vadd.f32 %v3781, %v3833
      %v3882 = vadd.f32 %v3782, %v3834
      %v3883 = vlaneseq
      %v3884 = vshrl.u32 %v3883, 7
      %v3885 = vsub.s32 4, %v3884
      %v3886 = vrot.slane %v617, %v3885
      %v3887 = vmul.f32 %v396, %v3886
      %v3888 = vmul.f32 %v397, %v3886
      %v3889 = vmul.f32 %v398, %v3886
      %v3890 = vmul.f32 %v399, %v3886
      %v3891 = vmul.f32 %v400, %v3886
      %v3892 = vmul.f32 %v401, %v3886
      %v3893 = vmul.f32 %v402, %v3886
      %v3894 = vmul.f32 %v403, %v3886
      %v3895 = vmul.f32 %v404, %v3886
      %v3896 = vmul.f32 %v405, %v3886
      %v3897 = vmul.f32 %v406, %v3886
      %v3898 = vmul.f32 %v407, %v3886
      %v3899 = vmul.f32 %v408, %v3886
      %v3900 = vmul.f32 %v409, %v3886
      %v3901 = vmul.f32 %v410, %v3886
      %v3902 = vmul.f32 %v411, %v3886
      %v3903 = vmul.f32 %v412, %v3886
      %v3904 = vmul.f32 %v413, %v3886
      %v3905 = vmul.f32 %v414, %v3886
      %v3906 = vmul.f32 %v415, %v3886
      %v3907 = vmul.f32 %v416, %v3886
      %v3908 = vmul.f32 %v417, %v3886
      %v3909 = vmul.f32 %v418, %v3886
      %v3910 = vmul.f32 %v419, %v3886
      %v3911 = vmul.f32 %v420, %v3886
      %v3912 = vmul.f32 %v421, %v3886
      %v3913 = vmul.f32 %v422, %v3886
      %v3914 = vmul.f32 %v423, %v3886
      %v3915 = vmul.f32 %v424, %v3886
      %v3916 = vmul.f32 %v425, %v3886
      %v3917 = vmul.f32 %v426, %v3886
      %v3918 = vmul.f32 %v427, %v3886
      %v3919 = vmul.f32 %v428, %v3886
      %v3920 = vmul.f32 %v429, %v3886
      %v3921 = vmul.f32 %v430, %v3886
      %v3922 = vmul.f32 %v431, %v3886
      %v3923 = vmul.f32 %v432, %v3886
      %v3924 = vmul.f32 %v433, %v3886
      %v3925 = vmul.f32 %v434, %v3886
      %v3926 = vmul.f32 %v435, %v3886
      %v3927 = vmul.f32 %v436, %v3886
      %v3928 = vmul.f32 %v437, %v3886
      %v3929 = vmul.f32 %v438, %v3886
      %v3930 = vmul.f32 %v439, %v3886
      %v3931 = vmul.f32 %v440, %v3886
      %v3932 = vmul.f32 %v441, %v3886
      %v3933 = vmul.f32 %v442, %v3886
      %v3934 = vmul.f32 %v443, %v3886
      %v3935 = vadd.f32 %v3835, %v3887
      %v3936 = vadd.f32 %v3836, %v3888
      %v3937 = vadd.f32 %v3837, %v3889
      %v3938 = vadd.f32 %v3838, %v3890
      %v3939 = vadd.f32 %v3839, %v3891
      %v3940 = vadd.f32 %v3840, %v3892
      %v3941 = vadd.f32 %v3841, %v3893
      %v3942 = vadd.f32 %v3842, %v3894
      %v3943 = vadd.f32 %v3843, %v3895
      %v3944 = vadd.f32 %v3844, %v3896
      %v3945 = vadd.f32 %v3845, %v3897
      %v3946 = vadd.f32 %v3846, %v3898
      %v3947 = vadd.f32 %v3847, %v3899
      %v3948 = vadd.f32 %v3848, %v3900
      %v3949 = vadd.f32 %v3849, %v3901
      %v3950 = vadd.f32 %v3850, %v3902
      %v3951 = vadd.f32 %v3851, %v3903
      %v3952 = vadd.f32 %v3852, %v3904
      %v3953 = vadd.f32 %v3853, %v3905
      %v3954 = vadd.f32 %v3854, %v3906
      %v3955 = vadd.f32 %v3855, %v3907
      %v3956 = vadd.f32 %v3856, %v3908
      %v3957 = vadd.f32 %v3857, %v3909
      %v3958 = vadd.f32 %v3858, %v3910
      %v3959 = vadd.f32 %v3859, %v3911
      %v3960 = vadd.f32 %v3860, %v3912
      %v3961 = vadd.f32 %v3861, %v3913
      %v3962 = vadd.f32 %v3862, %v3914
      %v3963 = vadd.f32 %v3863, %v3915
      %v3964 = vadd.f32 %v3864, %v3916
      %v3965 = vadd.f32 %v3865, %v3917
      %v3966 = vadd.f32 %v3866, %v3918
      %v3967 = vadd.f32 %v3867, %v3919
      %v3968 = vadd.f32 %v3868, %v3920
      %v3969 = vadd.f32 %v3869, %v3921
      %v3970 = vadd.f32 %v3870, %v3922
      %v3971 = vadd.f32 %v3871, %v3923
      %v3972 = vadd.f32 %v3872, %v3924
      %v3973 = vadd.f32 %v3873, %v3925
      %v3974 = vadd.f32 %v3874, %v3926
      %v3975 = vadd.f32 %v3875, %v3927
      %v3976 = vadd.f32 %v3876, %v3928
      %v3977 = vadd.f32 %v3877, %v3929
      %v3978 = vadd.f32 %v3878, %v3930
      %v3979 = vadd.f32 %v3879, %v3931
      %v3980 = vadd.f32 %v3880, %v3932
      %v3981 = vadd.f32 %v3881, %v3933
      %v3982 = vadd.f32 %v3882, %v3934
      %v3983 = vlaneseq
      %v3984 = vshrl.u32 %v3983, 7
      %v3985 = vsub.s32 4, %v3984
      %v3986 = vrot.slane %v618, %v3985
      %v3987 = vmul.f32 %v399, %v3986
      %v3988 = vmul.f32 %v400, %v3986
      %v3989 = vmul.f32 %v401, %v3986
      %v3990 = vmul.f32 %v402, %v3986
      %v3991 = vmul.f32 %v403, %v3986
      %v3992 = vmul.f32 %v404, %v3986
      %v3993 = vmul.f32 %v405, %v3986
      %v3994 = vmul.f32 %v406, %v3986
      %v3995 = vmul.f32 %v407, %v3986
      %v3996 = vmul.f32 %v408, %v3986
      %v3997 = vmul.f32 %v409, %v3986
      %v3998 = vmul.f32 %v410, %v3986
      %v3999 = vmul.f32 %v411, %v3986
      %v4000 = vmul.f32 %v412, %v3986
      %v4001 = vmul.f32 %v413, %v3986
      %v4002 = vmul.f32 %v414, %v3986
      %v4003 = vmul.f32 %v415, %v3986
      %v4004 = vmul.f32 %v416, %v3986
      %v4005 = vmul.f32 %v417, %v3986
      %v4006 = vmul.f32 %v418, %v3986
      %v4007 = vmul.f32 %v419, %v3986
      %v4008 = vmul.f32 %v420, %v3986
      %v4009 = vmul.f32 %v421, %v3986
      %v4010 = vmul.f32 %v422, %v3986
      %v4011 = vmul.f32 %v423, %v3986
      %v4012 = vmul.f32 %v424, %v3986
      %v4013 = vmul.f32 %v425, %v3986
      %v4014 = vmul.f32 %v426, %v3986
      %v4015 = vmul.f32 %v427, %v3986
      %v4016 = vmul.f32 %v428, %v3986
      %v4017 = vmul.f32 %v429, %v3986
      %v4018 = vmul.f32 %v430, %v3986
      %v4019 = vmul.f32 %v431, %v3986
      %v4020 = vmul.f32 %v432, %v3986
      %v4021 = vmul.f32 %v433, %v3986
      %v4022 = vmul.f32 %v434, %v3986
      %v4023 = vmul.f32 %v435, %v3986
      %v4024 = vmul.f32 %v436, %v3986
      %v4025 = vmul.f32 %v437, %v3986
      %v4026 = vmul.f32 %v438, %v3986
      %v4027 = vmul.f32 %v439, %v3986
      %v4028 = vmul.f32 %v440, %v3986
      %v4029 = vmul.f32 %v441, %v3986
      %v4030 = vmul.f32 %v442, %v3986
      %v4031 = vmul.f32 %v443, %v3986
      %v4032 = vmul.f32 %v444, %v3986
      %v4033 = vmul.f32 %v445, %v3986
      %v4034 = vmul.f32 %v446, %v3986
      %v4035 = vadd.f32 %v3935, %v3987
      %v4036 = vadd.f32 %v3936, %v3988
      %v4037 = vadd.f32 %v3937, %v3989
      %v4038 = vadd.f32 %v3938, %v3990
      %v4039 = vadd.f32 %v3939, %v3991
      %v4040 = vadd.f32 %v3940, %v3992
      %v4041 = vadd.f32 %v3941, %v3993
      %v4042 = vadd.f32 %v3942, %v3994
      %v4043 = vadd.f32 %v3943, %v3995
      %v4044 = vadd.f32 %v3944, %v3996
      %v4045 = vadd.f32 %v3945, %v3997
      %v4046 = vadd.f32 %v3946, %v3998
      %v4047 = vadd.f32 %v3947, %v3999
      %v4048 = vadd.f32 %v3948, %v4000
      %v4049 = vadd.f32 %v3949, %v4001
      %v4050 = vadd.f32 %v3950, %v4002
      %v4051 = vadd.f32 %v3951, %v4003
      %v4052 = vadd.f32 %v3952, %v4004
      %v4053 = vadd.f32 %v3953, %v4005
      %v4054 = vadd.f32 %v3954, %v4006
      %v4055 = vadd.f32 %v3955, %v4007
      %v4056 = vadd.f32 %v3956, %v4008
      %v4057 = vadd.f32 %v3957, %v4009
      %v4058 = vadd.f32 %v3958, %v4010
      %v4059 = vadd.f32 %v3959, %v4011
      %v4060 = vadd.f32 %v3960, %v4012
      %v4061 = vadd.f32 %v3961, %v4013
      %v4062 = vadd.f32 %v3962, %v4014
      %v4063 = vadd.f32 %v3963, %v4015
      %v4064 = vadd.f32 %v3964, %v4016
      %v4065 = vadd.f32 %v3965, %v4017
      %v4066 = vadd.f32 %v3966, %v4018
      %v4067 = vadd.f32 %v3967, %v4019
      %v4068 = vadd.f32 %v3968, %v4020
      %v4069 = vadd.f32 %v3969, %v4021
      %v4070 = vadd.f32 %v3970, %v4022
      %v4071 = vadd.f32 %v3971, %v4023
      %v4072 = vadd.f32 %v3972, %v4024
      %v4073 = vadd.f32 %v3973, %v4025
      %v4074 = vadd.f32 %v3974, %v4026
      %v4075 = vadd.f32 %v3975, %v4027
      %v4076 = vadd.f32 %v3976, %v4028
      %v4077 = vadd.f32 %v3977, %v4029
      %v4078 = vadd.f32 %v3978, %v4030
      %v4079 = vadd.f32 %v3979, %v4031
      %v4080 = vadd.f32 %v3980, %v4032
      %v4081 = vadd.f32 %v3981, %v4033
      %v4082 = vadd.f32 %v3982, %v4034
      %v4083 = vlaneseq
      %v4084 = vshrl.u32 %v4083, 7
      %v4085 = vsub.s32 4, %v4084
      %v4086 = vrot.slane %v619, %v4085
      %v4087 = vmul.f32 %v402, %v4086
      %v4088 = vmul.f32 %v403, %v4086
      %v4089 = vmul.f32 %v404, %v4086
      %v4090 = vmul.f32 %v405, %v4086
      %v4091 = vmul.f32 %v406, %v4086
      %v4092 = vmul.f32 %v407, %v4086
      %v4093 = vmul.f32 %v408, %v4086
      %v4094 = vmul.f32 %v409, %v4086
      %v4095 = vmul.f32 %v410, %v4086
      %v4096 = vmul.f32 %v411, %v4086
      %v4097 = vmul.f32 %v412, %v4086
      %v4098 = vmul.f32 %v413, %v4086
      %v4099 = vmul.f32 %v414, %v4086
      %v4100 = vmul.f32 %v415, %v4086
      %v4101 = vmul.f32 %v416, %v4086
      %v4102 = vmul.f32 %v417, %v4086
      %v4103 = vmul.f32 %v418, %v4086
      %v4104 = vmul.f32 %v419, %v4086
      %v4105 = vmul.f32 %v420, %v4086
      %v4106 = vmul.f32 %v421, %v4086
      %v4107 = vmul.f32 %v422, %v4086
      %v4108 = vmul.f32 %v423, %v4086
      %v4109 = vmul.f32 %v424, %v4086
      %v4110 = vmul.f32 %v425, %v4086
      %v4111 = vmul.f32 %v426, %v4086
      %v4112 = vmul.f32 %v427, %v4086
      %v4113 = vmul.f32 %v428, %v4086
      %v4114 = vmul.f32 %v429, %v4086
      %v4115 = vmul.f32 %v430, %v4086
      %v4116 = vmul.f32 %v431, %v4086
      %v4117 = vmul.f32 %v432, %v4086
      %v4118 = vmul.f32 %v433, %v4086
      %v4119 = vmul.f32 %v434, %v4086
      %v4120 = vmul.f32 %v435, %v4086
      %v4121 = vmul.f32 %v436, %v4086
      %v4122 = vmul.f32 %v437, %v4086
      %v4123 = vmul.f32 %v438, %v4086
      %v4124 = vmul.f32 %v439, %v4086
      %v4125 = vmul.f32 %v440, %v4086
      %v4126 = vmul.f32 %v441, %v4086
      %v4127 = vmul.f32 %v442, %v4086
      %v4128 = vmul.f32 %v443, %v4086
      %v4129 = vmul.f32 %v444, %v4086
      %v4130 = vmul.f32 %v445, %v4086
      %v4131 = vmul.f32 %v446, %v4086
      %v4132 = vmul.f32 %v447, %v4086
      %v4133 = vmul.f32 %v448, %v4086
      %v4134 = vmul.f32 %v449, %v4086
      %v4135 = vadd.f32 %v4035, %v4087
      %v4136 = vadd.f32 %v4036, %v4088
      %v4137 = vadd.f32 %v4037, %v4089
      %v4138 = vadd.f32 %v4038, %v4090
      %v4139 = vadd.f32 %v4039, %v4091
      %v4140 = vadd.f32 %v4040, %v4092
      %v4141 = vadd.f32 %v4041, %v4093
      %v4142 = vadd.f32 %v4042, %v4094
      %v4143 = vadd.f32 %v4043, %v4095
      %v4144 = vadd.f32 %v4044, %v4096
      %v4145 = vadd.f32 %v4045, %v4097
      %v4146 = vadd.f32 %v4046, %v4098
      %v4147 = vadd.f32 %v4047, %v4099
      %v4148 = vadd.f32 %v4048, %v4100
      %v4149 = vadd.f32 %v4049, %v4101
      %v4150 = vadd.f32 %v4050, %v4102
      %v4151 = vadd.f32 %v4051, %v4103
      %v4152 = vadd.f32 %v4052, %v4104
      %v4153 = vadd.f32 %v4053, %v4105
      %v4154 = vadd.f32 %v4054, %v4106
      %v4155 = vadd.f32 %v4055, %v4107
      %v4156 = vadd.f32 %v4056, %v4108
      %v4157 = vadd.f32 %v4057, %v4109
      %v4158 = vadd.f32 %v4058, %v4110
      %v4159 = vadd.f32 %v4059, %v4111
      %v4160 = vadd.f32 %v4060, %v4112
      %v4161 = vadd.f32 %v4061, %v4113
      %v4162 = vadd.f32 %v4062, %v4114
      %v4163 = vadd.f32 %v4063, %v4115
      %v4164 = vadd.f32 %v4064, %v4116
      %v4165 = vadd.f32 %v4065, %v4117
      %v4166 = vadd.f32 %v4066, %v4118
      %v4167 = vadd.f32 %v4067, %v4119
      %v4168 = vadd.f32 %v4068, %v4120
      %v4169 = vadd.f32 %v4069, %v4121
      %v4170 = vadd.f32 %v4070, %v4122
      %v4171 = vadd.f32 %v4071, %v4123
      %v4172 = vadd.f32 %v4072, %v4124
      %v4173 = vadd.f32 %v4073, %v4125
      %v4174 = vadd.f32 %v4074, %v4126
      %v4175 = vadd.f32 %v4075, %v4127
      %v4176 = vadd.f32 %v4076, %v4128
      %v4177 = vadd.f32 %v4077, %v4129
      %v4178 = vadd.f32 %v4078, %v4130
      %v4179 = vadd.f32 %v4079, %v4131
      %v4180 = vadd.f32 %v4080, %v4132
      %v4181 = vadd.f32 %v4081, %v4133
      %v4182 = vadd.f32 %v4082, %v4134
      %v4183 = vlaneseq
      %v4184 = vshrl.u32 %v4183, 7
      %v4185 = vsub.s32 4, %v4184
      %v4186 = vrot.slane %v620, %v4185
      %v4187 = vmul.f32 %v405, %v4186
      %v4188 = vmul.f32 %v406, %v4186
      %v4189 = vmul.f32 %v407, %v4186
      %v4190 = vmul.f32 %v408, %v4186
      %v4191 = vmul.f32 %v409, %v4186
      %v4192 = vmul.f32 %v410, %v4186
      %v4193 = vmul.f32 %v411, %v4186
      %v4194 = vmul.f32 %v412, %v4186
      %v4195 = vmul.f32 %v413, %v4186
      %v4196 = vmul.f32 %v414, %v4186
      %v4197 = vmul.f32 %v415, %v4186
      %v4198 = vmul.f32 %v416, %v4186
      %v4199 = vmul.f32 %v417, %v4186
      %v4200 = vmul.f32 %v418, %v4186
      %v4201 = vmul.f32 %v419, %v4186
      %v4202 = vmul.f32 %v420, %v4186
      %v4203 = vmul.f32 %v421, %v4186
      %v4204 = vmul.f32 %v422, %v4186
      %v4205 = vmul.f32 %v423, %v4186
      %v4206 = vmul.f32 %v424, %v4186
      %v4207 = vmul.f32 %v425, %v4186
      %v4208 = vmul.f32 %v426, %v4186
      %v4209 = vmul.f32 %v427, %v4186
      %v4210 = vmul.f32 %v428, %v4186
      %v4211 = vmul.f32 %v429, %v4186
      %v4212 = vmul.f32 %v430, %v4186
      %v4213 = vmul.f32 %v431, %v4186
      %v4214 = vmul.f32 %v432, %v4186
      %v4215 = vmul.f32 %v433, %v4186
      %v4216 = vmul.f32 %v434, %v4186
      %v4217 = vmul.f32 %v435, %v4186
      %v4218 = vmul.f32 %v436, %v4186
      %v4219 = vmul.f32 %v437, %v4186
      %v4220 = vmul.f32 %v438, %v4186
      %v4221 = vmul.f32 %v439, %v4186
      %v4222 = vmul.f32 %v440, %v4186
      %v4223 = vmul.f32 %v441, %v4186
      %v4224 = vmul.f32 %v442, %v4186
      %v4225 = vmul.f32 %v443, %v4186
      %v4226 = vmul.f32 %v444, %v4186
      %v4227 = vmul.f32 %v445, %v4186
      %v4228 = vmul.f32 %v446, %v4186
      %v4229 = vmul.f32 %v447, %v4186
      %v4230 = vmul.f32 %v448, %v4186
      %v4231 = vmul.f32 %v449, %v4186
      %v4232 = vmul.f32 %v450, %v4186
      %v4233 = vmul.f32 %v451, %v4186
      %v4234 = vmul.f32 %v452, %v4186
      %v4235 = vadd.f32 %v4135, %v4187
      %v4236 = vadd.f32 %v4136, %v4188
      %v4237 = vadd.f32 %v4137, %v4189
      %v4238 = vadd.f32 %v4138, %v4190
      %v4239 = vadd.f32 %v4139, %v4191
      %v4240 = vadd.f32 %v4140, %v4192
      %v4241 = vadd.f32 %v4141, %v4193
      %v4242 = vadd.f32 %v4142, %v4194
      %v4243 = vadd.f32 %v4143, %v4195
      %v4244 = vadd.f32 %v4144, %v4196
      %v4245 = vadd.f32 %v4145, %v4197
      %v4246 = vadd.f32 %v4146, %v4198
      %v4247 = vadd.f32 %v4147, %v4199
      %v4248 = vadd.f32 %v4148, %v4200
      %v4249 = vadd.f32 %v4149, %v4201
      %v4250 = vadd.f32 %v4150, %v4202
      %v4251 = vadd.f32 %v4151, %v4203
      %v4252 = vadd.f32 %v4152, %v4204
      %v4253 = vadd.f32 %v4153, %v4205
      %v4254 = vadd.f32 %v4154, %v4206
      %v4255 = vadd.f32 %v4155, %v4207
      %v4256 = vadd.f32 %v4156, %v4208
      %v4257 = vadd.f32 %v4157, %v4209
      %v4258 = vadd.f32 %v4158, %v4210
      %v4259 = vadd.f32 %v4159, %v4211
      %v4260 = vadd.f32 %v4160, %v4212
      %v4261 = vadd.f32 %v4161, %v4213
      %v4262 = vadd.f32 %v4162, %v4214
      %v4263 = vadd.f32 %v4163, %v4215
      %v4264 = vadd.f32 %v4164, %v4216
      %v4265 = vadd.f32 %v4165, %v4217
      %v4266 = vadd.f32 %v4166, %v4218
      %v4267 = vadd.f32 %v4167, %v4219
      %v4268 = vadd.f32 %v4168, %v4220
      %v4269 = vadd.f32 %v4169, %v4221
      %v4270 = vadd.f32 %v4170, %v4222
      %v4271 = vadd.f32 %v4171, %v4223
      %v4272 = vadd.f32 %v4172, %v4224
      %v4273 = vadd.f32 %v4173, %v4225
      %v4274 = vadd.f32 %v4174, %v4226
      %v4275 = vadd.f32 %v4175, %v4227
      %v4276 = vadd.f32 %v4176, %v4228
      %v4277 = vadd.f32 %v4177, %v4229
      %v4278 = vadd.f32 %v4178, %v4230
      %v4279 = vadd.f32 %v4179, %v4231
      %v4280 = vadd.f32 %v4180, %v4232
      %v4281 = vadd.f32 %v4181, %v4233
      %v4282 = vadd.f32 %v4182, %v4234
      %vm4331 = vcmask 1043456
      %v4332 = vrot.slane %v4235, 4
      %v4333 = vrot.slane %v4236, 4
      %v4334 = vsel %vm4331, %v4332, %v4333
      %v4335 = vrot.slane %v4237, 4
      %v4336 = vsel %vm4331, %v4333, %v4335
      %v4337 = vrot.slane %v4238, 4
      %v4338 = vrot.slane %v4239, 4
      %v4339 = vsel %vm4331, %v4337, %v4338
      %v4340 = vrot.slane %v4240, 4
      %v4341 = vsel %vm4331, %v4338, %v4340
      %v4342 = vrot.slane %v4241, 4
      %v4343 = vrot.slane %v4242, 4
      %v4344 = vsel %vm4331, %v4342, %v4343
      %v4345 = vrot.slane %v4243, 4
      %v4346 = vsel %vm4331, %v4343, %v4345
      %v4347 = vrot.slane %v4244, 4
      %v4348 = vrot.slane %v4245, 4
      %v4349 = vsel %vm4331, %v4347, %v4348
      %v4350 = vrot.slane %v4246, 4
      %v4351 = vsel %vm4331, %v4348, %v4350
      %v4352 = vrot.slane %v4247, 4
      %v4353 = vrot.slane %v4248, 4
      %v4354 = vsel %vm4331, %v4352, %v4353
      %v4355 = vrot.slane %v4249, 4
      %v4356 = vsel %vm4331, %v4353, %v4355
      %v4357 = vrot.slane %v4250, 4
      %v4358 = vrot.slane %v4251, 4
      %v4359 = vsel %vm4331, %v4357, %v4358
      %v4360 = vrot.slane %v4252, 4
      %v4361 = vsel %vm4331, %v4358, %v4360
      %v4362 = vrot.slane %v4253, 4
      %v4363 = vrot.slane %v4254, 4
      %v4364 = vsel %vm4331, %v4362, %v4363
      %v4365 = vrot.slane %v4255, 4
      %v4366 = vsel %vm4331, %v4363, %v4365
      %v4367 = vrot.slane %v4256, 4
      %v4368 = vrot.slane %v4257, 4
      %v4369 = vsel %vm4331, %v4367, %v4368
      %v4370 = vrot.slane %v4258, 4
      %v4371 = vsel %vm4331, %v4368, %v4370
      %v4372 = vrot.slane %v4259, 4
      %v4373 = vrot.slane %v4260, 4
      %v4374 = vsel %vm4331, %v4372, %v4373
      %v4375 = vrot.slane %v4261, 4
      %v4376 = vsel %vm4331, %v4373, %v4375
      %v4377 = vrot.slane %v4262, 4
      %v4378 = vrot.slane %v4263, 4
      %v4379 = vsel %vm4331, %v4377, %v4378
      %v4380 = vrot.slane %v4264, 4
      %v4381 = vsel %vm4331, %v4378, %v4380
      %v4382 = vrot.slane %v4265, 4
      %v4383 = vrot.slane %v4266, 4
      %v4384 = vsel %vm4331, %v4382, %v4383
      %v4385 = vrot.slane %v4267, 4
      %v4386 = vsel %vm4331, %v4383, %v4385
      %v4387 = vrot.slane %v4268, 4
      %v4388 = vrot.slane %v4269, 4
      %v4389 = vsel %vm4331, %v4387, %v4388
      %v4390 = vrot.slane %v4270, 4
      %v4391 = vsel %vm4331, %v4388, %v4390
      %v4392 = vrot.slane %v4271, 4
      %v4393 = vrot.slane %v4272, 4
      %v4394 = vsel %vm4331, %v4392, %v4393
      %v4395 = vrot.slane %v4273, 4
      %v4396 = vsel %vm4331, %v4393, %v4395
      %v4397 = vrot.slane %v4274, 4
      %v4398 = vrot.slane %v4275, 4
      %v4399 = vsel %vm4331, %v4397, %v4398
      %v4400 = vrot.slane %v4276, 4
      %v4401 = vsel %vm4331, %v4398, %v4400
      %v4402 = vrot.slane %v4277, 4
      %v4403 = vrot.slane %v4278, 4
      %v4404 = vsel %vm4331, %v4402, %v4403
      %v4405 = vrot.slane %v4279, 4
      %v4406 = vsel %vm4331, %v4403, %v4405
      %v4407 = vrot.slane %v4280, 4
      %v4408 = vrot.slane %v4281, 4
      %v4409 = vsel %vm4331, %v4407, %v4408
      %v4410 = vrot.slane %v4282, 4
      %v4411 = vsel %vm4331, %v4408, %v4410
      %v4444 = vadd.f32 %v3599, %v4334
      %v4445 = vadd.f32 %v3600, %v4336
      %v4446 = vadd.f32 %v3601, %v4339
      %v4447 = vadd.f32 %v3602, %v4341
      %v4448 = vadd.f32 %v3603, %v4344
      %v4449 = vadd.f32 %v3604, %v4346
      %v4450 = vadd.f32 %v3605, %v4349
      %v4451 = vadd.f32 %v3606, %v4351
      %v4452 = vadd.f32 %v3607, %v4354
      %v4453 = vadd.f32 %v3608, %v4356
      %v4454 = vadd.f32 %v3609, %v4359
      %v4455 = vadd.f32 %v3610, %v4361
      %v4456 = vadd.f32 %v3611, %v4364
      %v4457 = vadd.f32 %v3612, %v4366
      %v4458 = vadd.f32 %v3613, %v4369
      %v4459 = vadd.f32 %v3614, %v4371
      %v4460 = vadd.f32 %v3615, %v4374
      %v4461 = vadd.f32 %v3616, %v4376
      %v4462 = vadd.f32 %v3617, %v4379
      %v4463 = vadd.f32 %v3618, %v4381
      %v4464 = vadd.f32 %v3619, %v4384
      %v4465 = vadd.f32 %v3620, %v4386
      %v4466 = vadd.f32 %v3621, %v4389
      %v4467 = vadd.f32 %v3622, %v4391
      %v4468 = vadd.f32 %v3623, %v4394
      %v4469 = vadd.f32 %v3624, %v4396
      %v4470 = vadd.f32 %v3625, %v4399
      %v4471 = vadd.f32 %v3626, %v4401
      %v4472 = vadd.f32 %v3627, %v4404
      %v4473 = vadd.f32 %v3628, %v4406
      %v4474 = vadd.f32 %v3629, %v4409
      %v4475 = vadd.f32 %v3630, %v4411
      %v4476 = vlaneseq
      %v4477 = vshrl.u32 %v4476, 7
      %v4478 = vsub.s32 5, %v4477
      %v4479 = vrot.slane %v614, %v4478
      %v4480 = vmul.f32 %v387, %v4479
      %v4481 = vmul.f32 %v388, %v4479
      %v4482 = vmul.f32 %v389, %v4479
      %v4483 = vmul.f32 %v390, %v4479
      %v4484 = vmul.f32 %v391, %v4479
      %v4485 = vmul.f32 %v392, %v4479
      %v4486 = vmul.f32 %v393, %v4479
      %v4487 = vmul.f32 %v394, %v4479
      %v4488 = vmul.f32 %v395, %v4479
      %v4489 = vmul.f32 %v396, %v4479
      %v4490 = vmul.f32 %v397, %v4479
      %v4491 = vmul.f32 %v398, %v4479
      %v4492 = vmul.f32 %v399, %v4479
      %v4493 = vmul.f32 %v400, %v4479
      %v4494 = vmul.f32 %v401, %v4479
      %v4495 = vmul.f32 %v402, %v4479
      %v4496 = vmul.f32 %v403, %v4479
      %v4497 = vmul.f32 %v404, %v4479
      %v4498 = vmul.f32 %v405, %v4479
      %v4499 = vmul.f32 %v406, %v4479
      %v4500 = vmul.f32 %v407, %v4479
      %v4501 = vmul.f32 %v408, %v4479
      %v4502 = vmul.f32 %v409, %v4479
      %v4503 = vmul.f32 %v410, %v4479
      %v4504 = vmul.f32 %v411, %v4479
      %v4505 = vmul.f32 %v412, %v4479
      %v4506 = vmul.f32 %v413, %v4479
      %v4507 = vmul.f32 %v414, %v4479
      %v4508 = vmul.f32 %v415, %v4479
      %v4509 = vmul.f32 %v416, %v4479
      %v4510 = vmul.f32 %v417, %v4479
      %v4511 = vmul.f32 %v418, %v4479
      %v4512 = vmul.f32 %v419, %v4479
      %v4513 = vmul.f32 %v420, %v4479
      %v4514 = vmul.f32 %v421, %v4479
      %v4515 = vmul.f32 %v422, %v4479
      %v4516 = vmul.f32 %v423, %v4479
      %v4517 = vmul.f32 %v424, %v4479
      %v4518 = vmul.f32 %v425, %v4479
      %v4519 = vmul.f32 %v426, %v4479
      %v4520 = vmul.f32 %v427, %v4479
      %v4521 = vmul.f32 %v428, %v4479
      %v4522 = vmul.f32 %v429, %v4479
      %v4523 = vmul.f32 %v430, %v4479
      %v4524 = vmul.f32 %v431, %v4479
      %v4525 = vmul.f32 %v432, %v4479
      %v4526 = vmul.f32 %v433, %v4479
      %v4527 = vmul.f32 %v434, %v4479
      %v4528 = vlaneseq
      %v4529 = vshrl.u32 %v4528, 7
      %v4530 = vsub.s32 5, %v4529
      %v4531 = vrot.slane %v615, %v4530
      %v4532 = vmul.f32 %v390, %v4531
      %v4533 = vmul.f32 %v391, %v4531
      %v4534 = vmul.f32 %v392, %v4531
      %v4535 = vmul.f32 %v393, %v4531
      %v4536 = vmul.f32 %v394, %v4531
      %v4537 = vmul.f32 %v395, %v4531
      %v4538 = vmul.f32 %v396, %v4531
      %v4539 = vmul.f32 %v397, %v4531
      %v4540 = vmul.f32 %v398, %v4531
      %v4541 = vmul.f32 %v399, %v4531
      %v4542 = vmul.f32 %v400, %v4531
      %v4543 = vmul.f32 %v401, %v4531
      %v4544 = vmul.f32 %v402, %v4531
      %v4545 = vmul.f32 %v403, %v4531
      %v4546 = vmul.f32 %v404, %v4531
      %v4547 = vmul.f32 %v405, %v4531
      %v4548 = vmul.f32 %v406, %v4531
      %v4549 = vmul.f32 %v407, %v4531
      %v4550 = vmul.f32 %v408, %v4531
      %v4551 = vmul.f32 %v409, %v4531
      %v4552 = vmul.f32 %v410, %v4531
      %v4553 = vmul.f32 %v411, %v4531
      %v4554 = vmul.f32 %v412, %v4531
      %v4555 = vmul.f32 %v413, %v4531
      %v4556 = vmul.f32 %v414, %v4531
      %v4557 = vmul.f32 %v415, %v4531
      %v4558 = vmul.f32 %v416, %v4531
      %v4559 = vmul.f32 %v417, %v4531
      %v4560 = vmul.f32 %v418, %v4531
      %v4561 = vmul.f32 %v419, %v4531
      %v4562 = vmul.f32 %v420, %v4531
      %v4563 = vmul.f32 %v421, %v4531
      %v4564 = vmul.f32 %v422, %v4531
      %v4565 = vmul.f32 %v423, %v4531
      %v4566 = vmul.f32 %v424, %v4531
      %v4567 = vmul.f32 %v425, %v4531
      %v4568 = vmul.f32 %v426, %v4531
      %v4569 = vmul.f32 %v427, %v4531
      %v4570 = vmul.f32 %v428, %v4531
      %v4571 = vmul.f32 %v429, %v4531
      %v4572 = vmul.f32 %v430, %v4531
      %v4573 = vmul.f32 %v431, %v4531
      %v4574 = vmul.f32 %v432, %v4531
      %v4575 = vmul.f32 %v433, %v4531
      %v4576 = vmul.f32 %v434, %v4531
      %v4577 = vmul.f32 %v435, %v4531
      %v4578 = vmul.f32 %v436, %v4531
      %v4579 = vmul.f32 %v437, %v4531
      %v4580 = vadd.f32 %v4480, %v4532
      %v4581 = vadd.f32 %v4481, %v4533
      %v4582 = vadd.f32 %v4482, %v4534
      %v4583 = vadd.f32 %v4483, %v4535
      %v4584 = vadd.f32 %v4484, %v4536
      %v4585 = vadd.f32 %v4485, %v4537
      %v4586 = vadd.f32 %v4486, %v4538
      %v4587 = vadd.f32 %v4487, %v4539
      %v4588 = vadd.f32 %v4488, %v4540
      %v4589 = vadd.f32 %v4489, %v4541
      %v4590 = vadd.f32 %v4490, %v4542
      %v4591 = vadd.f32 %v4491, %v4543
      %v4592 = vadd.f32 %v4492, %v4544
      %v4593 = vadd.f32 %v4493, %v4545
      %v4594 = vadd.f32 %v4494, %v4546
      %v4595 = vadd.f32 %v4495, %v4547
      %v4596 = vadd.f32 %v4496, %v4548
      %v4597 = vadd.f32 %v4497, %v4549
      %v4598 = vadd.f32 %v4498, %v4550
      %v4599 = vadd.f32 %v4499, %v4551
      %v4600 = vadd.f32 %v4500, %v4552
      %v4601 = vadd.f32 %v4501, %v4553
      %v4602 = vadd.f32 %v4502, %v4554
      %v4603 = vadd.f32 %v4503, %v4555
      %v4604 = vadd.f32 %v4504, %v4556
      %v4605 = vadd.f32 %v4505, %v4557
      %v4606 = vadd.f32 %v4506, %v4558
      %v4607 = vadd.f32 %v4507, %v4559
      %v4608 = vadd.f32 %v4508, %v4560
      %v4609 = vadd.f32 %v4509, %v4561
      %v4610 = vadd.f32 %v4510, %v4562
      %v4611 = vadd.f32 %v4511, %v4563
      %v4612 = vadd.f32 %v4512, %v4564
      %v4613 = vadd.f32 %v4513, %v4565
      %v4614 = vadd.f32 %v4514, %v4566
      %v4615 = vadd.f32 %v4515, %v4567
      %v4616 = vadd.f32 %v4516, %v4568
      %v4617 = vadd.f32 %v4517, %v4569
      %v4618 = vadd.f32 %v4518, %v4570
      %v4619 = vadd.f32 %v4519, %v4571
      %v4620 = vadd.f32 %v4520, %v4572
      %v4621 = vadd.f32 %v4521, %v4573
      %v4622 = vadd.f32 %v4522, %v4574
      %v4623 = vadd.f32 %v4523, %v4575
      %v4624 = vadd.f32 %v4524, %v4576
      %v4625 = vadd.f32 %v4525, %v4577
      %v4626 = vadd.f32 %v4526, %v4578
      %v4627 = vadd.f32 %v4527, %v4579
      %v4628 = vlaneseq
      %v4629 = vshrl.u32 %v4628, 7
      %v4630 = vsub.s32 5, %v4629
      %v4631 = vrot.slane %v616, %v4630
      %v4632 = vmul.f32 %v393, %v4631
      %v4633 = vmul.f32 %v394, %v4631
      %v4634 = vmul.f32 %v395, %v4631
      %v4635 = vmul.f32 %v396, %v4631
      %v4636 = vmul.f32 %v397, %v4631
      %v4637 = vmul.f32 %v398, %v4631
      %v4638 = vmul.f32 %v399, %v4631
      %v4639 = vmul.f32 %v400, %v4631
      %v4640 = vmul.f32 %v401, %v4631
      %v4641 = vmul.f32 %v402, %v4631
      %v4642 = vmul.f32 %v403, %v4631
      %v4643 = vmul.f32 %v404, %v4631
      %v4644 = vmul.f32 %v405, %v4631
      %v4645 = vmul.f32 %v406, %v4631
      %v4646 = vmul.f32 %v407, %v4631
      %v4647 = vmul.f32 %v408, %v4631
      %v4648 = vmul.f32 %v409, %v4631
      %v4649 = vmul.f32 %v410, %v4631
      %v4650 = vmul.f32 %v411, %v4631
      %v4651 = vmul.f32 %v412, %v4631
      %v4652 = vmul.f32 %v413, %v4631
      %v4653 = vmul.f32 %v414, %v4631
      %v4654 = vmul.f32 %v415, %v4631
      %v4655 = vmul.f32 %v416, %v4631
      %v4656 = vmul.f32 %v417, %v4631
      %v4657 = vmul.f32 %v418, %v4631
      %v4658 = vmul.f32 %v419, %v4631
      %v4659 = vmul.f32 %v420, %v4631
      %v4660 = vmul.f32 %v421, %v4631
      %v4661 = vmul.f32 %v422, %v4631
      %v4662 = vmul.f32 %v423, %v4631
      %v4663 = vmul.f32 %v424, %v4631
      %v4664 = vmul.f32 %v425, %v4631
      %v4665 = vmul.f32 %v426, %v4631
      %v4666 = vmul.f32 %v427, %v4631
      %v4667 = vmul.f32 %v428, %v4631
      %v4668 = vmul.f32 %v429, %v4631
      %v4669 = vmul.f32 %v430, %v4631
      %v4670 = vmul.f32 %v431, %v4631
      %v4671 = vmul.f32 %v432, %v4631
      %v4672 = vmul.f32 %v433, %v4631
      %v4673 = vmul.f32 %v434, %v4631
      %v4674 = vmul.f32 %v435, %v4631
      %v4675 = vmul.f32 %v436, %v4631
      %v4676 = vmul.f32 %v437, %v4631
      %v4677 = vmul.f32 %v438, %v4631
      %v4678 = vmul.f32 %v439, %v4631
      %v4679 = vmul.f32 %v440, %v4631
      %v4680 = vadd.f32 %v4580, %v4632
      %v4681 = vadd.f32 %v4581, %v4633
      %v4682 = vadd.f32 %v4582, %v4634
      %v4683 = vadd.f32 %v4583, %v4635
      %v4684 = vadd.f32 %v4584, %v4636
      %v4685 = vadd.f32 %v4585, %v4637
      %v4686 = vadd.f32 %v4586, %v4638
      %v4687 = vadd.f32 %v4587, %v4639
      %v4688 = vadd.f32 %v4588, %v4640
      %v4689 = vadd.f32 %v4589, %v4641
      %v4690 = vadd.f32 %v4590, %v4642
      %v4691 = vadd.f32 %v4591, %v4643
      %v4692 = vadd.f32 %v4592, %v4644
      %v4693 = vadd.f32 %v4593, %v4645
      %v4694 = vadd.f32 %v4594, %v4646
      %v4695 = vadd.f32 %v4595, %v4647
      %v4696 = vadd.f32 %v4596, %v4648
      %v4697 = vadd.f32 %v4597, %v4649
      %v4698 = vadd.f32 %v4598, %v4650
      %v4699 = vadd.f32 %v4599, %v4651
      %v4700 = vadd.f32 %v4600, %v4652
      %v4701 = vadd.f32 %v4601, %v4653
      %v4702 = vadd.f32 %v4602, %v4654
      %v4703 = vadd.f32 %v4603, %v4655
      %v4704 = vadd.f32 %v4604, %v4656
      %v4705 = vadd.f32 %v4605, %v4657
      %v4706 = vadd.f32 %v4606, %v4658
      %v4707 = vadd.f32 %v4607, %v4659
      %v4708 = vadd.f32 %v4608, %v4660
      %v4709 = vadd.f32 %v4609, %v4661
      %v4710 = vadd.f32 %v4610, %v4662
      %v4711 = vadd.f32 %v4611, %v4663
      %v4712 = vadd.f32 %v4612, %v4664
      %v4713 = vadd.f32 %v4613, %v4665
      %v4714 = vadd.f32 %v4614, %v4666
      %v4715 = vadd.f32 %v4615, %v4667
      %v4716 = vadd.f32 %v4616, %v4668
      %v4717 = vadd.f32 %v4617, %v4669
      %v4718 = vadd.f32 %v4618, %v4670
      %v4719 = vadd.f32 %v4619, %v4671
      %v4720 = vadd.f32 %v4620, %v4672
      %v4721 = vadd.f32 %v4621, %v4673
      %v4722 = vadd.f32 %v4622, %v4674
      %v4723 = vadd.f32 %v4623, %v4675
      %v4724 = vadd.f32 %v4624, %v4676
      %v4725 = vadd.f32 %v4625, %v4677
      %v4726 = vadd.f32 %v4626, %v4678
      %v4727 = vadd.f32 %v4627, %v4679
      %v4728 = vlaneseq
      %v4729 = vshrl.u32 %v4728, 7
      %v4730 = vsub.s32 5, %v4729
      %v4731 = vrot.slane %v617, %v4730
      %v4732 = vmul.f32 %v396, %v4731
      %v4733 = vmul.f32 %v397, %v4731
      %v4734 = vmul.f32 %v398, %v4731
      %v4735 = vmul.f32 %v399, %v4731
      %v4736 = vmul.f32 %v400, %v4731
      %v4737 = vmul.f32 %v401, %v4731
      %v4738 = vmul.f32 %v402, %v4731
      %v4739 = vmul.f32 %v403, %v4731
      %v4740 = vmul.f32 %v404, %v4731
      %v4741 = vmul.f32 %v405, %v4731
      %v4742 = vmul.f32 %v406, %v4731
      %v4743 = vmul.f32 %v407, %v4731
      %v4744 = vmul.f32 %v408, %v4731
      %v4745 = vmul.f32 %v409, %v4731
      %v4746 = vmul.f32 %v410, %v4731
      %v4747 = vmul.f32 %v411, %v4731
      %v4748 = vmul.f32 %v412, %v4731
      %v4749 = vmul.f32 %v413, %v4731
      %v4750 = vmul.f32 %v414, %v4731
      %v4751 = vmul.f32 %v415, %v4731
      %v4752 = vmul.f32 %v416, %v4731
      %v4753 = vmul.f32 %v417, %v4731
      %v4754 = vmul.f32 %v418, %v4731
      %v4755 = vmul.f32 %v419, %v4731
      %v4756 = vmul.f32 %v420, %v4731
      %v4757 = vmul.f32 %v421, %v4731
      %v4758 = vmul.f32 %v422, %v4731
      %v4759 = vmul.f32 %v423, %v4731
      %v4760 = vmul.f32 %v424, %v4731
      %v4761 = vmul.f32 %v425, %v4731
      %v4762 = vmul.f32 %v426, %v4731
      %v4763 = vmul.f32 %v427, %v4731
      %v4764 = vmul.f32 %v428, %v4731
      %v4765 = vmul.f32 %v429, %v4731
      %v4766 = vmul.f32 %v430, %v4731
      %v4767 = vmul.f32 %v431, %v4731
      %v4768 = vmul.f32 %v432, %v4731
      %v4769 = vmul.f32 %v433, %v4731
      %v4770 = vmul.f32 %v434, %v4731
      %v4771 = vmul.f32 %v435, %v4731
      %v4772 = vmul.f32 %v436, %v4731
      %v4773 = vmul.f32 %v437, %v4731
      %v4774 = vmul.f32 %v438, %v4731
      %v4775 = vmul.f32 %v439, %v4731
      %v4776 = vmul.f32 %v440, %v4731
      %v4777 = vmul.f32 %v441, %v4731
      %v4778 = vmul.f32 %v442, %v4731
      %v4779 = vmul.f32 %v443, %v4731
      %v4780 = vadd.f32 %v4680, %v4732
      %v4781 = vadd.f32 %v4681, %v4733
      %v4782 = vadd.f32 %v4682, %v4734
      %v4783 = vadd.f32 %v4683, %v4735
      %v4784 = vadd.f32 %v4684, %v4736
      %v4785 = vadd.f32 %v4685, %v4737
      %v4786 = vadd.f32 %v4686, %v4738
      %v4787 = vadd.f32 %v4687, %v4739
      %v4788 = vadd.f32 %v4688, %v4740
      %v4789 = vadd.f32 %v4689, %v4741
      %v4790 = vadd.f32 %v4690, %v4742
      %v4791 = vadd.f32 %v4691, %v4743
      %v4792 = vadd.f32 %v4692, %v4744
      %v4793 = vadd.f32 %v4693, %v4745
      %v4794 = vadd.f32 %v4694, %v4746
      %v4795 = vadd.f32 %v4695, %v4747
      %v4796 = vadd.f32 %v4696, %v4748
      %v4797 = vadd.f32 %v4697, %v4749
      %v4798 = vadd.f32 %v4698, %v4750
      %v4799 = vadd.f32 %v4699, %v4751
      %v4800 = vadd.f32 %v4700, %v4752
      %v4801 = vadd.f32 %v4701, %v4753
      %v4802 = vadd.f32 %v4702, %v4754
      %v4803 = vadd.f32 %v4703, %v4755
      %v4804 = vadd.f32 %v4704, %v4756
      %v4805 = vadd.f32 %v4705, %v4757
      %v4806 = vadd.f32 %v4706, %v4758
      %v4807 = vadd.f32 %v4707, %v4759
      %v4808 = vadd.f32 %v4708, %v4760
      %v4809 = vadd.f32 %v4709, %v4761
      %v4810 = vadd.f32 %v4710, %v4762
      %v4811 = vadd.f32 %v4711, %v4763
      %v4812 = vadd.f32 %v4712, %v4764
      %v4813 = vadd.f32 %v4713, %v4765
      %v4814 = vadd.f32 %v4714, %v4766
      %v4815 = vadd.f32 %v4715, %v4767
      %v4816 = vadd.f32 %v4716, %v4768
      %v4817 = vadd.f32 %v4717, %v4769
      %v4818 = vadd.f32 %v4718, %v4770
      %v4819 = vadd.f32 %v4719, %v4771
      %v4820 = vadd.f32 %v4720, %v4772
      %v4821 = vadd.f32 %v4721, %v4773
      %v4822 = vadd.f32 %v4722, %v4774
      %v4823 = vadd.f32 %v4723, %v4775
      %v4824 = vadd.f32 %v4724, %v4776
      %v4825 = vadd.f32 %v4725, %v4777
      %v4826 = vadd.f32 %v4726, %v4778
      %v4827 = vadd.f32 %v4727, %v4779
      %v4828 = vlaneseq
      %v4829 = vshrl.u32 %v4828, 7
      %v4830 = vsub.s32 5, %v4829
      %v4831 = vrot.slane %v618, %v4830
      %v4832 = vmul.f32 %v399, %v4831
      %v4833 = vmul.f32 %v400, %v4831
      %v4834 = vmul.f32 %v401, %v4831
      %v4835 = vmul.f32 %v402, %v4831
      %v4836 = vmul.f32 %v403, %v4831
      %v4837 = vmul.f32 %v404, %v4831
      %v4838 = vmul.f32 %v405, %v4831
      %v4839 = vmul.f32 %v406, %v4831
      %v4840 = vmul.f32 %v407, %v4831
      %v4841 = vmul.f32 %v408, %v4831
      %v4842 = vmul.f32 %v409, %v4831
      %v4843 = vmul.f32 %v410, %v4831
      %v4844 = vmul.f32 %v411, %v4831
      %v4845 = vmul.f32 %v412, %v4831
      %v4846 = vmul.f32 %v413, %v4831
      %v4847 = vmul.f32 %v414, %v4831
      %v4848 = vmul.f32 %v415, %v4831
      %v4849 = vmul.f32 %v416, %v4831
      %v4850 = vmul.f32 %v417, %v4831
      %v4851 = vmul.f32 %v418, %v4831
      %v4852 = vmul.f32 %v419, %v4831
      %v4853 = vmul.f32 %v420, %v4831
      %v4854 = vmul.f32 %v421, %v4831
      %v4855 = vmul.f32 %v422, %v4831
      %v4856 = vmul.f32 %v423, %v4831
      %v4857 = vmul.f32 %v424, %v4831
      %v4858 = vmul.f32 %v425, %v4831
      %v4859 = vmul.f32 %v426, %v4831
      %v4860 = vmul.f32 %v427, %v4831
      %v4861 = vmul.f32 %v428, %v4831
      %v4862 = vmul.f32 %v429, %v4831
      %v4863 = vmul.f32 %v430, %v4831
      %v4864 = vmul.f32 %v431, %v4831
      %v4865 = vmul.f32 %v432, %v4831
      %v4866 = vmul.f32 %v433, %v4831
      %v4867 = vmul.f32 %v434, %v4831
      %v4868 = vmul.f32 %v435, %v4831
      %v4869 = vmul.f32 %v436, %v4831
      %v4870 = vmul.f32 %v437, %v4831
      %v4871 = vmul.f32 %v438, %v4831
      %v4872 = vmul.f32 %v439, %v4831
      %v4873 = vmul.f32 %v440, %v4831
      %v4874 = vmul.f32 %v441, %v4831
      %v4875 = vmul.f32 %v442, %v4831
      %v4876 = vmul.f32 %v443, %v4831
      %v4877 = vmul.f32 %v444, %v4831
      %v4878 = vmul.f32 %v445, %v4831
      %v4879 = vmul.f32 %v446, %v4831
      %v4880 = vadd.f32 %v4780, %v4832
      %v4881 = vadd.f32 %v4781, %v4833
      %v4882 = vadd.f32 %v4782, %v4834
      %v4883 = vadd.f32 %v4783, %v4835
      %v4884 = vadd.f32 %v4784, %v4836
      %v4885 = vadd.f32 %v4785, %v4837
      %v4886 = vadd.f32 %v4786, %v4838
      %v4887 = vadd.f32 %v4787, %v4839
      %v4888 = vadd.f32 %v4788, %v4840
      %v4889 = vadd.f32 %v4789, %v4841
      %v4890 = vadd.f32 %v4790, %v4842
      %v4891 = vadd.f32 %v4791, %v4843
      %v4892 = vadd.f32 %v4792, %v4844
      %v4893 = vadd.f32 %v4793, %v4845
      %v4894 = vadd.f32 %v4794, %v4846
      %v4895 = vadd.f32 %v4795, %v4847
      %v4896 = vadd.f32 %v4796, %v4848
      %v4897 = vadd.f32 %v4797, %v4849
      %v4898 = vadd.f32 %v4798, %v4850
      %v4899 = vadd.f32 %v4799, %v4851
      %v4900 = vadd.f32 %v4800, %v4852
      %v4901 = vadd.f32 %v4801, %v4853
      %v4902 = vadd.f32 %v4802, %v4854
      %v4903 = vadd.f32 %v4803, %v4855
      %v4904 = vadd.f32 %v4804, %v4856
      %v4905 = vadd.f32 %v4805, %v4857
      %v4906 = vadd.f32 %v4806, %v4858
      %v4907 = vadd.f32 %v4807, %v4859
      %v4908 = vadd.f32 %v4808, %v4860
      %v4909 = vadd.f32 %v4809, %v4861
      %v4910 = vadd.f32 %v4810, %v4862
      %v4911 = vadd.f32 %v4811, %v4863
      %v4912 = vadd.f32 %v4812, %v4864
      %v4913 = vadd.f32 %v4813, %v4865
      %v4914 = vadd.f32 %v4814, %v4866
      %v4915 = vadd.f32 %v4815, %v4867
      %v4916 = vadd.f32 %v4816, %v4868
      %v4917 = vadd.f32 %v4817, %v4869
      %v4918 = vadd.f32 %v4818, %v4870
      %v4919 = vadd.f32 %v4819, %v4871
      %v4920 = vadd.f32 %v4820, %v4872
      %v4921 = vadd.f32 %v4821, %v4873
      %v4922 = vadd.f32 %v4822, %v4874
      %v4923 = vadd.f32 %v4823, %v4875
      %v4924 = vadd.f32 %v4824, %v4876
      %v4925 = vadd.f32 %v4825, %v4877
      %v4926 = vadd.f32 %v4826, %v4878
      %v4927 = vadd.f32 %v4827, %v4879
      %v4928 = vlaneseq
      %v4929 = vshrl.u32 %v4928, 7
      %v4930 = vsub.s32 5, %v4929
      %v4931 = vrot.slane %v619, %v4930
      %v4932 = vmul.f32 %v402, %v4931
      %v4933 = vmul.f32 %v403, %v4931
      %v4934 = vmul.f32 %v404, %v4931
      %v4935 = vmul.f32 %v405, %v4931
      %v4936 = vmul.f32 %v406, %v4931
      %v4937 = vmul.f32 %v407, %v4931
      %v4938 = vmul.f32 %v408, %v4931
      %v4939 = vmul.f32 %v409, %v4931
      %v4940 = vmul.f32 %v410, %v4931
      %v4941 = vmul.f32 %v411, %v4931
      %v4942 = vmul.f32 %v412, %v4931
      %v4943 = vmul.f32 %v413, %v4931
      %v4944 = vmul.f32 %v414, %v4931
      %v4945 = vmul.f32 %v415, %v4931
      %v4946 = vmul.f32 %v416, %v4931
      %v4947 = vmul.f32 %v417, %v4931
      %v4948 = vmul.f32 %v418, %v4931
      %v4949 = vmul.f32 %v419, %v4931
      %v4950 = vmul.f32 %v420, %v4931
      %v4951 = vmul.f32 %v421, %v4931
      %v4952 = vmul.f32 %v422, %v4931
      %v4953 = vmul.f32 %v423, %v4931
      %v4954 = vmul.f32 %v424, %v4931
      %v4955 = vmul.f32 %v425, %v4931
      %v4956 = vmul.f32 %v426, %v4931
      %v4957 = vmul.f32 %v427, %v4931
      %v4958 = vmul.f32 %v428, %v4931
      %v4959 = vmul.f32 %v429, %v4931
      %v4960 = vmul.f32 %v430, %v4931
      %v4961 = vmul.f32 %v431, %v4931
      %v4962 = vmul.f32 %v432, %v4931
      %v4963 = vmul.f32 %v433, %v4931
      %v4964 = vmul.f32 %v434, %v4931
      %v4965 = vmul.f32 %v435, %v4931
      %v4966 = vmul.f32 %v436, %v4931
      %v4967 = vmul.f32 %v437, %v4931
      %v4968 = vmul.f32 %v438, %v4931
      %v4969 = vmul.f32 %v439, %v4931
      %v4970 = vmul.f32 %v440, %v4931
      %v4971 = vmul.f32 %v441, %v4931
      %v4972 = vmul.f32 %v442, %v4931
      %v4973 = vmul.f32 %v443, %v4931
      %v4974 = vmul.f32 %v444, %v4931
      %v4975 = vmul.f32 %v445, %v4931
      %v4976 = vmul.f32 %v446, %v4931
      %v4977 = vmul.f32 %v447, %v4931
      %v4978 = vmul.f32 %v448, %v4931
      %v4979 = vmul.f32 %v449, %v4931
      %v4980 = vadd.f32 %v4880, %v4932
      %v4981 = vadd.f32 %v4881, %v4933
      %v4982 = vadd.f32 %v4882, %v4934
      %v4983 = vadd.f32 %v4883, %v4935
      %v4984 = vadd.f32 %v4884, %v4936
      %v4985 = vadd.f32 %v4885, %v4937
      %v4986 = vadd.f32 %v4886, %v4938
      %v4987 = vadd.f32 %v4887, %v4939
      %v4988 = vadd.f32 %v4888, %v4940
      %v4989 = vadd.f32 %v4889, %v4941
      %v4990 = vadd.f32 %v4890, %v4942
      %v4991 = vadd.f32 %v4891, %v4943
      %v4992 = vadd.f32 %v4892, %v4944
      %v4993 = vadd.f32 %v4893, %v4945
      %v4994 = vadd.f32 %v4894, %v4946
      %v4995 = vadd.f32 %v4895, %v4947
      %v4996 = vadd.f32 %v4896, %v4948
      %v4997 = vadd.f32 %v4897, %v4949
      %v4998 = vadd.f32 %v4898, %v4950
      %v4999 = vadd.f32 %v4899, %v4951
      %v5000 = vadd.f32 %v4900, %v4952
      %v5001 = vadd.f32 %v4901, %v4953
      %v5002 = vadd.f32 %v4902, %v4954
      %v5003 = vadd.f32 %v4903, %v4955
      %v5004 = vadd.f32 %v4904, %v4956
      %v5005 = vadd.f32 %v4905, %v4957
      %v5006 = vadd.f32 %v4906, %v4958
      %v5007 = vadd.f32 %v4907, %v4959
      %v5008 = vadd.f32 %v4908, %v4960
      %v5009 = vadd.f32 %v4909, %v4961
      %v5010 = vadd.f32 %v4910, %v4962
      %v5011 = vadd.f32 %v4911, %v4963
      %v5012 = vadd.f32 %v4912, %v4964
      %v5013 = vadd.f32 %v4913, %v4965
      %v5014 = vadd.f32 %v4914, %v4966
      %v5015 = vadd.f32 %v4915, %v4967
      %v5016 = vadd.f32 %v4916, %v4968
      %v5017 = vadd.f32 %v4917, %v4969
      %v5018 = vadd.f32 %v4918, %v4970
      %v5019 = vadd.f32 %v4919, %v4971
      %v5020 = vadd.f32 %v4920, %v4972
      %v5021 = vadd.f32 %v4921, %v4973
      %v5022 = vadd.f32 %v4922, %v4974
      %v5023 = vadd.f32 %v4923, %v4975
      %v5024 = vadd.f32 %v4924, %v4976
      %v5025 = vadd.f32 %v4925, %v4977
      %v5026 = vadd.f32 %v4926, %v4978
      %v5027 = vadd.f32 %v4927, %v4979
      %v5028 = vlaneseq
      %v5029 = vshrl.u32 %v5028, 7
      %v5030 = vsub.s32 5, %v5029
      %v5031 = vrot.slane %v620, %v5030
      %v5032 = vmul.f32 %v405, %v5031
      %v5033 = vmul.f32 %v406, %v5031
      %v5034 = vmul.f32 %v407, %v5031
      %v5035 = vmul.f32 %v408, %v5031
      %v5036 = vmul.f32 %v409, %v5031
      %v5037 = vmul.f32 %v410, %v5031
      %v5038 = vmul.f32 %v411, %v5031
      %v5039 = vmul.f32 %v412, %v5031
      %v5040 = vmul.f32 %v413, %v5031
      %v5041 = vmul.f32 %v414, %v5031
      %v5042 = vmul.f32 %v415, %v5031
      %v5043 = vmul.f32 %v416, %v5031
      %v5044 = vmul.f32 %v417, %v5031
      %v5045 = vmul.f32 %v418, %v5031
      %v5046 = vmul.f32 %v419, %v5031
      %v5047 = vmul.f32 %v420, %v5031
      %v5048 = vmul.f32 %v421, %v5031
      %v5049 = vmul.f32 %v422, %v5031
      %v5050 = vmul.f32 %v423, %v5031
      %v5051 = vmul.f32 %v424, %v5031
      %v5052 = vmul.f32 %v425, %v5031
      %v5053 = vmul.f32 %v426, %v5031
      %v5054 = vmul.f32 %v427, %v5031
      %v5055 = vmul.f32 %v428, %v5031
      %v5056 = vmul.f32 %v429, %v5031
      %v5057 = vmul.f32 %v430, %v5031
      %v5058 = vmul.f32 %v431, %v5031
      %v5059 = vmul.f32 %v432, %v5031
      %v5060 = vmul.f32 %v433, %v5031
      %v5061 = vmul.f32 %v434, %v5031
      %v5062 = vmul.f32 %v435, %v5031
      %v5063 = vmul.f32 %v436, %v5031
      %v5064 = vmul.f32 %v437, %v5031
      %v5065 = vmul.f32 %v438, %v5031
      %v5066 = vmul.f32 %v439, %v5031
      %v5067 = vmul.f32 %v440, %v5031
      %v5068 = vmul.f32 %v441, %v5031
      %v5069 = vmul.f32 %v442, %v5031
      %v5070 = vmul.f32 %v443, %v5031
      %v5071 = vmul.f32 %v444, %v5031
      %v5072 = vmul.f32 %v445, %v5031
      %v5073 = vmul.f32 %v446, %v5031
      %v5074 = vmul.f32 %v447, %v5031
      %v5075 = vmul.f32 %v448, %v5031
      %v5076 = vmul.f32 %v449, %v5031
      %v5077 = vmul.f32 %v450, %v5031
      %v5078 = vmul.f32 %v451, %v5031
      %v5079 = vmul.f32 %v452, %v5031
      %v5080 = vadd.f32 %v4980, %v5032
      %v5081 = vadd.f32 %v4981, %v5033
      %v5082 = vadd.f32 %v4982, %v5034
      %v5083 = vadd.f32 %v4983, %v5035
      %v5084 = vadd.f32 %v4984, %v5036
      %v5085 = vadd.f32 %v4985, %v5037
      %v5086 = vadd.f32 %v4986, %v5038
      %v5087 = vadd.f32 %v4987, %v5039
      %v5088 = vadd.f32 %v4988, %v5040
      %v5089 = vadd.f32 %v4989, %v5041
      %v5090 = vadd.f32 %v4990, %v5042
      %v5091 = vadd.f32 %v4991, %v5043
      %v5092 = vadd.f32 %v4992, %v5044
      %v5093 = vadd.f32 %v4993, %v5045
      %v5094 = vadd.f32 %v4994, %v5046
      %v5095 = vadd.f32 %v4995, %v5047
      %v5096 = vadd.f32 %v4996, %v5048
      %v5097 = vadd.f32 %v4997, %v5049
      %v5098 = vadd.f32 %v4998, %v5050
      %v5099 = vadd.f32 %v4999, %v5051
      %v5100 = vadd.f32 %v5000, %v5052
      %v5101 = vadd.f32 %v5001, %v5053
      %v5102 = vadd.f32 %v5002, %v5054
      %v5103 = vadd.f32 %v5003, %v5055
      %v5104 = vadd.f32 %v5004, %v5056
      %v5105 = vadd.f32 %v5005, %v5057
      %v5106 = vadd.f32 %v5006, %v5058
      %v5107 = vadd.f32 %v5007, %v5059
      %v5108 = vadd.f32 %v5008, %v5060
      %v5109 = vadd.f32 %v5009, %v5061
      %v5110 = vadd.f32 %v5010, %v5062
      %v5111 = vadd.f32 %v5011, %v5063
      %v5112 = vadd.f32 %v5012, %v5064
      %v5113 = vadd.f32 %v5013, %v5065
      %v5114 = vadd.f32 %v5014, %v5066
      %v5115 = vadd.f32 %v5015, %v5067
      %v5116 = vadd.f32 %v5016, %v5068
      %v5117 = vadd.f32 %v5017, %v5069
      %v5118 = vadd.f32 %v5018, %v5070
      %v5119 = vadd.f32 %v5019, %v5071
      %v5120 = vadd.f32 %v5020, %v5072
      %v5121 = vadd.f32 %v5021, %v5073
      %v5122 = vadd.f32 %v5022, %v5074
      %v5123 = vadd.f32 %v5023, %v5075
      %v5124 = vadd.f32 %v5024, %v5076
      %v5125 = vadd.f32 %v5025, %v5077
      %v5126 = vadd.f32 %v5026, %v5078
      %v5127 = vadd.f32 %v5027, %v5079
      %vm5176 = vcmask 1042432
      %v5177 = vrot.slane %v5080, 5
      %v5178 = vrot.slane %v5081, 5
      %v5179 = vsel %vm5176, %v5177, %v5178
      %v5180 = vrot.slane %v5082, 5
      %v5181 = vsel %vm5176, %v5178, %v5180
      %v5182 = vrot.slane %v5083, 5
      %v5183 = vrot.slane %v5084, 5
      %v5184 = vsel %vm5176, %v5182, %v5183
      %v5185 = vrot.slane %v5085, 5
      %v5186 = vsel %vm5176, %v5183, %v5185
      %v5187 = vrot.slane %v5086, 5
      %v5188 = vrot.slane %v5087, 5
      %v5189 = vsel %vm5176, %v5187, %v5188
      %v5190 = vrot.slane %v5088, 5
      %v5191 = vsel %vm5176, %v5188, %v5190
      %v5192 = vrot.slane %v5089, 5
      %v5193 = vrot.slane %v5090, 5
      %v5194 = vsel %vm5176, %v5192, %v5193
      %v5195 = vrot.slane %v5091, 5
      %v5196 = vsel %vm5176, %v5193, %v5195
      %v5197 = vrot.slane %v5092, 5
      %v5198 = vrot.slane %v5093, 5
      %v5199 = vsel %vm5176, %v5197, %v5198
      %v5200 = vrot.slane %v5094, 5
      %v5201 = vsel %vm5176, %v5198, %v5200
      %v5202 = vrot.slane %v5095, 5
      %v5203 = vrot.slane %v5096, 5
      %v5204 = vsel %vm5176, %v5202, %v5203
      %v5205 = vrot.slane %v5097, 5
      %v5206 = vsel %vm5176, %v5203, %v5205
      %v5207 = vrot.slane %v5098, 5
      %v5208 = vrot.slane %v5099, 5
      %v5209 = vsel %vm5176, %v5207, %v5208
      %v5210 = vrot.slane %v5100, 5
      %v5211 = vsel %vm5176, %v5208, %v5210
      %v5212 = vrot.slane %v5101, 5
      %v5213 = vrot.slane %v5102, 5
      %v5214 = vsel %vm5176, %v5212, %v5213
      %v5215 = vrot.slane %v5103, 5
      %v5216 = vsel %vm5176, %v5213, %v5215
      %v5217 = vrot.slane %v5104, 5
      %v5218 = vrot.slane %v5105, 5
      %v5219 = vsel %vm5176, %v5217, %v5218
      %v5220 = vrot.slane %v5106, 5
      %v5221 = vsel %vm5176, %v5218, %v5220
      %v5222 = vrot.slane %v5107, 5
      %v5223 = vrot.slane %v5108, 5
      %v5224 = vsel %vm5176, %v5222, %v5223
      %v5225 = vrot.slane %v5109, 5
      %v5226 = vsel %vm5176, %v5223, %v5225
      %v5227 = vrot.slane %v5110, 5
      %v5228 = vrot.slane %v5111, 5
      %v5229 = vsel %vm5176, %v5227, %v5228
      %v5230 = vrot.slane %v5112, 5
      %v5231 = vsel %vm5176, %v5228, %v5230
      %v5232 = vrot.slane %v5113, 5
      %v5233 = vrot.slane %v5114, 5
      %v5234 = vsel %vm5176, %v5232, %v5233
      %v5235 = vrot.slane %v5115, 5
      %v5236 = vsel %vm5176, %v5233, %v5235
      %v5237 = vrot.slane %v5116, 5
      %v5238 = vrot.slane %v5117, 5
      %v5239 = vsel %vm5176, %v5237, %v5238
      %v5240 = vrot.slane %v5118, 5
      %v5241 = vsel %vm5176, %v5238, %v5240
      %v5242 = vrot.slane %v5119, 5
      %v5243 = vrot.slane %v5120, 5
      %v5244 = vsel %vm5176, %v5242, %v5243
      %v5245 = vrot.slane %v5121, 5
      %v5246 = vsel %vm5176, %v5243, %v5245
      %v5247 = vrot.slane %v5122, 5
      %v5248 = vrot.slane %v5123, 5
      %v5249 = vsel %vm5176, %v5247, %v5248
      %v5250 = vrot.slane %v5124, 5
      %v5251 = vsel %vm5176, %v5248, %v5250
      %v5252 = vrot.slane %v5125, 5
      %v5253 = vrot.slane %v5126, 5
      %v5254 = vsel %vm5176, %v5252, %v5253
      %v5255 = vrot.slane %v5127, 5
      %v5256 = vsel %vm5176, %v5253, %v5255
      %v5289 = vadd.f32 %v4444, %v5179
      %v5290 = vadd.f32 %v4445, %v5181
      %v5291 = vadd.f32 %v4446, %v5184
      %v5292 = vadd.f32 %v4447, %v5186
      %v5293 = vadd.f32 %v4448, %v5189
      %v5294 = vadd.f32 %v4449, %v5191
      %v5295 = vadd.f32 %v4450, %v5194
      %v5296 = vadd.f32 %v4451, %v5196
      %v5297 = vadd.f32 %v4452, %v5199
      %v5298 = vadd.f32 %v4453, %v5201
      %v5299 = vadd.f32 %v4454, %v5204
      %v5300 = vadd.f32 %v4455, %v5206
      %v5301 = vadd.f32 %v4456, %v5209
      %v5302 = vadd.f32 %v4457, %v5211
      %v5303 = vadd.f32 %v4458, %v5214
      %v5304 = vadd.f32 %v4459, %v5216
      %v5305 = vadd.f32 %v4460, %v5219
      %v5306 = vadd.f32 %v4461, %v5221
      %v5307 = vadd.f32 %v4462, %v5224
      %v5308 = vadd.f32 %v4463, %v5226
      %v5309 = vadd.f32 %v4464, %v5229
      %v5310 = vadd.f32 %v4465, %v5231
      %v5311 = vadd.f32 %v4466, %v5234
      %v5312 = vadd.f32 %v4467, %v5236
      %v5313 = vadd.f32 %v4468, %v5239
      %v5314 = vadd.f32 %v4469, %v5241
      %v5315 = vadd.f32 %v4470, %v5244
      %v5316 = vadd.f32 %v4471, %v5246
      %v5317 = vadd.f32 %v4472, %v5249
      %v5318 = vadd.f32 %v4473, %v5251
      %v5319 = vadd.f32 %v4474, %v5254
      %v5320 = vadd.f32 %v4475, %v5256
      %v5321 = vlaneseq
      %v5322 = vshrl.u32 %v5321, 7
      %v5323 = vsub.s32 6, %v5322
      %v5324 = vrot.slane %v614, %v5323
      %v5325 = vmul.f32 %v387, %v5324
      %v5326 = vmul.f32 %v388, %v5324
      %v5327 = vmul.f32 %v389, %v5324
      %v5328 = vmul.f32 %v390, %v5324
      %v5329 = vmul.f32 %v391, %v5324
      %v5330 = vmul.f32 %v392, %v5324
      %v5331 = vmul.f32 %v393, %v5324
      %v5332 = vmul.f32 %v394, %v5324
      %v5333 = vmul.f32 %v395, %v5324
      %v5334 = vmul.f32 %v396, %v5324
      %v5335 = vmul.f32 %v397, %v5324
      %v5336 = vmul.f32 %v398, %v5324
      %v5337 = vmul.f32 %v399, %v5324
      %v5338 = vmul.f32 %v400, %v5324
      %v5339 = vmul.f32 %v401, %v5324
      %v5340 = vmul.f32 %v402, %v5324
      %v5341 = vmul.f32 %v403, %v5324
      %v5342 = vmul.f32 %v404, %v5324
      %v5343 = vmul.f32 %v405, %v5324
      %v5344 = vmul.f32 %v406, %v5324
      %v5345 = vmul.f32 %v407, %v5324
      %v5346 = vmul.f32 %v408, %v5324
      %v5347 = vmul.f32 %v409, %v5324
      %v5348 = vmul.f32 %v410, %v5324
      %v5349 = vmul.f32 %v411, %v5324
      %v5350 = vmul.f32 %v412, %v5324
      %v5351 = vmul.f32 %v413, %v5324
      %v5352 = vmul.f32 %v414, %v5324
      %v5353 = vmul.f32 %v415, %v5324
      %v5354 = vmul.f32 %v416, %v5324
      %v5355 = vmul.f32 %v417, %v5324
      %v5356 = vmul.f32 %v418, %v5324
      %v5357 = vmul.f32 %v419, %v5324
      %v5358 = vmul.f32 %v420, %v5324
      %v5359 = vmul.f32 %v421, %v5324
      %v5360 = vmul.f32 %v422, %v5324
      %v5361 = vmul.f32 %v423, %v5324
      %v5362 = vmul.f32 %v424, %v5324
      %v5363 = vmul.f32 %v425, %v5324
      %v5364 = vmul.f32 %v426, %v5324
      %v5365 = vmul.f32 %v427, %v5324
      %v5366 = vmul.f32 %v428, %v5324
      %v5367 = vmul.f32 %v429, %v5324
      %v5368 = vmul.f32 %v430, %v5324
      %v5369 = vmul.f32 %v431, %v5324
      %v5370 = vmul.f32 %v432, %v5324
      %v5371 = vmul.f32 %v433, %v5324
      %v5372 = vmul.f32 %v434, %v5324
      %v5373 = vlaneseq
      %v5374 = vshrl.u32 %v5373, 7
      %v5375 = vsub.s32 6, %v5374
      %v5376 = vrot.slane %v615, %v5375
      %v5377 = vmul.f32 %v390, %v5376
      %v5378 = vmul.f32 %v391, %v5376
      %v5379 = vmul.f32 %v392, %v5376
      %v5380 = vmul.f32 %v393, %v5376
      %v5381 = vmul.f32 %v394, %v5376
      %v5382 = vmul.f32 %v395, %v5376
      %v5383 = vmul.f32 %v396, %v5376
      %v5384 = vmul.f32 %v397, %v5376
      %v5385 = vmul.f32 %v398, %v5376
      %v5386 = vmul.f32 %v399, %v5376
      %v5387 = vmul.f32 %v400, %v5376
      %v5388 = vmul.f32 %v401, %v5376
      %v5389 = vmul.f32 %v402, %v5376
      %v5390 = vmul.f32 %v403, %v5376
      %v5391 = vmul.f32 %v404, %v5376
      %v5392 = vmul.f32 %v405, %v5376
      %v5393 = vmul.f32 %v406, %v5376
      %v5394 = vmul.f32 %v407, %v5376
      %v5395 = vmul.f32 %v408, %v5376
      %v5396 = vmul.f32 %v409, %v5376
      %v5397 = vmul.f32 %v410, %v5376
      %v5398 = vmul.f32 %v411, %v5376
      %v5399 = vmul.f32 %v412, %v5376
      %v5400 = vmul.f32 %v413, %v5376
      %v5401 = vmul.f32 %v414, %v5376
      %v5402 = vmul.f32 %v415, %v5376
      %v5403 = vmul.f32 %v416, %v5376
      %v5404 = vmul.f32 %v417, %v5376
      %v5405 = vmul.f32 %v418, %v5376
      %v5406 = vmul.f32 %v419, %v5376
      %v5407 = vmul.f32 %v420, %v5376
      %v5408 = vmul.f32 %v421, %v5376
      %v5409 = vmul.f32 %v422, %v5376
      %v5410 = vmul.f32 %v423, %v5376
      %v5411 = vmul.f32 %v424, %v5376
      %v5412 = vmul.f32 %v425, %v5376
      %v5413 = vmul.f32 %v426, %v5376
      %v5414 = vmul.f32 %v427, %v5376
      %v5415 = vmul.f32 %v428, %v5376
      %v5416 = vmul.f32 %v429, %v5376
      %v5417 = vmul.f32 %v430, %v5376
      %v5418 = vmul.f32 %v431, %v5376
      %v5419 = vmul.f32 %v432, %v5376
      %v5420 = vmul.f32 %v433, %v5376
      %v5421 = vmul.f32 %v434, %v5376
      %v5422 = vmul.f32 %v435, %v5376
      %v5423 = vmul.f32 %v436, %v5376
      %v5424 = vmul.f32 %v437, %v5376
      %v5425 = vadd.f32 %v5325, %v5377
      %v5426 = vadd.f32 %v5326, %v5378
      %v5427 = vadd.f32 %v5327, %v5379
      %v5428 = vadd.f32 %v5328, %v5380
      %v5429 = vadd.f32 %v5329, %v5381
      %v5430 = vadd.f32 %v5330, %v5382
      %v5431 = vadd.f32 %v5331, %v5383
      %v5432 = vadd.f32 %v5332, %v5384
      %v5433 = vadd.f32 %v5333, %v5385
      %v5434 = vadd.f32 %v5334, %v5386
      %v5435 = vadd.f32 %v5335, %v5387
      %v5436 = vadd.f32 %v5336, %v5388
      %v5437 = vadd.f32 %v5337, %v5389
      %v5438 = vadd.f32 %v5338, %v5390
      %v5439 = vadd.f32 %v5339, %v5391
      %v5440 = vadd.f32 %v5340, %v5392
      %v5441 = vadd.f32 %v5341, %v5393
      %v5442 = vadd.f32 %v5342, %v5394
      %v5443 = vadd.f32 %v5343, %v5395
      %v5444 = vadd.f32 %v5344, %v5396
      %v5445 = vadd.f32 %v5345, %v5397
      %v5446 = vadd.f32 %v5346, %v5398
      %v5447 = vadd.f32 %v5347, %v5399
      %v5448 = vadd.f32 %v5348, %v5400
      %v5449 = vadd.f32 %v5349, %v5401
      %v5450 = vadd.f32 %v5350, %v5402
      %v5451 = vadd.f32 %v5351, %v5403
      %v5452 = vadd.f32 %v5352, %v5404
      %v5453 = vadd.f32 %v5353, %v5405
      %v5454 = vadd.f32 %v5354, %v5406
      %v5455 = vadd.f32 %v5355, %v5407
      %v5456 = vadd.f32 %v5356, %v5408
      %v5457 = vadd.f32 %v5357, %v5409
      %v5458 = vadd.f32 %v5358, %v5410
      %v5459 = vadd.f32 %v5359, %v5411
      %v5460 = vadd.f32 %v5360, %v5412
      %v5461 = vadd.f32 %v5361, %v5413
      %v5462 = vadd.f32 %v5362, %v5414
      %v5463 = vadd.f32 %v5363, %v5415
      %v5464 = vadd.f32 %v5364, %v5416
      %v5465 = vadd.f32 %v5365, %v5417
      %v5466 = vadd.f32 %v5366, %v5418
      %v5467 = vadd.f32 %v5367, %v5419
      %v5468 = vadd.f32 %v5368, %v5420
      %v5469 = vadd.f32 %v5369, %v5421
      %v5470 = vadd.f32 %v5370, %v5422
      %v5471 = vadd.f32 %v5371, %v5423
      %v5472 = vadd.f32 %v5372, %v5424
      %v5473 = vlaneseq
      %v5474 = vshrl.u32 %v5473, 7
      %v5475 = vsub.s32 6, %v5474
      %v5476 = vrot.slane %v616, %v5475
      %v5477 = vmul.f32 %v393, %v5476
      %v5478 = vmul.f32 %v394, %v5476
      %v5479 = vmul.f32 %v395, %v5476
      %v5480 = vmul.f32 %v396, %v5476
      %v5481 = vmul.f32 %v397, %v5476
      %v5482 = vmul.f32 %v398, %v5476
      %v5483 = vmul.f32 %v399, %v5476
      %v5484 = vmul.f32 %v400, %v5476
      %v5485 = vmul.f32 %v401, %v5476
      %v5486 = vmul.f32 %v402, %v5476
      %v5487 = vmul.f32 %v403, %v5476
      %v5488 = vmul.f32 %v404, %v5476
      %v5489 = vmul.f32 %v405, %v5476
      %v5490 = vmul.f32 %v406, %v5476
      %v5491 = vmul.f32 %v407, %v5476
      %v5492 = vmul.f32 %v408, %v5476
      %v5493 = vmul.f32 %v409, %v5476
      %v5494 = vmul.f32 %v410, %v5476
      %v5495 = vmul.f32 %v411, %v5476
      %v5496 = vmul.f32 %v412, %v5476
      %v5497 = vmul.f32 %v413, %v5476
      %v5498 = vmul.f32 %v414, %v5476
      %v5499 = vmul.f32 %v415, %v5476
      %v5500 = vmul.f32 %v416, %v5476
      %v5501 = vmul.f32 %v417, %v5476
      %v5502 = vmul.f32 %v418, %v5476
      %v5503 = vmul.f32 %v419, %v5476
      %v5504 = vmul.f32 %v420, %v5476
      %v5505 = vmul.f32 %v421, %v5476
      %v5506 = vmul.f32 %v422, %v5476
      %v5507 = vmul.f32 %v423, %v5476
      %v5508 = vmul.f32 %v424, %v5476
      %v5509 = vmul.f32 %v425, %v5476
      %v5510 = vmul.f32 %v426, %v5476
      %v5511 = vmul.f32 %v427, %v5476
      %v5512 = vmul.f32 %v428, %v5476
      %v5513 = vmul.f32 %v429, %v5476
      %v5514 = vmul.f32 %v430, %v5476
      %v5515 = vmul.f32 %v431, %v5476
      %v5516 = vmul.f32 %v432, %v5476
      %v5517 = vmul.f32 %v433, %v5476
      %v5518 = vmul.f32 %v434, %v5476
      %v5519 = vmul.f32 %v435, %v5476
      %v5520 = vmul.f32 %v436, %v5476
      %v5521 = vmul.f32 %v437, %v5476
      %v5522 = vmul.f32 %v438, %v5476
      %v5523 = vmul.f32 %v439, %v5476
      %v5524 = vmul.f32 %v440, %v5476
      %v5525 = vadd.f32 %v5425, %v5477
      %v5526 = vadd.f32 %v5426, %v5478
      %v5527 = vadd.f32 %v5427, %v5479
      %v5528 = vadd.f32 %v5428, %v5480
      %v5529 = vadd.f32 %v5429, %v5481
      %v5530 = vadd.f32 %v5430, %v5482
      %v5531 = vadd.f32 %v5431, %v5483
      %v5532 = vadd.f32 %v5432, %v5484
      %v5533 = vadd.f32 %v5433, %v5485
      %v5534 = vadd.f32 %v5434, %v5486
      %v5535 = vadd.f32 %v5435, %v5487
      %v5536 = vadd.f32 %v5436, %v5488
      %v5537 = vadd.f32 %v5437, %v5489
      %v5538 = vadd.f32 %v5438, %v5490
      %v5539 = vadd.f32 %v5439, %v5491
      %v5540 = vadd.f32 %v5440, %v5492
      %v5541 = vadd.f32 %v5441, %v5493
      %v5542 = vadd.f32 %v5442, %v5494
      %v5543 = vadd.f32 %v5443, %v5495
      %v5544 = vadd.f32 %v5444, %v5496
      %v5545 = vadd.f32 %v5445, %v5497
      %v5546 = vadd.f32 %v5446, %v5498
      %v5547 = vadd.f32 %v5447, %v5499
      %v5548 = vadd.f32 %v5448, %v5500
      %v5549 = vadd.f32 %v5449, %v5501
      %v5550 = vadd.f32 %v5450, %v5502
      %v5551 = vadd.f32 %v5451, %v5503
      %v5552 = vadd.f32 %v5452, %v5504
      %v5553 = vadd.f32 %v5453, %v5505
      %v5554 = vadd.f32 %v5454, %v5506
      %v5555 = vadd.f32 %v5455, %v5507
      %v5556 = vadd.f32 %v5456, %v5508
      %v5557 = vadd.f32 %v5457, %v5509
      %v5558 = vadd.f32 %v5458, %v5510
      %v5559 = vadd.f32 %v5459, %v5511
      %v5560 = vadd.f32 %v5460, %v5512
      %v5561 = vadd.f32 %v5461, %v5513
      %v5562 = vadd.f32 %v5462, %v5514
      %v5563 = vadd.f32 %v5463, %v5515
      %v5564 = vadd.f32 %v5464, %v5516
      %v5565 = vadd.f32 %v5465, %v5517
      %v5566 = vadd.f32 %v5466, %v5518
      %v5567 = vadd.f32 %v5467, %v5519
      %v5568 = vadd.f32 %v5468, %v5520
      %v5569 = vadd.f32 %v5469, %v5521
      %v5570 = vadd.f32 %v5470, %v5522
      %v5571 = vadd.f32 %v5471, %v5523
      %v5572 = vadd.f32 %v5472, %v5524
      %v5573 = vlaneseq
      %v5574 = vshrl.u32 %v5573, 7
      %v5575 = vsub.s32 6, %v5574
      %v5576 = vrot.slane %v617, %v5575
      %v5577 = vmul.f32 %v396, %v5576
      %v5578 = vmul.f32 %v397, %v5576
      %v5579 = vmul.f32 %v398, %v5576
      %v5580 = vmul.f32 %v399, %v5576
      %v5581 = vmul.f32 %v400, %v5576
      %v5582 = vmul.f32 %v401, %v5576
      %v5583 = vmul.f32 %v402, %v5576
      %v5584 = vmul.f32 %v403, %v5576
      %v5585 = vmul.f32 %v404, %v5576
      %v5586 = vmul.f32 %v405, %v5576
      %v5587 = vmul.f32 %v406, %v5576
      %v5588 = vmul.f32 %v407, %v5576
      %v5589 = vmul.f32 %v408, %v5576
      %v5590 = vmul.f32 %v409, %v5576
      %v5591 = vmul.f32 %v410, %v5576
      %v5592 = vmul.f32 %v411, %v5576
      %v5593 = vmul.f32 %v412, %v5576
      %v5594 = vmul.f32 %v413, %v5576
      %v5595 = vmul.f32 %v414, %v5576
      %v5596 = vmul.f32 %v415, %v5576
      %v5597 = vmul.f32 %v416, %v5576
      %v5598 = vmul.f32 %v417, %v5576
      %v5599 = vmul.f32 %v418, %v5576
      %v5600 = vmul.f32 %v419, %v5576
      %v5601 = vmul.f32 %v420, %v5576
      %v5602 = vmul.f32 %v421, %v5576
      %v5603 = vmul.f32 %v422, %v5576
      %v5604 = vmul.f32 %v423, %v5576
      %v5605 = vmul.f32 %v424, %v5576
      %v5606 = vmul.f32 %v425, %v5576
      %v5607 = vmul.f32 %v426, %v5576
      %v5608 = vmul.f32 %v427, %v5576
      %v5609 = vmul.f32 %v428, %v5576
      %v5610 = vmul.f32 %v429, %v5576
      %v5611 = vmul.f32 %v430, %v5576
      %v5612 = vmul.f32 %v431, %v5576
      %v5613 = vmul.f32 %v432, %v5576
      %v5614 = vmul.f32 %v433, %v5576
      %v5615 = vmul.f32 %v434, %v5576
      %v5616 = vmul.f32 %v435, %v5576
      %v5617 = vmul.f32 %v436, %v5576
      %v5618 = vmul.f32 %v437, %v5576
      %v5619 = vmul.f32 %v438, %v5576
      %v5620 = vmul.f32 %v439, %v5576
      %v5621 = vmul.f32 %v440, %v5576
      %v5622 = vmul.f32 %v441, %v5576
      %v5623 = vmul.f32 %v442, %v5576
      %v5624 = vmul.f32 %v443, %v5576
      %v5625 = vadd.f32 %v5525, %v5577
      %v5626 = vadd.f32 %v5526, %v5578
      %v5627 = vadd.f32 %v5527, %v5579
      %v5628 = vadd.f32 %v5528, %v5580
      %v5629 = vadd.f32 %v5529, %v5581
      %v5630 = vadd.f32 %v5530, %v5582
      %v5631 = vadd.f32 %v5531, %v5583
      %v5632 = vadd.f32 %v5532, %v5584
      %v5633 = vadd.f32 %v5533, %v5585
      %v5634 = vadd.f32 %v5534, %v5586
      %v5635 = vadd.f32 %v5535, %v5587
      %v5636 = vadd.f32 %v5536, %v5588
      %v5637 = vadd.f32 %v5537, %v5589
      %v5638 = vadd.f32 %v5538, %v5590
      %v5639 = vadd.f32 %v5539, %v5591
      %v5640 = vadd.f32 %v5540, %v5592
      %v5641 = vadd.f32 %v5541, %v5593
      %v5642 = vadd.f32 %v5542, %v5594
      %v5643 = vadd.f32 %v5543, %v5595
      %v5644 = vadd.f32 %v5544, %v5596
      %v5645 = vadd.f32 %v5545, %v5597
      %v5646 = vadd.f32 %v5546, %v5598
      %v5647 = vadd.f32 %v5547, %v5599
      %v5648 = vadd.f32 %v5548, %v5600
      %v5649 = vadd.f32 %v5549, %v5601
      %v5650 = vadd.f32 %v5550, %v5602
      %v5651 = vadd.f32 %v5551, %v5603
      %v5652 = vadd.f32 %v5552, %v5604
      %v5653 = vadd.f32 %v5553, %v5605
      %v5654 = vadd.f32 %v5554, %v5606
      %v5655 = vadd.f32 %v5555, %v5607
      %v5656 = vadd.f32 %v5556, %v5608
      %v5657 = vadd.f32 %v5557, %v5609
      %v5658 = vadd.f32 %v5558, %v5610
      %v5659 = vadd.f32 %v5559, %v5611
      %v5660 = vadd.f32 %v5560, %v5612
      %v5661 = vadd.f32 %v5561, %v5613
      %v5662 = vadd.f32 %v5562, %v5614
      %v5663 = vadd.f32 %v5563, %v5615
      %v5664 = vadd.f32 %v5564, %v5616
      %v5665 = vadd.f32 %v5565, %v5617
      %v5666 = vadd.f32 %v5566, %v5618
      %v5667 = vadd.f32 %v5567, %v5619
      %v5668 = vadd.f32 %v5568, %v5620
      %v5669 = vadd.f32 %v5569, %v5621
      %v5670 = vadd.f32 %v5570, %v5622
      %v5671 = vadd.f32 %v5571, %v5623
      %v5672 = vadd.f32 %v5572, %v5624
      %v5673 = vlaneseq
      %v5674 = vshrl.u32 %v5673, 7
      %v5675 = vsub.s32 6, %v5674
      %v5676 = vrot.slane %v618, %v5675
      %v5677 = vmul.f32 %v399, %v5676
      %v5678 = vmul.f32 %v400, %v5676
      %v5679 = vmul.f32 %v401, %v5676
      %v5680 = vmul.f32 %v402, %v5676
      %v5681 = vmul.f32 %v403, %v5676
      %v5682 = vmul.f32 %v404, %v5676
      %v5683 = vmul.f32 %v405, %v5676
      %v5684 = vmul.f32 %v406, %v5676
      %v5685 = vmul.f32 %v407, %v5676
      %v5686 = vmul.f32 %v408, %v5676
      %v5687 = vmul.f32 %v409, %v5676
      %v5688 = vmul.f32 %v410, %v5676
      %v5689 = vmul.f32 %v411, %v5676
      %v5690 = vmul.f32 %v412, %v5676
      %v5691 = vmul.f32 %v413, %v5676
      %v5692 = vmul.f32 %v414, %v5676
      %v5693 = vmul.f32 %v415, %v5676
      %v5694 = vmul.f32 %v416, %v5676
      %v5695 = vmul.f32 %v417, %v5676
      %v5696 = vmul.f32 %v418, %v5676
      %v5697 = vmul.f32 %v419, %v5676
      %v5698 = vmul.f32 %v420, %v5676
      %v5699 = vmul.f32 %v421, %v5676
      %v5700 = vmul.f32 %v422, %v5676
      %v5701 = vmul.f32 %v423, %v5676
      %v5702 = vmul.f32 %v424, %v5676
      %v5703 = vmul.f32 %v425, %v5676
      %v5704 = vmul.f32 %v426, %v5676
      %v5705 = vmul.f32 %v427, %v5676
      %v5706 = vmul.f32 %v428, %v5676
      %v5707 = vmul.f32 %v429, %v5676
      %v5708 = vmul.f32 %v430, %v5676
      %v5709 = vmul.f32 %v431, %v5676
      %v5710 = vmul.f32 %v432, %v5676
      %v5711 = vmul.f32 %v433, %v5676
      %v5712 = vmul.f32 %v434, %v5676
      %v5713 = vmul.f32 %v435, %v5676
      %v5714 = vmul.f32 %v436, %v5676
      %v5715 = vmul.f32 %v437, %v5676
      %v5716 = vmul.f32 %v438, %v5676
      %v5717 = vmul.f32 %v439, %v5676
      %v5718 = vmul.f32 %v440, %v5676
      %v5719 = vmul.f32 %v441, %v5676
      %v5720 = vmul.f32 %v442, %v5676
      %v5721 = vmul.f32 %v443, %v5676
      %v5722 = vmul.f32 %v444, %v5676
      %v5723 = vmul.f32 %v445, %v5676
      %v5724 = vmul.f32 %v446, %v5676
      %v5725 = vadd.f32 %v5625, %v5677
      %v5726 = vadd.f32 %v5626, %v5678
      %v5727 = vadd.f32 %v5627, %v5679
      %v5728 = vadd.f32 %v5628, %v5680
      %v5729 = vadd.f32 %v5629, %v5681
      %v5730 = vadd.f32 %v5630, %v5682
      %v5731 = vadd.f32 %v5631, %v5683
      %v5732 = vadd.f32 %v5632, %v5684
      %v5733 = vadd.f32 %v5633, %v5685
      %v5734 = vadd.f32 %v5634, %v5686
      %v5735 = vadd.f32 %v5635, %v5687
      %v5736 = vadd.f32 %v5636, %v5688
      %v5737 = vadd.f32 %v5637, %v5689
      %v5738 = vadd.f32 %v5638, %v5690
      %v5739 = vadd.f32 %v5639, %v5691
      %v5740 = vadd.f32 %v5640, %v5692
      %v5741 = vadd.f32 %v5641, %v5693
      %v5742 = vadd.f32 %v5642, %v5694
      %v5743 = vadd.f32 %v5643, %v5695
      %v5744 = vadd.f32 %v5644, %v5696
      %v5745 = vadd.f32 %v5645, %v5697
      %v5746 = vadd.f32 %v5646, %v5698
      %v5747 = vadd.f32 %v5647, %v5699
      %v5748 = vadd.f32 %v5648, %v5700
      %v5749 = vadd.f32 %v5649, %v5701
      %v5750 = vadd.f32 %v5650, %v5702
      %v5751 = vadd.f32 %v5651, %v5703
      %v5752 = vadd.f32 %v5652, %v5704
      %v5753 = vadd.f32 %v5653, %v5705
      %v5754 = vadd.f32 %v5654, %v5706
      %v5755 = vadd.f32 %v5655, %v5707
      %v5756 = vadd.f32 %v5656, %v5708
      %v5757 = vadd.f32 %v5657, %v5709
      %v5758 = vadd.f32 %v5658, %v5710
      %v5759 = vadd.f32 %v5659, %v5711
      %v5760 = vadd.f32 %v5660, %v5712
      %v5761 = vadd.f32 %v5661, %v5713
      %v5762 = vadd.f32 %v5662, %v5714
      %v5763 = vadd.f32 %v5663, %v5715
      %v5764 = vadd.f32 %v5664, %v5716
      %v5765 = vadd.f32 %v5665, %v5717
      %v5766 = vadd.f32 %v5666, %v5718
      %v5767 = vadd.f32 %v5667, %v5719
      %v5768 = vadd.f32 %v5668, %v5720
      %v5769 = vadd.f32 %v5669, %v5721
      %v5770 = vadd.f32 %v5670, %v5722
      %v5771 = vadd.f32 %v5671, %v5723
      %v5772 = vadd.f32 %v5672, %v5724
      %v5773 = vlaneseq
      %v5774 = vshrl.u32 %v5773, 7
      %v5775 = vsub.s32 6, %v5774
      %v5776 = vrot.slane %v619, %v5775
      %v5777 = vmul.f32 %v402, %v5776
      %v5778 = vmul.f32 %v403, %v5776
      %v5779 = vmul.f32 %v404, %v5776
      %v5780 = vmul.f32 %v405, %v5776
      %v5781 = vmul.f32 %v406, %v5776
      %v5782 = vmul.f32 %v407, %v5776
      %v5783 = vmul.f32 %v408, %v5776
      %v5784 = vmul.f32 %v409, %v5776
      %v5785 = vmul.f32 %v410, %v5776
      %v5786 = vmul.f32 %v411, %v5776
      %v5787 = vmul.f32 %v412, %v5776
      %v5788 = vmul.f32 %v413, %v5776
      %v5789 = vmul.f32 %v414, %v5776
      %v5790 = vmul.f32 %v415, %v5776
      %v5791 = vmul.f32 %v416, %v5776
      %v5792 = vmul.f32 %v417, %v5776
      %v5793 = vmul.f32 %v418, %v5776
      %v5794 = vmul.f32 %v419, %v5776
      %v5795 = vmul.f32 %v420, %v5776
      %v5796 = vmul.f32 %v421, %v5776
      %v5797 = vmul.f32 %v422, %v5776
      %v5798 = vmul.f32 %v423, %v5776
      %v5799 = vmul.f32 %v424, %v5776
      %v5800 = vmul.f32 %v425, %v5776
      %v5801 = vmul.f32 %v426, %v5776
      %v5802 = vmul.f32 %v427, %v5776
      %v5803 = vmul.f32 %v428, %v5776
      %v5804 = vmul.f32 %v429, %v5776
      %v5805 = vmul.f32 %v430, %v5776
      %v5806 = vmul.f32 %v431, %v5776
      %v5807 = vmul.f32 %v432, %v5776
      %v5808 = vmul.f32 %v433, %v5776
      %v5809 = vmul.f32 %v434, %v5776
      %v5810 = vmul.f32 %v435, %v5776
      %v5811 = vmul.f32 %v436, %v5776
      %v5812 = vmul.f32 %v437, %v5776
      %v5813 = vmul.f32 %v438, %v5776
      %v5814 = vmul.f32 %v439, %v5776
      %v5815 = vmul.f32 %v440, %v5776
      %v5816 = vmul.f32 %v441, %v5776
      %v5817 = vmul.f32 %v442, %v5776
      %v5818 = vmul.f32 %v443, %v5776
      %v5819 = vmul.f32 %v444, %v5776
      %v5820 = vmul.f32 %v445, %v5776
      %v5821 = vmul.f32 %v446, %v5776
      %v5822 = vmul.f32 %v447, %v5776
      %v5823 = vmul.f32 %v448, %v5776
      %v5824 = vmul.f32 %v449, %v5776
      %v5825 = vadd.f32 %v5725, %v5777
      %v5826 = vadd.f32 %v5726, %v5778
      %v5827 = vadd.f32 %v5727, %v5779
      %v5828 = vadd.f32 %v5728, %v5780
      %v5829 = vadd.f32 %v5729, %v5781
      %v5830 = vadd.f32 %v5730, %v5782
      %v5831 = vadd.f32 %v5731, %v5783
      %v5832 = vadd.f32 %v5732, %v5784
      %v5833 = vadd.f32 %v5733, %v5785
      %v5834 = vadd.f32 %v5734, %v5786
      %v5835 = vadd.f32 %v5735, %v5787
      %v5836 = vadd.f32 %v5736, %v5788
      %v5837 = vadd.f32 %v5737, %v5789
      %v5838 = vadd.f32 %v5738, %v5790
      %v5839 = vadd.f32 %v5739, %v5791
      %v5840 = vadd.f32 %v5740, %v5792
      %v5841 = vadd.f32 %v5741, %v5793
      %v5842 = vadd.f32 %v5742, %v5794
      %v5843 = vadd.f32 %v5743, %v5795
      %v5844 = vadd.f32 %v5744, %v5796
      %v5845 = vadd.f32 %v5745, %v5797
      %v5846 = vadd.f32 %v5746, %v5798
      %v5847 = vadd.f32 %v5747, %v5799
      %v5848 = vadd.f32 %v5748, %v5800
      %v5849 = vadd.f32 %v5749, %v5801
      %v5850 = vadd.f32 %v5750, %v5802
      %v5851 = vadd.f32 %v5751, %v5803
      %v5852 = vadd.f32 %v5752, %v5804
      %v5853 = vadd.f32 %v5753, %v5805
      %v5854 = vadd.f32 %v5754, %v5806
      %v5855 = vadd.f32 %v5755, %v5807
      %v5856 = vadd.f32 %v5756, %v5808
      %v5857 = vadd.f32 %v5757, %v5809
      %v5858 = vadd.f32 %v5758, %v5810
      %v5859 = vadd.f32 %v5759, %v5811
      %v5860 = vadd.f32 %v5760, %v5812
      %v5861 = vadd.f32 %v5761, %v5813
      %v5862 = vadd.f32 %v5762, %v5814
      %v5863 = vadd.f32 %v5763, %v5815
      %v5864 = vadd.f32 %v5764, %v5816
      %v5865 = vadd.f32 %v5765, %v5817
      %v5866 = vadd.f32 %v5766, %v5818
      %v5867 = vadd.f32 %v5767, %v5819
      %v5868 = vadd.f32 %v5768, %v5820
      %v5869 = vadd.f32 %v5769, %v5821
      %v5870 = vadd.f32 %v5770, %v5822
      %v5871 = vadd.f32 %v5771, %v5823
      %v5872 = vadd.f32 %v5772, %v5824
      %v5873 = vlaneseq
      %v5874 = vshrl.u32 %v5873, 7
      %v5875 = vsub.s32 6, %v5874
      %v5876 = vrot.slane %v620, %v5875
      %v5877 = vmul.f32 %v405, %v5876
      %v5878 = vmul.f32 %v406, %v5876
      %v5879 = vmul.f32 %v407, %v5876
      %v5880 = vmul.f32 %v408, %v5876
      %v5881 = vmul.f32 %v409, %v5876
      %v5882 = vmul.f32 %v410, %v5876
      %v5883 = vmul.f32 %v411, %v5876
      %v5884 = vmul.f32 %v412, %v5876
      %v5885 = vmul.f32 %v413, %v5876
      %v5886 = vmul.f32 %v414, %v5876
      %v5887 = vmul.f32 %v415, %v5876
      %v5888 = vmul.f32 %v416, %v5876
      %v5889 = vmul.f32 %v417, %v5876
      %v5890 = vmul.f32 %v418, %v5876
      %v5891 = vmul.f32 %v419, %v5876
      %v5892 = vmul.f32 %v420, %v5876
      %v5893 = vmul.f32 %v421, %v5876
      %v5894 = vmul.f32 %v422, %v5876
      %v5895 = vmul.f32 %v423, %v5876
      %v5896 = vmul.f32 %v424, %v5876
      %v5897 = vmul.f32 %v425, %v5876
      %v5898 = vmul.f32 %v426, %v5876
      %v5899 = vmul.f32 %v427, %v5876
      %v5900 = vmul.f32 %v428, %v5876
      %v5901 = vmul.f32 %v429, %v5876
      %v5902 = vmul.f32 %v430, %v5876
      %v5903 = vmul.f32 %v431, %v5876
      %v5904 = vmul.f32 %v432, %v5876
      %v5905 = vmul.f32 %v433, %v5876
      %v5906 = vmul.f32 %v434, %v5876
      %v5907 = vmul.f32 %v435, %v5876
      %v5908 = vmul.f32 %v436, %v5876
      %v5909 = vmul.f32 %v437, %v5876
      %v5910 = vmul.f32 %v438, %v5876
      %v5911 = vmul.f32 %v439, %v5876
      %v5912 = vmul.f32 %v440, %v5876
      %v5913 = vmul.f32 %v441, %v5876
      %v5914 = vmul.f32 %v442, %v5876
      %v5915 = vmul.f32 %v443, %v5876
      %v5916 = vmul.f32 %v444, %v5876
      %v5917 = vmul.f32 %v445, %v5876
      %v5918 = vmul.f32 %v446, %v5876
      %v5919 = vmul.f32 %v447, %v5876
      %v5920 = vmul.f32 %v448, %v5876
      %v5921 = vmul.f32 %v449, %v5876
      %v5922 = vmul.f32 %v450, %v5876
      %v5923 = vmul.f32 %v451, %v5876
      %v5924 = vmul.f32 %v452, %v5876
      %v5925 = vadd.f32 %v5825, %v5877
      %v5926 = vadd.f32 %v5826, %v5878
      %v5927 = vadd.f32 %v5827, %v5879
      %v5928 = vadd.f32 %v5828, %v5880
      %v5929 = vadd.f32 %v5829, %v5881
      %v5930 = vadd.f32 %v5830, %v5882
      %v5931 = vadd.f32 %v5831, %v5883
      %v5932 = vadd.f32 %v5832, %v5884
      %v5933 = vadd.f32 %v5833, %v5885
      %v5934 = vadd.f32 %v5834, %v5886
      %v5935 = vadd.f32 %v5835, %v5887
      %v5936 = vadd.f32 %v5836, %v5888
      %v5937 = vadd.f32 %v5837, %v5889
      %v5938 = vadd.f32 %v5838, %v5890
      %v5939 = vadd.f32 %v5839, %v5891
      %v5940 = vadd.f32 %v5840, %v5892
      %v5941 = vadd.f32 %v5841, %v5893
      %v5942 = vadd.f32 %v5842, %v5894
      %v5943 = vadd.f32 %v5843, %v5895
      %v5944 = vadd.f32 %v5844, %v5896
      %v5945 = vadd.f32 %v5845, %v5897
      %v5946 = vadd.f32 %v5846, %v5898
      %v5947 = vadd.f32 %v5847, %v5899
      %v5948 = vadd.f32 %v5848, %v5900
      %v5949 = vadd.f32 %v5849, %v5901
      %v5950 = vadd.f32 %v5850, %v5902
      %v5951 = vadd.f32 %v5851, %v5903
      %v5952 = vadd.f32 %v5852, %v5904
      %v5953 = vadd.f32 %v5853, %v5905
      %v5954 = vadd.f32 %v5854, %v5906
      %v5955 = vadd.f32 %v5855, %v5907
      %v5956 = vadd.f32 %v5856, %v5908
      %v5957 = vadd.f32 %v5857, %v5909
      %v5958 = vadd.f32 %v5858, %v5910
      %v5959 = vadd.f32 %v5859, %v5911
      %v5960 = vadd.f32 %v5860, %v5912
      %v5961 = vadd.f32 %v5861, %v5913
      %v5962 = vadd.f32 %v5862, %v5914
      %v5963 = vadd.f32 %v5863, %v5915
      %v5964 = vadd.f32 %v5864, %v5916
      %v5965 = vadd.f32 %v5865, %v5917
      %v5966 = vadd.f32 %v5866, %v5918
      %v5967 = vadd.f32 %v5867, %v5919
      %v5968 = vadd.f32 %v5868, %v5920
      %v5969 = vadd.f32 %v5869, %v5921
      %v5970 = vadd.f32 %v5870, %v5922
      %v5971 = vadd.f32 %v5871, %v5923
      %v5972 = vadd.f32 %v5872, %v5924
      %vm6021 = vcmask 1041408
      %v6022 = vrot.slane %v5925, 6
      %v6023 = vrot.slane %v5926, 6
      %v6024 = vsel %vm6021, %v6022, %v6023
      %v6025 = vrot.slane %v5927, 6
      %v6026 = vsel %vm6021, %v6023, %v6025
      %v6027 = vrot.slane %v5928, 6
      %v6028 = vrot.slane %v5929, 6
      %v6029 = vsel %vm6021, %v6027, %v6028
      %v6030 = vrot.slane %v5930, 6
      %v6031 = vsel %vm6021, %v6028, %v6030
      %v6032 = vrot.slane %v5931, 6
      %v6033 = vrot.slane %v5932, 6
      %v6034 = vsel %vm6021, %v6032, %v6033
      %v6035 = vrot.slane %v5933, 6
      %v6036 = vsel %vm6021, %v6033, %v6035
      %v6037 = vrot.slane %v5934, 6
      %v6038 = vrot.slane %v5935, 6
      %v6039 = vsel %vm6021, %v6037, %v6038
      %v6040 = vrot.slane %v5936, 6
      %v6041 = vsel %vm6021, %v6038, %v6040
      %v6042 = vrot.slane %v5937, 6
      %v6043 = vrot.slane %v5938, 6
      %v6044 = vsel %vm6021, %v6042, %v6043
      %v6045 = vrot.slane %v5939, 6
      %v6046 = vsel %vm6021, %v6043, %v6045
      %v6047 = vrot.slane %v5940, 6
      %v6048 = vrot.slane %v5941, 6
      %v6049 = vsel %vm6021, %v6047, %v6048
      %v6050 = vrot.slane %v5942, 6
      %v6051 = vsel %vm6021, %v6048, %v6050
      %v6052 = vrot.slane %v5943, 6
      %v6053 = vrot.slane %v5944, 6
      %v6054 = vsel %vm6021, %v6052, %v6053
      %v6055 = vrot.slane %v5945, 6
      %v6056 = vsel %vm6021, %v6053, %v6055
      %v6057 = vrot.slane %v5946, 6
      %v6058 = vrot.slane %v5947, 6
      %v6059 = vsel %vm6021, %v6057, %v6058
      %v6060 = vrot.slane %v5948, 6
      %v6061 = vsel %vm6021, %v6058, %v6060
      %v6062 = vrot.slane %v5949, 6
      %v6063 = vrot.slane %v5950, 6
      %v6064 = vsel %vm6021, %v6062, %v6063
      %v6065 = vrot.slane %v5951, 6
      %v6066 = vsel %vm6021, %v6063, %v6065
      %v6067 = vrot.slane %v5952, 6
      %v6068 = vrot.slane %v5953, 6
      %v6069 = vsel %vm6021, %v6067, %v6068
      %v6070 = vrot.slane %v5954, 6
      %v6071 = vsel %vm6021, %v6068, %v6070
      %v6072 = vrot.slane %v5955, 6
      %v6073 = vrot.slane %v5956, 6
      %v6074 = vsel %vm6021, %v6072, %v6073
      %v6075 = vrot.slane %v5957, 6
      %v6076 = vsel %vm6021, %v6073, %v6075
      %v6077 = vrot.slane %v5958, 6
      %v6078 = vrot.slane %v5959, 6
      %v6079 = vsel %vm6021, %v6077, %v6078
      %v6080 = vrot.slane %v5960, 6
      %v6081 = vsel %vm6021, %v6078, %v6080
      %v6082 = vrot.slane %v5961, 6
      %v6083 = vrot.slane %v5962, 6
      %v6084 = vsel %vm6021, %v6082, %v6083
      %v6085 = vrot.slane %v5963, 6
      %v6086 = vsel %vm6021, %v6083, %v6085
      %v6087 = vrot.slane %v5964, 6
      %v6088 = vrot.slane %v5965, 6
      %v6089 = vsel %vm6021, %v6087, %v6088
      %v6090 = vrot.slane %v5966, 6
      %v6091 = vsel %vm6021, %v6088, %v6090
      %v6092 = vrot.slane %v5967, 6
      %v6093 = vrot.slane %v5968, 6
      %v6094 = vsel %vm6021, %v6092, %v6093
      %v6095 = vrot.slane %v5969, 6
      %v6096 = vsel %vm6021, %v6093, %v6095
      %v6097 = vrot.slane %v5970, 6
      %v6098 = vrot.slane %v5971, 6
      %v6099 = vsel %vm6021, %v6097, %v6098
      %v6100 = vrot.slane %v5972, 6
      %v6101 = vsel %vm6021, %v6098, %v6100
      %v6134 = vadd.f32 %v5289, %v6024
      %v6135 = vadd.f32 %v5290, %v6026
      %v6136 = vadd.f32 %v5291, %v6029
      %v6137 = vadd.f32 %v5292, %v6031
      %v6138 = vadd.f32 %v5293, %v6034
      %v6139 = vadd.f32 %v5294, %v6036
      %v6140 = vadd.f32 %v5295, %v6039
      %v6141 = vadd.f32 %v5296, %v6041
      %v6142 = vadd.f32 %v5297, %v6044
      %v6143 = vadd.f32 %v5298, %v6046
      %v6144 = vadd.f32 %v5299, %v6049
      %v6145 = vadd.f32 %v5300, %v6051
      %v6146 = vadd.f32 %v5301, %v6054
      %v6147 = vadd.f32 %v5302, %v6056
      %v6148 = vadd.f32 %v5303, %v6059
      %v6149 = vadd.f32 %v5304, %v6061
      %v6150 = vadd.f32 %v5305, %v6064
      %v6151 = vadd.f32 %v5306, %v6066
      %v6152 = vadd.f32 %v5307, %v6069
      %v6153 = vadd.f32 %v5308, %v6071
      %v6154 = vadd.f32 %v5309, %v6074
      %v6155 = vadd.f32 %v5310, %v6076
      %v6156 = vadd.f32 %v5311, %v6079
      %v6157 = vadd.f32 %v5312, %v6081
      %v6158 = vadd.f32 %v5313, %v6084
      %v6159 = vadd.f32 %v5314, %v6086
      %v6160 = vadd.f32 %v5315, %v6089
      %v6161 = vadd.f32 %v5316, %v6091
      %v6162 = vadd.f32 %v5317, %v6094
      %v6163 = vadd.f32 %v5318, %v6096
      %v6164 = vadd.f32 %v5319, %v6099
      %v6165 = vadd.f32 %v5320, %v6101
      %v6166 = vld [vmem:[%s2] sm:$0x1]
      %v6168 = vlaneseq
      %v6169 = vshrl.u32 %v6168, 7
      %v6170 = vsub.s32 0, %v6169
      %v6171 = vrot.slane %v6166, %v6170
      %v6173 = vadd.f32 %v6134, %v6171
      %v6174 = vadd.f32 %v6135, %v6171
      %v6175 = vadd.f32 %v6136, %v6171
      %v6176 = vadd.f32 %v6137, %v6171
      %v6177 = vadd.f32 %v6138, %v6171
      %v6178 = vadd.f32 %v6139, %v6171
      %v6179 = vadd.f32 %v6140, %v6171
      %v6180 = vadd.f32 %v6141, %v6171
      %v6181 = vadd.f32 %v6142, %v6171
      %v6182 = vadd.f32 %v6143, %v6171
      %v6183 = vadd.f32 %v6144, %v6171
      %v6184 = vadd.f32 %v6145, %v6171
      %v6185 = vadd.f32 %v6146, %v6171
      %v6186 = vadd.f32 %v6147, %v6171
      %v6187 = vadd.f32 %v6148, %v6171
      %v6188 = vadd.f32 %v6149, %v6171
      %v6189 = vadd.f32 %v6150, %v6171
      %v6190 = vadd.f32 %v6151, %v6171
      %v6191 = vadd.f32 %v6152, %v6171
      %v6192 = vadd.f32 %v6153, %v6171
      %v6193 = vadd.f32 %v6154, %v6171
      %v6194 = vadd.f32 %v6155, %v6171
      %v6195 = vadd.f32 %v6156, %v6171
      %v6196 = vadd.f32 %v6157, %v6171
      %v6197 = vadd.f32 %v6158, %v6171
      %v6198 = vadd.f32 %v6159, %v6171
      %v6199 = vadd.f32 %v6160, %v6171
      %v6200 = vadd.f32 %v6161, %v6171
      %v6201 = vadd.f32 %v6162, %v6171
      %v6202 = vadd.f32 %v6163, %v6171
      %v6203 = vadd.f32 %v6164, %v6171
      %v6204 = vadd.f32 %v6165, %v6171
      %vm6205 = vcmask 261120
      %v6206 = vsel %vm6205, %v6173, 0.0
      %6207 = vadd.xlane.f32.xlu0 %v6206
      %v6208 = vpop.xlane.xlu0 %6207
      %v6209 = vsel %vm6205, %v6174, 0.0
      %6210 = vadd.xlane.f32.xlu0 %v6209
      %v6211 = vpop.xlane.xlu0 %6210
      %v6212 = vsel %vm6205, %v6175, 0.0
      %6213 = vadd.xlane.f32.xlu0 %v6212
      %v6214 = vpop.xlane.xlu0 %6213
      %v6215 = vsel %vm6205, %v6176, 0.0
      %6216 = vadd.xlane.f32.xlu0 %v6215
      %v6217 = vpop.xlane.xlu0 %6216
      %v6218 = vsel %vm6205, %v6177, 0.0
      %6219 = vadd.xlane.f32.xlu0 %v6218
      %v6220 = vpop.xlane.xlu0 %6219
      %v6221 = vsel %vm6205, %v6178, 0.0
      %6222 = vadd.xlane.f32.xlu0 %v6221
      %v6223 = vpop.xlane.xlu0 %6222
      %v6224 = vsel %vm6205, %v6179, 0.0
      %6225 = vadd.xlane.f32.xlu0 %v6224
      %v6226 = vpop.xlane.xlu0 %6225
      %v6227 = vsel %vm6205, %v6180, 0.0
      %6228 = vadd.xlane.f32.xlu0 %v6227
      %v6229 = vpop.xlane.xlu0 %6228
      %v6230 = vsel %vm6205, %v6181, 0.0
      %6231 = vadd.xlane.f32.xlu0 %v6230
      %v6232 = vpop.xlane.xlu0 %6231
      %v6233 = vsel %vm6205, %v6182, 0.0
      %6234 = vadd.xlane.f32.xlu0 %v6233
      %v6235 = vpop.xlane.xlu0 %6234
      %v6236 = vsel %vm6205, %v6183, 0.0
      %6237 = vadd.xlane.f32.xlu0 %v6236
      %v6238 = vpop.xlane.xlu0 %6237
      %v6239 = vsel %vm6205, %v6184, 0.0
      %6240 = vadd.xlane.f32.xlu0 %v6239
      %v6241 = vpop.xlane.xlu0 %6240
      %v6242 = vsel %vm6205, %v6185, 0.0
      %6243 = vadd.xlane.f32.xlu0 %v6242
      %v6244 = vpop.xlane.xlu0 %6243
      %v6245 = vsel %vm6205, %v6186, 0.0
      %6246 = vadd.xlane.f32.xlu0 %v6245
      %v6247 = vpop.xlane.xlu0 %6246
      %v6248 = vsel %vm6205, %v6187, 0.0
      %6249 = vadd.xlane.f32.xlu0 %v6248
      %v6250 = vpop.xlane.xlu0 %6249
      %v6251 = vsel %vm6205, %v6188, 0.0
      %6252 = vadd.xlane.f32.xlu0 %v6251
      %v6253 = vpop.xlane.xlu0 %6252
      %v6254 = vsel %vm6205, %v6189, 0.0
      %6255 = vadd.xlane.f32.xlu0 %v6254
      %v6256 = vpop.xlane.xlu0 %6255
      %v6257 = vsel %vm6205, %v6190, 0.0
      %6258 = vadd.xlane.f32.xlu0 %v6257
      %v6259 = vpop.xlane.xlu0 %6258
      %v6260 = vsel %vm6205, %v6191, 0.0
      %6261 = vadd.xlane.f32.xlu0 %v6260
      %v6262 = vpop.xlane.xlu0 %6261
      %v6263 = vsel %vm6205, %v6192, 0.0
      %6264 = vadd.xlane.f32.xlu0 %v6263
      %v6265 = vpop.xlane.xlu0 %6264
      %v6266 = vsel %vm6205, %v6193, 0.0
      %6267 = vadd.xlane.f32.xlu0 %v6266
      %v6268 = vpop.xlane.xlu0 %6267
      %v6269 = vsel %vm6205, %v6194, 0.0
      %6270 = vadd.xlane.f32.xlu0 %v6269
      %v6271 = vpop.xlane.xlu0 %6270
      %v6272 = vsel %vm6205, %v6195, 0.0
      %6273 = vadd.xlane.f32.xlu0 %v6272
      %v6274 = vpop.xlane.xlu0 %6273
      %v6275 = vsel %vm6205, %v6196, 0.0
      %6276 = vadd.xlane.f32.xlu0 %v6275
      %v6277 = vpop.xlane.xlu0 %6276
      %v6278 = vsel %vm6205, %v6197, 0.0
      %6279 = vadd.xlane.f32.xlu0 %v6278
      %v6280 = vpop.xlane.xlu0 %6279
      %v6281 = vsel %vm6205, %v6198, 0.0
      %6282 = vadd.xlane.f32.xlu0 %v6281
      %v6283 = vpop.xlane.xlu0 %6282
      %v6284 = vsel %vm6205, %v6199, 0.0
      %6285 = vadd.xlane.f32.xlu0 %v6284
      %v6286 = vpop.xlane.xlu0 %6285
      %v6287 = vsel %vm6205, %v6200, 0.0
      %6288 = vadd.xlane.f32.xlu0 %v6287
      %v6289 = vpop.xlane.xlu0 %6288
      %v6290 = vsel %vm6205, %v6201, 0.0
      %6291 = vadd.xlane.f32.xlu0 %v6290
      %v6292 = vpop.xlane.xlu0 %6291
      %v6293 = vsel %vm6205, %v6202, 0.0
      %6294 = vadd.xlane.f32.xlu0 %v6293
      %v6295 = vpop.xlane.xlu0 %6294
      %v6296 = vsel %vm6205, %v6203, 0.0
      %6297 = vadd.xlane.f32.xlu0 %v6296
      %v6298 = vpop.xlane.xlu0 %6297
      %v6299 = vsel %vm6205, %v6204, 0.0
      %6300 = vadd.xlane.f32.xlu0 %v6299
      %v6301 = vpop.xlane.xlu0 %6300
      %v6302 = vrcp.pop 32.0
      %v6303 = vmul.f32 %v6208, %v6302
      %v6304 = vmul.f32 %v6211, %v6302
      %v6305 = vmul.f32 %v6214, %v6302
      %v6306 = vmul.f32 %v6217, %v6302
      %v6307 = vmul.f32 %v6220, %v6302
      %v6308 = vmul.f32 %v6223, %v6302
      %v6309 = vmul.f32 %v6226, %v6302
      %v6310 = vmul.f32 %v6229, %v6302
      %v6311 = vmul.f32 %v6232, %v6302
      %v6312 = vmul.f32 %v6235, %v6302
      %v6313 = vmul.f32 %v6238, %v6302
      %v6314 = vmul.f32 %v6241, %v6302
      %v6315 = vmul.f32 %v6244, %v6302
      %v6316 = vmul.f32 %v6247, %v6302
      %v6317 = vmul.f32 %v6250, %v6302
      %v6318 = vmul.f32 %v6253, %v6302
      %v6319 = vmul.f32 %v6256, %v6302
      %v6320 = vmul.f32 %v6259, %v6302
      %v6321 = vmul.f32 %v6262, %v6302
      %v6322 = vmul.f32 %v6265, %v6302
      %v6323 = vmul.f32 %v6268, %v6302
      %v6324 = vmul.f32 %v6271, %v6302
      %v6325 = vmul.f32 %v6274, %v6302
      %v6326 = vmul.f32 %v6277, %v6302
      %v6327 = vmul.f32 %v6280, %v6302
      %v6328 = vmul.f32 %v6283, %v6302
      %v6329 = vmul.f32 %v6286, %v6302
      %v6330 = vmul.f32 %v6289, %v6302
      %v6331 = vmul.f32 %v6292, %v6302
      %v6332 = vmul.f32 %v6295, %v6302
      %v6333 = vmul.f32 %v6298, %v6302
      %v6334 = vmul.f32 %v6301, %v6302
      %v6335 = vsub.f32 %v6173, %v6303
      %v6336 = vsub.f32 %v6174, %v6304
      %v6337 = vsub.f32 %v6175, %v6305
      %v6338 = vsub.f32 %v6176, %v6306
      %v6339 = vsub.f32 %v6177, %v6307
      %v6340 = vsub.f32 %v6178, %v6308
      %v6341 = vsub.f32 %v6179, %v6309
      %v6342 = vsub.f32 %v6180, %v6310
      %v6343 = vsub.f32 %v6181, %v6311
      %v6344 = vsub.f32 %v6182, %v6312
      %v6345 = vsub.f32 %v6183, %v6313
      %v6346 = vsub.f32 %v6184, %v6314
      %v6347 = vsub.f32 %v6185, %v6315
      %v6348 = vsub.f32 %v6186, %v6316
      %v6349 = vsub.f32 %v6187, %v6317
      %v6350 = vsub.f32 %v6188, %v6318
      %v6351 = vsub.f32 %v6189, %v6319
      %v6352 = vsub.f32 %v6190, %v6320
      %v6353 = vsub.f32 %v6191, %v6321
      %v6354 = vsub.f32 %v6192, %v6322
      %v6355 = vsub.f32 %v6193, %v6323
      %v6356 = vsub.f32 %v6194, %v6324
      %v6357 = vsub.f32 %v6195, %v6325
      %v6358 = vsub.f32 %v6196, %v6326
      %v6359 = vsub.f32 %v6197, %v6327
      %v6360 = vsub.f32 %v6198, %v6328
      %v6361 = vsub.f32 %v6199, %v6329
      %v6362 = vsub.f32 %v6200, %v6330
      %v6363 = vsub.f32 %v6201, %v6331
      %v6364 = vsub.f32 %v6202, %v6332
      %v6365 = vsub.f32 %v6203, %v6333
      %v6366 = vsub.f32 %v6204, %v6334
      %v6367 = vmul.f32 %v6335, %v6335
      %v6368 = vmul.f32 %v6336, %v6336
      %v6369 = vmul.f32 %v6337, %v6337
      %v6370 = vmul.f32 %v6338, %v6338
      %v6371 = vmul.f32 %v6339, %v6339
      %v6372 = vmul.f32 %v6340, %v6340
      %v6373 = vmul.f32 %v6341, %v6341
      %v6374 = vmul.f32 %v6342, %v6342
      %v6375 = vmul.f32 %v6343, %v6343
      %v6376 = vmul.f32 %v6344, %v6344
      %v6377 = vmul.f32 %v6345, %v6345
      %v6378 = vmul.f32 %v6346, %v6346
      %v6379 = vmul.f32 %v6347, %v6347
      %v6380 = vmul.f32 %v6348, %v6348
      %v6381 = vmul.f32 %v6349, %v6349
      %v6382 = vmul.f32 %v6350, %v6350
      %v6383 = vmul.f32 %v6351, %v6351
      %v6384 = vmul.f32 %v6352, %v6352
      %v6385 = vmul.f32 %v6353, %v6353
      %v6386 = vmul.f32 %v6354, %v6354
      %v6387 = vmul.f32 %v6355, %v6355
      %v6388 = vmul.f32 %v6356, %v6356
      %v6389 = vmul.f32 %v6357, %v6357
      %v6390 = vmul.f32 %v6358, %v6358
      %v6391 = vmul.f32 %v6359, %v6359
      %v6392 = vmul.f32 %v6360, %v6360
      %v6393 = vmul.f32 %v6361, %v6361
      %v6394 = vmul.f32 %v6362, %v6362
      %v6395 = vmul.f32 %v6363, %v6363
      %v6396 = vmul.f32 %v6364, %v6364
      %v6397 = vmul.f32 %v6365, %v6365
      %v6398 = vmul.f32 %v6366, %v6366
      %v6399 = vsel %vm6205, %v6367, 0.0
      %6400 = vadd.xlane.f32.xlu0 %v6399
      %v6401 = vpop.xlane.xlu0 %6400
      %v6402 = vsel %vm6205, %v6368, 0.0
      %6403 = vadd.xlane.f32.xlu0 %v6402
      %v6404 = vpop.xlane.xlu0 %6403
      %v6405 = vsel %vm6205, %v6369, 0.0
      %6406 = vadd.xlane.f32.xlu0 %v6405
      %v6407 = vpop.xlane.xlu0 %6406
      %v6408 = vsel %vm6205, %v6370, 0.0
      %6409 = vadd.xlane.f32.xlu0 %v6408
      %v6410 = vpop.xlane.xlu0 %6409
      %v6411 = vsel %vm6205, %v6371, 0.0
      %6412 = vadd.xlane.f32.xlu0 %v6411
      %v6413 = vpop.xlane.xlu0 %6412
      %v6414 = vsel %vm6205, %v6372, 0.0
      %6415 = vadd.xlane.f32.xlu0 %v6414
      %v6416 = vpop.xlane.xlu0 %6415
      %v6417 = vsel %vm6205, %v6373, 0.0
      %6418 = vadd.xlane.f32.xlu0 %v6417
      %v6419 = vpop.xlane.xlu0 %6418
      %v6420 = vsel %vm6205, %v6374, 0.0
      %6421 = vadd.xlane.f32.xlu0 %v6420
      %v6422 = vpop.xlane.xlu0 %6421
      %v6423 = vsel %vm6205, %v6375, 0.0
      %6424 = vadd.xlane.f32.xlu0 %v6423
      %v6425 = vpop.xlane.xlu0 %6424
      %v6426 = vsel %vm6205, %v6376, 0.0
      %6427 = vadd.xlane.f32.xlu0 %v6426
      %v6428 = vpop.xlane.xlu0 %6427
      %v6429 = vsel %vm6205, %v6377, 0.0
      %6430 = vadd.xlane.f32.xlu0 %v6429
      %v6431 = vpop.xlane.xlu0 %6430
      %v6432 = vsel %vm6205, %v6378, 0.0
      %6433 = vadd.xlane.f32.xlu0 %v6432
      %v6434 = vpop.xlane.xlu0 %6433
      %v6435 = vsel %vm6205, %v6379, 0.0
      %6436 = vadd.xlane.f32.xlu0 %v6435
      %v6437 = vpop.xlane.xlu0 %6436
      %v6438 = vsel %vm6205, %v6380, 0.0
      %6439 = vadd.xlane.f32.xlu0 %v6438
      %v6440 = vpop.xlane.xlu0 %6439
      %v6441 = vsel %vm6205, %v6381, 0.0
      %6442 = vadd.xlane.f32.xlu0 %v6441
      %v6443 = vpop.xlane.xlu0 %6442
      %v6444 = vsel %vm6205, %v6382, 0.0
      %6445 = vadd.xlane.f32.xlu0 %v6444
      %v6446 = vpop.xlane.xlu0 %6445
      %v6447 = vsel %vm6205, %v6383, 0.0
      %6448 = vadd.xlane.f32.xlu0 %v6447
      %v6449 = vpop.xlane.xlu0 %6448
      %v6450 = vsel %vm6205, %v6384, 0.0
      %6451 = vadd.xlane.f32.xlu0 %v6450
      %v6452 = vpop.xlane.xlu0 %6451
      %v6453 = vsel %vm6205, %v6385, 0.0
      %6454 = vadd.xlane.f32.xlu0 %v6453
      %v6455 = vpop.xlane.xlu0 %6454
      %v6456 = vsel %vm6205, %v6386, 0.0
      %6457 = vadd.xlane.f32.xlu0 %v6456
      %v6458 = vpop.xlane.xlu0 %6457
      %v6459 = vsel %vm6205, %v6387, 0.0
      %6460 = vadd.xlane.f32.xlu0 %v6459
      %v6461 = vpop.xlane.xlu0 %6460
      %v6462 = vsel %vm6205, %v6388, 0.0
      %6463 = vadd.xlane.f32.xlu0 %v6462
      %v6464 = vpop.xlane.xlu0 %6463
      %v6465 = vsel %vm6205, %v6389, 0.0
      %6466 = vadd.xlane.f32.xlu0 %v6465
      %v6467 = vpop.xlane.xlu0 %6466
      %v6468 = vsel %vm6205, %v6390, 0.0
      %6469 = vadd.xlane.f32.xlu0 %v6468
      %v6470 = vpop.xlane.xlu0 %6469
      %v6471 = vsel %vm6205, %v6391, 0.0
      %6472 = vadd.xlane.f32.xlu0 %v6471
      %v6473 = vpop.xlane.xlu0 %6472
      %v6474 = vsel %vm6205, %v6392, 0.0
      %6475 = vadd.xlane.f32.xlu0 %v6474
      %v6476 = vpop.xlane.xlu0 %6475
      %v6477 = vsel %vm6205, %v6393, 0.0
      %6478 = vadd.xlane.f32.xlu0 %v6477
      %v6479 = vpop.xlane.xlu0 %6478
      %v6480 = vsel %vm6205, %v6394, 0.0
      %6481 = vadd.xlane.f32.xlu0 %v6480
      %v6482 = vpop.xlane.xlu0 %6481
      %v6483 = vsel %vm6205, %v6395, 0.0
      %6484 = vadd.xlane.f32.xlu0 %v6483
      %v6485 = vpop.xlane.xlu0 %6484
      %v6486 = vsel %vm6205, %v6396, 0.0
      %6487 = vadd.xlane.f32.xlu0 %v6486
      %v6488 = vpop.xlane.xlu0 %6487
      %v6489 = vsel %vm6205, %v6397, 0.0
      %6490 = vadd.xlane.f32.xlu0 %v6489
      %v6491 = vpop.xlane.xlu0 %6490
      %v6492 = vsel %vm6205, %v6398, 0.0
      %6493 = vadd.xlane.f32.xlu0 %v6492
      %v6494 = vpop.xlane.xlu0 %6493
      %v6495 = vmul.f32 %v6401, %v6302
      %v6496 = vmul.f32 %v6404, %v6302
      %v6497 = vmul.f32 %v6407, %v6302
      %v6498 = vmul.f32 %v6410, %v6302
      %v6499 = vmul.f32 %v6413, %v6302
      %v6500 = vmul.f32 %v6416, %v6302
      %v6501 = vmul.f32 %v6419, %v6302
      %v6502 = vmul.f32 %v6422, %v6302
      %v6503 = vmul.f32 %v6425, %v6302
      %v6504 = vmul.f32 %v6428, %v6302
      %v6505 = vmul.f32 %v6431, %v6302
      %v6506 = vmul.f32 %v6434, %v6302
      %v6507 = vmul.f32 %v6437, %v6302
      %v6508 = vmul.f32 %v6440, %v6302
      %v6509 = vmul.f32 %v6443, %v6302
      %v6510 = vmul.f32 %v6446, %v6302
      %v6511 = vmul.f32 %v6449, %v6302
      %v6512 = vmul.f32 %v6452, %v6302
      %v6513 = vmul.f32 %v6455, %v6302
      %v6514 = vmul.f32 %v6458, %v6302
      %v6515 = vmul.f32 %v6461, %v6302
      %v6516 = vmul.f32 %v6464, %v6302
      %v6517 = vmul.f32 %v6467, %v6302
      %v6518 = vmul.f32 %v6470, %v6302
      %v6519 = vmul.f32 %v6473, %v6302
      %v6520 = vmul.f32 %v6476, %v6302
      %v6521 = vmul.f32 %v6479, %v6302
      %v6522 = vmul.f32 %v6482, %v6302
      %v6523 = vmul.f32 %v6485, %v6302
      %v6524 = vmul.f32 %v6488, %v6302
      %v6525 = vmul.f32 %v6491, %v6302
      %v6526 = vmul.f32 %v6494, %v6302
      %v6527 = vadd.f32 %v6495, 1e-06
      %v6528 = vadd.f32 %v6496, 1e-06
      %v6529 = vadd.f32 %v6497, 1e-06
      %v6530 = vadd.f32 %v6498, 1e-06
      %v6531 = vadd.f32 %v6499, 1e-06
      %v6532 = vadd.f32 %v6500, 1e-06
      %v6533 = vadd.f32 %v6501, 1e-06
      %v6534 = vadd.f32 %v6502, 1e-06
      %v6535 = vadd.f32 %v6503, 1e-06
      %v6536 = vadd.f32 %v6504, 1e-06
      %v6537 = vadd.f32 %v6505, 1e-06
      %v6538 = vadd.f32 %v6506, 1e-06
      %v6539 = vadd.f32 %v6507, 1e-06
      %v6540 = vadd.f32 %v6508, 1e-06
      %v6541 = vadd.f32 %v6509, 1e-06
      %v6542 = vadd.f32 %v6510, 1e-06
      %v6543 = vadd.f32 %v6511, 1e-06
      %v6544 = vadd.f32 %v6512, 1e-06
      %v6545 = vadd.f32 %v6513, 1e-06
      %v6546 = vadd.f32 %v6514, 1e-06
      %v6547 = vadd.f32 %v6515, 1e-06
      %v6548 = vadd.f32 %v6516, 1e-06
      %v6549 = vadd.f32 %v6517, 1e-06
      %v6550 = vadd.f32 %v6518, 1e-06
      %v6551 = vadd.f32 %v6519, 1e-06
      %v6552 = vadd.f32 %v6520, 1e-06
      %v6553 = vadd.f32 %v6521, 1e-06
      %v6554 = vadd.f32 %v6522, 1e-06
      %v6555 = vadd.f32 %v6523, 1e-06
      %v6556 = vadd.f32 %v6524, 1e-06
      %v6557 = vadd.f32 %v6525, 1e-06
      %v6558 = vadd.f32 %v6526, 1e-06
      %v6559 = vrsqrt.pop %v6527
      %v6560 = vrsqrt.pop %v6528
      %v6561 = vrsqrt.pop %v6529
      %v6562 = vrsqrt.pop %v6530
      %v6563 = vrsqrt.pop %v6531
      %v6564 = vrsqrt.pop %v6532
      %v6565 = vrsqrt.pop %v6533
      %v6566 = vrsqrt.pop %v6534
      %v6567 = vrsqrt.pop %v6535
      %v6568 = vrsqrt.pop %v6536
      %v6569 = vrsqrt.pop %v6537
      %v6570 = vrsqrt.pop %v6538
      %v6571 = vrsqrt.pop %v6539
      %v6572 = vrsqrt.pop %v6540
      %v6573 = vrsqrt.pop %v6541
      %v6574 = vrsqrt.pop %v6542
      %v6575 = vrsqrt.pop %v6543
      %v6576 = vrsqrt.pop %v6544
      %v6577 = vrsqrt.pop %v6545
      %v6578 = vrsqrt.pop %v6546
      %v6579 = vrsqrt.pop %v6547
      %v6580 = vrsqrt.pop %v6548
      %v6581 = vrsqrt.pop %v6549
      %v6582 = vrsqrt.pop %v6550
      %v6583 = vrsqrt.pop %v6551
      %v6584 = vrsqrt.pop %v6552
      %v6585 = vrsqrt.pop %v6553
      %v6586 = vrsqrt.pop %v6554
      %v6587 = vrsqrt.pop %v6555
      %v6588 = vrsqrt.pop %v6556
      %v6589 = vrsqrt.pop %v6557
      %v6590 = vrsqrt.pop %v6558
      %v6591 = vmul.f32 %v6335, %v6559
      %v6592 = vmul.f32 %v6336, %v6560
      %v6593 = vmul.f32 %v6337, %v6561
      %v6594 = vmul.f32 %v6338, %v6562
      %v6595 = vmul.f32 %v6339, %v6563
      %v6596 = vmul.f32 %v6340, %v6564
      %v6597 = vmul.f32 %v6341, %v6565
      %v6598 = vmul.f32 %v6342, %v6566
      %v6599 = vmul.f32 %v6343, %v6567
      %v6600 = vmul.f32 %v6344, %v6568
      %v6601 = vmul.f32 %v6345, %v6569
      %v6602 = vmul.f32 %v6346, %v6570
      %v6603 = vmul.f32 %v6347, %v6571
      %v6604 = vmul.f32 %v6348, %v6572
      %v6605 = vmul.f32 %v6349, %v6573
      %v6606 = vmul.f32 %v6350, %v6574
      %v6607 = vmul.f32 %v6351, %v6575
      %v6608 = vmul.f32 %v6352, %v6576
      %v6609 = vmul.f32 %v6353, %v6577
      %v6610 = vmul.f32 %v6354, %v6578
      %v6611 = vmul.f32 %v6355, %v6579
      %v6612 = vmul.f32 %v6356, %v6580
      %v6613 = vmul.f32 %v6357, %v6581
      %v6614 = vmul.f32 %v6358, %v6582
      %v6615 = vmul.f32 %v6359, %v6583
      %v6616 = vmul.f32 %v6360, %v6584
      %v6617 = vmul.f32 %v6361, %v6585
      %v6618 = vmul.f32 %v6362, %v6586
      %v6619 = vmul.f32 %v6363, %v6587
      %v6620 = vmul.f32 %v6364, %v6588
      %v6621 = vmul.f32 %v6365, %v6589
      %v6622 = vmul.f32 %v6366, %v6590
      %v6623 = vld [vmem:[%s3] sm:$0x1]
      %v6625 = vlaneseq
      %v6626 = vshrl.u32 %v6625, 7
      %v6627 = vsub.s32 0, %v6626
      %v6628 = vrot.slane %v6623, %v6627
      %v6630 = vmul.f32 %v6591, %v6628
      %v6631 = vmul.f32 %v6592, %v6628
      %v6632 = vmul.f32 %v6593, %v6628
      %v6633 = vmul.f32 %v6594, %v6628
      %v6634 = vmul.f32 %v6595, %v6628
      %v6635 = vmul.f32 %v6596, %v6628
      %v6636 = vmul.f32 %v6597, %v6628
      %v6637 = vmul.f32 %v6598, %v6628
      %v6638 = vmul.f32 %v6599, %v6628
      %v6639 = vmul.f32 %v6600, %v6628
      %v6640 = vmul.f32 %v6601, %v6628
      %v6641 = vmul.f32 %v6602, %v6628
      %v6642 = vmul.f32 %v6603, %v6628
      %v6643 = vmul.f32 %v6604, %v6628
      %v6644 = vmul.f32 %v6605, %v6628
      %v6645 = vmul.f32 %v6606, %v6628
      %v6646 = vmul.f32 %v6607, %v6628
      %v6647 = vmul.f32 %v6608, %v6628
      %v6648 = vmul.f32 %v6609, %v6628
      %v6649 = vmul.f32 %v6610, %v6628
      %v6650 = vmul.f32 %v6611, %v6628
      %v6651 = vmul.f32 %v6612, %v6628
      %v6652 = vmul.f32 %v6613, %v6628
      %v6653 = vmul.f32 %v6614, %v6628
      %v6654 = vmul.f32 %v6615, %v6628
      %v6655 = vmul.f32 %v6616, %v6628
      %v6656 = vmul.f32 %v6617, %v6628
      %v6657 = vmul.f32 %v6618, %v6628
      %v6658 = vmul.f32 %v6619, %v6628
      %v6659 = vmul.f32 %v6620, %v6628
      %v6660 = vmul.f32 %v6621, %v6628
      %v6661 = vmul.f32 %v6622, %v6628
      %v6662 = vld [vmem:[%s4] sm:$0x1]
      %v6664 = vlaneseq
      %v6665 = vshrl.u32 %v6664, 7
      %v6666 = vsub.s32 0, %v6665
      %v6667 = vrot.slane %v6662, %v6666
      %v6669 = vadd.f32 %v6630, %v6667
      %v6670 = vadd.f32 %v6631, %v6667
      %v6671 = vadd.f32 %v6632, %v6667
      %v6672 = vadd.f32 %v6633, %v6667
      %v6673 = vadd.f32 %v6634, %v6667
      %v6674 = vadd.f32 %v6635, %v6667
      %v6675 = vadd.f32 %v6636, %v6667
      %v6676 = vadd.f32 %v6637, %v6667
      %v6677 = vadd.f32 %v6638, %v6667
      %v6678 = vadd.f32 %v6639, %v6667
      %v6679 = vadd.f32 %v6640, %v6667
      %v6680 = vadd.f32 %v6641, %v6667
      %v6681 = vadd.f32 %v6642, %v6667
      %v6682 = vadd.f32 %v6643, %v6667
      %v6683 = vadd.f32 %v6644, %v6667
      %v6684 = vadd.f32 %v6645, %v6667
      %v6685 = vadd.f32 %v6646, %v6667
      %v6686 = vadd.f32 %v6647, %v6667
      %v6687 = vadd.f32 %v6648, %v6667
      %v6688 = vadd.f32 %v6649, %v6667
      %v6689 = vadd.f32 %v6650, %v6667
      %v6690 = vadd.f32 %v6651, %v6667
      %v6691 = vadd.f32 %v6652, %v6667
      %v6692 = vadd.f32 %v6653, %v6667
      %v6693 = vadd.f32 %v6654, %v6667
      %v6694 = vadd.f32 %v6655, %v6667
      %v6695 = vadd.f32 %v6656, %v6667
      %v6696 = vadd.f32 %v6657, %v6667
      %v6697 = vadd.f32 %v6658, %v6667
      %v6698 = vadd.f32 %v6659, %v6667
      %v6699 = vadd.f32 %v6660, %v6667
      %v6700 = vadd.f32 %v6661, %v6667
      %v6701 = vpack.c.bf16 %v6670, %v6669
      %v6702 = vpack.c.bf16 %v6672, %v6671
      %v6703 = vpack.c.bf16 %v6674, %v6673
      %v6704 = vpack.c.bf16 %v6676, %v6675
      %v6705 = vpack.c.bf16 %v6678, %v6677
      %v6706 = vpack.c.bf16 %v6680, %v6679
      %v6707 = vpack.c.bf16 %v6682, %v6681
      %v6708 = vpack.c.bf16 %v6684, %v6683
      %v6709 = vpack.c.bf16 %v6686, %v6685
      %v6710 = vpack.c.bf16 %v6688, %v6687
      %v6711 = vpack.c.bf16 %v6690, %v6689
      %v6712 = vpack.c.bf16 %v6692, %v6691
      %v6713 = vpack.c.bf16 %v6694, %v6693
      %v6714 = vpack.c.bf16 %v6696, %v6695
      %v6715 = vpack.c.bf16 %v6698, %v6697
      %v6716 = vpack.c.bf16 %v6700, %v6699
      %v6717 = vld [vmem:[%s5] sm:$0xf]
      %v6718 = vld [vmem:[%s5 + $0x4] sm:$0xf]
      %v6719 = vld [vmem:[%s5 + $0x8] sm:$0xf]
      %v6720 = vld [vmem:[%s5 + $0xc] sm:$0xf]
      %v6721 = vld [vmem:[%s6] sm:$0x1]
      %v6723 = vlaneseq
      %v6724 = vshrl.u32 %v6723, 7
      %v6725 = vsub.s32 0, %v6724
      %v6726 = vrot.slane %v6721, %v6725
      %v6732 = vunpack.c.l.b16 %v6717
      %v6733 = vunpack.c.l.b16 %v6718
      %v6734 = vunpack.c.l.b16 %v6719
      %v6735 = vunpack.c.l.b16 %v6720
      %v6736 = vpack.c.b16 %v6733, %v6732
      %v6737 = vpack.c.b16 %v6735, %v6734
      %v6741 = vsel %vm6205, %v6701, 0
      %v6744 = vsel %vm6205, %v6702, 0
      %v6747 = vsel %vm6205, %v6703, 0
      %v6750 = vsel %vm6205, %v6704, 0
      %v6753 = vsel %vm6205, %v6705, 0
      %v6756 = vsel %vm6205, %v6706, 0
      %v6759 = vsel %vm6205, %v6707, 0
      %v6762 = vsel %vm6205, %v6708, 0
      %v6765 = vsel %vm6205, %v6709, 0
      %v6768 = vsel %vm6205, %v6710, 0
      %v6771 = vsel %vm6205, %v6711, 0
      %v6774 = vsel %vm6205, %v6712, 0
      %v6777 = vsel %vm6205, %v6713, 0
      %v6780 = vsel %vm6205, %v6714, 0
      %v6783 = vsel %vm6205, %v6715, 0
      %v6786 = vsel %vm6205, %v6716, 0
      %6788 = vmatprep.subr.bf16.mxu0 0
      %6789 = vmatpush1.bf16.msra.mxu0 %v6736
      %6790 = vmatprep.subr.bf16.mxu0 0
      %6791 = vmatpush1.bf16.msra.mxu0 %v6737
      %6792 = vmatprep.subr.bf16.mxu0 0
      %6793 = vmatpush1.bf16.msra.mxu0 0
      %6794 = vmatprep.subr.bf16.mxu0 0
      %6795 = vmatpush1.bf16.msra.mxu0 0
      %6796 = vmatprep.subr.bf16.mxu0 0
      %6797 = vmatpush1.bf16.msra.mxu0 0
      %6798 = vmatprep.subr.bf16.mxu0 0
      %6799 = vmatpush1.bf16.msra.mxu0 0
      %6800 = vmatprep.subr.bf16.mxu0 0
      %6801 = vmatpush1.bf16.msra.mxu0 0
      %6802 = vmatprep.subr.bf16.mxu0 0
      %6803 = vmatpush1.bf16.msra.mxu0 0
      %6804 = vmatprep.subr.bf16.mxu0 0
      %6805 = vmatpush1.bf16.msra.mxu0 0
      %6806 = vmatprep.subr.bf16.mxu0 0
      %6807 = vmatpush1.bf16.msra.mxu0 0
      %6808 = vmatprep.subr.bf16.mxu0 0
      %6809 = vmatpush1.bf16.msra.mxu0 0
      %6810 = vmatprep.subr.bf16.mxu0 0
      %6811 = vmatpush1.bf16.msra.mxu0 0
      %6812 = vmatprep.subr.bf16.mxu0 0
      %6813 = vmatpush1.bf16.msra.mxu0 0
      %6814 = vmatprep.subr.bf16.mxu0 0
      %6815 = vmatpush1.bf16.msra.mxu0 0
      %6816 = vmatprep.subr.bf16.mxu0 0
      %6817 = vmatpush1.bf16.msra.mxu0 0
      %6818 = vmatprep.subr.bf16.mxu0 0
      %6819 = vmatpush1.bf16.msra.mxu0 0
      %6820 = vmatprep.mubr.bf16.mxu0 0
      %6821 = vmatmul.mubr.bf16.gmra.mrb[0].mxu0 %v6741
      %v6822 = vpop.f32.mrb[0].mxu0
      %v6823 = vadd.f32 %v6726, %v6822
      %v6824 = vpop.f32.mrb[0].mxu0
      %v6825 = vpop.f32.mrb[0].mxu0
      %v6826 = vadd.f32 %v6726, %v6825
      %v6827 = vpop.f32.mrb[0].mxu0
      %6828 = vmatprep.mubr.bf16.mxu0 0
      %6829 = vmatmul.mubr.bf16.gmra.mrb[0].mxu0 %v6744
      %v6830 = vpop.f32.mrb[0].mxu0
      %v6831 = vadd.f32 %v6726, %v6830
      %v6832 = vpop.f32.mrb[0].mxu0
      %v6833 = vpop.f32.mrb[0].mxu0
      %v6834 = vadd.f32 %v6726, %v6833
      %v6835 = vpop.f32.mrb[0].mxu0
      %6836 = vmatprep.mubr.bf16.mxu0 0
      %6837 = vmatmul.mubr.bf16.gmra.mrb[0].mxu0 %v6747
      %v6838 = vpop.f32.mrb[0].mxu0
      %v6839 = vadd.f32 %v6726, %v6838
      %v6840 = vpop.f32.mrb[0].mxu0
      %v6841 = vpop.f32.mrb[0].mxu0
      %v6842 = vadd.f32 %v6726, %v6841
      %v6843 = vpop.f32.mrb[0].mxu0
      %6844 = vmatprep.mubr.bf16.mxu0 0
      %6845 = vmatmul.mubr.bf16.gmra.mrb[0].mxu0 %v6750
      %v6846 = vpop.f32.mrb[0].mxu0
      %v6847 = vadd.f32 %v6726, %v6846
      %v6848 = vpop.f32.mrb[0].mxu0
      %v6849 = vpop.f32.mrb[0].mxu0
      %v6850 = vadd.f32 %v6726, %v6849
      %v6851 = vpop.f32.mrb[0].mxu0
      %6852 = vmatprep.mubr.bf16.mxu0 0
      %6853 = vmatmul.mubr.bf16.gmra.mrb[0].mxu0 %v6753
      %v6854 = vpop.f32.mrb[0].mxu0
      %v6855 = vadd.f32 %v6726, %v6854
      %v6856 = vpop.f32.mrb[0].mxu0
      %v6857 = vpop.f32.mrb[0].mxu0
      %v6858 = vadd.f32 %v6726, %v6857
      %v6859 = vpop.f32.mrb[0].mxu0
      %6860 = vmatprep.mubr.bf16.mxu0 0
      %6861 = vmatmul.mubr.bf16.gmra.mrb[0].mxu0 %v6756
      %v6862 = vpop.f32.mrb[0].mxu0
      %v6863 = vadd.f32 %v6726, %v6862
      %v6864 = vpop.f32.mrb[0].mxu0
      %v6865 = vpop.f32.mrb[0].mxu0
      %v6866 = vadd.f32 %v6726, %v6865
      %v6867 = vpop.f32.mrb[0].mxu0
      %6868 = vmatprep.mubr.bf16.mxu0 0
      %6869 = vmatmul.mubr.bf16.gmra.mrb[0].mxu0 %v6759
      %v6870 = vpop.f32.mrb[0].mxu0
      %v6871 = vadd.f32 %v6726, %v6870
      %v6872 = vpop.f32.mrb[0].mxu0
      %v6873 = vpop.f32.mrb[0].mxu0
      %v6874 = vadd.f32 %v6726, %v6873
      %v6875 = vpop.f32.mrb[0].mxu0
      %6876 = vmatprep.mubr.bf16.mxu0 0
      %6877 = vmatmul.mubr.bf16.gmra.mrb[0].mxu0 %v6762
      %v6878 = vpop.f32.mrb[0].mxu0
      %v6879 = vadd.f32 %v6726, %v6878
      %v6880 = vpop.f32.mrb[0].mxu0
      %v6881 = vpop.f32.mrb[0].mxu0
      %v6882 = vadd.f32 %v6726, %v6881
      %v6883 = vpop.f32.mrb[0].mxu0
      %6884 = vmatprep.mubr.bf16.mxu0 0
      %6885 = vmatmul.mubr.bf16.gmra.mrb[0].mxu0 %v6765
      %v6886 = vpop.f32.mrb[0].mxu0
      %v6887 = vadd.f32 %v6726, %v6886
      %v6888 = vpop.f32.mrb[0].mxu0
      %v6889 = vpop.f32.mrb[0].mxu0
      %v6890 = vadd.f32 %v6726, %v6889
      %v6891 = vpop.f32.mrb[0].mxu0
      %6892 = vmatprep.mubr.bf16.mxu0 0
      %6893 = vmatmul.mubr.bf16.gmra.mrb[0].mxu0 %v6768
      %v6894 = vpop.f32.mrb[0].mxu0
      %v6895 = vadd.f32 %v6726, %v6894
      %v6896 = vpop.f32.mrb[0].mxu0
      %v6897 = vpop.f32.mrb[0].mxu0
      %v6898 = vadd.f32 %v6726, %v6897
      %v6899 = vpop.f32.mrb[0].mxu0
      %6900 = vmatprep.mubr.bf16.mxu0 0
      %6901 = vmatmul.mubr.bf16.gmra.mrb[0].mxu0 %v6771
      %v6902 = vpop.f32.mrb[0].mxu0
      %v6903 = vadd.f32 %v6726, %v6902
      %v6904 = vpop.f32.mrb[0].mxu0
      %v6905 = vpop.f32.mrb[0].mxu0
      %v6906 = vadd.f32 %v6726, %v6905
      %v6907 = vpop.f32.mrb[0].mxu0
      %6908 = vmatprep.mubr.bf16.mxu0 0
      %6909 = vmatmul.mubr.bf16.gmra.mrb[0].mxu0 %v6774
      %v6910 = vpop.f32.mrb[0].mxu0
      %v6911 = vadd.f32 %v6726, %v6910
      %v6912 = vpop.f32.mrb[0].mxu0
      %v6913 = vpop.f32.mrb[0].mxu0
      %v6914 = vadd.f32 %v6726, %v6913
      %v6915 = vpop.f32.mrb[0].mxu0
      %6916 = vmatprep.mubr.bf16.mxu0 0
      %6917 = vmatmul.mubr.bf16.gmra.mrb[0].mxu0 %v6777
      %v6918 = vpop.f32.mrb[0].mxu0
      %v6919 = vadd.f32 %v6726, %v6918
      %v6920 = vpop.f32.mrb[0].mxu0
      %v6921 = vpop.f32.mrb[0].mxu0
      %v6922 = vadd.f32 %v6726, %v6921
      %v6923 = vpop.f32.mrb[0].mxu0
      %6924 = vmatprep.mubr.bf16.mxu0 0
      %6925 = vmatmul.mubr.bf16.gmra.mrb[0].mxu0 %v6780
      %v6926 = vpop.f32.mrb[0].mxu0
      %v6927 = vadd.f32 %v6726, %v6926
      %v6928 = vpop.f32.mrb[0].mxu0
      %v6929 = vpop.f32.mrb[0].mxu0
      %v6930 = vadd.f32 %v6726, %v6929
      %v6931 = vpop.f32.mrb[0].mxu0
      %6932 = vmatprep.mubr.bf16.mxu0 0
      %6933 = vmatmul.mubr.bf16.gmra.mrb[0].mxu0 %v6783
      %v6934 = vpop.f32.mrb[0].mxu0
      %v6935 = vadd.f32 %v6726, %v6934
      %v6936 = vpop.f32.mrb[0].mxu0
      %v6937 = vpop.f32.mrb[0].mxu0
      %v6938 = vadd.f32 %v6726, %v6937
      %v6939 = vpop.f32.mrb[0].mxu0
      %6940 = vmatprep.mubr.bf16.mxu0 0
      %6941 = vmatmul.mubr.bf16.gmra.mrb[0].mxu0 %v6786
      %v6942 = vpop.f32.mrb[0].mxu0
      %v6943 = vadd.f32 %v6726, %v6942
      %v6944 = vpop.f32.mrb[0].mxu0
      %v6945 = vpop.f32.mrb[0].mxu0
      %v6946 = vadd.f32 %v6726, %v6945
      %v6947 = vpop.f32.mrb[0].mxu0
      %6948 = vdwg.mxu0
      %v6949 = vmul.f32 %v6823, 0.5
      %v6950 = vmul.f32 %v6826, 0.5
      %v6951 = vmul.f32 %v6831, 0.5
      %v6952 = vmul.f32 %v6834, 0.5
      %v6953 = vmul.f32 %v6839, 0.5
      %v6954 = vmul.f32 %v6842, 0.5
      %v6955 = vmul.f32 %v6847, 0.5
      %v6956 = vmul.f32 %v6850, 0.5
      %v6957 = vmul.f32 %v6855, 0.5
      %v6958 = vmul.f32 %v6858, 0.5
      %v6959 = vmul.f32 %v6863, 0.5
      %v6960 = vmul.f32 %v6866, 0.5
      %v6961 = vmul.f32 %v6871, 0.5
      %v6962 = vmul.f32 %v6874, 0.5
      %v6963 = vmul.f32 %v6879, 0.5
      %v6964 = vmul.f32 %v6882, 0.5
      %v6965 = vmul.f32 %v6887, 0.5
      %v6966 = vmul.f32 %v6890, 0.5
      %v6967 = vmul.f32 %v6895, 0.5
      %v6968 = vmul.f32 %v6898, 0.5
      %v6969 = vmul.f32 %v6903, 0.5
      %v6970 = vmul.f32 %v6906, 0.5
      %v6971 = vmul.f32 %v6911, 0.5
      %v6972 = vmul.f32 %v6914, 0.5
      %v6973 = vmul.f32 %v6919, 0.5
      %v6974 = vmul.f32 %v6922, 0.5
      %v6975 = vmul.f32 %v6927, 0.5
      %v6976 = vmul.f32 %v6930, 0.5
      %v6977 = vmul.f32 %v6935, 0.5
      %v6978 = vmul.f32 %v6938, 0.5
      %v6979 = vmul.f32 %v6943, 0.5
      %v6980 = vmul.f32 %v6946, 0.5
      %v6981 = vmul.f32 %v6823, %v6823
      %v6982 = vmul.f32 %v6826, %v6826
      %v6983 = vmul.f32 %v6831, %v6831
      %v6984 = vmul.f32 %v6834, %v6834
      %v6985 = vmul.f32 %v6839, %v6839
      %v6986 = vmul.f32 %v6842, %v6842
      %v6987 = vmul.f32 %v6847, %v6847
      %v6988 = vmul.f32 %v6850, %v6850
      %v6989 = vmul.f32 %v6855, %v6855
      %v6990 = vmul.f32 %v6858, %v6858
      %v6991 = vmul.f32 %v6863, %v6863
      %v6992 = vmul.f32 %v6866, %v6866
      %v6993 = vmul.f32 %v6871, %v6871
      %v6994 = vmul.f32 %v6874, %v6874
      %v6995 = vmul.f32 %v6879, %v6879
      %v6996 = vmul.f32 %v6882, %v6882
      %v6997 = vmul.f32 %v6887, %v6887
      %v6998 = vmul.f32 %v6890, %v6890
      %v6999 = vmul.f32 %v6895, %v6895
      %v7000 = vmul.f32 %v6898, %v6898
      %v7001 = vmul.f32 %v6903, %v6903
      %v7002 = vmul.f32 %v6906, %v6906
      %v7003 = vmul.f32 %v6911, %v6911
      %v7004 = vmul.f32 %v6914, %v6914
      %v7005 = vmul.f32 %v6919, %v6919
      %v7006 = vmul.f32 %v6922, %v6922
      %v7007 = vmul.f32 %v6927, %v6927
      %v7008 = vmul.f32 %v6930, %v6930
      %v7009 = vmul.f32 %v6935, %v6935
      %v7010 = vmul.f32 %v6938, %v6938
      %v7011 = vmul.f32 %v6943, %v6943
      %v7012 = vmul.f32 %v6946, %v6946
      %v7013 = vmul.f32 %v6981, %v6823
      %v7014 = vmul.f32 %v6982, %v6826
      %v7015 = vmul.f32 %v6983, %v6831
      %v7016 = vmul.f32 %v6984, %v6834
      %v7017 = vmul.f32 %v6985, %v6839
      %v7018 = vmul.f32 %v6986, %v6842
      %v7019 = vmul.f32 %v6987, %v6847
      %v7020 = vmul.f32 %v6988, %v6850
      %v7021 = vmul.f32 %v6989, %v6855
      %v7022 = vmul.f32 %v6990, %v6858
      %v7023 = vmul.f32 %v6991, %v6863
      %v7024 = vmul.f32 %v6992, %v6866
      %v7025 = vmul.f32 %v6993, %v6871
      %v7026 = vmul.f32 %v6994, %v6874
      %v7027 = vmul.f32 %v6995, %v6879
      %v7028 = vmul.f32 %v6996, %v6882
      %v7029 = vmul.f32 %v6997, %v6887
      %v7030 = vmul.f32 %v6998, %v6890
      %v7031 = vmul.f32 %v6999, %v6895
      %v7032 = vmul.f32 %v7000, %v6898
      %v7033 = vmul.f32 %v7001, %v6903
      %v7034 = vmul.f32 %v7002, %v6906
      %v7035 = vmul.f32 %v7003, %v6911
      %v7036 = vmul.f32 %v7004, %v6914
      %v7037 = vmul.f32 %v7005, %v6919
      %v7038 = vmul.f32 %v7006, %v6922
      %v7039 = vmul.f32 %v7007, %v6927
      %v7040 = vmul.f32 %v7008, %v6930
      %v7041 = vmul.f32 %v7009, %v6935
      %v7042 = vmul.f32 %v7010, %v6938
      %v7043 = vmul.f32 %v7011, %v6943
      %v7044 = vmul.f32 %v7012, %v6946
      %v7045 = vmul.f32 %v7013, 0.044715
      %v7046 = vmul.f32 %v7014, 0.044715
      %v7047 = vmul.f32 %v7015, 0.044715
      %v7048 = vmul.f32 %v7016, 0.044715
      %v7049 = vmul.f32 %v7017, 0.044715
      %v7050 = vmul.f32 %v7018, 0.044715
      %v7051 = vmul.f32 %v7019, 0.044715
      %v7052 = vmul.f32 %v7020, 0.044715
      %v7053 = vmul.f32 %v7021, 0.044715
      %v7054 = vmul.f32 %v7022, 0.044715
      %v7055 = vmul.f32 %v7023, 0.044715
      %v7056 = vmul.f32 %v7024, 0.044715
      %v7057 = vmul.f32 %v7025, 0.044715
      %v7058 = vmul.f32 %v7026, 0.044715
      %v7059 = vmul.f32 %v7027, 0.044715
      %v7060 = vmul.f32 %v7028, 0.044715
      %v7061 = vmul.f32 %v7029, 0.044715
      %v7062 = vmul.f32 %v7030, 0.044715
      %v7063 = vmul.f32 %v7031, 0.044715
      %v7064 = vmul.f32 %v7032, 0.044715
      %v7065 = vmul.f32 %v7033, 0.044715
      %v7066 = vmul.f32 %v7034, 0.044715
      %v7067 = vmul.f32 %v7035, 0.044715
      %v7068 = vmul.f32 %v7036, 0.044715
      %v7069 = vmul.f32 %v7037, 0.044715
      %v7070 = vmul.f32 %v7038, 0.044715
      %v7071 = vmul.f32 %v7039, 0.044715
      %v7072 = vmul.f32 %v7040, 0.044715
      %v7073 = vmul.f32 %v7041, 0.044715
      %v7074 = vmul.f32 %v7042, 0.044715
      %v7075 = vmul.f32 %v7043, 0.044715
      %v7076 = vmul.f32 %v7044, 0.044715
      %v7077 = vadd.f32 %v6823, %v7045
      %v7078 = vadd.f32 %v6826, %v7046
      %v7079 = vadd.f32 %v6831, %v7047
      %v7080 = vadd.f32 %v6834, %v7048
      %v7081 = vadd.f32 %v6839, %v7049
      %v7082 = vadd.f32 %v6842, %v7050
      %v7083 = vadd.f32 %v6847, %v7051
      %v7084 = vadd.f32 %v6850, %v7052
      %v7085 = vadd.f32 %v6855, %v7053
      %v7086 = vadd.f32 %v6858, %v7054
      %v7087 = vadd.f32 %v6863, %v7055
      %v7088 = vadd.f32 %v6866, %v7056
      %v7089 = vadd.f32 %v6871, %v7057
      %v7090 = vadd.f32 %v6874, %v7058
      %v7091 = vadd.f32 %v6879, %v7059
      %v7092 = vadd.f32 %v6882, %v7060
      %v7093 = vadd.f32 %v6887, %v7061
      %v7094 = vadd.f32 %v6890, %v7062
      %v7095 = vadd.f32 %v6895, %v7063
      %v7096 = vadd.f32 %v6898, %v7064
      %v7097 = vadd.f32 %v6903, %v7065
      %v7098 = vadd.f32 %v6906, %v7066
      %v7099 = vadd.f32 %v6911, %v7067
      %v7100 = vadd.f32 %v6914, %v7068
      %v7101 = vadd.f32 %v6919, %v7069
      %v7102 = vadd.f32 %v6922, %v7070
      %v7103 = vadd.f32 %v6927, %v7071
      %v7104 = vadd.f32 %v6930, %v7072
      %v7105 = vadd.f32 %v6935, %v7073
      %v7106 = vadd.f32 %v6938, %v7074
      %v7107 = vadd.f32 %v6943, %v7075
      %v7108 = vadd.f32 %v6946, %v7076
      %v7109 = vmul.f32 %v7077, 0.7978846
      %v7110 = vmul.f32 %v7078, 0.7978846
      %v7111 = vmul.f32 %v7079, 0.7978846
      %v7112 = vmul.f32 %v7080, 0.7978846
      %v7113 = vmul.f32 %v7081, 0.7978846
      %v7114 = vmul.f32 %v7082, 0.7978846
      %v7115 = vmul.f32 %v7083, 0.7978846
      %v7116 = vmul.f32 %v7084, 0.7978846
      %v7117 = vmul.f32 %v7085, 0.7978846
      %v7118 = vmul.f32 %v7086, 0.7978846
      %v7119 = vmul.f32 %v7087, 0.7978846
      %v7120 = vmul.f32 %v7088, 0.7978846
      %v7121 = vmul.f32 %v7089, 0.7978846
      %v7122 = vmul.f32 %v7090, 0.7978846
      %v7123 = vmul.f32 %v7091, 0.7978846
      %v7124 = vmul.f32 %v7092, 0.7978846
      %v7125 = vmul.f32 %v7093, 0.7978846
      %v7126 = vmul.f32 %v7094, 0.7978846
      %v7127 = vmul.f32 %v7095, 0.7978846
      %v7128 = vmul.f32 %v7096, 0.7978846
      %v7129 = vmul.f32 %v7097, 0.7978846
      %v7130 = vmul.f32 %v7098, 0.7978846
      %v7131 = vmul.f32 %v7099, 0.7978846
      %v7132 = vmul.f32 %v7100, 0.7978846
      %v7133 = vmul.f32 %v7101, 0.7978846
      %v7134 = vmul.f32 %v7102, 0.7978846
      %v7135 = vmul.f32 %v7103, 0.7978846
      %v7136 = vmul.f32 %v7104, 0.7978846
      %v7137 = vmul.f32 %v7105, 0.7978846
      %v7138 = vmul.f32 %v7106, 0.7978846
      %v7139 = vmul.f32 %v7107, 0.7978846
      %v7140 = vmul.f32 %v7108, 0.7978846
      %v7141 = vtanh.pop %v7109
      %v7142 = vtanh.pop %v7110
      %v7143 = vtanh.pop %v7111
      %v7144 = vtanh.pop %v7112
      %v7145 = vtanh.pop %v7113
      %v7146 = vtanh.pop %v7114
      %v7147 = vtanh.pop %v7115
      %v7148 = vtanh.pop %v7116
      %v7149 = vtanh.pop %v7117
      %v7150 = vtanh.pop %v7118
      %v7151 = vtanh.pop %v7119
      %v7152 = vtanh.pop %v7120
      %v7153 = vtanh.pop %v7121
      %v7154 = vtanh.pop %v7122
      %v7155 = vtanh.pop %v7123
      %v7156 = vtanh.pop %v7124
      %v7157 = vtanh.pop %v7125
      %v7158 = vtanh.pop %v7126
      %v7159 = vtanh.pop %v7127
      %v7160 = vtanh.pop %v7128
      %v7161 = vtanh.pop %v7129
      %v7162 = vtanh.pop %v7130
      %v7163 = vtanh.pop %v7131
      %v7164 = vtanh.pop %v7132
      %v7165 = vtanh.pop %v7133
      %v7166 = vtanh.pop %v7134
      %v7167 = vtanh.pop %v7135
      %v7168 = vtanh.pop %v7136
      %v7169 = vtanh.pop %v7137
      %v7170 = vtanh.pop %v7138
      %v7171 = vtanh.pop %v7139
      %v7172 = vtanh.pop %v7140
      %v7173 = vadd.f32 %v7141, 1.0
      %v7174 = vadd.f32 %v7142, 1.0
      %v7175 = vadd.f32 %v7143, 1.0
      %v7176 = vadd.f32 %v7144, 1.0
      %v7177 = vadd.f32 %v7145, 1.0
      %v7178 = vadd.f32 %v7146, 1.0
      %v7179 = vadd.f32 %v7147, 1.0
      %v7180 = vadd.f32 %v7148, 1.0
      %v7181 = vadd.f32 %v7149, 1.0
      %v7182 = vadd.f32 %v7150, 1.0
      %v7183 = vadd.f32 %v7151, 1.0
      %v7184 = vadd.f32 %v7152, 1.0
      %v7185 = vadd.f32 %v7153, 1.0
      %v7186 = vadd.f32 %v7154, 1.0
      %v7187 = vadd.f32 %v7155, 1.0
      %v7188 = vadd.f32 %v7156, 1.0
      %v7189 = vadd.f32 %v7157, 1.0
      %v7190 = vadd.f32 %v7158, 1.0
      %v7191 = vadd.f32 %v7159, 1.0
      %v7192 = vadd.f32 %v7160, 1.0
      %v7193 = vadd.f32 %v7161, 1.0
      %v7194 = vadd.f32 %v7162, 1.0
      %v7195 = vadd.f32 %v7163, 1.0
      %v7196 = vadd.f32 %v7164, 1.0
      %v7197 = vadd.f32 %v7165, 1.0
      %v7198 = vadd.f32 %v7166, 1.0
      %v7199 = vadd.f32 %v7167, 1.0
      %v7200 = vadd.f32 %v7168, 1.0
      %v7201 = vadd.f32 %v7169, 1.0
      %v7202 = vadd.f32 %v7170, 1.0
      %v7203 = vadd.f32 %v7171, 1.0
      %v7204 = vadd.f32 %v7172, 1.0
      %v7205 = vmul.f32 %v6949, %v7173
      %v7206 = vmul.f32 %v6950, %v7174
      %v7207 = vmul.f32 %v6951, %v7175
      %v7208 = vmul.f32 %v6952, %v7176
      %v7209 = vmul.f32 %v6953, %v7177
      %v7210 = vmul.f32 %v6954, %v7178
      %v7211 = vmul.f32 %v6955, %v7179
      %v7212 = vmul.f32 %v6956, %v7180
      %v7213 = vmul.f32 %v6957, %v7181
      %v7214 = vmul.f32 %v6958, %v7182
      %v7215 = vmul.f32 %v6959, %v7183
      %v7216 = vmul.f32 %v6960, %v7184
      %v7217 = vmul.f32 %v6961, %v7185
      %v7218 = vmul.f32 %v6962, %v7186
      %v7219 = vmul.f32 %v6963, %v7187
      %v7220 = vmul.f32 %v6964, %v7188
      %v7221 = vmul.f32 %v6965, %v7189
      %v7222 = vmul.f32 %v6966, %v7190
      %v7223 = vmul.f32 %v6967, %v7191
      %v7224 = vmul.f32 %v6968, %v7192
      %v7225 = vmul.f32 %v6969, %v7193
      %v7226 = vmul.f32 %v6970, %v7194
      %v7227 = vmul.f32 %v6971, %v7195
      %v7228 = vmul.f32 %v6972, %v7196
      %v7229 = vmul.f32 %v6973, %v7197
      %v7230 = vmul.f32 %v6974, %v7198
      %v7231 = vmul.f32 %v6975, %v7199
      %v7232 = vmul.f32 %v6976, %v7200
      %v7233 = vmul.f32 %v6977, %v7201
      %v7234 = vmul.f32 %v6978, %v7202
      %v7235 = vmul.f32 %v6979, %v7203
      %v7236 = vmul.f32 %v6980, %v7204
      %v7237 = vpack.c.bf16 %v7206, %v7205
      %v7238 = vpack.c.bf16 %v7208, %v7207
      %v7239 = vpack.c.bf16 %v7210, %v7209
      %v7240 = vpack.c.bf16 %v7212, %v7211
      %v7241 = vpack.c.bf16 %v7214, %v7213
      %v7242 = vpack.c.bf16 %v7216, %v7215
      %v7243 = vpack.c.bf16 %v7218, %v7217
      %v7244 = vpack.c.bf16 %v7220, %v7219
      %v7245 = vpack.c.bf16 %v7222, %v7221
      %v7246 = vpack.c.bf16 %v7224, %v7223
      %v7247 = vpack.c.bf16 %v7226, %v7225
      %v7248 = vpack.c.bf16 %v7228, %v7227
      %v7249 = vpack.c.bf16 %v7230, %v7229
      %v7250 = vpack.c.bf16 %v7232, %v7231
      %v7251 = vpack.c.bf16 %v7234, %v7233
      %v7252 = vpack.c.bf16 %v7236, %v7235
      %v7253 = vld [vmem:[%s7] sm:$0xf]
      %v7254 = vld [vmem:[%s7 + $0x4] sm:$0xf]
      %v7255 = vld [vmem:[%s7 + $0x8] sm:$0xf]
      %v7256 = vld [vmem:[%s7 + $0xc] sm:$0xf]
      %v7257 = vld [vmem:[%s7 + $0x10] sm:$0xf]
      %v7258 = vld [vmem:[%s7 + $0x14] sm:$0xf]
      %v7259 = vld [vmem:[%s7 + $0x18] sm:$0xf]
      %v7260 = vld [vmem:[%s7 + $0x1c] sm:$0xf]
      %v7261 = vld [vmem:[%s7 + $0x20] sm:$0xf]
      %v7262 = vld [vmem:[%s7 + $0x24] sm:$0xf]
      %v7263 = vld [vmem:[%s7 + $0x28] sm:$0xf]
      %v7264 = vld [vmem:[%s7 + $0x2c] sm:$0xf]
      %v7265 = vld [vmem:[%s7 + $0x30] sm:$0xf]
      %v7266 = vld [vmem:[%s7 + $0x34] sm:$0xf]
      %v7267 = vld [vmem:[%s7 + $0x38] sm:$0xf]
      %v7268 = vld [vmem:[%s7 + $0x3c] sm:$0xf]
      %v7269 = vld [vmem:[%s8] sm:$0x1]
      %v7271 = vlaneseq
      %v7272 = vshrl.u32 %v7271, 7
      %v7273 = vsub.s32 0, %v7272
      %v7274 = vrot.slane %v7269, %v7273
      %v7292 = vunpack.c.l.b16 %v7253
      %v7293 = vunpack.c.l.b16 %v7254
      %v7294 = vunpack.c.l.b16 %v7255
      %v7295 = vunpack.c.l.b16 %v7256
      %v7296 = vunpack.c.l.b16 %v7257
      %v7297 = vunpack.c.l.b16 %v7258
      %v7298 = vunpack.c.l.b16 %v7259
      %v7299 = vunpack.c.l.b16 %v7260
      %v7300 = vunpack.c.l.b16 %v7261
      %v7301 = vunpack.c.l.b16 %v7262
      %v7302 = vunpack.c.l.b16 %v7263
      %v7303 = vunpack.c.l.b16 %v7264
      %v7304 = vunpack.c.l.b16 %v7265
      %v7305 = vunpack.c.l.b16 %v7266
      %v7306 = vunpack.c.l.b16 %v7267
      %v7307 = vunpack.c.l.b16 %v7268
      %v7308 = vpack.c.b16 %v7293, %v7292
      %v7309 = vpack.c.b16 %v7295, %v7294
      %v7310 = vpack.c.b16 %v7297, %v7296
      %v7311 = vpack.c.b16 %v7299, %v7298
      %v7312 = vpack.c.b16 %v7301, %v7300
      %v7313 = vpack.c.b16 %v7303, %v7302
      %v7314 = vpack.c.b16 %v7305, %v7304
      %v7315 = vpack.c.b16 %v7307, %v7306
      %7324 = vmatprep.subr.bf16.mxu0 0
      %7325 = vmatpush1.bf16.msra.mxu0 %v7308
      %7326 = vmatprep.subr.bf16.mxu0 0
      %7327 = vmatpush1.bf16.msra.mxu0 %v7309
      %7328 = vmatprep.subr.bf16.mxu0 0
      %7329 = vmatpush1.bf16.msra.mxu0 %v7310
      %7330 = vmatprep.subr.bf16.mxu0 0
      %7331 = vmatpush1.bf16.msra.mxu0 %v7311
      %7332 = vmatprep.subr.bf16.mxu0 0
      %7333 = vmatpush1.bf16.msra.mxu0 %v7312
      %7334 = vmatprep.subr.bf16.mxu0 0
      %7335 = vmatpush1.bf16.msra.mxu0 %v7313
      %7336 = vmatprep.subr.bf16.mxu0 0
      %7337 = vmatpush1.bf16.msra.mxu0 %v7314
      %7338 = vmatprep.subr.bf16.mxu0 0
      %7339 = vmatpush1.bf16.msra.mxu0 %v7315
      %7340 = vmatprep.subr.bf16.mxu0 0
      %7341 = vmatpush1.bf16.msra.mxu0 0
      %7342 = vmatprep.subr.bf16.mxu0 0
      %7343 = vmatpush1.bf16.msra.mxu0 0
      %7344 = vmatprep.subr.bf16.mxu0 0
      %7345 = vmatpush1.bf16.msra.mxu0 0
      %7346 = vmatprep.subr.bf16.mxu0 0
      %7347 = vmatpush1.bf16.msra.mxu0 0
      %7348 = vmatprep.subr.bf16.mxu0 0
      %7349 = vmatpush1.bf16.msra.mxu0 0
      %7350 = vmatprep.subr.bf16.mxu0 0
      %7351 = vmatpush1.bf16.msra.mxu0 0
      %7352 = vmatprep.subr.bf16.mxu0 0
      %7353 = vmatpush1.bf16.msra.mxu0 0
      %7354 = vmatprep.subr.bf16.mxu0 0
      %7355 = vmatpush1.bf16.msra.mxu0 0
      %7356 = vmatprep.mubr.bf16.mxu0 0
      %7357 = vmatmul.mubr.bf16.gmra.mrb[0].mxu0 %v7237
      %v7358 = vpop.f32.mrb[0].mxu0
      %v7359 = vadd.f32 %v7274, %v7358
      %v7360 = vpop.f32.mrb[0].mxu0
      %v7361 = vpop.f32.mrb[0].mxu0
      %v7362 = vadd.f32 %v7274, %v7361
      %v7363 = vpop.f32.mrb[0].mxu0
      %7364 = vmatprep.mubr.bf16.mxu0 0
      %7365 = vmatmul.mubr.bf16.gmra.mrb[0].mxu0 %v7238
      %v7366 = vpop.f32.mrb[0].mxu0
      %v7367 = vadd.f32 %v7274, %v7366
      %v7368 = vpop.f32.mrb[0].mxu0
      %v7369 = vpop.f32.mrb[0].mxu0
      %v7370 = vadd.f32 %v7274, %v7369
      %v7371 = vpop.f32.mrb[0].mxu0
      %7372 = vmatprep.mubr.bf16.mxu0 0
      %7373 = vmatmul.mubr.bf16.gmra.mrb[0].mxu0 %v7239
      %v7374 = vpop.f32.mrb[0].mxu0
      %v7375 = vadd.f32 %v7274, %v7374
      %v7376 = vpop.f32.mrb[0].mxu0
      %v7377 = vpop.f32.mrb[0].mxu0
      %v7378 = vadd.f32 %v7274, %v7377
      %v7379 = vpop.f32.mrb[0].mxu0
      %7380 = vmatprep.mubr.bf16.mxu0 0
      %7381 = vmatmul.mubr.bf16.gmra.mrb[0].mxu0 %v7240
      %v7382 = vpop.f32.mrb[0].mxu0
      %v7383 = vadd.f32 %v7274, %v7382
      %v7384 = vpop.f32.mrb[0].mxu0
      %v7385 = vpop.f32.mrb[0].mxu0
      %v7386 = vadd.f32 %v7274, %v7385
      %v7387 = vpop.f32.mrb[0].mxu0
      %7388 = vmatprep.mubr.bf16.mxu0 0
      %7389 = vmatmul.mubr.bf16.gmra.mrb[0].mxu0 %v7241
      %v7390 = vpop.f32.mrb[0].mxu0
      %v7391 = vadd.f32 %v7274, %v7390
      %v7392 = vpop.f32.mrb[0].mxu0
      %v7393 = vpop.f32.mrb[0].mxu0
      %v7394 = vadd.f32 %v7274, %v7393
      %v7395 = vpop.f32.mrb[0].mxu0
      %7396 = vmatprep.mubr.bf16.mxu0 0
      %7397 = vmatmul.mubr.bf16.gmra.mrb[0].mxu0 %v7242
      %v7398 = vpop.f32.mrb[0].mxu0
      %v7399 = vadd.f32 %v7274, %v7398
      %v7400 = vpop.f32.mrb[0].mxu0
      %v7401 = vpop.f32.mrb[0].mxu0
      %v7402 = vadd.f32 %v7274, %v7401
      %v7403 = vpop.f32.mrb[0].mxu0
      %7404 = vmatprep.mubr.bf16.mxu0 0
      %7405 = vmatmul.mubr.bf16.gmra.mrb[0].mxu0 %v7243
      %v7406 = vpop.f32.mrb[0].mxu0
      %v7407 = vadd.f32 %v7274, %v7406
      %v7408 = vpop.f32.mrb[0].mxu0
      %v7409 = vpop.f32.mrb[0].mxu0
      %v7410 = vadd.f32 %v7274, %v7409
      %v7411 = vpop.f32.mrb[0].mxu0
      %7412 = vmatprep.mubr.bf16.mxu0 0
      %7413 = vmatmul.mubr.bf16.gmra.mrb[0].mxu0 %v7244
      %v7414 = vpop.f32.mrb[0].mxu0
      %v7415 = vadd.f32 %v7274, %v7414
      %v7416 = vpop.f32.mrb[0].mxu0
      %v7417 = vpop.f32.mrb[0].mxu0
      %v7418 = vadd.f32 %v7274, %v7417
      %v7419 = vpop.f32.mrb[0].mxu0
      %7420 = vmatprep.mubr.bf16.mxu0 0
      %7421 = vmatmul.mubr.bf16.gmra.mrb[0].mxu0 %v7245
      %v7422 = vpop.f32.mrb[0].mxu0
      %v7423 = vadd.f32 %v7274, %v7422
      %v7424 = vpop.f32.mrb[0].mxu0
      %v7425 = vpop.f32.mrb[0].mxu0
      %v7426 = vadd.f32 %v7274, %v7425
      %v7427 = vpop.f32.mrb[0].mxu0
      %7428 = vmatprep.mubr.bf16.mxu0 0
      %7429 = vmatmul.mubr.bf16.gmra.mrb[0].mxu0 %v7246
      %v7430 = vpop.f32.mrb[0].mxu0
      %v7431 = vadd.f32 %v7274, %v7430
      %v7432 = vpop.f32.mrb[0].mxu0
      %v7433 = vpop.f32.mrb[0].mxu0
      %v7434 = vadd.f32 %v7274, %v7433
      %v7435 = vpop.f32.mrb[0].mxu0
      %7436 = vmatprep.mubr.bf16.mxu0 0
      %7437 = vmatmul.mubr.bf16.gmra.mrb[0].mxu0 %v7247
      %v7438 = vpop.f32.mrb[0].mxu0
      %v7439 = vadd.f32 %v7274, %v7438
      %v7440 = vpop.f32.mrb[0].mxu0
      %v7441 = vpop.f32.mrb[0].mxu0
      %v7442 = vadd.f32 %v7274, %v7441
      %v7443 = vpop.f32.mrb[0].mxu0
      %7444 = vmatprep.mubr.bf16.mxu0 0
      %7445 = vmatmul.mubr.bf16.gmra.mrb[0].mxu0 %v7248
      %v7446 = vpop.f32.mrb[0].mxu0
      %v7447 = vadd.f32 %v7274, %v7446
      %v7448 = vpop.f32.mrb[0].mxu0
      %v7449 = vpop.f32.mrb[0].mxu0
      %v7450 = vadd.f32 %v7274, %v7449
      %v7451 = vpop.f32.mrb[0].mxu0
      %7452 = vmatprep.mubr.bf16.mxu0 0
      %7453 = vmatmul.mubr.bf16.gmra.mrb[0].mxu0 %v7249
      %v7454 = vpop.f32.mrb[0].mxu0
      %v7455 = vadd.f32 %v7274, %v7454
      %v7456 = vpop.f32.mrb[0].mxu0
      %v7457 = vpop.f32.mrb[0].mxu0
      %v7458 = vadd.f32 %v7274, %v7457
      %v7459 = vpop.f32.mrb[0].mxu0
      %7460 = vmatprep.mubr.bf16.mxu0 0
      %7461 = vmatmul.mubr.bf16.gmra.mrb[0].mxu0 %v7250
      %v7462 = vpop.f32.mrb[0].mxu0
      %v7463 = vadd.f32 %v7274, %v7462
      %v7464 = vpop.f32.mrb[0].mxu0
      %v7465 = vpop.f32.mrb[0].mxu0
      %v7466 = vadd.f32 %v7274, %v7465
      %v7467 = vpop.f32.mrb[0].mxu0
      %7468 = vmatprep.mubr.bf16.mxu0 0
      %7469 = vmatmul.mubr.bf16.gmra.mrb[0].mxu0 %v7251
      %v7470 = vpop.f32.mrb[0].mxu0
      %v7471 = vadd.f32 %v7274, %v7470
      %v7472 = vpop.f32.mrb[0].mxu0
      %v7473 = vpop.f32.mrb[0].mxu0
      %v7474 = vadd.f32 %v7274, %v7473
      %v7475 = vpop.f32.mrb[0].mxu0
      %7476 = vmatprep.mubr.bf16.mxu0 0
      %7477 = vmatmul.mubr.bf16.gmra.mrb[0].mxu0 %v7252
      %v7478 = vpop.f32.mrb[0].mxu0
      %v7479 = vadd.f32 %v7274, %v7478
      %v7480 = vpop.f32.mrb[0].mxu0
      %v7481 = vpop.f32.mrb[0].mxu0
      %v7482 = vadd.f32 %v7274, %v7481
      %v7483 = vpop.f32.mrb[0].mxu0
      %7484 = vdwg.mxu0
      %v7485 = vld [vmem:[%s9] sm:$0x1]
      %v7487 = vlaneseq
      %v7488 = vshrl.u32 %v7487, 7
      %v7489 = vsub.s32 0, %v7488
      %v7490 = vrot.slane %v7485, %v7489
      %v7492 = vmul.f32 %v7490, %v7359
      %v7493 = vmul.f32 %v7490, %v7362
      %v7494 = vmul.f32 %v7490, %v7367
      %v7495 = vmul.f32 %v7490, %v7370
      %v7496 = vmul.f32 %v7490, %v7375
      %v7497 = vmul.f32 %v7490, %v7378
      %v7498 = vmul.f32 %v7490, %v7383
      %v7499 = vmul.f32 %v7490, %v7386
      %v7500 = vmul.f32 %v7490, %v7391
      %v7501 = vmul.f32 %v7490, %v7394
      %v7502 = vmul.f32 %v7490, %v7399
      %v7503 = vmul.f32 %v7490, %v7402
      %v7504 = vmul.f32 %v7490, %v7407
      %v7505 = vmul.f32 %v7490, %v7410
      %v7506 = vmul.f32 %v7490, %v7415
      %v7507 = vmul.f32 %v7490, %v7418
      %v7508 = vmul.f32 %v7490, %v7423
      %v7509 = vmul.f32 %v7490, %v7426
      %v7510 = vmul.f32 %v7490, %v7431
      %v7511 = vmul.f32 %v7490, %v7434
      %v7512 = vmul.f32 %v7490, %v7439
      %v7513 = vmul.f32 %v7490, %v7442
      %v7514 = vmul.f32 %v7490, %v7447
      %v7515 = vmul.f32 %v7490, %v7450
      %v7516 = vmul.f32 %v7490, %v7455
      %v7517 = vmul.f32 %v7490, %v7458
      %v7518 = vmul.f32 %v7490, %v7463
      %v7519 = vmul.f32 %v7490, %v7466
      %v7520 = vmul.f32 %v7490, %v7471
      %v7521 = vmul.f32 %v7490, %v7474
      %v7522 = vmul.f32 %v7490, %v7479
      %v7523 = vmul.f32 %v7490, %v7482
      %v7524 = vadd.f32 %v504, %v7492
      %v7525 = vadd.f32 %v506, %v7493
      %v7526 = vadd.f32 %v509, %v7494
      %v7527 = vadd.f32 %v511, %v7495
      %v7528 = vadd.f32 %v514, %v7496
      %v7529 = vadd.f32 %v516, %v7497
      %v7530 = vadd.f32 %v519, %v7498
      %v7531 = vadd.f32 %v521, %v7499
      %v7532 = vadd.f32 %v524, %v7500
      %v7533 = vadd.f32 %v526, %v7501
      %v7534 = vadd.f32 %v529, %v7502
      %v7535 = vadd.f32 %v531, %v7503
      %v7536 = vadd.f32 %v534, %v7504
      %v7537 = vadd.f32 %v536, %v7505
      %v7538 = vadd.f32 %v539, %v7506
      %v7539 = vadd.f32 %v541, %v7507
      %v7540 = vadd.f32 %v544, %v7508
      %v7541 = vadd.f32 %v546, %v7509
      %v7542 = vadd.f32 %v549, %v7510
      %v7543 = vadd.f32 %v551, %v7511
      %v7544 = vadd.f32 %v554, %v7512
      %v7545 = vadd.f32 %v556, %v7513
      %v7546 = vadd.f32 %v559, %v7514
      %v7547 = vadd.f32 %v561, %v7515
      %v7548 = vadd.f32 %v564, %v7516
      %v7549 = vadd.f32 %v566, %v7517
      %v7550 = vadd.f32 %v569, %v7518
      %v7551 = vadd.f32 %v571, %v7519
      %v7552 = vadd.f32 %v574, %v7520
      %v7553 = vadd.f32 %v576, %v7521
      %v7554 = vadd.f32 %v579, %v7522
      %v7555 = vadd.f32 %v581, %v7523
      %7556 = vxpose.xlu0.b32.start [1/16] %v7524, 128
      %7557 = vxpose.xlu0.b32.cont [2/16] %v7525, 128
      %7558 = vxpose.xlu0.b32.cont [3/16] %v7526, 128
      %7559 = vxpose.xlu0.b32.cont [4/16] %v7527, 128
      %7560 = vxpose.xlu0.b32.cont [5/16] %v7528, 128
      %7561 = vxpose.xlu0.b32.cont [6/16] %v7529, 128
      %7562 = vxpose.xlu0.b32.cont [7/16] %v7530, 128
      %7563 = vxpose.xlu0.b32.cont [8/16] %v7531, 128
      %7564 = vxpose.xlu0.b32.cont [9/16] %v7532, 128
      %7565 = vxpose.xlu0.b32.cont [10/16] %v7533, 128
      %7566 = vxpose.xlu0.b32.cont [11/16] %v7534, 128
      %7567 = vxpose.xlu0.b32.cont [12/16] %v7535, 128
      %7568 = vxpose.xlu0.b32.cont [13/16] %v7536, 128
      %7569 = vxpose.xlu0.b32.cont [14/16] %v7537, 128
      %7570 = vxpose.xlu0.b32.cont [15/16] %v7538, 128
      %7571 = vxpose.xlu0.b32.end [16/16] %v7539, 128
      %v7572 = vpop.trf.xlu0
      %v7573 = vpop.trf.xlu0
      %v7574 = vpop.trf.xlu0
      %v7575 = vpop.trf.xlu0
      %v7576 = vpop.trf.xlu0
      %v7577 = vpop.trf.xlu0
      %v7578 = vpop.trf.xlu0
      %v7579 = vpop.trf.xlu0
      %v7580 = vpop.trf.xlu0
      %v7581 = vpop.trf.xlu0
      %v7582 = vpop.trf.xlu0
      %v7583 = vpop.trf.xlu0
      %v7584 = vpop.trf.xlu0
      %v7585 = vpop.trf.xlu0
      %v7586 = vpop.trf.xlu0
      %v7587 = vpop.trf.xlu0
      %7588 = vxpose.xlu0.b32.start [1/16] %v7540, 128
      %7589 = vxpose.xlu0.b32.cont [2/16] %v7541, 128
      %7590 = vxpose.xlu0.b32.cont [3/16] %v7542, 128
      %7591 = vxpose.xlu0.b32.cont [4/16] %v7543, 128
      %7592 = vxpose.xlu0.b32.cont [5/16] %v7544, 128
      %7593 = vxpose.xlu0.b32.cont [6/16] %v7545, 128
      %7594 = vxpose.xlu0.b32.cont [7/16] %v7546, 128
      %7595 = vxpose.xlu0.b32.cont [8/16] %v7547, 128
      %7596 = vxpose.xlu0.b32.cont [9/16] %v7548, 128
      %7597 = vxpose.xlu0.b32.cont [10/16] %v7549, 128
      %7598 = vxpose.xlu0.b32.cont [11/16] %v7550, 128
      %7599 = vxpose.xlu0.b32.cont [12/16] %v7551, 128
      %7600 = vxpose.xlu0.b32.cont [13/16] %v7552, 128
      %7601 = vxpose.xlu0.b32.cont [14/16] %v7553, 128
      %7602 = vxpose.xlu0.b32.cont [15/16] %v7554, 128
      %7603 = vxpose.xlu0.b32.end [16/16] %v7555, 128
      %v7604 = vpop.trf.xlu0
      %v7605 = vpop.trf.xlu0
      %v7606 = vpop.trf.xlu0
      %v7607 = vpop.trf.xlu0
      %v7608 = vpop.trf.xlu0
      %v7609 = vpop.trf.xlu0
      %v7610 = vpop.trf.xlu0
      %v7611 = vpop.trf.xlu0
      %v7612 = vpop.trf.xlu0
      %v7613 = vpop.trf.xlu0
      %v7614 = vpop.trf.xlu0
      %v7615 = vpop.trf.xlu0
      %v7616 = vpop.trf.xlu0
      %v7617 = vpop.trf.xlu0
      %v7618 = vpop.trf.xlu0
      %v7619 = vpop.trf.xlu0
      %7620 = vst [vmem:[%s381] sm:$0xff] %v7572
      %7621 = vst [vmem:[%s381 + $0x8] sm:$0xff] %v7604
      %7622 = vst [vmem:[%s381 + $0x10] sm:$0xff] %v7573
      %7623 = vst [vmem:[%s381 + $0x18] sm:$0xff] %v7605
      %7624 = vst [vmem:[%s381 + $0x20] sm:$0xff] %v7574
      %7625 = vst [vmem:[%s381 + $0x28] sm:$0xff] %v7606
      %7626 = vst [vmem:[%s381 + $0x30] sm:$0xff] %v7575
      %7627 = vst [vmem:[%s381 + $0x38] sm:$0xff] %v7607
      %s7628 = smul.u32 2, %s26
      %p7629 = scmp.lt.s32.totalorder %s25, 1
      %s7630 = scalar_select %p7629, %s25, 1
      %p7631 = scmp.lt.s32.totalorder %s7628, 1
      %s7632 = scalar_select %p7631, %s7628, 1
      %s7633 = smul.addr %s7630, 8
      %s7634 = sadd.s32 %s7632, %s7633
      %s7635 = smul.addr %s7634, 8
      %s7636 = scalar_lea.vmem %s10, %s7635
      // Predicated region
      $region61: #{convnext_block.1} parent=59 // pred_check
        %p7637 = pneg %p268
      $region62: #{convnext_block.1} parent=59 // pred_check_branch
        %7639 = sbr.rel (%p7637) target = $region64
      $region63: #{convnext_block.1} parent=59 // pred_region
        %s7640 = smul.u32 2, %s26
      $region64: #{convnext_block.1} parent=59 // pred_fallthru
        _
    $region60: #{convnext_block.1} parent=5 // pred_fallthru
      _
    %p7641 = scmp.le.s32.totalorder 2, %s16
    // Predicated region
    $region65: #{convnext_block.1} parent=5 // pred_check
      %p7642 = pneg %p7641
    $region66: #{convnext_block.1} parent=5 // pred_check_branch
      %7644 = sbr.rel (%p7642) target = $region68
    $region67: #{convnext_block.1} parent=5 // pred_region
      %s7645 = ssub.s32 %s16, 2
      // Predicated region
      $region69: #{convnext_block.1} parent=67 // pred_check
        %p7646 = pneg %p274
      $region70: #{convnext_block.1} parent=67 // pred_check_branch
        %7648 = sbr.rel (%p7646) target = $region72
      $region71: #{convnext_block.1} parent=67 // pred_region
        %s7649 = smul.u32 2, %s28
        %p7650 = scmp.lt.s32.totalorder %s27, 1
        %s7651 = scalar_select %p7650, %s27, 1
        %p7652 = scmp.lt.s32.totalorder %s7649, 1
        %s7653 = scalar_select %p7652, %s7649, 1
        %s7654 = smul.addr %s7651, 8
        %s7655 = sadd.s32 %s7653, %s7654
        %s7656 = smul.addr %s7655, 8
        %s7657 = scalar_lea.vmem %s10, %s7656
      $region72: #{convnext_block.1} parent=67 // pred_fallthru
        _
    $region68: #{convnext_block.1} parent=5 // pred_fallthru
      _
  $region6: #{convnext_block.1} parent=0 // loop_footer
    %s20 = sadd.s32 1, %s16
  $region7: #{convnext_block.1} parent=0 // loop_footer_branch
    %15 = sbr.rel target = $region3
  $region8: #{convnext_block.1} parent=0 // loop_exit
    _

</llo_original>
